<compile_context>
chip_gen: v5e
topology: v5e:2x2
jax: 0.10.0
libtpu: 0.0.40
codegen_flags: <defaults>
</compile_context>

<pallas_src>
import functools

import jax
import jax.numpy as jnp
from jax import lax
from jax.experimental import pallas as pl
from jax.experimental.pallas import tpu as pltpu


# --------------------------------------------------------------------------
# Fused conv(KxK, valid) + bias + ReLU + 2x2/2 maxpool kernel (one image/step)
# --------------------------------------------------------------------------

def _conv_relu_pool_kernel(xr_ref, w_ref, b_ref, o_ref, xu_ref, patch_ref, *,
                           K, Cin, Cout, H, Hp, Wp):
    # xr_ref : (1, H, W//2, 2*Cin)   width-pair-folded NHWC input
    # w_ref  : (K*K*Cin, 128)        weight, rows ordered (kh, kw, ci), Cout padded
    # b_ref  : (1, 128)              bias (zero padded)
    # o_ref  : (1, Hp, Wp, Cout)     pooled NHWC output
    # xu_ref : VMEM (H, Wp, (K+1)*Cin) scratch: xu[h, wp, j*Cin+ci] = X[h, 2wp+j, ci]
    # patch_ref: VMEM (4, Wp, K*K*Cin) scratch: the 4 pooling-offset patch matrices
    KC = K * Cin

    # ---- stage 1: fold the K+1 width offsets (stride 2) onto the lane axis ----
    def build_row(h, carry):
        for j in range(K + 1):                    # j = dw + kw  (0..K)
            u0, par = j // 2, j % 2
            xu_ref[h, :, j * Cin:(j + 1) * Cin] = (
                xr_ref[0, h, u0:u0 + Wp, par * Cin:(par + 1) * Cin])
        return carry

    lax.fori_loop(0, H, build_row, 0)

    # ---- stage 2: one pooled output row per iteration ----
    # pooled[hp, wp, :] = relu(max_{dh,dw in {0,1}} conv(2hp+dh, 2wp+dw, :))
    def pooled_row(hp, carry):
        r0 = 2 * hp
        # assemble the four (Wp, K*K*Cin) patch matrices in VMEM (contiguous
        # lane-slices of xu only -- no strided access, no concatenate).
        for dh in range(2):
            for dw in range(2):
                for kh in range(K):
                    patch_ref[2 * dh + dw, :, kh * KC:(kh + 1) * KC] = (
                        xu_ref[r0 + dh + kh, :, dw * Cin:dw * Cin + KC])
        # 4 lane-dense MXU matmuls, max-reduced => fused ReLU+maxpool epilogue.
        acc = jnp.dot(patch_ref[0], w_ref[...], preferred_element_type=jnp.float32)
        for idx in range(1, 4):
            acc = jnp.maximum(
                acc,
                jnp.dot(patch_ref[idx], w_ref[...],
                        preferred_element_type=jnp.float32))
        acc = jnp.maximum(acc + b_ref[...], 0.0)          # bias + ReLU (post-max ok)
        o_ref[0, hp, :, :] = acc[:, :Cout].astype(o_ref.dtype)
        return carry

    lax.fori_loop(0, Hp, pooled_row, 0)


def conv_relu_pool(xr, w_mat, bias, *, K, Cin, Cout):
    """Fused valid KxK conv + bias + ReLU + 2x2/2 maxpool.

    xr    : (B, H, W//2, 2*Cin)  -- free reshape of the NHWC input.
    w_mat : (K*K*Cin, 128)       -- (kh, kw, ci)-ordered, Cout zero-padded to 128.
    bias  : (1, 128)
    returns (B, Hp, Wp, Cout) pooled NHWC activations.
    """
    B, H, W2, C2 = xr.shape
    assert C2 == 2 * Cin
    Ho, Wo = H - K + 1, 2 * W2 - K + 1
    Hp, Wp = Ho // 2, Wo // 2
    kernel = functools.partial(_conv_relu_pool_kernel, K=K, Cin=Cin, Cout=Cout,
                               H=H, Hp=Hp, Wp=Wp)
    return pl.pallas_call(
        kernel,
        out_shape=jax.ShapeDtypeStruct((B, Hp, Wp, Cout), jnp.float32),
        grid=(B,),
        in_specs=[
            pl.BlockSpec((1, H, W2, C2), lambda b: (b, 0, 0, 0)),
            pl.BlockSpec(w_mat.shape, lambda b: (0, 0)),
            pl.BlockSpec(bias.shape, lambda b: (0, 0)),
        ],
        out_specs=pl.BlockSpec((1, Hp, Wp, Cout), lambda b: (b, 0, 0, 0)),
        scratch_shapes=[
            pltpu.VMEM((H, Wp, (K + 1) * Cin), jnp.float32),   # width-unrolled rows
            pltpu.VMEM((4, Wp, K * K * Cin), jnp.float32),     # 4 pooling-offset patches
        ],
        compiler_params=pltpu.CompilerParams(dimension_semantics=("parallel",)),
    )(xr, w_mat, bias)


# --------------------------------------------------------------------------
# Fused fc1 + ReLU + fc2 + ReLU + fc3 kernel (single call, all weights in VMEM)
# --------------------------------------------------------------------------

def _fc_stack_kernel(x_ref, w1_ref, b1_ref, w2_ref, b2_ref, w3_ref, b3_ref, o_ref):
    h = jnp.dot(x_ref[...], w1_ref[...], preferred_element_type=jnp.float32)
    h = jnp.maximum(h + b1_ref[...], 0.0)
    h = jnp.dot(h, w2_ref[...], preferred_element_type=jnp.float32)
    h = jnp.maximum(h + b2_ref[...], 0.0)
    o = jnp.dot(h, w3_ref[...], preferred_element_type=jnp.float32) + b3_ref[...]
    o_ref[...] = o.astype(o_ref.dtype)


def fc_stack(x, w1, b1, w2, b2, w3, b3):
    B = x.shape[0]
    N = w3.shape[1]
    return pl.pallas_call(
        _fc_stack_kernel,
        out_shape=jax.ShapeDtypeStruct((B, N), jnp.float32),
        grid=(1,),
        in_specs=[
            pl.BlockSpec(x.shape, lambda i: (0, 0)),
            pl.BlockSpec(w1.shape, lambda i: (0, 0)),
            pl.BlockSpec(b1.shape, lambda i: (0, 0)),
            pl.BlockSpec(w2.shape, lambda i: (0, 0)),
            pl.BlockSpec(b2.shape, lambda i: (0, 0)),
            pl.BlockSpec(w3.shape, lambda i: (0, 0)),
            pl.BlockSpec(b3.shape, lambda i: (0, 0)),
        ],
        out_specs=pl.BlockSpec((B, N), lambda i: (0, 0)),
        compiler_params=pltpu.CompilerParams(dimension_semantics=("arbitrary",)),
    )(x, w1, b1, w2, b2, w3, b3)


# --------------------------------------------------------------------------
# Parameters (PyTorch conventions) and one-time layout preparation
# --------------------------------------------------------------------------

def init_params(key):
    # Deterministic synthetic weights in PyTorch shape conventions
    # (Conv2d: (Cout, Cin, KH, KW); Linear: (out, in)).
    ks = jax.random.split(key, 10)
    s = 0.05
    p = {}
    p["conv1_w"] = jax.random.normal(ks[0], (16, 3, 5, 5), jnp.float32) * s
    p["conv1_b"] = jax.random.normal(ks[1], (16,), jnp.float32) * s
    p["conv2_w"] = jax.random.normal(ks[2], (32, 16, 5, 5), jnp.float32) * s
    p["conv2_b"] = jax.random.normal(ks[3], (32,), jnp.float32) * s
    p["fc1_w"] = jax.random.normal(ks[4], (64, 17 * 17 * 32), jnp.float32) * s
    p["fc1_b"] = jax.random.normal(ks[5], (64,), jnp.float32) * s
    p["fc2_w"] = jax.random.normal(ks[6], (16, 64), jnp.float32) * s
    p["fc2_b"] = jax.random.normal(ks[7], (16,), jnp.float32) * s
    p["fc3_w"] = jax.random.normal(ks[8], (2, 16), jnp.float32) * s
    p["fc3_b"] = jax.random.normal(ks[9], (2,), jnp.float32) * s
    return p


def prepare_params(p):
    """One-time weight-layout prep, done OUTSIDE the jitted forward pass."""
    def conv_mat(w, b, cin, cout):
        # (Cout,Cin,KH,KW) -> (KH*KW*Cin, Cout), lane-padded to 128 outputs.
        m = jnp.transpose(w, (2, 3, 1, 0)).reshape(5 * 5 * cin, cout)
        m = jnp.pad(m, ((0, 0), (0, 128 - cout)))
        bb = jnp.pad(b, (0, 128 - cout)).reshape(1, 128)
        return m, bb

    w1, b1 = conv_mat(p["conv1_w"], p["conv1_b"], 3, 16)
    w2, b2 = conv_mat(p["conv2_w"], p["conv2_b"], 16, 32)
    # fc1 columns are ordered for torch's NCHW flatten (c*289 + h*17 + w);
    # permute them once to the NHWC flatten order ((h*17 + w)*32 + c) so the
    # activation flatten in the forward pass is a free reshape.
    fc1 = (p["fc1_w"].reshape(64, 32, 17, 17)
           .transpose(2, 3, 1, 0).reshape(17 * 17 * 32, 64))
    return {
        "w1": w1, "b1": b1, "w2": w2, "b2": b2,
        "fc1_w": fc1, "fc1_b": p["fc1_b"].reshape(1, 64),
        "fc2_w": p["fc2_w"].T, "fc2_b": p["fc2_b"].reshape(1, 16),
        "fc3_w": p["fc3_w"].T, "fc3_b": p["fc3_b"].reshape(1, 2),
    }


# --------------------------------------------------------------------------
# Forward pass
# --------------------------------------------------------------------------

def net_forward(x_nchw, prep):
    B = x_nchw.shape[0]
    x = jnp.transpose(x_nchw, (0, 2, 3, 1))              # NCHW -> NHWC (tiny, 150 KB)
    xr = x.reshape(B, 80, 40, 6)                         # free: fold width pairs on lanes

    y1 = conv_relu_pool(xr, prep["w1"], prep["b1"],
                        K=5, Cin=3, Cout=16)             # (B, 38, 38, 16)
    y2 = conv_relu_pool(y1.reshape(B, 38, 19, 32), prep["w2"], prep["b2"],
                        K=5, Cin=16, Cout=32)            # (B, 17, 17, 32)

    flat = y2.reshape(B, 17 * 17 * 32)                   # free NHWC flatten
    return fc_stack(flat, prep["fc1_w"], prep["fc1_b"],
                    prep["fc2_w"], prep["fc2_b"],
                    prep["fc3_w"], prep["fc3_b"])        # (B, 2)


if __name__ == "__main__":
    key = jax.random.PRNGKey(0)
    kx, kp = jax.random.split(key)
    # Spatial size 80x80 / 3 channels is forced by the module (fc1 = 17*17*32).
    x = jax.random.normal(kx, (2, 3, 80, 80), jnp.float32)   # NCHW, like PyTorch
    params = init_params(kp)
    prep = prepare_params(params)        # one-time weight layout prep (outside jit)

    fwd = jax.jit(net_forward)
    out = fwd(x, prep)
    jax.block_until_ready(out)
    assert out.shape == (2, 2) and out.dtype == jnp.float32
    print("KERNEL_OK")
</pallas_src>

<mosaic_0001>
module attributes {stable_mosaic.version = 11 : i64} {
  func.func @_conv_relu_pool_kernel(%arg0: i32, %arg1: memref<1x80x40x6xf32, #tpu.memory_space<vmem>>, %arg2: memref<75x128xf32, #tpu.memory_space<vmem>>, %arg3: memref<1x128xf32, #tpu.memory_space<vmem>>, %arg4: memref<1x38x38x16xf32, #tpu.memory_space<vmem>>, %arg5: memref<80x38x18xf32, #tpu.memory_space<vmem>>, %arg6: memref<4x38x75xf32, #tpu.memory_space<vmem>>) attributes {dimension_semantics = [#tpu.dimension_semantics<parallel>], iteration_bounds = array<i64: 2>, scalar_prefetch = 0 : i64, scratch_operands = 2 : i64, tpu.core_type = #tpu.core_type<tc>, window_params = [{transform_indices = @transform_0, window_bounds = array<i64: 1, 80, 40, 6>}, {pipeline_mode = #tpu.pipeline_mode<synchronous>, transform_indices = @transform_1, window_bounds = array<i64: 75, 128>}, {pipeline_mode = #tpu.pipeline_mode<synchronous>, transform_indices = @transform_2, window_bounds = array<i64: 1, 128>}, {transform_indices = @transform_3, window_bounds = array<i64: 1, 38, 38, 16>}]} {
    %c0_i32 = arith.constant 0 : i32
    %c80_i32 = arith.constant 80 : i32
    %0 = arith.addi %c0_i32, %c80_i32 : i32
    %c1_i32 = arith.constant 1 : i32
    scf.for %arg7 = %c0_i32 to %0 step %c1_i32  : i32 {
      %c0 = arith.constant 0 : index
      %2 = arith.index_cast %arg7 : i32 to index
      %c0_4 = arith.constant 0 : index
      %c0_5 = arith.constant 0 : index
      %3 = vector.load %arg1[%c0, %2, %c0_4, %c0_5] : memref<1x80x40x6xf32, #tpu.memory_space<vmem>>, vector<1x1x38x3xf32>
      %4 = vector.shape_cast %3 : vector<1x1x38x3xf32> to vector<38x3xf32>
      %5 = arith.index_cast %arg7 : i32 to index
      %c0_6 = arith.constant 0 : index
      %c0_7 = arith.constant 0 : index
      %6 = vector.load %arg5[%5, %c0_6, %c0_7] : memref<80x38x18xf32, #tpu.memory_space<vmem>>, vector<1x38x3xf32>
      %7 = vector.shape_cast %6 : vector<1x38x3xf32> to vector<38x3xf32>
      %8 = vector.shape_cast %4 : vector<38x3xf32> to vector<1x38x3xf32>
      tpu.vector_store %arg5[%5, %c0_6, %c0_7], %8 {strides = array<i32>} : memref<80x38x18xf32, #tpu.memory_space<vmem>>, vector<1x38x3xf32>,
      %c0_8 = arith.constant 0 : index
      %9 = arith.index_cast %arg7 : i32 to index
      %c0_9 = arith.constant 0 : index
      %c3 = arith.constant 3 : index
      %10 = vector.load %arg1[%c0_8, %9, %c0_9, %c3] : memref<1x80x40x6xf32, #tpu.memory_space<vmem>>, vector<1x1x38x3xf32>
      %11 = vector.shape_cast %10 : vector<1x1x38x3xf32> to vector<38x3xf32>
      %12 = arith.index_cast %arg7 : i32 to index
      %c0_10 = arith.constant 0 : index
      %c3_11 = arith.constant 3 : index
      %13 = vector.load %arg5[%12, %c0_10, %c3_11] : memref<80x38x18xf32, #tpu.memory_space<vmem>>, vector<1x38x3xf32>
      %14 = vector.shape_cast %13 : vector<1x38x3xf32> to vector<38x3xf32>
      %15 = vector.shape_cast %11 : vector<38x3xf32> to vector<1x38x3xf32>
      tpu.vector_store %arg5[%12, %c0_10, %c3_11], %15 {strides = array<i32>} : memref<80x38x18xf32, #tpu.memory_space<vmem>>, vector<1x38x3xf32>,
      %c0_12 = arith.constant 0 : index
      %16 = arith.index_cast %arg7 : i32 to index
      %c1 = arith.constant 1 : index
      %c0_13 = arith.constant 0 : index
      %17 = vector.load %arg1[%c0_12, %16, %c1, %c0_13] : memref<1x80x40x6xf32, #tpu.memory_space<vmem>>, vector<1x1x38x3xf32>
      %18 = vector.shape_cast %17 : vector<1x1x38x3xf32> to vector<38x3xf32>
      %19 = arith.index_cast %arg7 : i32 to index
      %c0_14 = arith.constant 0 : index
      %c6 = arith.constant 6 : index
      %20 = vector.load %arg5[%19, %c0_14, %c6] : memref<80x38x18xf32, #tpu.memory_space<vmem>>, vector<1x38x3xf32>
      %21 = vector.shape_cast %20 : vector<1x38x3xf32> to vector<38x3xf32>
      %22 = vector.shape_cast %18 : vector<38x3xf32> to vector<1x38x3xf32>
      tpu.vector_store %arg5[%19, %c0_14, %c6], %22 {strides = array<i32>} : memref<80x38x18xf32, #tpu.memory_space<vmem>>, vector<1x38x3xf32>,
      %c0_15 = arith.constant 0 : index
      %23 = arith.index_cast %arg7 : i32 to index
      %c1_16 = arith.constant 1 : index
      %c3_17 = arith.constant 3 : index
      %24 = vector.load %arg1[%c0_15, %23, %c1_16, %c3_17] : memref<1x80x40x6xf32, #tpu.memory_space<vmem>>, vector<1x1x38x3xf32>
      %25 = vector.shape_cast %24 : vector<1x1x38x3xf32> to vector<38x3xf32>
      %26 = arith.index_cast %arg7 : i32 to index
      %c0_18 = arith.constant 0 : index
      %c9 = arith.constant 9 : index
      %27 = vector.load %arg5[%26, %c0_18, %c9] : memref<80x38x18xf32, #tpu.memory_space<vmem>>, vector<1x38x3xf32>
      %28 = vector.shape_cast %27 : vector<1x38x3xf32> to vector<38x3xf32>
      %29 = vector.shape_cast %25 : vector<38x3xf32> to vector<1x38x3xf32>
      tpu.vector_store %arg5[%26, %c0_18, %c9], %29 {strides = array<i32>} : memref<80x38x18xf32, #tpu.memory_space<vmem>>, vector<1x38x3xf32>,
      %c0_19 = arith.constant 0 : index
      %30 = arith.index_cast %arg7 : i32 to index
      %c2 = arith.constant 2 : index
      %c0_20 = arith.constant 0 : index
      %31 = vector.load %arg1[%c0_19, %30, %c2, %c0_20] : memref<1x80x40x6xf32, #tpu.memory_space<vmem>>, vector<1x1x38x3xf32>
      %32 = vector.shape_cast %31 : vector<1x1x38x3xf32> to vector<38x3xf32>
      %33 = arith.index_cast %arg7 : i32 to index
      %c0_21 = arith.constant 0 : index
      %c12 = arith.constant 12 : index
      %34 = vector.load %arg5[%33, %c0_21, %c12] : memref<80x38x18xf32, #tpu.memory_space<vmem>>, vector<1x38x3xf32>
      %35 = vector.shape_cast %34 : vector<1x38x3xf32> to vector<38x3xf32>
      %36 = vector.shape_cast %32 : vector<38x3xf32> to vector<1x38x3xf32>
      tpu.vector_store %arg5[%33, %c0_21, %c12], %36 {strides = array<i32>} : memref<80x38x18xf32, #tpu.memory_space<vmem>>, vector<1x38x3xf32>,
      %c0_22 = arith.constant 0 : index
      %37 = arith.index_cast %arg7 : i32 to index
      %c2_23 = arith.constant 2 : index
      %c3_24 = arith.constant 3 : index
      %38 = vector.load %arg1[%c0_22, %37, %c2_23, %c3_24] : memref<1x80x40x6xf32, #tpu.memory_space<vmem>>, vector<1x1x38x3xf32>
      %39 = vector.shape_cast %38 : vector<1x1x38x3xf32> to vector<38x3xf32>
      %40 = arith.index_cast %arg7 : i32 to index
      %c0_25 = arith.constant 0 : index
      %c15 = arith.constant 15 : index
      %41 = vector.load %arg5[%40, %c0_25, %c15] : memref<80x38x18xf32, #tpu.memory_space<vmem>>, vector<1x38x3xf32>
      %42 = vector.shape_cast %41 : vector<1x38x3xf32> to vector<38x3xf32>
      %43 = vector.shape_cast %39 : vector<38x3xf32> to vector<1x38x3xf32>
      tpu.vector_store %arg5[%40, %c0_25, %c15], %43 {strides = array<i32>} : memref<80x38x18xf32, #tpu.memory_space<vmem>>, vector<1x38x3xf32>,
    }
    %c80_i32_0 = arith.constant 80 : i32
    %c0_i32_1 = arith.constant 0 : i32
    %c38_i32 = arith.constant 38 : i32
    %1 = arith.addi %c0_i32_1, %c38_i32 : i32
    %c1_i32_2 = arith.constant 1 : i32
    scf.for %arg7 = %c0_i32_1 to %1 step %c1_i32_2  : i32 {
      %c2_i32 = arith.constant 2 : i32
      %2 = arith.muli %c2_i32, %arg7 : i32
      %c0_i32_4 = arith.constant 0 : i32
      %3 = arith.addi %2, %c0_i32_4 : i32
      %c0_i32_5 = arith.constant 0 : i32
      %4 = arith.addi %3, %c0_i32_5 : i32
      %5 = arith.index_cast %4 : i32 to index
      %c0 = arith.constant 0 : index
      %c0_6 = arith.constant 0 : index
      %6 = vector.load %arg5[%5, %c0, %c0_6] : memref<80x38x18xf32, #tpu.memory_space<vmem>>, vector<1x38x15xf32>
      %7 = vector.shape_cast %6 : vector<1x38x15xf32> to vector<38x15xf32>
      %c0_7 = arith.constant 0 : index
      %c0_8 = arith.constant 0 : index
      %c0_9 = arith.constant 0 : index
      %8 = vector.load %arg6[%c0_7, %c0_8, %c0_9] : memref<4x38x75xf32, #tpu.memory_space<vmem>>, vector<1x38x15xf32>
      %9 = vector.shape_cast %8 : vector<1x38x15xf32> to vector<38x15xf32>
      %10 = vector.shape_cast %7 : vector<38x15xf32> to vector<1x38x15xf32>
      tpu.vector_store %arg6[%c0_7, %c0_8, %c0_9], %10 {strides = array<i32>} : memref<4x38x75xf32, #tpu.memory_space<vmem>>, vector<1x38x15xf32>,
      %c0_i32_10 = arith.constant 0 : i32
      %11 = arith.addi %2, %c0_i32_10 : i32
      %c1_i32_11 = arith.constant 1 : i32
      %12 = arith.addi %11, %c1_i32_11 : i32
      %13 = arith.index_cast %12 : i32 to index
      %c0_12 = arith.constant 0 : index
      %c0_13 = arith.constant 0 : index
      %14 = vector.load %arg5[%13, %c0_12, %c0_13] : memref<80x38x18xf32, #tpu.memory_space<vmem>>, vector<1x38x15xf32>
      %15 = vector.shape_cast %14 : vector<1x38x15xf32> to vector<38x15xf32>
      %c0_14 = arith.constant 0 : index
      %c0_15 = arith.constant 0 : index
      %c15 = arith.constant 15 : index
      %16 = vector.load %arg6[%c0_14, %c0_15, %c15] : memref<4x38x75xf32, #tpu.memory_space<vmem>>, vector<1x38x15xf32>
      %17 = vector.shape_cast %16 : vector<1x38x15xf32> to vector<38x15xf32>
      %18 = vector.shape_cast %15 : vector<38x15xf32> to vector<1x38x15xf32>
      tpu.vector_store %arg6[%c0_14, %c0_15, %c15], %18 {strides = array<i32>} : memref<4x38x75xf32, #tpu.memory_space<vmem>>, vector<1x38x15xf32>,
      %c0_i32_16 = arith.constant 0 : i32
      %19 = arith.addi %2, %c0_i32_16 : i32
      %c2_i32_17 = arith.constant 2 : i32
      %20 = arith.addi %19, %c2_i32_17 : i32
      %21 = arith.index_cast %20 : i32 to index
      %c0_18 = arith.constant 0 : index
      %c0_19 = arith.constant 0 : index
      %22 = vector.load %arg5[%21, %c0_18, %c0_19] : memref<80x38x18xf32, #tpu.memory_space<vmem>>, vector<1x38x15xf32>
      %23 = vector.shape_cast %22 : vector<1x38x15xf32> to vector<38x15xf32>
      %c0_20 = arith.constant 0 : index
      %c0_21 = arith.constant 0 : index
      %c30 = arith.constant 30 : index
      %24 = vector.load %arg6[%c0_20, %c0_21, %c30] : memref<4x38x75xf32, #tpu.memory_space<vmem>>, vector<1x38x15xf32>
      %25 = vector.shape_cast %24 : vector<1x38x15xf32> to vector<38x15xf32>
      %26 = vector.shape_cast %23 : vector<38x15xf32> to vector<1x38x15xf32>
      tpu.vector_store %arg6[%c0_20, %c0_21, %c30], %26 {strides = array<i32>} : memref<4x38x75xf32, #tpu.memory_space<vmem>>, vector<1x38x15xf32>,
      %c0_i32_22 = arith.constant 0 : i32
      %27 = arith.addi %2, %c0_i32_22 : i32
      %c3_i32 = arith.constant 3 : i32
      %28 = arith.addi %27, %c3_i32 : i32
      %29 = arith.index_cast %28 : i32 to index
      %c0_23 = arith.constant 0 : index
      %c0_24 = arith.constant 0 : index
      %30 = vector.load %arg5[%29, %c0_23, %c0_24] : memref<80x38x18xf32, #tpu.memory_space<vmem>>, vector<1x38x15xf32>
      %31 = vector.shape_cast %30 : vector<1x38x15xf32> to vector<38x15xf32>
      %c0_25 = arith.constant 0 : index
      %c0_26 = arith.constant 0 : index
      %c45 = arith.constant 45 : index
      %32 = vector.load %arg6[%c0_25, %c0_26, %c45] : memref<4x38x75xf32, #tpu.memory_space<vmem>>, vector<1x38x15xf32>
      %33 = vector.shape_cast %32 : vector<1x38x15xf32> to vector<38x15xf32>
      %34 = vector.shape_cast %31 : vector<38x15xf32> to vector<1x38x15xf32>
      tpu.vector_store %arg6[%c0_25, %c0_26, %c45], %34 {strides = array<i32>} : memref<4x38x75xf32, #tpu.memory_space<vmem>>, vector<1x38x15xf32>,
      %c0_i32_27 = arith.constant 0 : i32
      %35 = arith.addi %2, %c0_i32_27 : i32
      %c4_i32 = arith.constant 4 : i32
      %36 = arith.addi %35, %c4_i32 : i32
      %37 = arith.index_cast %36 : i32 to index
      %c0_28 = arith.constant 0 : index
      %c0_29 = arith.constant 0 : index
      %38 = vector.load %arg5[%37, %c0_28, %c0_29] : memref<80x38x18xf32, #tpu.memory_space<vmem>>, vector<1x38x15xf32>
      %39 = vector.shape_cast %38 : vector<1x38x15xf32> to vector<38x15xf32>
      %c0_30 = arith.constant 0 : index
      %c0_31 = arith.constant 0 : index
      %c60 = arith.constant 60 : index
      %40 = vector.load %arg6[%c0_30, %c0_31, %c60] : memref<4x38x75xf32, #tpu.memory_space<vmem>>, vector<1x38x15xf32>
      %41 = vector.shape_cast %40 : vector<1x38x15xf32> to vector<38x15xf32>
      %42 = vector.shape_cast %39 : vector<38x15xf32> to vector<1x38x15xf32>
      tpu.vector_store %arg6[%c0_30, %c0_31, %c60], %42 {strides = array<i32>} : memref<4x38x75xf32, #tpu.memory_space<vmem>>, vector<1x38x15xf32>,
      %c0_i32_32 = arith.constant 0 : i32
      %43 = arith.addi %2, %c0_i32_32 : i32
      %c0_i32_33 = arith.constant 0 : i32
      %44 = arith.addi %43, %c0_i32_33 : i32
      %45 = arith.index_cast %44 : i32 to index
      %c0_34 = arith.constant 0 : index
      %c3 = arith.constant 3 : index
      %46 = vector.load %arg5[%45, %c0_34, %c3] : memref<80x38x18xf32, #tpu.memory_space<vmem>>, vector<1x38x15xf32>
      %47 = vector.shape_cast %46 : vector<1x38x15xf32> to vector<38x15xf32>
      %c1 = arith.constant 1 : index
      %c0_35 = arith.constant 0 : index
      %c0_36 = arith.constant 0 : index
      %48 = vector.load %arg6[%c1, %c0_35, %c0_36] : memref<4x38x75xf32, #tpu.memory_space<vmem>>, vector<1x38x15xf32>
      %49 = vector.shape_cast %48 : vector<1x38x15xf32> to vector<38x15xf32>
      %50 = vector.shape_cast %47 : vector<38x15xf32> to vector<1x38x15xf32>
      tpu.vector_store %arg6[%c1, %c0_35, %c0_36], %50 {strides = array<i32>} : memref<4x38x75xf32, #tpu.memory_space<vmem>>, vector<1x38x15xf32>,
      %c0_i32_37 = arith.constant 0 : i32
      %51 = arith.addi %2, %c0_i32_37 : i32
      %c1_i32_38 = arith.constant 1 : i32
      %52 = arith.addi %51, %c1_i32_38 : i32
      %53 = arith.index_cast %52 : i32 to index
      %c0_39 = arith.constant 0 : index
      %c3_40 = arith.constant 3 : index
      %54 = vector.load %arg5[%53, %c0_39, %c3_40] : memref<80x38x18xf32, #tpu.memory_space<vmem>>, vector<1x38x15xf32>
      %55 = vector.shape_cast %54 : vector<1x38x15xf32> to vector<38x15xf32>
      %c1_41 = arith.constant 1 : index
      %c0_42 = arith.constant 0 : index
      %c15_43 = arith.constant 15 : index
      %56 = vector.load %arg6[%c1_41, %c0_42, %c15_43] : memref<4x38x75xf32, #tpu.memory_space<vmem>>, vector<1x38x15xf32>
      %57 = vector.shape_cast %56 : vector<1x38x15xf32> to vector<38x15xf32>
      %58 = vector.shape_cast %55 : vector<38x15xf32> to vector<1x38x15xf32>
      tpu.vector_store %arg6[%c1_41, %c0_42, %c15_43], %58 {strides = array<i32>} : memref<4x38x75xf32, #tpu.memory_space<vmem>>, vector<1x38x15xf32>,
      %c0_i32_44 = arith.constant 0 : i32
      %59 = arith.addi %2, %c0_i32_44 : i32
      %c2_i32_45 = arith.constant 2 : i32
      %60 = arith.addi %59, %c2_i32_45 : i32
      %61 = arith.index_cast %60 : i32 to index
      %c0_46 = arith.constant 0 : index
      %c3_47 = arith.constant 3 : index
      %62 = vector.load %arg5[%61, %c0_46, %c3_47] : memref<80x38x18xf32, #tpu.memory_space<vmem>>, vector<1x38x15xf32>
      %63 = vector.shape_cast %62 : vector<1x38x15xf32> to vector<38x15xf32>
      %c1_48 = arith.constant 1 : index
      %c0_49 = arith.constant 0 : index
      %c30_50 = arith.constant 30 : index
      %64 = vector.load %arg6[%c1_48, %c0_49, %c30_50] : memref<4x38x75xf32, #tpu.memory_space<vmem>>, vector<1x38x15xf32>
      %65 = vector.shape_cast %64 : vector<1x38x15xf32> to vector<38x15xf32>
      %66 = vector.shape_cast %63 : vector<38x15xf32> to vector<1x38x15xf32>
      tpu.vector_store %arg6[%c1_48, %c0_49, %c30_50], %66 {strides = array<i32>} : memref<4x38x75xf32, #tpu.memory_space<vmem>>, vector<1x38x15xf32>,
      %c0_i32_51 = arith.constant 0 : i32
      %67 = arith.addi %2, %c0_i32_51 : i32
      %c3_i32_52 = arith.constant 3 : i32
      %68 = arith.addi %67, %c3_i32_52 : i32
      %69 = arith.index_cast %68 : i32 to index
      %c0_53 = arith.constant 0 : index
      %c3_54 = arith.constant 3 : index
      %70 = vector.load %arg5[%69, %c0_53, %c3_54] : memref<80x38x18xf32, #tpu.memory_space<vmem>>, vector<1x38x15xf32>
      %71 = vector.shape_cast %70 : vector<1x38x15xf32> to vector<38x15xf32>
      %c1_55 = arith.constant 1 : index
      %c0_56 = arith.constant 0 : index
      %c45_57 = arith.constant 45 : index
      %72 = vector.load %arg6[%c1_55, %c0_56, %c45_57] : memref<4x38x75xf32, #tpu.memory_space<vmem>>, vector<1x38x15xf32>
      %73 = vector.shape_cast %72 : vector<1x38x15xf32> to vector<38x15xf32>
      %74 = vector.shape_cast %71 : vector<38x15xf32> to vector<1x38x15xf32>
      tpu.vector_store %arg6[%c1_55, %c0_56, %c45_57], %74 {strides = array<i32>} : memref<4x38x75xf32, #tpu.memory_space<vmem>>, vector<1x38x15xf32>,
      %c0_i32_58 = arith.constant 0 : i32
      %75 = arith.addi %2, %c0_i32_58 : i32
      %c4_i32_59 = arith.constant 4 : i32
      %76 = arith.addi %75, %c4_i32_59 : i32
      %77 = arith.index_cast %76 : i32 to index
      %c0_60 = arith.constant 0 : index
      %c3_61 = arith.constant 3 : index
      %78 = vector.load %arg5[%77, %c0_60, %c3_61] : memref<80x38x18xf32, #tpu.memory_space<vmem>>, vector<1x38x15xf32>
      %79 = vector.shape_cast %78 : vector<1x38x15xf32> to vector<38x15xf32>
      %c1_62 = arith.constant 1 : index
      %c0_63 = arith.constant 0 : index
      %c60_64 = arith.constant 60 : index
      %80 = vector.load %arg6[%c1_62, %c0_63, %c60_64] : memref<4x38x75xf32, #tpu.memory_space<vmem>>, vector<1x38x15xf32>
      %81 = vector.shape_cast %80 : vector<1x38x15xf32> to vector<38x15xf32>
      %82 = vector.shape_cast %79 : vector<38x15xf32> to vector<1x38x15xf32>
      tpu.vector_store %arg6[%c1_62, %c0_63, %c60_64], %82 {strides = array<i32>} : memref<4x38x75xf32, #tpu.memory_space<vmem>>, vector<1x38x15xf32>,
      %c1_i32_65 = arith.constant 1 : i32
      %83 = arith.addi %2, %c1_i32_65 : i32
      %c0_i32_66 = arith.constant 0 : i32
      %84 = arith.addi %83, %c0_i32_66 : i32
      %85 = arith.index_cast %84 : i32 to index
      %c0_67 = arith.constant 0 : index
      %c0_68 = arith.constant 0 : index
      %86 = vector.load %arg5[%85, %c0_67, %c0_68] : memref<80x38x18xf32, #tpu.memory_space<vmem>>, vector<1x38x15xf32>
      %87 = vector.shape_cast %86 : vector<1x38x15xf32> to vector<38x15xf32>
      %c2 = arith.constant 2 : index
      %c0_69 = arith.constant 0 : index
      %c0_70 = arith.constant 0 : index
      %88 = vector.load %arg6[%c2, %c0_69, %c0_70] : memref<4x38x75xf32, #tpu.memory_space<vmem>>, vector<1x38x15xf32>
      %89 = vector.shape_cast %88 : vector<1x38x15xf32> to vector<38x15xf32>
      %90 = vector.shape_cast %87 : vector<38x15xf32> to vector<1x38x15xf32>
      tpu.vector_store %arg6[%c2, %c0_69, %c0_70], %90 {strides = array<i32>} : memref<4x38x75xf32, #tpu.memory_space<vmem>>, vector<1x38x15xf32>,
      %c1_i32_71 = arith.constant 1 : i32
      %91 = arith.addi %2, %c1_i32_71 : i32
      %c1_i32_72 = arith.constant 1 : i32
      %92 = arith.addi %91, %c1_i32_72 : i32
      %93 = arith.index_cast %92 : i32 to index
      %c0_73 = arith.constant 0 : index
      %c0_74 = arith.constant 0 : index
      %94 = vector.load %arg5[%93, %c0_73, %c0_74] : memref<80x38x18xf32, #tpu.memory_space<vmem>>, vector<1x38x15xf32>
      %95 = vector.shape_cast %94 : vector<1x38x15xf32> to vector<38x15xf32>
      %c2_75 = arith.constant 2 : index
      %c0_76 = arith.constant 0 : index
      %c15_77 = arith.constant 15 : index
      %96 = vector.load %arg6[%c2_75, %c0_76, %c15_77] : memref<4x38x75xf32, #tpu.memory_space<vmem>>, vector<1x38x15xf32>
      %97 = vector.shape_cast %96 : vector<1x38x15xf32> to vector<38x15xf32>
      %98 = vector.shape_cast %95 : vector<38x15xf32> to vector<1x38x15xf32>
      tpu.vector_store %arg6[%c2_75, %c0_76, %c15_77], %98 {strides = array<i32>} : memref<4x38x75xf32, #tpu.memory_space<vmem>>, vector<1x38x15xf32>,
      %c1_i32_78 = arith.constant 1 : i32
      %99 = arith.addi %2, %c1_i32_78 : i32
      %c2_i32_79 = arith.constant 2 : i32
      %100 = arith.addi %99, %c2_i32_79 : i32
      %101 = arith.index_cast %100 : i32 to index
      %c0_80 = arith.constant 0 : index
      %c0_81 = arith.constant 0 : index
      %102 = vector.load %arg5[%101, %c0_80, %c0_81] : memref<80x38x18xf32, #tpu.memory_space<vmem>>, vector<1x38x15xf32>
      %103 = vector.shape_cast %102 : vector<1x38x15xf32> to vector<38x15xf32>
      %c2_82 = arith.constant 2 : index
      %c0_83 = arith.constant 0 : index
      %c30_84 = arith.constant 30 : index
      %104 = vector.load %arg6[%c2_82, %c0_83, %c30_84] : memref<4x38x75xf32, #tpu.memory_space<vmem>>, vector<1x38x15xf32>
      %105 = vector.shape_cast %104 : vector<1x38x15xf32> to vector<38x15xf32>
      %106 = vector.shape_cast %103 : vector<38x15xf32> to vector<1x38x15xf32>
      tpu.vector_store %arg6[%c2_82, %c0_83, %c30_84], %106 {strides = array<i32>} : memref<4x38x75xf32, #tpu.memory_space<vmem>>, vector<1x38x15xf32>,
      %c1_i32_85 = arith.constant 1 : i32
      %107 = arith.addi %2, %c1_i32_85 : i32
      %c3_i32_86 = arith.constant 3 : i32
      %108 = arith.addi %107, %c3_i32_86 : i32
      %109 = arith.index_cast %108 : i32 to index
      %c0_87 = arith.constant 0 : index
      %c0_88 = arith.constant 0 : index
      %110 = vector.load %arg5[%109, %c0_87, %c0_88] : memref<80x38x18xf32, #tpu.memory_space<vmem>>, vector<1x38x15xf32>
      %111 = vector.shape_cast %110 : vector<1x38x15xf32> to vector<38x15xf32>
      %c2_89 = arith.constant 2 : index
      %c0_90 = arith.constant 0 : index
      %c45_91 = arith.constant 45 : index
      %112 = vector.load %arg6[%c2_89, %c0_90, %c45_91] : memref<4x38x75xf32, #tpu.memory_space<vmem>>, vector<1x38x15xf32>
      %113 = vector.shape_cast %112 : vector<1x38x15xf32> to vector<38x15xf32>
      %114 = vector.shape_cast %111 : vector<38x15xf32> to vector<1x38x15xf32>
      tpu.vector_store %arg6[%c2_89, %c0_90, %c45_91], %114 {strides = array<i32>} : memref<4x38x75xf32, #tpu.memory_space<vmem>>, vector<1x38x15xf32>,
      %c1_i32_92 = arith.constant 1 : i32
      %115 = arith.addi %2, %c1_i32_92 : i32
      %c4_i32_93 = arith.constant 4 : i32
      %116 = arith.addi %115, %c4_i32_93 : i32
      %117 = arith.index_cast %116 : i32 to index
      %c0_94 = arith.constant 0 : index
      %c0_95 = arith.constant 0 : index
      %118 = vector.load %arg5[%117, %c0_94, %c0_95] : memref<80x38x18xf32, #tpu.memory_space<vmem>>, vector<1x38x15xf32>
      %119 = vector.shape_cast %118 : vector<1x38x15xf32> to vector<38x15xf32>
      %c2_96 = arith.constant 2 : index
      %c0_97 = arith.constant 0 : index
      %c60_98 = arith.constant 60 : index
      %120 = vector.load %arg6[%c2_96, %c0_97, %c60_98] : memref<4x38x75xf32, #tpu.memory_space<vmem>>, vector<1x38x15xf32>
      %121 = vector.shape_cast %120 : vector<1x38x15xf32> to vector<38x15xf32>
      %122 = vector.shape_cast %119 : vector<38x15xf32> to vector<1x38x15xf32>
      tpu.vector_store %arg6[%c2_96, %c0_97, %c60_98], %122 {strides = array<i32>} : memref<4x38x75xf32, #tpu.memory_space<vmem>>, vector<1x38x15xf32>,
      %c1_i32_99 = arith.constant 1 : i32
      %123 = arith.addi %2, %c1_i32_99 : i32
      %c0_i32_100 = arith.constant 0 : i32
      %124 = arith.addi %123, %c0_i32_100 : i32
      %125 = arith.index_cast %124 : i32 to index
      %c0_101 = arith.constant 0 : index
      %c3_102 = arith.constant 3 : index
      %126 = vector.load %arg5[%125, %c0_101, %c3_102] : memref<80x38x18xf32, #tpu.memory_space<vmem>>, vector<1x38x15xf32>
      %127 = vector.shape_cast %126 : vector<1x38x15xf32> to vector<38x15xf32>
      %c3_103 = arith.constant 3 : index
      %c0_104 = arith.constant 0 : index
      %c0_105 = arith.constant 0 : index
      %128 = vector.load %arg6[%c3_103, %c0_104, %c0_105] : memref<4x38x75xf32, #tpu.memory_space<vmem>>, vector<1x38x15xf32>
      %129 = vector.shape_cast %128 : vector<1x38x15xf32> to vector<38x15xf32>
      %130 = vector.shape_cast %127 : vector<38x15xf32> to vector<1x38x15xf32>
      tpu.vector_store %arg6[%c3_103, %c0_104, %c0_105], %130 {strides = array<i32>} : memref<4x38x75xf32, #tpu.memory_space<vmem>>, vector<1x38x15xf32>,
      %c1_i32_106 = arith.constant 1 : i32
      %131 = arith.addi %2, %c1_i32_106 : i32
      %c1_i32_107 = arith.constant 1 : i32
      %132 = arith.addi %131, %c1_i32_107 : i32
      %133 = arith.index_cast %132 : i32 to index
      %c0_108 = arith.constant 0 : index
      %c3_109 = arith.constant 3 : index
      %134 = vector.load %arg5[%133, %c0_108, %c3_109] : memref<80x38x18xf32, #tpu.memory_space<vmem>>, vector<1x38x15xf32>
      %135 = vector.shape_cast %134 : vector<1x38x15xf32> to vector<38x15xf32>
      %c3_110 = arith.constant 3 : index
      %c0_111 = arith.constant 0 : index
      %c15_112 = arith.constant 15 : index
      %136 = vector.load %arg6[%c3_110, %c0_111, %c15_112] : memref<4x38x75xf32, #tpu.memory_space<vmem>>, vector<1x38x15xf32>
      %137 = vector.shape_cast %136 : vector<1x38x15xf32> to vector<38x15xf32>
      %138 = vector.shape_cast %135 : vector<38x15xf32> to vector<1x38x15xf32>
      tpu.vector_store %arg6[%c3_110, %c0_111, %c15_112], %138 {strides = array<i32>} : memref<4x38x75xf32, #tpu.memory_space<vmem>>, vector<1x38x15xf32>,
      %c1_i32_113 = arith.constant 1 : i32
      %139 = arith.addi %2, %c1_i32_113 : i32
      %c2_i32_114 = arith.constant 2 : i32
      %140 = arith.addi %139, %c2_i32_114 : i32
      %141 = arith.index_cast %140 : i32 to index
      %c0_115 = arith.constant 0 : index
      %c3_116 = arith.constant 3 : index
      %142 = vector.load %arg5[%141, %c0_115, %c3_116] : memref<80x38x18xf32, #tpu.memory_space<vmem>>, vector<1x38x15xf32>
      %143 = vector.shape_cast %142 : vector<1x38x15xf32> to vector<38x15xf32>
      %c3_117 = arith.constant 3 : index
      %c0_118 = arith.constant 0 : index
      %c30_119 = arith.constant 30 : index
      %144 = vector.load %arg6[%c3_117, %c0_118, %c30_119] : memref<4x38x75xf32, #tpu.memory_space<vmem>>, vector<1x38x15xf32>
      %145 = vector.shape_cast %144 : vector<1x38x15xf32> to vector<38x15xf32>
      %146 = vector.shape_cast %143 : vector<38x15xf32> to vector<1x38x15xf32>
      tpu.vector_store %arg6[%c3_117, %c0_118, %c30_119], %146 {strides = array<i32>} : memref<4x38x75xf32, #tpu.memory_space<vmem>>, vector<1x38x15xf32>,
      %c1_i32_120 = arith.constant 1 : i32
      %147 = arith.addi %2, %c1_i32_120 : i32
      %c3_i32_121 = arith.constant 3 : i32
      %148 = arith.addi %147, %c3_i32_121 : i32
      %149 = arith.index_cast %148 : i32 to index
      %c0_122 = arith.constant 0 : index
      %c3_123 = arith.constant 3 : index
      %150 = vector.load %arg5[%149, %c0_122, %c3_123] : memref<80x38x18xf32, #tpu.memory_space<vmem>>, vector<1x38x15xf32>
      %151 = vector.shape_cast %150 : vector<1x38x15xf32> to vector<38x15xf32>
      %c3_124 = arith.constant 3 : index
      %c0_125 = arith.constant 0 : index
      %c45_126 = arith.constant 45 : index
      %152 = vector.load %arg6[%c3_124, %c0_125, %c45_126] : memref<4x38x75xf32, #tpu.memory_space<vmem>>, vector<1x38x15xf32>
      %153 = vector.shape_cast %152 : vector<1x38x15xf32> to vector<38x15xf32>
      %154 = vector.shape_cast %151 : vector<38x15xf32> to vector<1x38x15xf32>
      tpu.vector_store %arg6[%c3_124, %c0_125, %c45_126], %154 {strides = array<i32>} : memref<4x38x75xf32, #tpu.memory_space<vmem>>, vector<1x38x15xf32>,
      %c1_i32_127 = arith.constant 1 : i32
      %155 = arith.addi %2, %c1_i32_127 : i32
      %c4_i32_128 = arith.constant 4 : i32
      %156 = arith.addi %155, %c4_i32_128 : i32
      %157 = arith.index_cast %156 : i32 to index
      %c0_129 = arith.constant 0 : index
      %c3_130 = arith.constant 3 : index
      %158 = vector.load %arg5[%157, %c0_129, %c3_130] : memref<80x38x18xf32, #tpu.memory_space<vmem>>, vector<1x38x15xf32>
      %159 = vector.shape_cast %158 : vector<1x38x15xf32> to vector<38x15xf32>
      %c3_131 = arith.constant 3 : index
      %c0_132 = arith.constant 0 : index
      %c60_133 = arith.constant 60 : index
      %160 = vector.load %arg6[%c3_131, %c0_132, %c60_133] : memref<4x38x75xf32, #tpu.memory_space<vmem>>, vector<1x38x15xf32>
      %161 = vector.shape_cast %160 : vector<1x38x15xf32> to vector<38x15xf32>
      %162 = vector.shape_cast %159 : vector<38x15xf32> to vector<1x38x15xf32>
      tpu.vector_store %arg6[%c3_131, %c0_132, %c60_133], %162 {strides = array<i32>} : memref<4x38x75xf32, #tpu.memory_space<vmem>>, vector<1x38x15xf32>,
      %c0_134 = arith.constant 0 : index
      %c0_135 = arith.constant 0 : index
      %c0_136 = arith.constant 0 : index
      %163 = vector.load %arg6[%c0_134, %c0_135, %c0_136] : memref<4x38x75xf32, #tpu.memory_space<vmem>>, vector<1x38x75xf32>
      %164 = vector.shape_cast %163 : vector<1x38x75xf32> to vector<38x75xf32>
      %c0_137 = arith.constant 0 : index
      %c0_138 = arith.constant 0 : index
      %165 = vector.load %arg2[%c0_137, %c0_138] : memref<75x128xf32, #tpu.memory_space<vmem>>, vector<75x128xf32>
      %cst = arith.constant dense<0.000000e+00> : vector<38x128xf32>
      %166 = tpu.matmul %164, %165, %cst {dimension_numbers = #tpu.dot_dimension_numbers<[1], [0], [0], [1], [0, 0, 1, 1], [], []>} : vector<38x75xf32>, vector<75x128xf32>, vector<38x128xf32> -> vector<38x128xf32>
      %c1_139 = arith.constant 1 : index
      %c0_140 = arith.constant 0 : index
      %c0_141 = arith.constant 0 : index
      %167 = vector.load %arg6[%c1_139, %c0_140, %c0_141] : memref<4x38x75xf32, #tpu.memory_space<vmem>>, vector<1x38x75xf32>
      %168 = vector.shape_cast %167 : vector<1x38x75xf32> to vector<38x75xf32>
      %c0_142 = arith.constant 0 : index
      %c0_143 = arith.constant 0 : index
      %169 = vector.load %arg2[%c0_142, %c0_143] : memref<75x128xf32, #tpu.memory_space<vmem>>, vector<75x128xf32>
      %cst_144 = arith.constant dense<0.000000e+00> : vector<38x128xf32>
      %170 = tpu.matmul %168, %169, %cst_144 {dimension_numbers = #tpu.dot_dimension_numbers<[1], [0], [0], [1], [0, 0, 1, 1], [], []>} : vector<38x75xf32>, vector<75x128xf32>, vector<38x128xf32> -> vector<38x128xf32>
      %171 = arith.maximumf %166, %170 : vector<38x128xf32>
      %c2_145 = arith.constant 2 : index
      %c0_146 = arith.constant 0 : index
      %c0_147 = arith.constant 0 : index
      %172 = vector.load %arg6[%c2_145, %c0_146, %c0_147] : memref<4x38x75xf32, #tpu.memory_space<vmem>>, vector<1x38x75xf32>
      %173 = vector.shape_cast %172 : vector<1x38x75xf32> to vector<38x75xf32>
      %c0_148 = arith.constant 0 : index
      %c0_149 = arith.constant 0 : index
      %174 = vector.load %arg2[%c0_148, %c0_149] : memref<75x128xf32, #tpu.memory_space<vmem>>, vector<75x128xf32>
      %cst_150 = arith.constant dense<0.000000e+00> : vector<38x128xf32>
      %175 = tpu.matmul %173, %174, %cst_150 {dimension_numbers = #tpu.dot_dimension_numbers<[1], [0], [0], [1], [0, 0, 1, 1], [], []>} : vector<38x75xf32>, vector<75x128xf32>, vector<38x128xf32> -> vector<38x128xf32>
      %176 = arith.maximumf %171, %175 : vector<38x128xf32>
      %c3_151 = arith.constant 3 : index
      %c0_152 = arith.constant 0 : index
      %c0_153 = arith.constant 0 : index
      %177 = vector.load %arg6[%c3_151, %c0_152, %c0_153] : memref<4x38x75xf32, #tpu.memory_space<vmem>>, vector<1x38x75xf32>
      %178 = vector.shape_cast %177 : vector<1x38x75xf32> to vector<38x75xf32>
      %c0_154 = arith.constant 0 : index
      %c0_155 = arith.constant 0 : index
      %179 = vector.load %arg2[%c0_154, %c0_155] : memref<75x128xf32, #tpu.memory_space<vmem>>, vector<75x128xf32>
      %cst_156 = arith.constant dense<0.000000e+00> : vector<38x128xf32>
      %180 = tpu.matmul %178, %179, %cst_156 {dimension_numbers = #tpu.dot_dimension_numbers<[1], [0], [0], [1], [0, 0, 1, 1], [], []>} : vector<38x75xf32>, vector<75x128xf32>, vector<38x128xf32> -> vector<38x128xf32>
      %181 = arith.maximumf %176, %180 : vector<38x128xf32>
      %c0_157 = arith.constant 0 : index
      %c0_158 = arith.constant 0 : index
      %182 = vector.load %arg3[%c0_157, %c0_158] : memref<1x128xf32, #tpu.memory_space<vmem>>, vector<1x128xf32>
      %183 = vector.broadcast %182 : vector<1x128xf32> to vector<38x128xf32>
      %184 = arith.addf %181, %183 : vector<38x128xf32>
      %cst_159 = arith.constant 0.000000e+00 : f32
      %185 = vector.broadcast %cst_159 : f32 to vector<38x128xf32>
      %186 = arith.maximumf %184, %185 : vector<38x128xf32>
      %187 = vector.extract_strided_slice %186 {offsets = [0, 0], sizes = [38, 16], strides = [1, 1]} : vector<38x128xf32> to vector<38x16xf32>
      %c0_160 = arith.constant 0 : index
      %188 = arith.index_cast %arg7 : i32 to index
      %c0_161 = arith.constant 0 : index
      %c0_162 = arith.constant 0 : index
      %189 = vector.load %arg4[%c0_160, %188, %c0_161, %c0_162] : memref<1x38x38x16xf32, #tpu.memory_space<vmem>>, vector<1x1x38x16xf32>
      %190 = vector.shape_cast %189 : vector<1x1x38x16xf32> to vector<38x16xf32>
      %191 = vector.shape_cast %187 : vector<38x16xf32> to vector<1x1x38x16xf32>
      tpu.vector_store %arg4[%c0_160, %188, %c0_161, %c0_162], %191 {strides = array<i32>} : memref<1x38x38x16xf32, #tpu.memory_space<vmem>>, vector<1x1x38x16xf32>,
    }
    %c38_i32_3 = arith.constant 38 : i32
    return
  }
  func.func @transform_0(%arg0: i32) -> (i32, i32, i32, i32) {
    %c0_i32 = arith.constant 0 : i32
    %c0_i32_0 = arith.constant 0 : i32
    %c0_i32_1 = arith.constant 0 : i32
    %c0_i32_2 = arith.constant 0 : i32
    return %arg0, %c0_i32, %c0_i32_0, %c0_i32_1 : i32, i32, i32, i32
  }
  func.func @transform_1(%arg0: i32) -> (i32, i32) {
    %c0_i32 = arith.constant 0 : i32
    %c0_i32_0 = arith.constant 0 : i32
    %c0_i32_1 = arith.constant 0 : i32
    return %c0_i32, %c0_i32_0 : i32, i32
  }
  func.func @transform_2(%arg0: i32) -> (i32, i32) {
    %c0_i32 = arith.constant 0 : i32
    %c0_i32_0 = arith.constant 0 : i32
    %c0_i32_1 = arith.constant 0 : i32
    return %c0_i32, %c0_i32_0 : i32, i32
  }
  func.func @transform_3(%arg0: i32) -> (i32, i32, i32, i32) {
    %c0_i32 = arith.constant 0 : i32
    %c0_i32_0 = arith.constant 0 : i32
    %c0_i32_1 = arith.constant 0 : i32
    %c0_i32_2 = arith.constant 0 : i32
    return %arg0, %c0_i32, %c0_i32_0, %c0_i32_1 : i32, i32, i32, i32
  }
}

module attributes {stable_mosaic.version = 11 : i64} {
  func.func @_conv_relu_pool_kernel(%arg0: i32, %arg1: memref<1x38x19x32xf32, #tpu.memory_space<vmem>>, %arg2: memref<400x128xf32, #tpu.memory_space<vmem>>, %arg3: memref<1x128xf32, #tpu.memory_space<vmem>>, %arg4: memref<1x17x17x32xf32, #tpu.memory_space<vmem>>, %arg5: memref<38x17x96xf32, #tpu.memory_space<vmem>>, %arg6: memref<4x17x400xf32, #tpu.memory_space<vmem>>) attributes {dimension_semantics = [#tpu.dimension_semantics<parallel>], iteration_bounds = array<i64: 2>, scalar_prefetch = 0 : i64, scratch_operands = 2 : i64, tpu.core_type = #tpu.core_type<tc>, window_params = [{transform_indices = @transform_0, window_bounds = array<i64: 1, 38, 19, 32>}, {pipeline_mode = #tpu.pipeline_mode<synchronous>, transform_indices = @transform_1, window_bounds = array<i64: 400, 128>}, {pipeline_mode = #tpu.pipeline_mode<synchronous>, transform_indices = @transform_2, window_bounds = array<i64: 1, 128>}, {transform_indices = @transform_3, window_bounds = array<i64: 1, 17, 17, 32>}]} {
    %c0_i32 = arith.constant 0 : i32
    %c38_i32 = arith.constant 38 : i32
    %0 = arith.addi %c0_i32, %c38_i32 : i32
    %c1_i32 = arith.constant 1 : i32
    scf.for %arg7 = %c0_i32 to %0 step %c1_i32  : i32 {
      %c0 = arith.constant 0 : index
      %2 = arith.index_cast %arg7 : i32 to index
      %c0_4 = arith.constant 0 : index
      %c0_5 = arith.constant 0 : index
      %3 = vector.load %arg1[%c0, %2, %c0_4, %c0_5] : memref<1x38x19x32xf32, #tpu.memory_space<vmem>>, vector<1x1x17x16xf32>
      %4 = vector.shape_cast %3 : vector<1x1x17x16xf32> to vector<17x16xf32>
      %5 = arith.index_cast %arg7 : i32 to index
      %c0_6 = arith.constant 0 : index
      %c0_7 = arith.constant 0 : index
      %6 = vector.load %arg5[%5, %c0_6, %c0_7] : memref<38x17x96xf32, #tpu.memory_space<vmem>>, vector<1x17x16xf32>
      %7 = vector.shape_cast %6 : vector<1x17x16xf32> to vector<17x16xf32>
      %8 = vector.shape_cast %4 : vector<17x16xf32> to vector<1x17x16xf32>
      tpu.vector_store %arg5[%5, %c0_6, %c0_7], %8 {strides = array<i32>} : memref<38x17x96xf32, #tpu.memory_space<vmem>>, vector<1x17x16xf32>,
      %c0_8 = arith.constant 0 : index
      %9 = arith.index_cast %arg7 : i32 to index
      %c0_9 = arith.constant 0 : index
      %c16 = arith.constant 16 : index
      %10 = vector.load %arg1[%c0_8, %9, %c0_9, %c16] : memref<1x38x19x32xf32, #tpu.memory_space<vmem>>, vector<1x1x17x16xf32>
      %11 = vector.shape_cast %10 : vector<1x1x17x16xf32> to vector<17x16xf32>
      %12 = arith.index_cast %arg7 : i32 to index
      %c0_10 = arith.constant 0 : index
      %c16_11 = arith.constant 16 : index
      %13 = vector.load %arg5[%12, %c0_10, %c16_11] : memref<38x17x96xf32, #tpu.memory_space<vmem>>, vector<1x17x16xf32>
      %14 = vector.shape_cast %13 : vector<1x17x16xf32> to vector<17x16xf32>
      %15 = vector.shape_cast %11 : vector<17x16xf32> to vector<1x17x16xf32>
      tpu.vector_store %arg5[%12, %c0_10, %c16_11], %15 {strides = array<i32>} : memref<38x17x96xf32, #tpu.memory_space<vmem>>, vector<1x17x16xf32>,
      %c0_12 = arith.constant 0 : index
      %16 = arith.index_cast %arg7 : i32 to index
      %c1 = arith.constant 1 : index
      %c0_13 = arith.constant 0 : index
      %17 = vector.load %arg1[%c0_12, %16, %c1, %c0_13] : memref<1x38x19x32xf32, #tpu.memory_space<vmem>>, vector<1x1x17x16xf32>
      %18 = vector.shape_cast %17 : vector<1x1x17x16xf32> to vector<17x16xf32>
      %19 = arith.index_cast %arg7 : i32 to index
      %c0_14 = arith.constant 0 : index
      %c32 = arith.constant 32 : index
      %20 = vector.load %arg5[%19, %c0_14, %c32] : memref<38x17x96xf32, #tpu.memory_space<vmem>>, vector<1x17x16xf32>
      %21 = vector.shape_cast %20 : vector<1x17x16xf32> to vector<17x16xf32>
      %22 = vector.shape_cast %18 : vector<17x16xf32> to vector<1x17x16xf32>
      tpu.vector_store %arg5[%19, %c0_14, %c32], %22 {strides = array<i32>} : memref<38x17x96xf32, #tpu.memory_space<vmem>>, vector<1x17x16xf32>,
      %c0_15 = arith.constant 0 : index
      %23 = arith.index_cast %arg7 : i32 to index
      %c1_16 = arith.constant 1 : index
      %c16_17 = arith.constant 16 : index
      %24 = vector.load %arg1[%c0_15, %23, %c1_16, %c16_17] : memref<1x38x19x32xf32, #tpu.memory_space<vmem>>, vector<1x1x17x16xf32>
      %25 = vector.shape_cast %24 : vector<1x1x17x16xf32> to vector<17x16xf32>
      %26 = arith.index_cast %arg7 : i32 to index
      %c0_18 = arith.constant 0 : index
      %c48 = arith.constant 48 : index
      %27 = vector.load %arg5[%26, %c0_18, %c48] : memref<38x17x96xf32, #tpu.memory_space<vmem>>, vector<1x17x16xf32>
      %28 = vector.shape_cast %27 : vector<1x17x16xf32> to vector<17x16xf32>
      %29 = vector.shape_cast %25 : vector<17x16xf32> to vector<1x17x16xf32>
      tpu.vector_store %arg5[%26, %c0_18, %c48], %29 {strides = array<i32>} : memref<38x17x96xf32, #tpu.memory_space<vmem>>, vector<1x17x16xf32>,
      %c0_19 = arith.constant 0 : index
      %30 = arith.index_cast %arg7 : i32 to index
      %c2 = arith.constant 2 : index
      %c0_20 = arith.constant 0 : index
      %31 = vector.load %arg1[%c0_19, %30, %c2, %c0_20] : memref<1x38x19x32xf32, #tpu.memory_space<vmem>>, vector<1x1x17x16xf32>
      %32 = vector.shape_cast %31 : vector<1x1x17x16xf32> to vector<17x16xf32>
      %33 = arith.index_cast %arg7 : i32 to index
      %c0_21 = arith.constant 0 : index
      %c64 = arith.constant 64 : index
      %34 = vector.load %arg5[%33, %c0_21, %c64] : memref<38x17x96xf32, #tpu.memory_space<vmem>>, vector<1x17x16xf32>
      %35 = vector.shape_cast %34 : vector<1x17x16xf32> to vector<17x16xf32>
      %36 = vector.shape_cast %32 : vector<17x16xf32> to vector<1x17x16xf32>
      tpu.vector_store %arg5[%33, %c0_21, %c64], %36 {strides = array<i32>} : memref<38x17x96xf32, #tpu.memory_space<vmem>>, vector<1x17x16xf32>,
      %c0_22 = arith.constant 0 : index
      %37 = arith.index_cast %arg7 : i32 to index
      %c2_23 = arith.constant 2 : index
      %c16_24 = arith.constant 16 : index
      %38 = vector.load %arg1[%c0_22, %37, %c2_23, %c16_24] : memref<1x38x19x32xf32, #tpu.memory_space<vmem>>, vector<1x1x17x16xf32>
      %39 = vector.shape_cast %38 : vector<1x1x17x16xf32> to vector<17x16xf32>
      %40 = arith.index_cast %arg7 : i32 to index
      %c0_25 = arith.constant 0 : index
      %c80 = arith.constant 80 : index
      %41 = vector.load %arg5[%40, %c0_25, %c80] : memref<38x17x96xf32, #tpu.memory_space<vmem>>, vector<1x17x16xf32>
      %42 = vector.shape_cast %41 : vector<1x17x16xf32> to vector<17x16xf32>
      %43 = vector.shape_cast %39 : vector<17x16xf32> to vector<1x17x16xf32>
      tpu.vector_store %arg5[%40, %c0_25, %c80], %43 {strides = array<i32>} : memref<38x17x96xf32, #tpu.memory_space<vmem>>, vector<1x17x16xf32>,
    }
    %c38_i32_0 = arith.constant 38 : i32
    %c0_i32_1 = arith.constant 0 : i32
    %c17_i32 = arith.constant 17 : i32
    %1 = arith.addi %c0_i32_1, %c17_i32 : i32
    %c1_i32_2 = arith.constant 1 : i32
    scf.for %arg7 = %c0_i32_1 to %1 step %c1_i32_2  : i32 {
      %c2_i32 = arith.constant 2 : i32
      %2 = arith.muli %c2_i32, %arg7 : i32
      %c0_i32_4 = arith.constant 0 : i32
      %3 = arith.addi %2, %c0_i32_4 : i32
      %c0_i32_5 = arith.constant 0 : i32
      %4 = arith.addi %3, %c0_i32_5 : i32
      %5 = arith.index_cast %4 : i32 to index
      %c0 = arith.constant 0 : index
      %c0_6 = arith.constant 0 : index
      %6 = vector.load %arg5[%5, %c0, %c0_6] : memref<38x17x96xf32, #tpu.memory_space<vmem>>, vector<1x17x80xf32>
      %7 = vector.shape_cast %6 : vector<1x17x80xf32> to vector<17x80xf32>
      %c0_7 = arith.constant 0 : index
      %c0_8 = arith.constant 0 : index
      %c0_9 = arith.constant 0 : index
      %8 = vector.load %arg6[%c0_7, %c0_8, %c0_9] : memref<4x17x400xf32, #tpu.memory_space<vmem>>, vector<1x17x80xf32>
      %9 = vector.shape_cast %8 : vector<1x17x80xf32> to vector<17x80xf32>
      %10 = vector.shape_cast %7 : vector<17x80xf32> to vector<1x17x80xf32>
      tpu.vector_store %arg6[%c0_7, %c0_8, %c0_9], %10 {strides = array<i32>} : memref<4x17x400xf32, #tpu.memory_space<vmem>>, vector<1x17x80xf32>,
      %c0_i32_10 = arith.constant 0 : i32
      %11 = arith.addi %2, %c0_i32_10 : i32
      %c1_i32_11 = arith.constant 1 : i32
      %12 = arith.addi %11, %c1_i32_11 : i32
      %13 = arith.index_cast %12 : i32 to index
      %c0_12 = arith.constant 0 : index
      %c0_13 = arith.constant 0 : index
      %14 = vector.load %arg5[%13, %c0_12, %c0_13] : memref<38x17x96xf32, #tpu.memory_space<vmem>>, vector<1x17x80xf32>
      %15 = vector.shape_cast %14 : vector<1x17x80xf32> to vector<17x80xf32>
      %c0_14 = arith.constant 0 : index
      %c0_15 = arith.constant 0 : index
      %c80 = arith.constant 80 : index
      %16 = vector.load %arg6[%c0_14, %c0_15, %c80] : memref<4x17x400xf32, #tpu.memory_space<vmem>>, vector<1x17x80xf32>
      %17 = vector.shape_cast %16 : vector<1x17x80xf32> to vector<17x80xf32>
      %18 = vector.shape_cast %15 : vector<17x80xf32> to vector<1x17x80xf32>
      tpu.vector_store %arg6[%c0_14, %c0_15, %c80], %18 {strides = array<i32>} : memref<4x17x400xf32, #tpu.memory_space<vmem>>, vector<1x17x80xf32>,
      %c0_i32_16 = arith.constant 0 : i32
      %19 = arith.addi %2, %c0_i32_16 : i32
      %c2_i32_17 = arith.constant 2 : i32
      %20 = arith.addi %19, %c2_i32_17 : i32
      %21 = arith.index_cast %20 : i32 to index
      %c0_18 = arith.constant 0 : index
      %c0_19 = arith.constant 0 : index
      %22 = vector.load %arg5[%21, %c0_18, %c0_19] : memref<38x17x96xf32, #tpu.memory_space<vmem>>, vector<1x17x80xf32>
      %23 = vector.shape_cast %22 : vector<1x17x80xf32> to vector<17x80xf32>
      %c0_20 = arith.constant 0 : index
      %c0_21 = arith.constant 0 : index
      %c160 = arith.constant 160 : index
      %24 = vector.load %arg6[%c0_20, %c0_21, %c160] : memref<4x17x400xf32, #tpu.memory_space<vmem>>, vector<1x17x80xf32>
      %25 = vector.shape_cast %24 : vector<1x17x80xf32> to vector<17x80xf32>
      %26 = vector.shape_cast %23 : vector<17x80xf32> to vector<1x17x80xf32>
      tpu.vector_store %arg6[%c0_20, %c0_21, %c160], %26 {strides = array<i32>} : memref<4x17x400xf32, #tpu.memory_space<vmem>>, vector<1x17x80xf32>,
      %c0_i32_22 = arith.constant 0 : i32
      %27 = arith.addi %2, %c0_i32_22 : i32
      %c3_i32 = arith.constant 3 : i32
      %28 = arith.addi %27, %c3_i32 : i32
      %29 = arith.index_cast %28 : i32 to index
      %c0_23 = arith.constant 0 : index
      %c0_24 = arith.constant 0 : index
      %30 = vector.load %arg5[%29, %c0_23, %c0_24] : memref<38x17x96xf32, #tpu.memory_space<vmem>>, vector<1x17x80xf32>
      %31 = vector.shape_cast %30 : vector<1x17x80xf32> to vector<17x80xf32>
      %c0_25 = arith.constant 0 : index
      %c0_26 = arith.constant 0 : index
      %c240 = arith.constant 240 : index
      %32 = vector.load %arg6[%c0_25, %c0_26, %c240] : memref<4x17x400xf32, #tpu.memory_space<vmem>>, vector<1x17x80xf32>
      %33 = vector.shape_cast %32 : vector<1x17x80xf32> to vector<17x80xf32>
      %34 = vector.shape_cast %31 : vector<17x80xf32> to vector<1x17x80xf32>
      tpu.vector_store %arg6[%c0_25, %c0_26, %c240], %34 {strides = array<i32>} : memref<4x17x400xf32, #tpu.memory_space<vmem>>, vector<1x17x80xf32>,
      %c0_i32_27 = arith.constant 0 : i32
      %35 = arith.addi %2, %c0_i32_27 : i32
      %c4_i32 = arith.constant 4 : i32
      %36 = arith.addi %35, %c4_i32 : i32
      %37 = arith.index_cast %36 : i32 to index
      %c0_28 = arith.constant 0 : index
      %c0_29 = arith.constant 0 : index
      %38 = vector.load %arg5[%37, %c0_28, %c0_29] : memref<38x17x96xf32, #tpu.memory_space<vmem>>, vector<1x17x80xf32>
      %39 = vector.shape_cast %38 : vector<1x17x80xf32> to vector<17x80xf32>
      %c0_30 = arith.constant 0 : index
      %c0_31 = arith.constant 0 : index
      %c320 = arith.constant 320 : index
      %40 = vector.load %arg6[%c0_30, %c0_31, %c320] : memref<4x17x400xf32, #tpu.memory_space<vmem>>, vector<1x17x80xf32>
      %41 = vector.shape_cast %40 : vector<1x17x80xf32> to vector<17x80xf32>
      %42 = vector.shape_cast %39 : vector<17x80xf32> to vector<1x17x80xf32>
      tpu.vector_store %arg6[%c0_30, %c0_31, %c320], %42 {strides = array<i32>} : memref<4x17x400xf32, #tpu.memory_space<vmem>>, vector<1x17x80xf32>,
      %c0_i32_32 = arith.constant 0 : i32
      %43 = arith.addi %2, %c0_i32_32 : i32
      %c0_i32_33 = arith.constant 0 : i32
      %44 = arith.addi %43, %c0_i32_33 : i32
      %45 = arith.index_cast %44 : i32 to index
      %c0_34 = arith.constant 0 : index
      %c16 = arith.constant 16 : index
      %46 = vector.load %arg5[%45, %c0_34, %c16] : memref<38x17x96xf32, #tpu.memory_space<vmem>>, vector<1x17x80xf32>
      %47 = vector.shape_cast %46 : vector<1x17x80xf32> to vector<17x80xf32>
      %c1 = arith.constant 1 : index
      %c0_35 = arith.constant 0 : index
      %c0_36 = arith.constant 0 : index
      %48 = vector.load %arg6[%c1, %c0_35, %c0_36] : memref<4x17x400xf32, #tpu.memory_space<vmem>>, vector<1x17x80xf32>
      %49 = vector.shape_cast %48 : vector<1x17x80xf32> to vector<17x80xf32>
      %50 = vector.shape_cast %47 : vector<17x80xf32> to vector<1x17x80xf32>
      tpu.vector_store %arg6[%c1, %c0_35, %c0_36], %50 {strides = array<i32>} : memref<4x17x400xf32, #tpu.memory_space<vmem>>, vector<1x17x80xf32>,
      %c0_i32_37 = arith.constant 0 : i32
      %51 = arith.addi %2, %c0_i32_37 : i32
      %c1_i32_38 = arith.constant 1 : i32
      %52 = arith.addi %51, %c1_i32_38 : i32
      %53 = arith.index_cast %52 : i32 to index
      %c0_39 = arith.constant 0 : index
      %c16_40 = arith.constant 16 : index
      %54 = vector.load %arg5[%53, %c0_39, %c16_40] : memref<38x17x96xf32, #tpu.memory_space<vmem>>, vector<1x17x80xf32>
      %55 = vector.shape_cast %54 : vector<1x17x80xf32> to vector<17x80xf32>
      %c1_41 = arith.constant 1 : index
      %c0_42 = arith.constant 0 : index
      %c80_43 = arith.constant 80 : index
      %56 = vector.load %arg6[%c1_41, %c0_42, %c80_43] : memref<4x17x400xf32, #tpu.memory_space<vmem>>, vector<1x17x80xf32>
      %57 = vector.shape_cast %56 : vector<1x17x80xf32> to vector<17x80xf32>
      %58 = vector.shape_cast %55 : vector<17x80xf32> to vector<1x17x80xf32>
      tpu.vector_store %arg6[%c1_41, %c0_42, %c80_43], %58 {strides = array<i32>} : memref<4x17x400xf32, #tpu.memory_space<vmem>>, vector<1x17x80xf32>,
      %c0_i32_44 = arith.constant 0 : i32
      %59 = arith.addi %2, %c0_i32_44 : i32
      %c2_i32_45 = arith.constant 2 : i32
      %60 = arith.addi %59, %c2_i32_45 : i32
      %61 = arith.index_cast %60 : i32 to index
      %c0_46 = arith.constant 0 : index
      %c16_47 = arith.constant 16 : index
      %62 = vector.load %arg5[%61, %c0_46, %c16_47] : memref<38x17x96xf32, #tpu.memory_space<vmem>>, vector<1x17x80xf32>
      %63 = vector.shape_cast %62 : vector<1x17x80xf32> to vector<17x80xf32>
      %c1_48 = arith.constant 1 : index
      %c0_49 = arith.constant 0 : index
      %c160_50 = arith.constant 160 : index
      %64 = vector.load %arg6[%c1_48, %c0_49, %c160_50] : memref<4x17x400xf32, #tpu.memory_space<vmem>>, vector<1x17x80xf32>
      %65 = vector.shape_cast %64 : vector<1x17x80xf32> to vector<17x80xf32>
      %66 = vector.shape_cast %63 : vector<17x80xf32> to vector<1x17x80xf32>
      tpu.vector_store %arg6[%c1_48, %c0_49, %c160_50], %66 {strides = array<i32>} : memref<4x17x400xf32, #tpu.memory_space<vmem>>, vector<1x17x80xf32>,
      %c0_i32_51 = arith.constant 0 : i32
      %67 = arith.addi %2, %c0_i32_51 : i32
      %c3_i32_52 = arith.constant 3 : i32
      %68 = arith.addi %67, %c3_i32_52 : i32
      %69 = arith.index_cast %68 : i32 to index
      %c0_53 = arith.constant 0 : index
      %c16_54 = arith.constant 16 : index
      %70 = vector.load %arg5[%69, %c0_53, %c16_54] : memref<38x17x96xf32, #tpu.memory_space<vmem>>, vector<1x17x80xf32>
      %71 = vector.shape_cast %70 : vector<1x17x80xf32> to vector<17x80xf32>
      %c1_55 = arith.constant 1 : index
      %c0_56 = arith.constant 0 : index
      %c240_57 = arith.constant 240 : index
      %72 = vector.load %arg6[%c1_55, %c0_56, %c240_57] : memref<4x17x400xf32, #tpu.memory_space<vmem>>, vector<1x17x80xf32>
      %73 = vector.shape_cast %72 : vector<1x17x80xf32> to vector<17x80xf32>
      %74 = vector.shape_cast %71 : vector<17x80xf32> to vector<1x17x80xf32>
      tpu.vector_store %arg6[%c1_55, %c0_56, %c240_57], %74 {strides = array<i32>} : memref<4x17x400xf32, #tpu.memory_space<vmem>>, vector<1x17x80xf32>,
      %c0_i32_58 = arith.constant 0 : i32
      %75 = arith.addi %2, %c0_i32_58 : i32
      %c4_i32_59 = arith.constant 4 : i32
      %76 = arith.addi %75, %c4_i32_59 : i32
      %77 = arith.index_cast %76 : i32 to index
      %c0_60 = arith.constant 0 : index
      %c16_61 = arith.constant 16 : index
      %78 = vector.load %arg5[%77, %c0_60, %c16_61] : memref<38x17x96xf32, #tpu.memory_space<vmem>>, vector<1x17x80xf32>
      %79 = vector.shape_cast %78 : vector<1x17x80xf32> to vector<17x80xf32>
      %c1_62 = arith.constant 1 : index
      %c0_63 = arith.constant 0 : index
      %c320_64 = arith.constant 320 : index
      %80 = vector.load %arg6[%c1_62, %c0_63, %c320_64] : memref<4x17x400xf32, #tpu.memory_space<vmem>>, vector<1x17x80xf32>
      %81 = vector.shape_cast %80 : vector<1x17x80xf32> to vector<17x80xf32>
      %82 = vector.shape_cast %79 : vector<17x80xf32> to vector<1x17x80xf32>
      tpu.vector_store %arg6[%c1_62, %c0_63, %c320_64], %82 {strides = array<i32>} : memref<4x17x400xf32, #tpu.memory_space<vmem>>, vector<1x17x80xf32>,
      %c1_i32_65 = arith.constant 1 : i32
      %83 = arith.addi %2, %c1_i32_65 : i32
      %c0_i32_66 = arith.constant 0 : i32
      %84 = arith.addi %83, %c0_i32_66 : i32
      %85 = arith.index_cast %84 : i32 to index
      %c0_67 = arith.constant 0 : index
      %c0_68 = arith.constant 0 : index
      %86 = vector.load %arg5[%85, %c0_67, %c0_68] : memref<38x17x96xf32, #tpu.memory_space<vmem>>, vector<1x17x80xf32>
      %87 = vector.shape_cast %86 : vector<1x17x80xf32> to vector<17x80xf32>
      %c2 = arith.constant 2 : index
      %c0_69 = arith.constant 0 : index
      %c0_70 = arith.constant 0 : index
      %88 = vector.load %arg6[%c2, %c0_69, %c0_70] : memref<4x17x400xf32, #tpu.memory_space<vmem>>, vector<1x17x80xf32>
      %89 = vector.shape_cast %88 : vector<1x17x80xf32> to vector<17x80xf32>
      %90 = vector.shape_cast %87 : vector<17x80xf32> to vector<1x17x80xf32>
      tpu.vector_store %arg6[%c2, %c0_69, %c0_70], %90 {strides = array<i32>} : memref<4x17x400xf32, #tpu.memory_space<vmem>>, vector<1x17x80xf32>,
      %c1_i32_71 = arith.constant 1 : i32
      %91 = arith.addi %2, %c1_i32_71 : i32
      %c1_i32_72 = arith.constant 1 : i32
      %92 = arith.addi %91, %c1_i32_72 : i32
      %93 = arith.index_cast %92 : i32 to index
      %c0_73 = arith.constant 0 : index
      %c0_74 = arith.constant 0 : index
      %94 = vector.load %arg5[%93, %c0_73, %c0_74] : memref<38x17x96xf32, #tpu.memory_space<vmem>>, vector<1x17x80xf32>
      %95 = vector.shape_cast %94 : vector<1x17x80xf32> to vector<17x80xf32>
      %c2_75 = arith.constant 2 : index
      %c0_76 = arith.constant 0 : index
      %c80_77 = arith.constant 80 : index
      %96 = vector.load %arg6[%c2_75, %c0_76, %c80_77] : memref<4x17x400xf32, #tpu.memory_space<vmem>>, vector<1x17x80xf32>
      %97 = vector.shape_cast %96 : vector<1x17x80xf32> to vector<17x80xf32>
      %98 = vector.shape_cast %95 : vector<17x80xf32> to vector<1x17x80xf32>
      tpu.vector_store %arg6[%c2_75, %c0_76, %c80_77], %98 {strides = array<i32>} : memref<4x17x400xf32, #tpu.memory_space<vmem>>, vector<1x17x80xf32>,
      %c1_i32_78 = arith.constant 1 : i32
      %99 = arith.addi %2, %c1_i32_78 : i32
      %c2_i32_79 = arith.constant 2 : i32
      %100 = arith.addi %99, %c2_i32_79 : i32
      %101 = arith.index_cast %100 : i32 to index
      %c0_80 = arith.constant 0 : index
      %c0_81 = arith.constant 0 : index
      %102 = vector.load %arg5[%101, %c0_80, %c0_81] : memref<38x17x96xf32, #tpu.memory_space<vmem>>, vector<1x17x80xf32>
      %103 = vector.shape_cast %102 : vector<1x17x80xf32> to vector<17x80xf32>
      %c2_82 = arith.constant 2 : index
      %c0_83 = arith.constant 0 : index
      %c160_84 = arith.constant 160 : index
      %104 = vector.load %arg6[%c2_82, %c0_83, %c160_84] : memref<4x17x400xf32, #tpu.memory_space<vmem>>, vector<1x17x80xf32>
      %105 = vector.shape_cast %104 : vector<1x17x80xf32> to vector<17x80xf32>
      %106 = vector.shape_cast %103 : vector<17x80xf32> to vector<1x17x80xf32>
      tpu.vector_store %arg6[%c2_82, %c0_83, %c160_84], %106 {strides = array<i32>} : memref<4x17x400xf32, #tpu.memory_space<vmem>>, vector<1x17x80xf32>,
      %c1_i32_85 = arith.constant 1 : i32
      %107 = arith.addi %2, %c1_i32_85 : i32
      %c3_i32_86 = arith.constant 3 : i32
      %108 = arith.addi %107, %c3_i32_86 : i32
      %109 = arith.index_cast %108 : i32 to index
      %c0_87 = arith.constant 0 : index
      %c0_88 = arith.constant 0 : index
      %110 = vector.load %arg5[%109, %c0_87, %c0_88] : memref<38x17x96xf32, #tpu.memory_space<vmem>>, vector<1x17x80xf32>
      %111 = vector.shape_cast %110 : vector<1x17x80xf32> to vector<17x80xf32>
      %c2_89 = arith.constant 2 : index
      %c0_90 = arith.constant 0 : index
      %c240_91 = arith.constant 240 : index
      %112 = vector.load %arg6[%c2_89, %c0_90, %c240_91] : memref<4x17x400xf32, #tpu.memory_space<vmem>>, vector<1x17x80xf32>
      %113 = vector.shape_cast %112 : vector<1x17x80xf32> to vector<17x80xf32>
      %114 = vector.shape_cast %111 : vector<17x80xf32> to vector<1x17x80xf32>
      tpu.vector_store %arg6[%c2_89, %c0_90, %c240_91], %114 {strides = array<i32>} : memref<4x17x400xf32, #tpu.memory_space<vmem>>, vector<1x17x80xf32>,
      %c1_i32_92 = arith.constant 1 : i32
      %115 = arith.addi %2, %c1_i32_92 : i32
      %c4_i32_93 = arith.constant 4 : i32
      %116 = arith.addi %115, %c4_i32_93 : i32
      %117 = arith.index_cast %116 : i32 to index
      %c0_94 = arith.constant 0 : index
      %c0_95 = arith.constant 0 : index
      %118 = vector.load %arg5[%117, %c0_94, %c0_95] : memref<38x17x96xf32, #tpu.memory_space<vmem>>, vector<1x17x80xf32>
      %119 = vector.shape_cast %118 : vector<1x17x80xf32> to vector<17x80xf32>
      %c2_96 = arith.constant 2 : index
      %c0_97 = arith.constant 0 : index
      %c320_98 = arith.constant 320 : index
      %120 = vector.load %arg6[%c2_96, %c0_97, %c320_98] : memref<4x17x400xf32, #tpu.memory_space<vmem>>, vector<1x17x80xf32>
      %121 = vector.shape_cast %120 : vector<1x17x80xf32> to vector<17x80xf32>
      %122 = vector.shape_cast %119 : vector<17x80xf32> to vector<1x17x80xf32>
      tpu.vector_store %arg6[%c2_96, %c0_97, %c320_98], %122 {strides = array<i32>} : memref<4x17x400xf32, #tpu.memory_space<vmem>>, vector<1x17x80xf32>,
      %c1_i32_99 = arith.constant 1 : i32
      %123 = arith.addi %2, %c1_i32_99 : i32
      %c0_i32_100 = arith.constant 0 : i32
      %124 = arith.addi %123, %c0_i32_100 : i32
      %125 = arith.index_cast %124 : i32 to index
      %c0_101 = arith.constant 0 : index
      %c16_102 = arith.constant 16 : index
      %126 = vector.load %arg5[%125, %c0_101, %c16_102] : memref<38x17x96xf32, #tpu.memory_space<vmem>>, vector<1x17x80xf32>
      %127 = vector.shape_cast %126 : vector<1x17x80xf32> to vector<17x80xf32>
      %c3 = arith.constant 3 : index
      %c0_103 = arith.constant 0 : index
      %c0_104 = arith.constant 0 : index
      %128 = vector.load %arg6[%c3, %c0_103, %c0_104] : memref<4x17x400xf32, #tpu.memory_space<vmem>>, vector<1x17x80xf32>
      %129 = vector.shape_cast %128 : vector<1x17x80xf32> to vector<17x80xf32>
      %130 = vector.shape_cast %127 : vector<17x80xf32> to vector<1x17x80xf32>
      tpu.vector_store %arg6[%c3, %c0_103, %c0_104], %130 {strides = array<i32>} : memref<4x17x400xf32, #tpu.memory_space<vmem>>, vector<1x17x80xf32>,
      %c1_i32_105 = arith.constant 1 : i32
      %131 = arith.addi %2, %c1_i32_105 : i32
      %c1_i32_106 = arith.constant 1 : i32
      %132 = arith.addi %131, %c1_i32_106 : i32
      %133 = arith.index_cast %132 : i32 to index
      %c0_107 = arith.constant 0 : index
      %c16_108 = arith.constant 16 : index
      %134 = vector.load %arg5[%133, %c0_107, %c16_108] : memref<38x17x96xf32, #tpu.memory_space<vmem>>, vector<1x17x80xf32>
      %135 = vector.shape_cast %134 : vector<1x17x80xf32> to vector<17x80xf32>
      %c3_109 = arith.constant 3 : index
      %c0_110 = arith.constant 0 : index
      %c80_111 = arith.constant 80 : index
      %136 = vector.load %arg6[%c3_109, %c0_110, %c80_111] : memref<4x17x400xf32, #tpu.memory_space<vmem>>, vector<1x17x80xf32>
      %137 = vector.shape_cast %136 : vector<1x17x80xf32> to vector<17x80xf32>
      %138 = vector.shape_cast %135 : vector<17x80xf32> to vector<1x17x80xf32>
      tpu.vector_store %arg6[%c3_109, %c0_110, %c80_111], %138 {strides = array<i32>} : memref<4x17x400xf32, #tpu.memory_space<vmem>>, vector<1x17x80xf32>,
      %c1_i32_112 = arith.constant 1 : i32
      %139 = arith.addi %2, %c1_i32_112 : i32
      %c2_i32_113 = arith.constant 2 : i32
      %140 = arith.addi %139, %c2_i32_113 : i32
      %141 = arith.index_cast %140 : i32 to index
      %c0_114 = arith.constant 0 : index
      %c16_115 = arith.constant 16 : index
      %142 = vector.load %arg5[%141, %c0_114, %c16_115] : memref<38x17x96xf32, #tpu.memory_space<vmem>>, vector<1x17x80xf32>
      %143 = vector.shape_cast %142 : vector<1x17x80xf32> to vector<17x80xf32>
      %c3_116 = arith.constant 3 : index
      %c0_117 = arith.constant 0 : index
      %c160_118 = arith.constant 160 : index
      %144 = vector.load %arg6[%c3_116, %c0_117, %c160_118] : memref<4x17x400xf32, #tpu.memory_space<vmem>>, vector<1x17x80xf32>
      %145 = vector.shape_cast %144 : vector<1x17x80xf32> to vector<17x80xf32>
      %146 = vector.shape_cast %143 : vector<17x80xf32> to vector<1x17x80xf32>
      tpu.vector_store %arg6[%c3_116, %c0_117, %c160_118], %146 {strides = array<i32>} : memref<4x17x400xf32, #tpu.memory_space<vmem>>, vector<1x17x80xf32>,
      %c1_i32_119 = arith.constant 1 : i32
      %147 = arith.addi %2, %c1_i32_119 : i32
      %c3_i32_120 = arith.constant 3 : i32
      %148 = arith.addi %147, %c3_i32_120 : i32
      %149 = arith.index_cast %148 : i32 to index
      %c0_121 = arith.constant 0 : index
      %c16_122 = arith.constant 16 : index
      %150 = vector.load %arg5[%149, %c0_121, %c16_122] : memref<38x17x96xf32, #tpu.memory_space<vmem>>, vector<1x17x80xf32>
      %151 = vector.shape_cast %150 : vector<1x17x80xf32> to vector<17x80xf32>
      %c3_123 = arith.constant 3 : index
      %c0_124 = arith.constant 0 : index
      %c240_125 = arith.constant 240 : index
      %152 = vector.load %arg6[%c3_123, %c0_124, %c240_125] : memref<4x17x400xf32, #tpu.memory_space<vmem>>, vector<1x17x80xf32>
      %153 = vector.shape_cast %152 : vector<1x17x80xf32> to vector<17x80xf32>
      %154 = vector.shape_cast %151 : vector<17x80xf32> to vector<1x17x80xf32>
      tpu.vector_store %arg6[%c3_123, %c0_124, %c240_125], %154 {strides = array<i32>} : memref<4x17x400xf32, #tpu.memory_space<vmem>>, vector<1x17x80xf32>,
      %c1_i32_126 = arith.constant 1 : i32
      %155 = arith.addi %2, %c1_i32_126 : i32
      %c4_i32_127 = arith.constant 4 : i32
      %156 = arith.addi %155, %c4_i32_127 : i32
      %157 = arith.index_cast %156 : i32 to index
      %c0_128 = arith.constant 0 : index
      %c16_129 = arith.constant 16 : index
      %158 = vector.load %arg5[%157, %c0_128, %c16_129] : memref<38x17x96xf32, #tpu.memory_space<vmem>>, vector<1x17x80xf32>
      %159 = vector.shape_cast %158 : vector<1x17x80xf32> to vector<17x80xf32>
      %c3_130 = arith.constant 3 : index
      %c0_131 = arith.constant 0 : index
      %c320_132 = arith.constant 320 : index
      %160 = vector.load %arg6[%c3_130, %c0_131, %c320_132] : memref<4x17x400xf32, #tpu.memory_space<vmem>>, vector<1x17x80xf32>
      %161 = vector.shape_cast %160 : vector<1x17x80xf32> to vector<17x80xf32>
      %162 = vector.shape_cast %159 : vector<17x80xf32> to vector<1x17x80xf32>
      tpu.vector_store %arg6[%c3_130, %c0_131, %c320_132], %162 {strides = array<i32>} : memref<4x17x400xf32, #tpu.memory_space<vmem>>, vector<1x17x80xf32>,
      %c0_133 = arith.constant 0 : index
      %c0_134 = arith.constant 0 : index
      %c0_135 = arith.constant 0 : index
      %163 = vector.load %arg6[%c0_133, %c0_134, %c0_135] : memref<4x17x400xf32, #tpu.memory_space<vmem>>, vector<1x17x400xf32>
      %164 = vector.shape_cast %163 : vector<1x17x400xf32> to vector<17x400xf32>
      %c0_136 = arith.constant 0 : index
      %c0_137 = arith.constant 0 : index
      %165 = vector.load %arg2[%c0_136, %c0_137] : memref<400x128xf32, #tpu.memory_space<vmem>>, vector<400x128xf32>
      %cst = arith.constant dense<0.000000e+00> : vector<17x128xf32>
      %166 = tpu.matmul %164, %165, %cst {dimension_numbers = #tpu.dot_dimension_numbers<[1], [0], [0], [1], [0, 0, 1, 1], [], []>} : vector<17x400xf32>, vector<400x128xf32>, vector<17x128xf32> -> vector<17x128xf32>
      %c1_138 = arith.constant 1 : index
      %c0_139 = arith.constant 0 : index
      %c0_140 = arith.constant 0 : index
      %167 = vector.load %arg6[%c1_138, %c0_139, %c0_140] : memref<4x17x400xf32, #tpu.memory_space<vmem>>, vector<1x17x400xf32>
      %168 = vector.shape_cast %167 : vector<1x17x400xf32> to vector<17x400xf32>
      %c0_141 = arith.constant 0 : index
      %c0_142 = arith.constant 0 : index
      %169 = vector.load %arg2[%c0_141, %c0_142] : memref<400x128xf32, #tpu.memory_space<vmem>>, vector<400x128xf32>
      %cst_143 = arith.constant dense<0.000000e+00> : vector<17x128xf32>
      %170 = tpu.matmul %168, %169, %cst_143 {dimension_numbers = #tpu.dot_dimension_numbers<[1], [0], [0], [1], [0, 0, 1, 1], [], []>} : vector<17x400xf32>, vector<400x128xf32>, vector<17x128xf32> -> vector<17x128xf32>
      %171 = arith.maximumf %166, %170 : vector<17x128xf32>
      %c2_144 = arith.constant 2 : index
      %c0_145 = arith.constant 0 : index
      %c0_146 = arith.constant 0 : index
      %172 = vector.load %arg6[%c2_144, %c0_145, %c0_146] : memref<4x17x400xf32, #tpu.memory_space<vmem>>, vector<1x17x400xf32>
      %173 = vector.shape_cast %172 : vector<1x17x400xf32> to vector<17x400xf32>
      %c0_147 = arith.constant 0 : index
      %c0_148 = arith.constant 0 : index
      %174 = vector.load %arg2[%c0_147, %c0_148] : memref<400x128xf32, #tpu.memory_space<vmem>>, vector<400x128xf32>
      %cst_149 = arith.constant dense<0.000000e+00> : vector<17x128xf32>
      %175 = tpu.matmul %173, %174, %cst_149 {dimension_numbers = #tpu.dot_dimension_numbers<[1], [0], [0], [1], [0, 0, 1, 1], [], []>} : vector<17x400xf32>, vector<400x128xf32>, vector<17x128xf32> -> vector<17x128xf32>
      %176 = arith.maximumf %171, %175 : vector<17x128xf32>
      %c3_150 = arith.constant 3 : index
      %c0_151 = arith.constant 0 : index
      %c0_152 = arith.constant 0 : index
      %177 = vector.load %arg6[%c3_150, %c0_151, %c0_152] : memref<4x17x400xf32, #tpu.memory_space<vmem>>, vector<1x17x400xf32>
      %178 = vector.shape_cast %177 : vector<1x17x400xf32> to vector<17x400xf32>
      %c0_153 = arith.constant 0 : index
      %c0_154 = arith.constant 0 : index
      %179 = vector.load %arg2[%c0_153, %c0_154] : memref<400x128xf32, #tpu.memory_space<vmem>>, vector<400x128xf32>
      %cst_155 = arith.constant dense<0.000000e+00> : vector<17x128xf32>
      %180 = tpu.matmul %178, %179, %cst_155 {dimension_numbers = #tpu.dot_dimension_numbers<[1], [0], [0], [1], [0, 0, 1, 1], [], []>} : vector<17x400xf32>, vector<400x128xf32>, vector<17x128xf32> -> vector<17x128xf32>
      %181 = arith.maximumf %176, %180 : vector<17x128xf32>
      %c0_156 = arith.constant 0 : index
      %c0_157 = arith.constant 0 : index
      %182 = vector.load %arg3[%c0_156, %c0_157] : memref<1x128xf32, #tpu.memory_space<vmem>>, vector<1x128xf32>
      %183 = vector.broadcast %182 : vector<1x128xf32> to vector<17x128xf32>
      %184 = arith.addf %181, %183 : vector<17x128xf32>
      %cst_158 = arith.constant 0.000000e+00 : f32
      %185 = vector.broadcast %cst_158 : f32 to vector<17x128xf32>
      %186 = arith.maximumf %184, %185 : vector<17x128xf32>
      %187 = vector.extract_strided_slice %186 {offsets = [0, 0], sizes = [17, 32], strides = [1, 1]} : vector<17x128xf32> to vector<17x32xf32>
      %c0_159 = arith.constant 0 : index
      %188 = arith.index_cast %arg7 : i32 to index
      %c0_160 = arith.constant 0 : index
      %c0_161 = arith.constant 0 : index
      %189 = vector.load %arg4[%c0_159, %188, %c0_160, %c0_161] : memref<1x17x17x32xf32, #tpu.memory_space<vmem>>, vector<1x1x17x32xf32>
      %190 = vector.shape_cast %189 : vector<1x1x17x32xf32> to vector<17x32xf32>
      %191 = vector.shape_cast %187 : vector<17x32xf32> to vector<1x1x17x32xf32>
      tpu.vector_store %arg4[%c0_159, %188, %c0_160, %c0_161], %191 {strides = array<i32>} : memref<1x17x17x32xf32, #tpu.memory_space<vmem>>, vector<1x1x17x32xf32>,
    }
    %c17_i32_3 = arith.constant 17 : i32
    return
  }
  func.func @transform_0(%arg0: i32) -> (i32, i32, i32, i32) {
    %c0_i32 = arith.constant 0 : i32
    %c0_i32_0 = arith.constant 0 : i32
    %c0_i32_1 = arith.constant 0 : i32
    %c0_i32_2 = arith.constant 0 : i32
    return %arg0, %c0_i32, %c0_i32_0, %c0_i32_1 : i32, i32, i32, i32
  }
  func.func @transform_1(%arg0: i32) -> (i32, i32) {
    %c0_i32 = arith.constant 0 : i32
    %c0_i32_0 = arith.constant 0 : i32
    %c0_i32_1 = arith.constant 0 : i32
    return %c0_i32, %c0_i32_0 : i32, i32
  }
  func.func @transform_2(%arg0: i32) -> (i32, i32) {
    %c0_i32 = arith.constant 0 : i32
    %c0_i32_0 = arith.constant 0 : i32
    %c0_i32_1 = arith.constant 0 : i32
    return %c0_i32, %c0_i32_0 : i32, i32
  }
  func.func @transform_3(%arg0: i32) -> (i32, i32, i32, i32) {
    %c0_i32 = arith.constant 0 : i32
    %c0_i32_0 = arith.constant 0 : i32
    %c0_i32_1 = arith.constant 0 : i32
    %c0_i32_2 = arith.constant 0 : i32
    return %arg0, %c0_i32, %c0_i32_0, %c0_i32_1 : i32, i32, i32, i32
  }
}

module attributes {stable_mosaic.version = 11 : i64} {
  func.func @_fc_stack_kernel(%arg0: i32, %arg1: memref<2x9248xf32, #tpu.memory_space<vmem>>, %arg2: memref<9248x64xf32, #tpu.memory_space<vmem>>, %arg3: memref<1x64xf32, #tpu.memory_space<vmem>>, %arg4: memref<64x16xf32, #tpu.memory_space<vmem>>, %arg5: memref<1x16xf32, #tpu.memory_space<vmem>>, %arg6: memref<16x2xf32, #tpu.memory_space<vmem>>, %arg7: memref<1x2xf32, #tpu.memory_space<vmem>>, %arg8: memref<2x2xf32, #tpu.memory_space<vmem>>) attributes {dimension_semantics = [#tpu.dimension_semantics<arbitrary>], iteration_bounds = array<i64: 1>, scalar_prefetch = 0 : i64, scratch_operands = 0 : i64, tpu.core_type = #tpu.core_type<tc>, window_params = [{pipeline_mode = #tpu.pipeline_mode<synchronous>, transform_indices = @transform_0, window_bounds = array<i64: 2, 9248>}, {pipeline_mode = #tpu.pipeline_mode<synchronous>, transform_indices = @transform_1, window_bounds = array<i64: 9248, 64>}, {pipeline_mode = #tpu.pipeline_mode<synchronous>, transform_indices = @transform_2, window_bounds = array<i64: 1, 64>}, {pipeline_mode = #tpu.pipeline_mode<synchronous>, transform_indices = @transform_3, window_bounds = array<i64: 64, 16>}, {pipeline_mode = #tpu.pipeline_mode<synchronous>, transform_indices = @transform_4, window_bounds = array<i64: 1, 16>}, {pipeline_mode = #tpu.pipeline_mode<synchronous>, transform_indices = @transform_5, window_bounds = array<i64: 16, 2>}, {pipeline_mode = #tpu.pipeline_mode<synchronous>, transform_indices = @transform_6, window_bounds = array<i64: 1, 2>}, {pipeline_mode = #tpu.pipeline_mode<synchronous>, transform_indices = @transform_7, window_bounds = array<i64: 2, 2>}]} {
    %c0 = arith.constant 0 : index
    %c0_0 = arith.constant 0 : index
    %0 = vector.load %arg1[%c0, %c0_0] : memref<2x9248xf32, #tpu.memory_space<vmem>>, vector<2x9248xf32>
    %c0_1 = arith.constant 0 : index
    %c0_2 = arith.constant 0 : index
    %1 = vector.load %arg2[%c0_1, %c0_2] : memref<9248x64xf32, #tpu.memory_space<vmem>>, vector<9248x64xf32>
    %cst = arith.constant dense<0.000000e+00> : vector<2x64xf32>
    %2 = tpu.matmul %0, %1, %cst {dimension_numbers = #tpu.dot_dimension_numbers<[1], [0], [0], [1], [0, 0, 1, 1], [], []>} : vector<2x9248xf32>, vector<9248x64xf32>, vector<2x64xf32> -> vector<2x64xf32>
    %c0_3 = arith.constant 0 : index
    %c0_4 = arith.constant 0 : index
    %3 = vector.load %arg3[%c0_3, %c0_4] : memref<1x64xf32, #tpu.memory_space<vmem>>, vector<1x64xf32>
    %4 = vector.broadcast %3 : vector<1x64xf32> to vector<2x64xf32>
    %5 = arith.addf %2, %4 : vector<2x64xf32>
    %cst_5 = arith.constant 0.000000e+00 : f32
    %6 = vector.broadcast %cst_5 : f32 to vector<2x64xf32>
    %7 = arith.maximumf %5, %6 : vector<2x64xf32>
    %c0_6 = arith.constant 0 : index
    %c0_7 = arith.constant 0 : index
    %8 = vector.load %arg4[%c0_6, %c0_7] : memref<64x16xf32, #tpu.memory_space<vmem>>, vector<64x16xf32>
    %cst_8 = arith.constant dense<0.000000e+00> : vector<2x16xf32>
    %9 = tpu.matmul %7, %8, %cst_8 {dimension_numbers = #tpu.dot_dimension_numbers<[1], [0], [0], [1], [0, 0, 1, 1], [], []>} : vector<2x64xf32>, vector<64x16xf32>, vector<2x16xf32> -> vector<2x16xf32>
    %c0_9 = arith.constant 0 : index
    %c0_10 = arith.constant 0 : index
    %10 = vector.load %arg5[%c0_9, %c0_10] : memref<1x16xf32, #tpu.memory_space<vmem>>, vector<1x16xf32>
    %11 = vector.broadcast %10 : vector<1x16xf32> to vector<2x16xf32>
    %12 = arith.addf %9, %11 : vector<2x16xf32>
    %cst_11 = arith.constant 0.000000e+00 : f32
    %13 = vector.broadcast %cst_11 : f32 to vector<2x16xf32>
    %14 = arith.maximumf %12, %13 : vector<2x16xf32>
    %c0_12 = arith.constant 0 : index
    %c0_13 = arith.constant 0 : index
    %15 = vector.load %arg6[%c0_12, %c0_13] : memref<16x2xf32, #tpu.memory_space<vmem>>, vector<16x2xf32>
    %cst_14 = arith.constant dense<0.000000e+00> : vector<2x2xf32>
    %16 = tpu.matmul %14, %15, %cst_14 {dimension_numbers = #tpu.dot_dimension_numbers<[1], [0], [0], [1], [0, 0, 1, 1], [], []>} : vector<2x16xf32>, vector<16x2xf32>, vector<2x2xf32> -> vector<2x2xf32>
    %c0_15 = arith.constant 0 : index
    %c0_16 = arith.constant 0 : index
    %17 = vector.load %arg7[%c0_15, %c0_16] : memref<1x2xf32, #tpu.memory_space<vmem>>, vector<1x2xf32>
    %18 = vector.broadcast %17 : vector<1x2xf32> to vector<2x2xf32>
    %19 = arith.addf %16, %18 : vector<2x2xf32>
    %c0_17 = arith.constant 0 : index
    %c0_18 = arith.constant 0 : index
    %20 = vector.load %arg8[%c0_17, %c0_18] : memref<2x2xf32, #tpu.memory_space<vmem>>, vector<2x2xf32>
    tpu.vector_store %arg8[%c0_17, %c0_18], %19 {strides = array<i32>} : memref<2x2xf32, #tpu.memory_space<vmem>>, vector<2x2xf32>,
    return
  }
  func.func @transform_0(%arg0: i32) -> (i32, i32) {
    %c0_i32 = arith.constant 0 : i32
    %c0_i32_0 = arith.constant 0 : i32
    %c0_i32_1 = arith.constant 0 : i32
    return %c0_i32, %c0_i32_0 : i32, i32
  }
  func.func @transform_1(%arg0: i32) -> (i32, i32) {
    %c0_i32 = arith.constant 0 : i32
    %c0_i32_0 = arith.constant 0 : i32
    %c0_i32_1 = arith.constant 0 : i32
    return %c0_i32, %c0_i32_0 : i32, i32
  }
  func.func @transform_2(%arg0: i32) -> (i32, i32) {
    %c0_i32 = arith.constant 0 : i32
    %c0_i32_0 = arith.constant 0 : i32
    %c0_i32_1 = arith.constant 0 : i32
    return %c0_i32, %c0_i32_0 : i32, i32
  }
  func.func @transform_3(%arg0: i32) -> (i32, i32) {
    %c0_i32 = arith.constant 0 : i32
    %c0_i32_0 = arith.constant 0 : i32
    %c0_i32_1 = arith.constant 0 : i32
    return %c0_i32, %c0_i32_0 : i32, i32
  }
  func.func @transform_4(%arg0: i32) -> (i32, i32) {
    %c0_i32 = arith.constant 0 : i32
    %c0_i32_0 = arith.constant 0 : i32
    %c0_i32_1 = arith.constant 0 : i32
    return %c0_i32, %c0_i32_0 : i32, i32
  }
  func.func @transform_5(%arg0: i32) -> (i32, i32) {
    %c0_i32 = arith.constant 0 : i32
    %c0_i32_0 = arith.constant 0 : i32
    %c0_i32_1 = arith.constant 0 : i32
    return %c0_i32, %c0_i32_0 : i32, i32
  }
  func.func @transform_6(%arg0: i32) -> (i32, i32) {
    %c0_i32 = arith.constant 0 : i32
    %c0_i32_0 = arith.constant 0 : i32
    %c0_i32_1 = arith.constant 0 : i32
    return %c0_i32, %c0_i32_0 : i32, i32
  }
  func.func @transform_7(%arg0: i32) -> (i32, i32) {
    %c0_i32 = arith.constant 0 : i32
    %c0_i32_0 = arith.constant 0 : i32
    %c0_i32_1 = arith.constant 0 : i32
    return %c0_i32, %c0_i32_0 : i32, i32
  }
}

</mosaic_0001>

<llo_original>
// kernel: net_forward.3
$region0: #{net_forward.3}
  #allocation0 [shape = 'u32[]', space=smem, size = 0x4, offset = 0x4, fixed_abs, tag = 'smem constant byte address 0x4 - core index']
  #allocation1 [shape = 'u32[72,128]{1,0:T(1,128)}', space=vmem, size = 0x9000, scoped, tag = 'internal scratch']
  #allocation2 [shape = 'f32[80,38,18]{2,1,0:T(8,128)}', space=vmem, size = 0x190000, scoped, tag = 'scratch operand']
  #allocation3 [shape = 'f32[4,38,75]{2,1,0:T(8,128)}', space=vmem, size = 0x14000, scoped, tag = 'scratch operand']
  %s0 = inlined_call_operand.vmem [shape: f32[2,80,40,6], index: 0, kind: input, shape index: {}]
  %s1 = inlined_call_operand.vmem [shape: f32[75,128], index: 1, kind: input, shape index: {}]
  %s2 = inlined_call_operand.vmem [shape: f32[1,128], index: 2, kind: input, shape index: {}]
  %s3 = inlined_call_operand.vmem [shape: f32[2,38,38,16], index: 3, kind: output, shape index: {}]
  %s4 = sld [smem:[#allocation0]]
  $region59: #{net_forward.3} parent=0
    _
  %s6 = ssub.s32 1, %s4
  %s7 = scalar_select 0, %s6, %s4
  loop: start=0, step=1, limit=4
  $region2: #{net_forward.3} parent=0 // loop_pre_header
    _
  $region3: #{net_forward.3} parent=0 // loop_header
    %s9 = sphi 0, %s13
    %p10 = scmp.ge.s32.totalorder %s9, 4
    %s19 = sphi 0, %s21
    %s22 = sphi 0, %s19
    %s23 = sphi 0, %s22
    %s39 = sphi 0, %s23
    %s43 = sphi 0, %s43
    %s45 = sphi 0, %s43
    %s46 = sphi 0, %s45
    %s60 = sphi 0, %s46
    %s64 = sphi 0, %s64
    %s66 = sphi 0, %s64
    %s67 = sphi 0, %s66
    %s81 = sphi 0, %s67
    %s87 = sphi 0, %s89
    %s90 = sphi 0, %s87
    %s91 = sphi 0, %s90
    %s107 = sphi 0, %s91
  $region4: #{net_forward.3} parent=0 // loop_header_branch
    %12 = sbr.rel (%p10) target = $region8
  $region5: #{net_forward.3} parent=0 // loop_body
    %s14 = ssub.s32 %s9, 1
    %s15 = ssub.s32 %s9, 2
    %s16 = sadd.s32 %s9, 1
    %s17 = ssub.s32 %s9, %s16
    %p18 = scmp.eq.s32.totalorder %s17, 0
    %s20 = sadd.s32 %s19, 1
    %s21 = scalar_select %p18, %s19, %s20
    %p24 = pneg %p18
    %p25 = scmp.eq.s32.totalorder %s9, 1
    %p26 = por %p24, %p25
    %p27 = scmp.ne.s32.totalorder %s19, %s22
    %p28 = scmp.eq.s32.totalorder %s9, 0
    %p29 = por %p27, %p28
    %p30 = scmp.ne.s32.totalorder %s19, %s22
    %p31 = scmp.eq.s32.totalorder %s14, 1
    %p32 = por %p30, %p31
    %p33 = scmp.ne.s32.totalorder %s22, %s23
    %p34 = scmp.eq.s32.totalorder %s14, 0
    %p35 = por %p33, %p34
    %p36 = scmp.ne.s32.totalorder %s22, %s23
    %p37 = scmp.eq.s32.totalorder %s15, 1
    %p38 = por %p36, %p37
    %p40 = scmp.ne.s32.totalorder %s23, %s39
    %p41 = scmp.eq.s32.totalorder %s15, 0
    %p42 = por %p40, %p41
    %s44 = sadd.s32 %s43, 1
    %p47 = scmp.eq.s32.totalorder %s9, 1
    %p48 = scmp.ne.s32.totalorder %s43, %s45
    %p49 = scmp.eq.s32.totalorder %s9, 0
    %p50 = por %p48, %p49
    %p51 = scmp.ne.s32.totalorder %s43, %s45
    %p52 = scmp.eq.s32.totalorder %s14, 1
    %p53 = por %p51, %p52
    %p54 = scmp.ne.s32.totalorder %s45, %s46
    %p55 = scmp.eq.s32.totalorder %s14, 0
    %p56 = por %p54, %p55
    %p57 = scmp.ne.s32.totalorder %s45, %s46
    %p58 = scmp.eq.s32.totalorder %s15, 1
    %p59 = por %p57, %p58
    %p61 = scmp.ne.s32.totalorder %s46, %s60
    %p62 = scmp.eq.s32.totalorder %s15, 0
    %p63 = por %p61, %p62
    %s65 = sadd.s32 %s64, 1
    %p68 = scmp.eq.s32.totalorder %s9, 1
    %p69 = scmp.ne.s32.totalorder %s64, %s66
    %p70 = scmp.eq.s32.totalorder %s9, 0
    %p71 = por %p69, %p70
    %p72 = scmp.ne.s32.totalorder %s64, %s66
    %p73 = scmp.eq.s32.totalorder %s14, 1
    %p74 = por %p72, %p73
    %p75 = scmp.ne.s32.totalorder %s66, %s67
    %p76 = scmp.eq.s32.totalorder %s14, 0
    %p77 = por %p75, %p76
    %p78 = scmp.ne.s32.totalorder %s66, %s67
    %p79 = scmp.eq.s32.totalorder %s15, 1
    %p80 = por %p78, %p79
    %p82 = scmp.ne.s32.totalorder %s67, %s81
    %p83 = scmp.eq.s32.totalorder %s15, 0
    %p84 = por %p82, %p83
    %s85 = ssub.s32 %s9, %s16
    %p86 = scmp.eq.s32.totalorder %s85, 0
    %s88 = sadd.s32 %s87, 1
    %s89 = scalar_select %p86, %s87, %s88
    %p92 = pneg %p86
    %p93 = scmp.eq.s32.totalorder %s9, 1
    %p94 = por %p92, %p93
    %p95 = scmp.ne.s32.totalorder %s87, %s90
    %p96 = scmp.eq.s32.totalorder %s9, 0
    %p97 = por %p95, %p96
    %p98 = scmp.ne.s32.totalorder %s87, %s90
    %p99 = scmp.eq.s32.totalorder %s14, 1
    %p100 = por %p98, %p99
    %p101 = scmp.ne.s32.totalorder %s90, %s91
    %p102 = scmp.eq.s32.totalorder %s14, 0
    %p103 = por %p101, %p102
    %p104 = scmp.ne.s32.totalorder %s90, %s91
    %p105 = scmp.eq.s32.totalorder %s15, 1
    %p106 = por %p104, %p105
    %p108 = scmp.ne.s32.totalorder %s91, %s107
    %p109 = scmp.eq.s32.totalorder %s15, 0
    %p110 = por %p108, %p109
    %p111 = scmp.le.s32.totalorder 1, %s9
    %p112 = scmp.lt.s32.totalorder %s9, 3
    %p113 = pnand %p111, %p112
    %p114 = pneg %p113
    // Predicated region
    $region9: #{net_forward.3} parent=5 // pred_check
      _
    $region10: #{net_forward.3} parent=5 // pred_check_branch
      %116 = sbr.rel (%p113) target = $region12
    $region11: #{net_forward.3} parent=5 // pred_region
      %s117 = ssub.s32 %s9, 1
      // Predicated region
      $region13: #{net_forward.3} parent=11 // pred_check
        %p118 = pneg %p56
      $region14: #{net_forward.3} parent=11 // pred_check_branch
        %120 = sbr.rel (%p118) target = $region16
      $region15: #{net_forward.3} parent=11 // pred_region
        _
      $region16: #{net_forward.3} parent=11 // pred_fallthru
        _
      // Predicated region
      $region17: #{net_forward.3} parent=11 // pred_check
        %p121 = pneg %p77
      $region18: #{net_forward.3} parent=11 // pred_check_branch
        %123 = sbr.rel (%p121) target = $region20
      $region19: #{net_forward.3} parent=11 // pred_region
        _
      $region20: #{net_forward.3} parent=11 // pred_fallthru
        _
    $region12: #{net_forward.3} parent=5 // pred_fallthru
      _
    %p124 = scmp.lt.s32.totalorder %s9, 2
    // Predicated region
    $region21: #{net_forward.3} parent=5 // pred_check
      %p125 = pneg %p124
    $region22: #{net_forward.3} parent=5 // pred_check_branch
      %127 = sbr.rel (%p125) target = $region24
    $region23: #{net_forward.3} parent=5 // pred_region
      // Predicated region
      $region25: #{net_forward.3} parent=23 // pred_check
        %p128 = pneg %p29
      $region26: #{net_forward.3} parent=23 // pred_check_branch
        %130 = sbr.rel (%p128) target = $region28
      $region27: #{net_forward.3} parent=23 // pred_region
        %p131 = scmp.lt.s32.totalorder %s9, 1
        %s132 = scalar_select %p131, %s9, 1
        %s133 = smul.addr %s132, 400
        %s134 = smul.addr %s133, 8
        %s135 = scalar_lea.vmem %s0, %s134
      $region28: #{net_forward.3} parent=23 // pred_fallthru
        _
    $region24: #{net_forward.3} parent=5 // pred_fallthru
      _
    %p136 = scmp.le.s32.totalorder 1, %s9
    %p137 = scmp.lt.s32.totalorder %s9, 3
    %p138 = pnand %p136, %p137
    %p139 = pneg %p138
    // Predicated region
    $region29: #{net_forward.3} parent=5 // pred_check
      _
    $region30: #{net_forward.3} parent=5 // pred_check_branch
      %141 = sbr.rel (%p138) target = $region32
    $region31: #{net_forward.3} parent=5 // pred_region
      %s142 = ssub.s32 %s9, 1
      %p143 = scmp.lt.s32.totalorder %s14, 1
      %s144 = scalar_select %p143, %s14, 1
      %s145 = smul.addr %s144, 400
      %s146 = smul.addr %s145, 8
      %s147 = scalar_lea.vmem %s0, %s146
      %p148 = pneg %p35
      %p149 = pneg %p32
      %p150 = pneg %p56
      %p151 = pneg %p53
      %p152 = pneg %p77
      %p153 = pneg %p74
      %p154 = pneg %p103
      %p155 = pneg %p100
      %p156 = scmp.lt.s32.totalorder %s14, 1
      %s157 = scalar_select %p156, %s14, 1
      %s158 = smul.addr %s157, 190
      %s159 = smul.addr %s158, 8
      %s160 = scalar_lea.vmem %s3, %s159
      %p161 = scmp.lt.s32.totalorder %s14, 1
      %s162 = scalar_select %p161, %s14, 1
      %s163 = smul.addr %s162, 400
      %s164 = smul.addr %s163, 8
      %s165 = scalar_lea.vmem %s0, %s164
      %p166 = scmp.lt.s32.totalorder %s14, 1
      %s167 = scalar_select %p166, %s14, 1
      %s168 = smul.addr %s167, 190
      %s169 = smul.addr %s168, 8
      %s170 = scalar_lea.vmem %s3, %s169
      loop: start=0, step=1, limit=80
      $region33: #{net_forward.3} parent=31 // loop_pre_header
        _
      $region34: #{net_forward.3} parent=31 // loop_header
        %s172 = sphi 0, %s176
        %p173 = scmp.ge.s32.totalorder %s172, 80
      $region35: #{net_forward.3} parent=31 // loop_header_branch
        %175 = sbr.rel (%p173) target = $region39
      $region36: #{net_forward.3} parent=31 // loop_body
        %s177 = smul.u32 %s172, 40
        %s178 = scalar_lea.vmem %s165, %s177
        %v179 = vld [vmem:[%s178] sm:$0xff]
        %v180 = vld [vmem:[%s178 + $0x8] sm:$0xff]
        %v181 = vld [vmem:[%s178 + $0x10] sm:$0xff]
        %v182 = vld [vmem:[%s178 + $0x18] sm:$0xff]
        %v183 = vld [vmem:[%s178 + $0x20] sm:$0x3f]
        %s184 = scalar_lea.vmem [#allocation2], %s177
        %vm185 = vcmask 23552
        %186 = vst.msk [vmem:[%s184] sm:$0xff] %vm185, %v179
        %187 = vst.msk [vmem:[%s184 + $0x8] sm:$0xff] %vm185, %v180
        %188 = vst.msk [vmem:[%s184 + $0x10] sm:$0xff] %vm185, %v181
        %189 = vst.msk [vmem:[%s184 + $0x18] sm:$0xff] %vm185, %v182
        %vm190 = vcmask 21504
        %191 = vst.msk [vmem:[%s184 + $0x20] sm:$0x3f] %vm190, %v183
        %v192 = vld [vmem:[%s178] sm:$0xff]
        %v193 = vld [vmem:[%s178 + $0x8] sm:$0xff]
        %v194 = vld [vmem:[%s178 + $0x10] sm:$0xff]
        %v195 = vld [vmem:[%s178 + $0x18] sm:$0xff]
        %v196 = vld [vmem:[%s178 + $0x20] sm:$0x3f]
        %vm197 = vcmask 48152
        %198 = vst.msk [vmem:[%s184] sm:$0xff] %vm197, %v192
        %199 = vst.msk [vmem:[%s184 + $0x8] sm:$0xff] %vm197, %v193
        %200 = vst.msk [vmem:[%s184 + $0x10] sm:$0xff] %vm197, %v194
        %201 = vst.msk [vmem:[%s184 + $0x18] sm:$0xff] %vm197, %v195
        %vm202 = vcmask 46104
        %203 = vst.msk [vmem:[%s184 + $0x20] sm:$0x3f] %vm202, %v196
        %v204 = vld [vmem:[%s178 + $0x1] sm:$0xff]
        %v205 = vld [vmem:[%s178 + $0x9] sm:$0xff]
        %v206 = vld [vmem:[%s178 + $0x11] sm:$0xff]
        %v207 = vld [vmem:[%s178 + $0x19] sm:$0xff]
        %v208 = vld [vmem:[%s178 + $0x21] sm:$0x3f]
        %214 = vrot.lane.b32.xlu0 %v204, 6
        %v215 = vpop.permute.xlu0 %214
        %216 = vrot.lane.b32.xlu0 %v205, 6
        %v217 = vpop.permute.xlu0 %216
        %218 = vrot.lane.b32.xlu0 %v206, 6
        %v219 = vpop.permute.xlu0 %218
        %220 = vrot.lane.b32.xlu0 %v207, 6
        %v221 = vpop.permute.xlu0 %220
        %222 = vrot.lane.b32.xlu0 %v208, 6
        %v223 = vpop.permute.xlu0 %222
        %vm229 = vcmask 72752
        %230 = vst.msk [vmem:[%s184] sm:$0xff] %vm229, %v215
        %231 = vst.msk [vmem:[%s184 + $0x8] sm:$0xff] %vm229, %v217
        %232 = vst.msk [vmem:[%s184 + $0x10] sm:$0xff] %vm229, %v219
        %233 = vst.msk [vmem:[%s184 + $0x18] sm:$0xff] %vm229, %v221
        %vm234 = vcmask 70704
        %235 = vst.msk [vmem:[%s184 + $0x20] sm:$0x3f] %vm234, %v223
        %v236 = vld [vmem:[%s178 + $0x1] sm:$0xff]
        %v237 = vld [vmem:[%s178 + $0x9] sm:$0xff]
        %v238 = vld [vmem:[%s178 + $0x11] sm:$0xff]
        %v239 = vld [vmem:[%s178 + $0x19] sm:$0xff]
        %v240 = vld [vmem:[%s178 + $0x21] sm:$0x3f]
        %246 = vrot.lane.b32.xlu0 %v236, 6
        %v247 = vpop.permute.xlu0 %246
        %248 = vrot.lane.b32.xlu0 %v237, 6
        %v249 = vpop.permute.xlu0 %248
        %250 = vrot.lane.b32.xlu0 %v238, 6
        %v251 = vpop.permute.xlu0 %250
        %252 = vrot.lane.b32.xlu0 %v239, 6
        %v253 = vpop.permute.xlu0 %252
        %254 = vrot.lane.b32.xlu0 %v240, 6
        %v255 = vpop.permute.xlu0 %254
        %vm261 = vcmask 97352
        %262 = vst.msk [vmem:[%s184] sm:$0xff] %vm261, %v247
        %263 = vst.msk [vmem:[%s184 + $0x8] sm:$0xff] %vm261, %v249
        %264 = vst.msk [vmem:[%s184 + $0x10] sm:$0xff] %vm261, %v251
        %265 = vst.msk [vmem:[%s184 + $0x18] sm:$0xff] %vm261, %v253
        %vm266 = vcmask 95304
        %267 = vst.msk [vmem:[%s184 + $0x20] sm:$0x3f] %vm266, %v255
        %v268 = vld [vmem:[%s178 + $0x2] sm:$0xff]
        %v269 = vld [vmem:[%s178 + $0xa] sm:$0xff]
        %v270 = vld [vmem:[%s178 + $0x12] sm:$0xff]
        %v271 = vld [vmem:[%s178 + $0x1a] sm:$0xff]
        %v272 = vld [vmem:[%s178 + $0x22] sm:$0x3f]
        %278 = vrot.lane.b32.xlu0 %v268, 12
        %v279 = vpop.permute.xlu0 %278
        %280 = vrot.lane.b32.xlu0 %v269, 12
        %v281 = vpop.permute.xlu0 %280
        %282 = vrot.lane.b32.xlu0 %v270, 12
        %v283 = vpop.permute.xlu0 %282
        %284 = vrot.lane.b32.xlu0 %v271, 12
        %v285 = vpop.permute.xlu0 %284
        %286 = vrot.lane.b32.xlu0 %v272, 12
        %v287 = vpop.permute.xlu0 %286
        %vm293 = vcmask 121952
        %294 = vst.msk [vmem:[%s184] sm:$0xff] %vm293, %v279
        %295 = vst.msk [vmem:[%s184 + $0x8] sm:$0xff] %vm293, %v281
        %296 = vst.msk [vmem:[%s184 + $0x10] sm:$0xff] %vm293, %v283
        %297 = vst.msk [vmem:[%s184 + $0x18] sm:$0xff] %vm293, %v285
        %vm298 = vcmask 119904
        %299 = vst.msk [vmem:[%s184 + $0x20] sm:$0x3f] %vm298, %v287
        %v300 = vld [vmem:[%s178 + $0x2] sm:$0xff]
        %v301 = vld [vmem:[%s178 + $0xa] sm:$0xff]
        %v302 = vld [vmem:[%s178 + $0x12] sm:$0xff]
        %v303 = vld [vmem:[%s178 + $0x1a] sm:$0xff]
        %v304 = vld [vmem:[%s178 + $0x22] sm:$0x3f]
        %310 = vrot.lane.b32.xlu0 %v300, 12
        %v311 = vpop.permute.xlu0 %310
        %312 = vrot.lane.b32.xlu0 %v301, 12
        %v313 = vpop.permute.xlu0 %312
        %314 = vrot.lane.b32.xlu0 %v302, 12
        %v315 = vpop.permute.xlu0 %314
        %316 = vrot.lane.b32.xlu0 %v303, 12
        %v317 = vpop.permute.xlu0 %316
        %318 = vrot.lane.b32.xlu0 %v304, 12
        %v319 = vpop.permute.xlu0 %318
        %vm325 = vcmask 146552
        %326 = vst.msk [vmem:[%s184] sm:$0xff] %vm325, %v311
        %327 = vst.msk [vmem:[%s184 + $0x8] sm:$0xff] %vm325, %v313
        %328 = vst.msk [vmem:[%s184 + $0x10] sm:$0xff] %vm325, %v315
        %329 = vst.msk [vmem:[%s184 + $0x18] sm:$0xff] %vm325, %v317
        %vm330 = vcmask 144504
        %331 = vst.msk [vmem:[%s184 + $0x20] sm:$0x3f] %vm330, %v319
      $region37: #{net_forward.3} parent=31 // loop_footer
        %s176 = sadd.s32 1, %s172
      $region38: #{net_forward.3} parent=31 // loop_footer_branch
        %171 = sbr.rel target = $region34
      $region39: #{net_forward.3} parent=31 // loop_exit
        _
      loop: start=0, step=1, limit=38
      $region40: #{net_forward.3} parent=31 // loop_pre_header
        _
      $region41: #{net_forward.3} parent=31 // loop_header
        %s333 = sphi 0, %s337
        %p334 = scmp.ge.s32.totalorder %s333, 38
      $region42: #{net_forward.3} parent=31 // loop_header_branch
        %336 = sbr.rel (%p334) target = $region46
      $region43: #{net_forward.3} parent=31 // loop_body
        %s338 = smul.u32 %s333, 2
        %s339 = smul.u32 %s338, 40
        %s340 = scalar_lea.vmem [#allocation2], %s339
        %v341 = vld [vmem:[%s340] sm:$0xff]
        %v342 = vld [vmem:[%s340 + $0x8] sm:$0xff]
        %v343 = vld [vmem:[%s340 + $0x10] sm:$0xff]
        %v344 = vld [vmem:[%s340 + $0x18] sm:$0xff]
        %v345 = vld [vmem:[%s340 + $0x20] sm:$0x3f]
        %vm346 = vcmask 121856
        %347 = vst.msk [vmem:[#allocation3] sm:$0xff] %vm346, %v341
        %348 = vst.msk [vmem:[#allocation3 + $0x8] sm:$0xff] %vm346, %v342
        %349 = vst.msk [vmem:[#allocation3 + $0x10] sm:$0xff] %vm346, %v343
        %350 = vst.msk [vmem:[#allocation3 + $0x18] sm:$0xff] %vm346, %v344
        %vm351 = vcmask 119808
        %352 = vst.msk [vmem:[#allocation3 + $0x20] sm:$0x3f] %vm351, %v345
        %s353 = sadd.s32 %s338, 1
        %s354 = smul.u32 %s353, 40
        %s355 = scalar_lea.vmem [#allocation2], %s354
        %v356 = vld [vmem:[%s355] sm:$0xff]
        %v357 = vld [vmem:[%s355 + $0x8] sm:$0xff]
        %v358 = vld [vmem:[%s355 + $0x10] sm:$0xff]
        %v359 = vld [vmem:[%s355 + $0x18] sm:$0xff]
        %v360 = vld [vmem:[%s355 + $0x20] sm:$0x3f]
        %366 = vrot.lane.b32.xlu0 %v356, 15
        %v367 = vpop.permute.xlu0 %366
        %368 = vrot.lane.b32.xlu0 %v357, 15
        %v369 = vpop.permute.xlu0 %368
        %370 = vrot.lane.b32.xlu0 %v358, 15
        %v371 = vpop.permute.xlu0 %370
        %372 = vrot.lane.b32.xlu0 %v359, 15
        %v373 = vpop.permute.xlu0 %372
        %374 = vrot.lane.b32.xlu0 %v360, 15
        %v375 = vpop.permute.xlu0 %374
        %vm381 = vcmask 244856
        %382 = vst.msk [vmem:[#allocation3] sm:$0xff] %vm381, %v367
        %383 = vst.msk [vmem:[#allocation3 + $0x8] sm:$0xff] %vm381, %v369
        %384 = vst.msk [vmem:[#allocation3 + $0x10] sm:$0xff] %vm381, %v371
        %385 = vst.msk [vmem:[#allocation3 + $0x18] sm:$0xff] %vm381, %v373
        %vm386 = vcmask 242808
        %387 = vst.msk [vmem:[#allocation3 + $0x20] sm:$0x3f] %vm386, %v375
        %s388 = sadd.s32 %s338, 2
        %s389 = smul.u32 %s388, 40
        %s390 = scalar_lea.vmem [#allocation2], %s389
        %v391 = vld [vmem:[%s390] sm:$0xff]
        %v392 = vld [vmem:[%s390 + $0x8] sm:$0xff]
        %v393 = vld [vmem:[%s390 + $0x10] sm:$0xff]
        %v394 = vld [vmem:[%s390 + $0x18] sm:$0xff]
        %v395 = vld [vmem:[%s390 + $0x20] sm:$0x3f]
        %401 = vrot.lane.b32.xlu0 %v391, 30
        %v402 = vpop.permute.xlu0 %401
        %403 = vrot.lane.b32.xlu0 %v392, 30
        %v404 = vpop.permute.xlu0 %403
        %405 = vrot.lane.b32.xlu0 %v393, 30
        %v406 = vpop.permute.xlu0 %405
        %407 = vrot.lane.b32.xlu0 %v394, 30
        %v408 = vpop.permute.xlu0 %407
        %409 = vrot.lane.b32.xlu0 %v395, 30
        %v410 = vpop.permute.xlu0 %409
        %vm416 = vcmask 367856
        %417 = vst.msk [vmem:[#allocation3] sm:$0xff] %vm416, %v402
        %418 = vst.msk [vmem:[#allocation3 + $0x8] sm:$0xff] %vm416, %v404
        %419 = vst.msk [vmem:[#allocation3 + $0x10] sm:$0xff] %vm416, %v406
        %420 = vst.msk [vmem:[#allocation3 + $0x18] sm:$0xff] %vm416, %v408
        %vm421 = vcmask 365808
        %422 = vst.msk [vmem:[#allocation3 + $0x20] sm:$0x3f] %vm421, %v410
        %s423 = sadd.s32 %s338, 3
        %s424 = smul.u32 %s423, 40
        %s425 = scalar_lea.vmem [#allocation2], %s424
        %v426 = vld [vmem:[%s425] sm:$0xff]
        %v427 = vld [vmem:[%s425 + $0x8] sm:$0xff]
        %v428 = vld [vmem:[%s425 + $0x10] sm:$0xff]
        %v429 = vld [vmem:[%s425 + $0x18] sm:$0xff]
        %v430 = vld [vmem:[%s425 + $0x20] sm:$0x3f]
        %436 = vrot.lane.b32.xlu0 %v426, 45
        %v437 = vpop.permute.xlu0 %436
        %438 = vrot.lane.b32.xlu0 %v427, 45
        %v439 = vpop.permute.xlu0 %438
        %440 = vrot.lane.b32.xlu0 %v428, 45
        %v441 = vpop.permute.xlu0 %440
        %442 = vrot.lane.b32.xlu0 %v429, 45
        %v443 = vpop.permute.xlu0 %442
        %444 = vrot.lane.b32.xlu0 %v430, 45
        %v445 = vpop.permute.xlu0 %444
        %vm451 = vcmask 490856
        %452 = vst.msk [vmem:[#allocation3] sm:$0xff] %vm451, %v437
        %453 = vst.msk [vmem:[#allocation3 + $0x8] sm:$0xff] %vm451, %v439
        %454 = vst.msk [vmem:[#allocation3 + $0x10] sm:$0xff] %vm451, %v441
        %455 = vst.msk [vmem:[#allocation3 + $0x18] sm:$0xff] %vm451, %v443
        %vm456 = vcmask 488808
        %457 = vst.msk [vmem:[#allocation3 + $0x20] sm:$0x3f] %vm456, %v445
        %s458 = sadd.s32 %s338, 4
        %s459 = smul.u32 %s458, 40
        %s460 = scalar_lea.vmem [#allocation2], %s459
        %v461 = vld [vmem:[%s460] sm:$0xff]
        %v462 = vld [vmem:[%s460 + $0x8] sm:$0xff]
        %v463 = vld [vmem:[%s460 + $0x10] sm:$0xff]
        %v464 = vld [vmem:[%s460 + $0x18] sm:$0xff]
        %v465 = vld [vmem:[%s460 + $0x20] sm:$0x3f]
        %471 = vrot.lane.b32.xlu0 %v461, 60
        %v472 = vpop.permute.xlu0 %471
        %473 = vrot.lane.b32.xlu0 %v462, 60
        %v474 = vpop.permute.xlu0 %473
        %475 = vrot.lane.b32.xlu0 %v463, 60
        %v476 = vpop.permute.xlu0 %475
        %477 = vrot.lane.b32.xlu0 %v464, 60
        %v478 = vpop.permute.xlu0 %477
        %479 = vrot.lane.b32.xlu0 %v465, 60
        %v480 = vpop.permute.xlu0 %479
        %vm486 = vcmask 613856
        %487 = vst.msk [vmem:[#allocation3] sm:$0xff] %vm486, %v472
        %488 = vst.msk [vmem:[#allocation3 + $0x8] sm:$0xff] %vm486, %v474
        %489 = vst.msk [vmem:[#allocation3 + $0x10] sm:$0xff] %vm486, %v476
        %490 = vst.msk [vmem:[#allocation3 + $0x18] sm:$0xff] %vm486, %v478
        %vm491 = vcmask 611808
        %492 = vst.msk [vmem:[#allocation3 + $0x20] sm:$0x3f] %vm491, %v480
        %v493 = vld [vmem:[%s340] sm:$0xff]
        %v494 = vld [vmem:[%s340 + $0x8] sm:$0xff]
        %v495 = vld [vmem:[%s340 + $0x10] sm:$0xff]
        %v496 = vld [vmem:[%s340 + $0x18] sm:$0xff]
        %v497 = vld [vmem:[%s340 + $0x20] sm:$0x3f]
        %503 = vrot.lane.b32.xlu0 %v493, 125
        %v504 = vpop.permute.xlu0 %503
        %505 = vrot.lane.b32.xlu0 %v494, 125
        %v506 = vpop.permute.xlu0 %505
        %507 = vrot.lane.b32.xlu0 %v495, 125
        %v508 = vpop.permute.xlu0 %507
        %509 = vrot.lane.b32.xlu0 %v496, 125
        %v510 = vpop.permute.xlu0 %509
        %511 = vrot.lane.b32.xlu0 %v497, 125
        %v512 = vpop.permute.xlu0 %511
        %s518 = scalar_lea.vmem [#allocation3], 40
        %519 = vst.msk [vmem:[%s518] sm:$0xff] %vm346, %v504
        %520 = vst.msk [vmem:[%s518 + $0x8] sm:$0xff] %vm346, %v506
        %521 = vst.msk [vmem:[%s518 + $0x10] sm:$0xff] %vm346, %v508
        %522 = vst.msk [vmem:[%s518 + $0x18] sm:$0xff] %vm346, %v510
        %523 = vst.msk [vmem:[%s518 + $0x20] sm:$0x3f] %vm351, %v512
        %v524 = vld [vmem:[%s355] sm:$0xff]
        %v525 = vld [vmem:[%s355 + $0x8] sm:$0xff]
        %v526 = vld [vmem:[%s355 + $0x10] sm:$0xff]
        %v527 = vld [vmem:[%s355 + $0x18] sm:$0xff]
        %v528 = vld [vmem:[%s355 + $0x20] sm:$0x3f]
        %534 = vrot.lane.b32.xlu0 %v524, 12
        %v535 = vpop.permute.xlu0 %534
        %536 = vrot.lane.b32.xlu0 %v525, 12
        %v537 = vpop.permute.xlu0 %536
        %538 = vrot.lane.b32.xlu0 %v526, 12
        %v539 = vpop.permute.xlu0 %538
        %540 = vrot.lane.b32.xlu0 %v527, 12
        %v541 = vpop.permute.xlu0 %540
        %542 = vrot.lane.b32.xlu0 %v528, 12
        %v543 = vpop.permute.xlu0 %542
        %549 = vst.msk [vmem:[%s518] sm:$0xff] %vm381, %v535
        %550 = vst.msk [vmem:[%s518 + $0x8] sm:$0xff] %vm381, %v537
        %551 = vst.msk [vmem:[%s518 + $0x10] sm:$0xff] %vm381, %v539
        %552 = vst.msk [vmem:[%s518 + $0x18] sm:$0xff] %vm381, %v541
        %553 = vst.msk [vmem:[%s518 + $0x20] sm:$0x3f] %vm386, %v543
        %v554 = vld [vmem:[%s390] sm:$0xff]
        %v555 = vld [vmem:[%s390 + $0x8] sm:$0xff]
        %v556 = vld [vmem:[%s390 + $0x10] sm:$0xff]
        %v557 = vld [vmem:[%s390 + $0x18] sm:$0xff]
        %v558 = vld [vmem:[%s390 + $0x20] sm:$0x3f]
        %564 = vrot.lane.b32.xlu0 %v554, 27
        %v565 = vpop.permute.xlu0 %564
        %566 = vrot.lane.b32.xlu0 %v555, 27
        %v567 = vpop.permute.xlu0 %566
        %568 = vrot.lane.b32.xlu0 %v556, 27
        %v569 = vpop.permute.xlu0 %568
        %570 = vrot.lane.b32.xlu0 %v557, 27
        %v571 = vpop.permute.xlu0 %570
        %572 = vrot.lane.b32.xlu0 %v558, 27
        %v573 = vpop.permute.xlu0 %572
        %579 = vst.msk [vmem:[%s518] sm:$0xff] %vm416, %v565
        %580 = vst.msk [vmem:[%s518 + $0x8] sm:$0xff] %vm416, %v567
        %581 = vst.msk [vmem:[%s518 + $0x10] sm:$0xff] %vm416, %v569
        %582 = vst.msk [vmem:[%s518 + $0x18] sm:$0xff] %vm416, %v571
        %583 = vst.msk [vmem:[%s518 + $0x20] sm:$0x3f] %vm421, %v573
        %v584 = vld [vmem:[%s425] sm:$0xff]
        %v585 = vld [vmem:[%s425 + $0x8] sm:$0xff]
        %v586 = vld [vmem:[%s425 + $0x10] sm:$0xff]
        %v587 = vld [vmem:[%s425 + $0x18] sm:$0xff]
        %v588 = vld [vmem:[%s425 + $0x20] sm:$0x3f]
        %594 = vrot.lane.b32.xlu0 %v584, 42
        %v595 = vpop.permute.xlu0 %594
        %596 = vrot.lane.b32.xlu0 %v585, 42
        %v597 = vpop.permute.xlu0 %596
        %598 = vrot.lane.b32.xlu0 %v586, 42
        %v599 = vpop.permute.xlu0 %598
        %600 = vrot.lane.b32.xlu0 %v587, 42
        %v601 = vpop.permute.xlu0 %600
        %602 = vrot.lane.b32.xlu0 %v588, 42
        %v603 = vpop.permute.xlu0 %602
        %609 = vst.msk [vmem:[%s518] sm:$0xff] %vm451, %v595
        %610 = vst.msk [vmem:[%s518 + $0x8] sm:$0xff] %vm451, %v597
        %611 = vst.msk [vmem:[%s518 + $0x10] sm:$0xff] %vm451, %v599
        %612 = vst.msk [vmem:[%s518 + $0x18] sm:$0xff] %vm451, %v601
        %613 = vst.msk [vmem:[%s518 + $0x20] sm:$0x3f] %vm456, %v603
        %v614 = vld [vmem:[%s460] sm:$0xff]
        %v615 = vld [vmem:[%s460 + $0x8] sm:$0xff]
        %v616 = vld [vmem:[%s460 + $0x10] sm:$0xff]
        %v617 = vld [vmem:[%s460 + $0x18] sm:$0xff]
        %v618 = vld [vmem:[%s460 + $0x20] sm:$0x3f]
        %624 = vrot.lane.b32.xlu0 %v614, 57
        %v625 = vpop.permute.xlu0 %624
        %626 = vrot.lane.b32.xlu0 %v615, 57
        %v627 = vpop.permute.xlu0 %626
        %628 = vrot.lane.b32.xlu0 %v616, 57
        %v629 = vpop.permute.xlu0 %628
        %630 = vrot.lane.b32.xlu0 %v617, 57
        %v631 = vpop.permute.xlu0 %630
        %632 = vrot.lane.b32.xlu0 %v618, 57
        %v633 = vpop.permute.xlu0 %632
        %639 = vst.msk [vmem:[%s518] sm:$0xff] %vm486, %v625
        %640 = vst.msk [vmem:[%s518 + $0x8] sm:$0xff] %vm486, %v627
        %641 = vst.msk [vmem:[%s518 + $0x10] sm:$0xff] %vm486, %v629
        %642 = vst.msk [vmem:[%s518 + $0x18] sm:$0xff] %vm486, %v631
        %643 = vst.msk [vmem:[%s518 + $0x20] sm:$0x3f] %vm491, %v633
        %v644 = vld [vmem:[%s355] sm:$0xff]
        %v645 = vld [vmem:[%s355 + $0x8] sm:$0xff]
        %v646 = vld [vmem:[%s355 + $0x10] sm:$0xff]
        %v647 = vld [vmem:[%s355 + $0x18] sm:$0xff]
        %v648 = vld [vmem:[%s355 + $0x20] sm:$0x3f]
        %s649 = scalar_lea.vmem [#allocation3], 80
        %650 = vst.msk [vmem:[%s649] sm:$0xff] %vm346, %v644
        %651 = vst.msk [vmem:[%s649 + $0x8] sm:$0xff] %vm346, %v645
        %652 = vst.msk [vmem:[%s649 + $0x10] sm:$0xff] %vm346, %v646
        %653 = vst.msk [vmem:[%s649 + $0x18] sm:$0xff] %vm346, %v647
        %654 = vst.msk [vmem:[%s649 + $0x20] sm:$0x3f] %vm351, %v648
        %v655 = vld [vmem:[%s390] sm:$0xff]
        %v656 = vld [vmem:[%s390 + $0x8] sm:$0xff]
        %v657 = vld [vmem:[%s390 + $0x10] sm:$0xff]
        %v658 = vld [vmem:[%s390 + $0x18] sm:$0xff]
        %v659 = vld [vmem:[%s390 + $0x20] sm:$0x3f]
        %665 = vrot.lane.b32.xlu0 %v655, 15
        %v666 = vpop.permute.xlu0 %665
        %667 = vrot.lane.b32.xlu0 %v656, 15
        %v668 = vpop.permute.xlu0 %667
        %669 = vrot.lane.b32.xlu0 %v657, 15
        %v670 = vpop.permute.xlu0 %669
        %671 = vrot.lane.b32.xlu0 %v658, 15
        %v672 = vpop.permute.xlu0 %671
        %673 = vrot.lane.b32.xlu0 %v659, 15
        %v674 = vpop.permute.xlu0 %673
        %680 = vst.msk [vmem:[%s649] sm:$0xff] %vm381, %v666
        %681 = vst.msk [vmem:[%s649 + $0x8] sm:$0xff] %vm381, %v668
        %682 = vst.msk [vmem:[%s649 + $0x10] sm:$0xff] %vm381, %v670
        %683 = vst.msk [vmem:[%s649 + $0x18] sm:$0xff] %vm381, %v672
        %684 = vst.msk [vmem:[%s649 + $0x20] sm:$0x3f] %vm386, %v674
        %v685 = vld [vmem:[%s425] sm:$0xff]
        %v686 = vld [vmem:[%s425 + $0x8] sm:$0xff]
        %v687 = vld [vmem:[%s425 + $0x10] sm:$0xff]
        %v688 = vld [vmem:[%s425 + $0x18] sm:$0xff]
        %v689 = vld [vmem:[%s425 + $0x20] sm:$0x3f]
        %695 = vrot.lane.b32.xlu0 %v685, 30
        %v696 = vpop.permute.xlu0 %695
        %697 = vrot.lane.b32.xlu0 %v686, 30
        %v698 = vpop.permute.xlu0 %697
        %699 = vrot.lane.b32.xlu0 %v687, 30
        %v700 = vpop.permute.xlu0 %699
        %701 = vrot.lane.b32.xlu0 %v688, 30
        %v702 = vpop.permute.xlu0 %701
        %703 = vrot.lane.b32.xlu0 %v689, 30
        %v704 = vpop.permute.xlu0 %703
        %710 = vst.msk [vmem:[%s649] sm:$0xff] %vm416, %v696
        %711 = vst.msk [vmem:[%s649 + $0x8] sm:$0xff] %vm416, %v698
        %712 = vst.msk [vmem:[%s649 + $0x10] sm:$0xff] %vm416, %v700
        %713 = vst.msk [vmem:[%s649 + $0x18] sm:$0xff] %vm416, %v702
        %714 = vst.msk [vmem:[%s649 + $0x20] sm:$0x3f] %vm421, %v704
        %v715 = vld [vmem:[%s460] sm:$0xff]
        %v716 = vld [vmem:[%s460 + $0x8] sm:$0xff]
        %v717 = vld [vmem:[%s460 + $0x10] sm:$0xff]
        %v718 = vld [vmem:[%s460 + $0x18] sm:$0xff]
        %v719 = vld [vmem:[%s460 + $0x20] sm:$0x3f]
        %725 = vrot.lane.b32.xlu0 %v715, 45
        %v726 = vpop.permute.xlu0 %725
        %727 = vrot.lane.b32.xlu0 %v716, 45
        %v728 = vpop.permute.xlu0 %727
        %729 = vrot.lane.b32.xlu0 %v717, 45
        %v730 = vpop.permute.xlu0 %729
        %731 = vrot.lane.b32.xlu0 %v718, 45
        %v732 = vpop.permute.xlu0 %731
        %733 = vrot.lane.b32.xlu0 %v719, 45
        %v734 = vpop.permute.xlu0 %733
        %740 = vst.msk [vmem:[%s649] sm:$0xff] %vm451, %v726
        %741 = vst.msk [vmem:[%s649 + $0x8] sm:$0xff] %vm451, %v728
        %742 = vst.msk [vmem:[%s649 + $0x10] sm:$0xff] %vm451, %v730
        %743 = vst.msk [vmem:[%s649 + $0x18] sm:$0xff] %vm451, %v732
        %744 = vst.msk [vmem:[%s649 + $0x20] sm:$0x3f] %vm456, %v734
        %s745 = sadd.s32 %s338, 5
        %s746 = smul.u32 %s745, 40
        %s747 = scalar_lea.vmem [#allocation2], %s746
        %v748 = vld [vmem:[%s747] sm:$0xff]
        %v749 = vld [vmem:[%s747 + $0x8] sm:$0xff]
        %v750 = vld [vmem:[%s747 + $0x10] sm:$0xff]
        %v751 = vld [vmem:[%s747 + $0x18] sm:$0xff]
        %v752 = vld [vmem:[%s747 + $0x20] sm:$0x3f]
        %758 = vrot.lane.b32.xlu0 %v748, 60
        %v759 = vpop.permute.xlu0 %758
        %760 = vrot.lane.b32.xlu0 %v749, 60
        %v761 = vpop.permute.xlu0 %760
        %762 = vrot.lane.b32.xlu0 %v750, 60
        %v763 = vpop.permute.xlu0 %762
        %764 = vrot.lane.b32.xlu0 %v751, 60
        %v765 = vpop.permute.xlu0 %764
        %766 = vrot.lane.b32.xlu0 %v752, 60
        %v767 = vpop.permute.xlu0 %766
        %773 = vst.msk [vmem:[%s649] sm:$0xff] %vm486, %v759
        %774 = vst.msk [vmem:[%s649 + $0x8] sm:$0xff] %vm486, %v761
        %775 = vst.msk [vmem:[%s649 + $0x10] sm:$0xff] %vm486, %v763
        %776 = vst.msk [vmem:[%s649 + $0x18] sm:$0xff] %vm486, %v765
        %777 = vst.msk [vmem:[%s649 + $0x20] sm:$0x3f] %vm491, %v767
        %v778 = vld [vmem:[%s355] sm:$0xff]
        %v779 = vld [vmem:[%s355 + $0x8] sm:$0xff]
        %v780 = vld [vmem:[%s355 + $0x10] sm:$0xff]
        %v781 = vld [vmem:[%s355 + $0x18] sm:$0xff]
        %v782 = vld [vmem:[%s355 + $0x20] sm:$0x3f]
        %788 = vrot.lane.b32.xlu0 %v778, 125
        %v789 = vpop.permute.xlu0 %788
        %790 = vrot.lane.b32.xlu0 %v779, 125
        %v791 = vpop.permute.xlu0 %790
        %792 = vrot.lane.b32.xlu0 %v780, 125
        %v793 = vpop.permute.xlu0 %792
        %794 = vrot.lane.b32.xlu0 %v781, 125
        %v795 = vpop.permute.xlu0 %794
        %796 = vrot.lane.b32.xlu0 %v782, 125
        %v797 = vpop.permute.xlu0 %796
        %s803 = scalar_lea.vmem [#allocation3], 120
        %804 = vst.msk [vmem:[%s803] sm:$0xff] %vm346, %v789
        %805 = vst.msk [vmem:[%s803 + $0x8] sm:$0xff] %vm346, %v791
        %806 = vst.msk [vmem:[%s803 + $0x10] sm:$0xff] %vm346, %v793
        %807 = vst.msk [vmem:[%s803 + $0x18] sm:$0xff] %vm346, %v795
        %808 = vst.msk [vmem:[%s803 + $0x20] sm:$0x3f] %vm351, %v797
        %v809 = vld [vmem:[%s390] sm:$0xff]
        %v810 = vld [vmem:[%s390 + $0x8] sm:$0xff]
        %v811 = vld [vmem:[%s390 + $0x10] sm:$0xff]
        %v812 = vld [vmem:[%s390 + $0x18] sm:$0xff]
        %v813 = vld [vmem:[%s390 + $0x20] sm:$0x3f]
        %819 = vrot.lane.b32.xlu0 %v809, 12
        %v820 = vpop.permute.xlu0 %819
        %821 = vrot.lane.b32.xlu0 %v810, 12
        %v822 = vpop.permute.xlu0 %821
        %823 = vrot.lane.b32.xlu0 %v811, 12
        %v824 = vpop.permute.xlu0 %823
        %825 = vrot.lane.b32.xlu0 %v812, 12
        %v826 = vpop.permute.xlu0 %825
        %827 = vrot.lane.b32.xlu0 %v813, 12
        %v828 = vpop.permute.xlu0 %827
        %834 = vst.msk [vmem:[%s803] sm:$0xff] %vm381, %v820
        %835 = vst.msk [vmem:[%s803 + $0x8] sm:$0xff] %vm381, %v822
        %836 = vst.msk [vmem:[%s803 + $0x10] sm:$0xff] %vm381, %v824
        %837 = vst.msk [vmem:[%s803 + $0x18] sm:$0xff] %vm381, %v826
        %838 = vst.msk [vmem:[%s803 + $0x20] sm:$0x3f] %vm386, %v828
        %v839 = vld [vmem:[%s425] sm:$0xff]
        %v840 = vld [vmem:[%s425 + $0x8] sm:$0xff]
        %v841 = vld [vmem:[%s425 + $0x10] sm:$0xff]
        %v842 = vld [vmem:[%s425 + $0x18] sm:$0xff]
        %v843 = vld [vmem:[%s425 + $0x20] sm:$0x3f]
        %849 = vrot.lane.b32.xlu0 %v839, 27
        %v850 = vpop.permute.xlu0 %849
        %851 = vrot.lane.b32.xlu0 %v840, 27
        %v852 = vpop.permute.xlu0 %851
        %853 = vrot.lane.b32.xlu0 %v841, 27
        %v854 = vpop.permute.xlu0 %853
        %855 = vrot.lane.b32.xlu0 %v842, 27
        %v856 = vpop.permute.xlu0 %855
        %857 = vrot.lane.b32.xlu0 %v843, 27
        %v858 = vpop.permute.xlu0 %857
        %864 = vst.msk [vmem:[%s803] sm:$0xff] %vm416, %v850
        %865 = vst.msk [vmem:[%s803 + $0x8] sm:$0xff] %vm416, %v852
        %866 = vst.msk [vmem:[%s803 + $0x10] sm:$0xff] %vm416, %v854
        %867 = vst.msk [vmem:[%s803 + $0x18] sm:$0xff] %vm416, %v856
        %868 = vst.msk [vmem:[%s803 + $0x20] sm:$0x3f] %vm421, %v858
        %v869 = vld [vmem:[%s460] sm:$0xff]
        %v870 = vld [vmem:[%s460 + $0x8] sm:$0xff]
        %v871 = vld [vmem:[%s460 + $0x10] sm:$0xff]
        %v872 = vld [vmem:[%s460 + $0x18] sm:$0xff]
        %v873 = vld [vmem:[%s460 + $0x20] sm:$0x3f]
        %879 = vrot.lane.b32.xlu0 %v869, 42
        %v880 = vpop.permute.xlu0 %879
        %881 = vrot.lane.b32.xlu0 %v870, 42
        %v882 = vpop.permute.xlu0 %881
        %883 = vrot.lane.b32.xlu0 %v871, 42
        %v884 = vpop.permute.xlu0 %883
        %885 = vrot.lane.b32.xlu0 %v872, 42
        %v886 = vpop.permute.xlu0 %885
        %887 = vrot.lane.b32.xlu0 %v873, 42
        %v888 = vpop.permute.xlu0 %887
        %894 = vst.msk [vmem:[%s803] sm:$0xff] %vm451, %v880
        %895 = vst.msk [vmem:[%s803 + $0x8] sm:$0xff] %vm451, %v882
        %896 = vst.msk [vmem:[%s803 + $0x10] sm:$0xff] %vm451, %v884
        %897 = vst.msk [vmem:[%s803 + $0x18] sm:$0xff] %vm451, %v886
        %898 = vst.msk [vmem:[%s803 + $0x20] sm:$0x3f] %vm456, %v888
        %v899 = vld [vmem:[%s747] sm:$0xff]
        %v900 = vld [vmem:[%s747 + $0x8] sm:$0xff]
        %v901 = vld [vmem:[%s747 + $0x10] sm:$0xff]
        %v902 = vld [vmem:[%s747 + $0x18] sm:$0xff]
        %v903 = vld [vmem:[%s747 + $0x20] sm:$0x3f]
        %909 = vrot.lane.b32.xlu0 %v899, 57
        %v910 = vpop.permute.xlu0 %909
        %911 = vrot.lane.b32.xlu0 %v900, 57
        %v912 = vpop.permute.xlu0 %911
        %913 = vrot.lane.b32.xlu0 %v901, 57
        %v914 = vpop.permute.xlu0 %913
        %915 = vrot.lane.b32.xlu0 %v902, 57
        %v916 = vpop.permute.xlu0 %915
        %917 = vrot.lane.b32.xlu0 %v903, 57
        %v918 = vpop.permute.xlu0 %917
        %924 = vst.msk [vmem:[%s803] sm:$0xff] %vm486, %v910
        %925 = vst.msk [vmem:[%s803 + $0x8] sm:$0xff] %vm486, %v912
        %926 = vst.msk [vmem:[%s803 + $0x10] sm:$0xff] %vm486, %v914
        %927 = vst.msk [vmem:[%s803 + $0x18] sm:$0xff] %vm486, %v916
        %928 = vst.msk [vmem:[%s803 + $0x20] sm:$0x3f] %vm491, %v918
        %v929 = vld [vmem:[#allocation3] sm:$0xff]
        %v930 = vld [vmem:[#allocation3 + $0x8] sm:$0xff]
        %v931 = vld [vmem:[#allocation3 + $0x10] sm:$0xff]
        %v932 = vld [vmem:[#allocation3 + $0x18] sm:$0xff]
        %v933 = vld [vmem:[#allocation3 + $0x20] sm:$0x3f]
        %v934 = vld [vmem:[%s1] sm:$0xff]
        %v935 = vld [vmem:[%s1 + $0x8] sm:$0xff]
        %v936 = vld [vmem:[%s1 + $0x10] sm:$0xff]
        %v937 = vld [vmem:[%s1 + $0x18] sm:$0xff]
        %v938 = vld [vmem:[%s1 + $0x20] sm:$0xff]
        %v939 = vld [vmem:[%s1 + $0x28] sm:$0xff]
        %v940 = vld [vmem:[%s1 + $0x30] sm:$0xff]
        %v941 = vld [vmem:[%s1 + $0x38] sm:$0xff]
        %v942 = vld [vmem:[%s1 + $0x40] sm:$0xff]
        %v943 = vld [vmem:[%s1 + $0x48] sm:$0x7]
        %vm944 = vcmask 613376
        %v946 = vsel %vm944, %v929, 0
        %v949 = vsel %vm944, %v930, 0
        %v952 = vsel %vm944, %v931, 0
        %v955 = vsel %vm944, %v932, 0
        %v958 = vsel %vm944, %v933, 0
        %vm960 = vcmask 1042432
        %v962 = vsel %vm960, %v943, 0
        %964 = vmatpush.msra.mxu0 0.0
        %965 = vmatpush.msra.mxu0 0.0
        %966 = vmatpush.msra.mxu0 0.0
        %967 = vmatpush.msra.mxu0 0.0
        %968 = vmatpush.msra.mxu0 0.0
        %969 = vmatpush.msra.mxu0 0.0
        %970 = vmatpush.msra.mxu0 %v962
        %971 = vmatpush.msra.mxu0 %v942
        %972 = vmatpush.msra.mxu0 %v941
        %973 = vmatpush.msra.mxu0 %v940
        %974 = vmatpush.msra.mxu0 %v939
        %975 = vmatpush.msra.mxu0 %v938
        %976 = vmatpush.msra.mxu0 %v937
        %977 = vmatpush.msra.mxu0 %v936
        %978 = vmatpush.msra.mxu0 %v935
        %979 = vmatpush.msra.mxu0 %v934
        %980 = vmatmul.f32.gmra.mxu0 %v946
        %v981 = vpop.f32.mrf.mxu0
        %v982 = vadd.f32 0.0, %v981
        %983 = vmatmul.f32.gmra.mxu0 %v949
        %v984 = vpop.f32.mrf.mxu0
        %v985 = vadd.f32 0.0, %v984
        %986 = vmatmul.f32.gmra.mxu0 %v952
        %v987 = vpop.f32.mrf.mxu0
        %v988 = vadd.f32 0.0, %v987
        %989 = vmatmul.f32.gmra.mxu0 %v955
        %v990 = vpop.f32.mrf.mxu0
        %v991 = vadd.f32 0.0, %v990
        %992 = vmatmul.f32.gmra.mxu0 %v958
        %v993 = vpop.f32.mrf.mxu0
        %v994 = vadd.f32 0.0, %v993
        %995 = vdwg.mxu0
        %v996 = vld [vmem:[%s518] sm:$0xff]
        %v997 = vld [vmem:[%s518 + $0x8] sm:$0xff]
        %v998 = vld [vmem:[%s518 + $0x10] sm:$0xff]
        %v999 = vld [vmem:[%s518 + $0x18] sm:$0xff]
        %v1000 = vld [vmem:[%s518 + $0x20] sm:$0x3f]
        %v1002 = vsel %vm944, %v996, 0
        %v1005 = vsel %vm944, %v997, 0
        %v1008 = vsel %vm944, %v998, 0
        %v1011 = vsel %vm944, %v999, 0
        %v1014 = vsel %vm944, %v1000, 0
        %1016 = vmatpush.msra.mxu0 0.0
        %1017 = vmatpush.msra.mxu0 0.0
        %1018 = vmatpush.msra.mxu0 0.0
        %1019 = vmatpush.msra.mxu0 0.0
        %1020 = vmatpush.msra.mxu0 0.0
        %1021 = vmatpush.msra.mxu0 0.0
        %1022 = vmatpush.msra.mxu0 %v962
        %1023 = vmatpush.msra.mxu0 %v942
        %1024 = vmatpush.msra.mxu0 %v941
        %1025 = vmatpush.msra.mxu0 %v940
        %1026 = vmatpush.msra.mxu0 %v939
        %1027 = vmatpush.msra.mxu0 %v938
        %1028 = vmatpush.msra.mxu0 %v937
        %1029 = vmatpush.msra.mxu0 %v936
        %1030 = vmatpush.msra.mxu0 %v935
        %1031 = vmatpush.msra.mxu0 %v934
        %1032 = vmatmul.f32.gmra.mxu0 %v1002
        %v1033 = vpop.f32.mrf.mxu0
        %v1034 = vadd.f32 0.0, %v1033
        %1035 = vmatmul.f32.gmra.mxu0 %v1005
        %v1036 = vpop.f32.mrf.mxu0
        %v1037 = vadd.f32 0.0, %v1036
        %1038 = vmatmul.f32.gmra.mxu0 %v1008
        %v1039 = vpop.f32.mrf.mxu0
        %v1040 = vadd.f32 0.0, %v1039
        %1041 = vmatmul.f32.gmra.mxu0 %v1011
        %v1042 = vpop.f32.mrf.mxu0
        %v1043 = vadd.f32 0.0, %v1042
        %1044 = vmatmul.f32.gmra.mxu0 %v1014
        %v1045 = vpop.f32.mrf.mxu0
        %v1046 = vadd.f32 0.0, %v1045
        %1047 = vdwg.mxu0
        %v1048 = vmax.f32 %v982, %v1034
        %v1049 = vmax.f32 %v985, %v1037
        %v1050 = vmax.f32 %v988, %v1040
        %v1051 = vmax.f32 %v991, %v1043
        %v1052 = vmax.f32 %v994, %v1046
        %v1053 = vld [vmem:[%s649] sm:$0xff]
        %v1054 = vld [vmem:[%s649 + $0x8] sm:$0xff]
        %v1055 = vld [vmem:[%s649 + $0x10] sm:$0xff]
        %v1056 = vld [vmem:[%s649 + $0x18] sm:$0xff]
        %v1057 = vld [vmem:[%s649 + $0x20] sm:$0x3f]
        %v1059 = vsel %vm944, %v1053, 0
        %v1062 = vsel %vm944, %v1054, 0
        %v1065 = vsel %vm944, %v1055, 0
        %v1068 = vsel %vm944, %v1056, 0
        %v1071 = vsel %vm944, %v1057, 0
        %1073 = vmatpush.msra.mxu0 0.0
        %1074 = vmatpush.msra.mxu0 0.0
        %1075 = vmatpush.msra.mxu0 0.0
        %1076 = vmatpush.msra.mxu0 0.0
        %1077 = vmatpush.msra.mxu0 0.0
        %1078 = vmatpush.msra.mxu0 0.0
        %1079 = vmatpush.msra.mxu0 %v962
        %1080 = vmatpush.msra.mxu0 %v942
        %1081 = vmatpush.msra.mxu0 %v941
        %1082 = vmatpush.msra.mxu0 %v940
        %1083 = vmatpush.msra.mxu0 %v939
        %1084 = vmatpush.msra.mxu0 %v938
        %1085 = vmatpush.msra.mxu0 %v937
        %1086 = vmatpush.msra.mxu0 %v936
        %1087 = vmatpush.msra.mxu0 %v935
        %1088 = vmatpush.msra.mxu0 %v934
        %1089 = vmatmul.f32.gmra.mxu0 %v1059
        %v1090 = vpop.f32.mrf.mxu0
        %v1091 = vadd.f32 0.0, %v1090
        %1092 = vmatmul.f32.gmra.mxu0 %v1062
        %v1093 = vpop.f32.mrf.mxu0
        %v1094 = vadd.f32 0.0, %v1093
        %1095 = vmatmul.f32.gmra.mxu0 %v1065
        %v1096 = vpop.f32.mrf.mxu0
        %v1097 = vadd.f32 0.0, %v1096
        %1098 = vmatmul.f32.gmra.mxu0 %v1068
        %v1099 = vpop.f32.mrf.mxu0
        %v1100 = vadd.f32 0.0, %v1099
        %1101 = vmatmul.f32.gmra.mxu0 %v1071
        %v1102 = vpop.f32.mrf.mxu0
        %v1103 = vadd.f32 0.0, %v1102
        %1104 = vdwg.mxu0
        %v1105 = vmax.f32 %v1048, %v1091
        %v1106 = vmax.f32 %v1049, %v1094
        %v1107 = vmax.f32 %v1050, %v1097
        %v1108 = vmax.f32 %v1051, %v1100
        %v1109 = vmax.f32 %v1052, %v1103
        %v1110 = vld [vmem:[%s803] sm:$0xff]
        %v1111 = vld [vmem:[%s803 + $0x8] sm:$0xff]
        %v1112 = vld [vmem:[%s803 + $0x10] sm:$0xff]
        %v1113 = vld [vmem:[%s803 + $0x18] sm:$0xff]
        %v1114 = vld [vmem:[%s803 + $0x20] sm:$0x3f]
        %v1116 = vsel %vm944, %v1110, 0
        %v1119 = vsel %vm944, %v1111, 0
        %v1122 = vsel %vm944, %v1112, 0
        %v1125 = vsel %vm944, %v1113, 0
        %v1128 = vsel %vm944, %v1114, 0
        %1130 = vmatpush.msra.mxu0 0.0
        %1131 = vmatpush.msra.mxu0 0.0
        %1132 = vmatpush.msra.mxu0 0.0
        %1133 = vmatpush.msra.mxu0 0.0
        %1134 = vmatpush.msra.mxu0 0.0
        %1135 = vmatpush.msra.mxu0 0.0
        %1136 = vmatpush.msra.mxu0 %v962
        %1137 = vmatpush.msra.mxu0 %v942
        %1138 = vmatpush.msra.mxu0 %v941
        %1139 = vmatpush.msra.mxu0 %v940
        %1140 = vmatpush.msra.mxu0 %v939
        %1141 = vmatpush.msra.mxu0 %v938
        %1142 = vmatpush.msra.mxu0 %v937
        %1143 = vmatpush.msra.mxu0 %v936
        %1144 = vmatpush.msra.mxu0 %v935
        %1145 = vmatpush.msra.mxu0 %v934
        %1146 = vmatmul.f32.gmra.mxu0 %v1116
        %v1147 = vpop.f32.mrf.mxu0
        %v1148 = vadd.f32 0.0, %v1147
        %1149 = vmatmul.f32.gmra.mxu0 %v1119
        %v1150 = vpop.f32.mrf.mxu0
        %v1151 = vadd.f32 0.0, %v1150
        %1152 = vmatmul.f32.gmra.mxu0 %v1122
        %v1153 = vpop.f32.mrf.mxu0
        %v1154 = vadd.f32 0.0, %v1153
        %1155 = vmatmul.f32.gmra.mxu0 %v1125
        %v1156 = vpop.f32.mrf.mxu0
        %v1157 = vadd.f32 0.0, %v1156
        %1158 = vmatmul.f32.gmra.mxu0 %v1128
        %v1159 = vpop.f32.mrf.mxu0
        %v1160 = vadd.f32 0.0, %v1159
        %1161 = vdwg.mxu0
        %v1162 = vmax.f32 %v1105, %v1148
        %v1163 = vmax.f32 %v1106, %v1151
        %v1164 = vmax.f32 %v1107, %v1154
        %v1165 = vmax.f32 %v1108, %v1157
        %v1166 = vmax.f32 %v1109, %v1160
        %v1167 = vld [vmem:[%s2] sm:$0x1]
        %v1169 = vperm.slane %v1167, 0
        %v1171 = vadd.f32 %v1162, %v1169
        %v1172 = vadd.f32 %v1163, %v1169
        %v1173 = vadd.f32 %v1164, %v1169
        %v1174 = vadd.f32 %v1165, %v1169
        %v1175 = vadd.f32 %v1166, %v1169
        %v1176 = vmax.f32 %v1171, 0.0
        %v1177 = vmax.f32 %v1172, 0.0
        %v1178 = vmax.f32 %v1173, 0.0
        %v1179 = vmax.f32 %v1174, 0.0
        %v1180 = vmax.f32 %v1175, 0.0
        %s1181 = smul.u32 %s333, 40
        %s1182 = scalar_lea.vmem %s170, %s1181
        %vm1183 = vcmask 130048
        %1184 = vst.msk [vmem:[%s1182] sm:$0xff] %vm1183, %v1176
        %1185 = vst.msk [vmem:[%s1182 + $0x8] sm:$0xff] %vm1183, %v1177
        %1186 = vst.msk [vmem:[%s1182 + $0x10] sm:$0xff] %vm1183, %v1178
        %1187 = vst.msk [vmem:[%s1182 + $0x18] sm:$0xff] %vm1183, %v1179
        %vm1188 = vcmask 128000
        %1189 = vst.msk [vmem:[%s1182 + $0x20] sm:$0x3f] %vm1188, %v1180
      $region44: #{net_forward.3} parent=31 // loop_footer
        %s337 = sadd.s32 1, %s333
      $region45: #{net_forward.3} parent=31 // loop_footer_branch
        %332 = sbr.rel target = $region41
      $region46: #{net_forward.3} parent=31 // loop_exit
        _
      %p1190 = scmp.lt.s32.totalorder %s14, 1
      %s1191 = scalar_select %p1190, %s14, 1
      %s1192 = smul.addr %s1191, 190
      %s1193 = smul.addr %s1192, 8
      %s1194 = scalar_lea.vmem %s3, %s1193
      // Predicated region
      $region47: #{net_forward.3} parent=31 // pred_check
        %p1195 = pneg %p100
      $region48: #{net_forward.3} parent=31 // pred_check_branch
        %1197 = sbr.rel (%p1195) target = $region50
      $region49: #{net_forward.3} parent=31 // pred_region
        _
      $region50: #{net_forward.3} parent=31 // pred_fallthru
        _
    $region32: #{net_forward.3} parent=5 // pred_fallthru
      _
    %p1198 = scmp.le.s32.totalorder 2, %s9
    // Predicated region
    $region51: #{net_forward.3} parent=5 // pred_check
      %p1199 = pneg %p1198
    $region52: #{net_forward.3} parent=5 // pred_check_branch
      %1201 = sbr.rel (%p1199) target = $region54
    $region53: #{net_forward.3} parent=5 // pred_region
      %s1202 = ssub.s32 %s9, 2
      // Predicated region
      $region55: #{net_forward.3} parent=53 // pred_check
        %p1203 = pneg %p106
      $region56: #{net_forward.3} parent=53 // pred_check_branch
        %1205 = sbr.rel (%p1203) target = $region58
      $region57: #{net_forward.3} parent=53 // pred_region
        %p1206 = scmp.lt.s32.totalorder %s15, 1
        %s1207 = scalar_select %p1206, %s15, 1
        %s1208 = smul.addr %s1207, 190
        %s1209 = smul.addr %s1208, 8
        %s1210 = scalar_lea.vmem %s3, %s1209
      $region58: #{net_forward.3} parent=53 // pred_fallthru
        _
    $region54: #{net_forward.3} parent=5 // pred_fallthru
      _
  $region6: #{net_forward.3} parent=0 // loop_footer
    %s13 = sadd.s32 1, %s9
  $region7: #{net_forward.3} parent=0 // loop_footer_branch
    %8 = sbr.rel target = $region3
  $region8: #{net_forward.3} parent=0 // loop_exit
    _

// kernel: net_forward.4
$region0: #{net_forward.4}
  #allocation0 [shape = 'u32[]', space=smem, size = 0x4, offset = 0x4, fixed_abs, tag = 'smem constant byte address 0x4 - core index']
  #allocation1 [shape = 'u32[72,128]{1,0:T(1,128)}', space=vmem, size = 0x9000, scoped, tag = 'internal scratch']
  #allocation2 [shape = 'f32[38,17,96]{2,1,0:T(8,128)}', space=vmem, size = 0x72000, scoped, tag = 'scratch operand']
  #allocation3 [shape = 'f32[4,17,400]{2,1,0:T(8,128)}', space=vmem, size = 0x30000, scoped, tag = 'scratch operand']
  %s0 = inlined_call_operand.vmem [shape: f32[2,38,19,32], index: 0, kind: input, shape index: {}]
  %s1 = inlined_call_operand.vmem [shape: f32[400,128], index: 1, kind: input, shape index: {}]
  %s2 = inlined_call_operand.vmem [shape: f32[1,128], index: 2, kind: input, shape index: {}]
  %s3 = inlined_call_operand.vmem [shape: f32[2,17,17,32], index: 3, kind: output, shape index: {}]
  %s4 = sld [smem:[#allocation0]]
  $region59: #{net_forward.4} parent=0
    _
  %s6 = ssub.s32 1, %s4
  %s7 = scalar_select 0, %s6, %s4
  loop: start=0, step=1, limit=4
  $region2: #{net_forward.4} parent=0 // loop_pre_header
    _
  $region3: #{net_forward.4} parent=0 // loop_header
    %s9 = sphi 0, %s13
    %p10 = scmp.ge.s32.totalorder %s9, 4
    %s19 = sphi 0, %s21
    %s22 = sphi 0, %s19
    %s23 = sphi 0, %s22
    %s39 = sphi 0, %s23
    %s43 = sphi 0, %s43
    %s45 = sphi 0, %s43
    %s46 = sphi 0, %s45
    %s60 = sphi 0, %s46
    %s64 = sphi 0, %s64
    %s66 = sphi 0, %s64
    %s67 = sphi 0, %s66
    %s81 = sphi 0, %s67
    %s87 = sphi 0, %s89
    %s90 = sphi 0, %s87
    %s91 = sphi 0, %s90
    %s107 = sphi 0, %s91
  $region4: #{net_forward.4} parent=0 // loop_header_branch
    %12 = sbr.rel (%p10) target = $region8
  $region5: #{net_forward.4} parent=0 // loop_body
    %s14 = ssub.s32 %s9, 1
    %s15 = ssub.s32 %s9, 2
    %s16 = sadd.s32 %s9, 1
    %s17 = ssub.s32 %s9, %s16
    %p18 = scmp.eq.s32.totalorder %s17, 0
    %s20 = sadd.s32 %s19, 1
    %s21 = scalar_select %p18, %s19, %s20
    %p24 = pneg %p18
    %p25 = scmp.eq.s32.totalorder %s9, 1
    %p26 = por %p24, %p25
    %p27 = scmp.ne.s32.totalorder %s19, %s22
    %p28 = scmp.eq.s32.totalorder %s9, 0
    %p29 = por %p27, %p28
    %p30 = scmp.ne.s32.totalorder %s19, %s22
    %p31 = scmp.eq.s32.totalorder %s14, 1
    %p32 = por %p30, %p31
    %p33 = scmp.ne.s32.totalorder %s22, %s23
    %p34 = scmp.eq.s32.totalorder %s14, 0
    %p35 = por %p33, %p34
    %p36 = scmp.ne.s32.totalorder %s22, %s23
    %p37 = scmp.eq.s32.totalorder %s15, 1
    %p38 = por %p36, %p37
    %p40 = scmp.ne.s32.totalorder %s23, %s39
    %p41 = scmp.eq.s32.totalorder %s15, 0
    %p42 = por %p40, %p41
    %s44 = sadd.s32 %s43, 1
    %p47 = scmp.eq.s32.totalorder %s9, 1
    %p48 = scmp.ne.s32.totalorder %s43, %s45
    %p49 = scmp.eq.s32.totalorder %s9, 0
    %p50 = por %p48, %p49
    %p51 = scmp.ne.s32.totalorder %s43, %s45
    %p52 = scmp.eq.s32.totalorder %s14, 1
    %p53 = por %p51, %p52
    %p54 = scmp.ne.s32.totalorder %s45, %s46
    %p55 = scmp.eq.s32.totalorder %s14, 0
    %p56 = por %p54, %p55
    %p57 = scmp.ne.s32.totalorder %s45, %s46
    %p58 = scmp.eq.s32.totalorder %s15, 1
    %p59 = por %p57, %p58
    %p61 = scmp.ne.s32.totalorder %s46, %s60
    %p62 = scmp.eq.s32.totalorder %s15, 0
    %p63 = por %p61, %p62
    %s65 = sadd.s32 %s64, 1
    %p68 = scmp.eq.s32.totalorder %s9, 1
    %p69 = scmp.ne.s32.totalorder %s64, %s66
    %p70 = scmp.eq.s32.totalorder %s9, 0
    %p71 = por %p69, %p70
    %p72 = scmp.ne.s32.totalorder %s64, %s66
    %p73 = scmp.eq.s32.totalorder %s14, 1
    %p74 = por %p72, %p73
    %p75 = scmp.ne.s32.totalorder %s66, %s67
    %p76 = scmp.eq.s32.totalorder %s14, 0
    %p77 = por %p75, %p76
    %p78 = scmp.ne.s32.totalorder %s66, %s67
    %p79 = scmp.eq.s32.totalorder %s15, 1
    %p80 = por %p78, %p79
    %p82 = scmp.ne.s32.totalorder %s67, %s81
    %p83 = scmp.eq.s32.totalorder %s15, 0
    %p84 = por %p82, %p83
    %s85 = ssub.s32 %s9, %s16
    %p86 = scmp.eq.s32.totalorder %s85, 0
    %s88 = sadd.s32 %s87, 1
    %s89 = scalar_select %p86, %s87, %s88
    %p92 = pneg %p86
    %p93 = scmp.eq.s32.totalorder %s9, 1
    %p94 = por %p92, %p93
    %p95 = scmp.ne.s32.totalorder %s87, %s90
    %p96 = scmp.eq.s32.totalorder %s9, 0
    %p97 = por %p95, %p96
    %p98 = scmp.ne.s32.totalorder %s87, %s90
    %p99 = scmp.eq.s32.totalorder %s14, 1
    %p100 = por %p98, %p99
    %p101 = scmp.ne.s32.totalorder %s90, %s91
    %p102 = scmp.eq.s32.totalorder %s14, 0
    %p103 = por %p101, %p102
    %p104 = scmp.ne.s32.totalorder %s90, %s91
    %p105 = scmp.eq.s32.totalorder %s15, 1
    %p106 = por %p104, %p105
    %p108 = scmp.ne.s32.totalorder %s91, %s107
    %p109 = scmp.eq.s32.totalorder %s15, 0
    %p110 = por %p108, %p109
    %p111 = scmp.le.s32.totalorder 1, %s9
    %p112 = scmp.lt.s32.totalorder %s9, 3
    %p113 = pnand %p111, %p112
    %p114 = pneg %p113
    // Predicated region
    $region9: #{net_forward.4} parent=5 // pred_check
      _
    $region10: #{net_forward.4} parent=5 // pred_check_branch
      %116 = sbr.rel (%p113) target = $region12
    $region11: #{net_forward.4} parent=5 // pred_region
      %s117 = ssub.s32 %s9, 1
      // Predicated region
      $region13: #{net_forward.4} parent=11 // pred_check
        %p118 = pneg %p56
      $region14: #{net_forward.4} parent=11 // pred_check_branch
        %120 = sbr.rel (%p118) target = $region16
      $region15: #{net_forward.4} parent=11 // pred_region
        _
      $region16: #{net_forward.4} parent=11 // pred_fallthru
        _
      // Predicated region
      $region17: #{net_forward.4} parent=11 // pred_check
        %p121 = pneg %p77
      $region18: #{net_forward.4} parent=11 // pred_check_branch
        %123 = sbr.rel (%p121) target = $region20
      $region19: #{net_forward.4} parent=11 // pred_region
        _
      $region20: #{net_forward.4} parent=11 // pred_fallthru
        _
    $region12: #{net_forward.4} parent=5 // pred_fallthru
      _
    %p124 = scmp.lt.s32.totalorder %s9, 2
    // Predicated region
    $region21: #{net_forward.4} parent=5 // pred_check
      %p125 = pneg %p124
    $region22: #{net_forward.4} parent=5 // pred_check_branch
      %127 = sbr.rel (%p125) target = $region24
    $region23: #{net_forward.4} parent=5 // pred_region
      // Predicated region
      $region25: #{net_forward.4} parent=23 // pred_check
        %p128 = pneg %p29
      $region26: #{net_forward.4} parent=23 // pred_check_branch
        %130 = sbr.rel (%p128) target = $region28
      $region27: #{net_forward.4} parent=23 // pred_region
        %p131 = scmp.lt.s32.totalorder %s9, 1
        %s132 = scalar_select %p131, %s9, 1
        %s133 = smul.addr %s132, 114
        %s134 = smul.addr %s133, 8
        %s135 = scalar_lea.vmem %s0, %s134
      $region28: #{net_forward.4} parent=23 // pred_fallthru
        _
    $region24: #{net_forward.4} parent=5 // pred_fallthru
      _
    %p136 = scmp.le.s32.totalorder 1, %s9
    %p137 = scmp.lt.s32.totalorder %s9, 3
    %p138 = pnand %p136, %p137
    %p139 = pneg %p138
    // Predicated region
    $region29: #{net_forward.4} parent=5 // pred_check
      _
    $region30: #{net_forward.4} parent=5 // pred_check_branch
      %141 = sbr.rel (%p138) target = $region32
    $region31: #{net_forward.4} parent=5 // pred_region
      %s142 = ssub.s32 %s9, 1
      %p143 = scmp.lt.s32.totalorder %s14, 1
      %s144 = scalar_select %p143, %s14, 1
      %s145 = smul.addr %s144, 114
      %s146 = smul.addr %s145, 8
      %s147 = scalar_lea.vmem %s0, %s146
      %p148 = pneg %p35
      %p149 = pneg %p32
      %p150 = pneg %p56
      %p151 = pneg %p53
      %p152 = pneg %p77
      %p153 = pneg %p74
      %p154 = pneg %p103
      %p155 = pneg %p100
      %p156 = scmp.lt.s32.totalorder %s14, 1
      %s157 = scalar_select %p156, %s14, 1
      %s158 = smul.addr %s157, 51
      %s159 = smul.addr %s158, 8
      %s160 = scalar_lea.vmem %s3, %s159
      %p161 = scmp.lt.s32.totalorder %s14, 1
      %s162 = scalar_select %p161, %s14, 1
      %s163 = smul.addr %s162, 114
      %s164 = smul.addr %s163, 8
      %s165 = scalar_lea.vmem %s0, %s164
      %p166 = scmp.lt.s32.totalorder %s14, 1
      %s167 = scalar_select %p166, %s14, 1
      %s168 = smul.addr %s167, 51
      %s169 = smul.addr %s168, 8
      %s170 = scalar_lea.vmem %s3, %s169
      loop: start=0, step=1, limit=38
      $region33: #{net_forward.4} parent=31 // loop_pre_header
        _
      $region34: #{net_forward.4} parent=31 // loop_header
        %s172 = sphi 0, %s176
        %p173 = scmp.ge.s32.totalorder %s172, 38
      $region35: #{net_forward.4} parent=31 // loop_header_branch
        %175 = sbr.rel (%p173) target = $region39
      $region36: #{net_forward.4} parent=31 // loop_body
        %s177 = smul.u32 %s172, 24
        %s178 = scalar_lea.vmem %s165, %s177
        %v179 = vld [vmem:[%s178] sm:$0xff]
        %v180 = vld [vmem:[%s178 + $0x8] sm:$0xff]
        %v181 = vld [vmem:[%s178 + $0x10] sm:$0x1]
        %s182 = scalar_lea.vmem [#allocation2], %s177
        %vm183 = vcmask 130048
        %184 = vst.msk [vmem:[%s182] sm:$0xff] %vm183, %v179
        %185 = vst.msk [vmem:[%s182 + $0x8] sm:$0xff] %vm183, %v180
        %vm186 = vcmask 122880
        %187 = vst.msk [vmem:[%s182 + $0x10] sm:$0x1] %vm186, %v181
        %v188 = vld [vmem:[%s178] sm:$0xff]
        %v189 = vld [vmem:[%s178 + $0x8] sm:$0xff]
        %v190 = vld [vmem:[%s178 + $0x10] sm:$0x1]
        %vm191 = vcmask 261248
        %192 = vst.msk [vmem:[%s182] sm:$0xff] %vm191, %v188
        %193 = vst.msk [vmem:[%s182 + $0x8] sm:$0xff] %vm191, %v189
        %vm194 = vcmask 254080
        %195 = vst.msk [vmem:[%s182 + $0x10] sm:$0x1] %vm194, %v190
        %v196 = vld [vmem:[%s178 + $0x1] sm:$0xff]
        %v197 = vld [vmem:[%s178 + $0x9] sm:$0xff]
        %v198 = vld [vmem:[%s178 + $0x11] sm:$0x1]
        %202 = vrot.lane.b32.xlu0 %v196, 32
        %v203 = vpop.permute.xlu0 %202
        %204 = vrot.lane.b32.xlu0 %v197, 32
        %v205 = vpop.permute.xlu0 %204
        %206 = vrot.lane.b32.xlu0 %v198, 32
        %v207 = vpop.permute.xlu0 %206
        %vm211 = vcmask 392448
        %212 = vst.msk [vmem:[%s182] sm:$0xff] %vm211, %v203
        %213 = vst.msk [vmem:[%s182 + $0x8] sm:$0xff] %vm211, %v205
        %vm214 = vcmask 385280
        %215 = vst.msk [vmem:[%s182 + $0x10] sm:$0x1] %vm214, %v207
        %v216 = vld [vmem:[%s178 + $0x1] sm:$0xff]
        %v217 = vld [vmem:[%s178 + $0x9] sm:$0xff]
        %v218 = vld [vmem:[%s178 + $0x11] sm:$0x1]
        %222 = vrot.lane.b32.xlu0 %v216, 32
        %v223 = vpop.permute.xlu0 %222
        %224 = vrot.lane.b32.xlu0 %v217, 32
        %v225 = vpop.permute.xlu0 %224
        %226 = vrot.lane.b32.xlu0 %v218, 32
        %v227 = vpop.permute.xlu0 %226
        %vm231 = vcmask 523648
        %232 = vst.msk [vmem:[%s182] sm:$0xff] %vm231, %v223
        %233 = vst.msk [vmem:[%s182 + $0x8] sm:$0xff] %vm231, %v225
        %vm234 = vcmask 516480
        %235 = vst.msk [vmem:[%s182 + $0x10] sm:$0x1] %vm234, %v227
        %v236 = vld [vmem:[%s178 + $0x2] sm:$0xff]
        %v237 = vld [vmem:[%s178 + $0xa] sm:$0xff]
        %v238 = vld [vmem:[%s178 + $0x12] sm:$0x1]
        %242 = vrot.lane.b32.xlu0 %v236, 64
        %v243 = vpop.permute.xlu0 %242
        %244 = vrot.lane.b32.xlu0 %v237, 64
        %v245 = vpop.permute.xlu0 %244
        %246 = vrot.lane.b32.xlu0 %v238, 64
        %v247 = vpop.permute.xlu0 %246
        %vm251 = vcmask 654848
        %252 = vst.msk [vmem:[%s182] sm:$0xff] %vm251, %v243
        %253 = vst.msk [vmem:[%s182 + $0x8] sm:$0xff] %vm251, %v245
        %vm254 = vcmask 647680
        %255 = vst.msk [vmem:[%s182 + $0x10] sm:$0x1] %vm254, %v247
        %v256 = vld [vmem:[%s178 + $0x2] sm:$0xff]
        %v257 = vld [vmem:[%s178 + $0xa] sm:$0xff]
        %v258 = vld [vmem:[%s178 + $0x12] sm:$0x1]
        %262 = vrot.lane.b32.xlu0 %v256, 64
        %v263 = vpop.permute.xlu0 %262
        %264 = vrot.lane.b32.xlu0 %v257, 64
        %v265 = vpop.permute.xlu0 %264
        %266 = vrot.lane.b32.xlu0 %v258, 64
        %v267 = vpop.permute.xlu0 %266
        %vm271 = vcmask 786048
        %272 = vst.msk [vmem:[%s182] sm:$0xff] %vm271, %v263
        %273 = vst.msk [vmem:[%s182 + $0x8] sm:$0xff] %vm271, %v265
        %vm274 = vcmask 778880
        %275 = vst.msk [vmem:[%s182 + $0x10] sm:$0x1] %vm274, %v267
      $region37: #{net_forward.4} parent=31 // loop_footer
        %s176 = sadd.s32 1, %s172
      $region38: #{net_forward.4} parent=31 // loop_footer_branch
        %171 = sbr.rel target = $region34
      $region39: #{net_forward.4} parent=31 // loop_exit
        _
      loop: start=0, step=1, limit=17
      $region40: #{net_forward.4} parent=31 // loop_pre_header
        _
      $region41: #{net_forward.4} parent=31 // loop_header
        %s277 = sphi 0, %s281
        %p278 = scmp.ge.s32.totalorder %s277, 17
      $region42: #{net_forward.4} parent=31 // loop_header_branch
        %280 = sbr.rel (%p278) target = $region46
      $region43: #{net_forward.4} parent=31 // loop_body
        %s282 = smul.u32 %s277, 2
        %s283 = smul.u32 %s282, 24
        %s284 = scalar_lea.vmem [#allocation2], %s283
        %v285 = vld [vmem:[%s284] sm:$0xff]
        %v286 = vld [vmem:[%s284 + $0x8] sm:$0xff]
        %v287 = vld [vmem:[%s284 + $0x10] sm:$0x1]
        %vm288 = vcmask 654336
        %289 = vst.msk [vmem:[#allocation3] sm:$0xff] %vm288, %v285
        %290 = vst.msk [vmem:[#allocation3 + $0x20] sm:$0xff] %vm288, %v286
        %vm291 = vcmask 647168
        %292 = vst.msk [vmem:[#allocation3 + $0x40] sm:$0x1] %vm291, %v287
        %s293 = sadd.s32 %s282, 1
        %s294 = smul.u32 %s293, 24
        %s295 = scalar_lea.vmem [#allocation2], %s294
        %v296 = vld [vmem:[%s295] sm:$0xff]
        %v297 = vld [vmem:[%s295 + $0x8] sm:$0xff]
        %v298 = vld [vmem:[%s295 + $0x10] sm:$0x1]
        %302 = vrot.lane.b32.xlu0 %v296, 80
        %v303 = vpop.permute.xlu0 %302
        %304 = vrot.lane.b32.xlu0 %v297, 80
        %v305 = vpop.permute.xlu0 %304
        %306 = vrot.lane.b32.xlu0 %v298, 80
        %v307 = vpop.permute.xlu0 %306
        %vm311 = vcmask 1048192
        %312 = vst.msk [vmem:[#allocation3] sm:$0xff] %vm311, %v303
        %vm313 = vcmask 261120
        %314 = vst.msk [vmem:[#allocation3 + $0x8] sm:$0xff] %vm313, %v303
        %315 = vst.msk [vmem:[#allocation3 + $0x20] sm:$0xff] %vm311, %v305
        %316 = vst.msk [vmem:[#allocation3 + $0x28] sm:$0xff] %vm313, %v305
        %vm317 = vcmask 1041024
        %318 = vst.msk [vmem:[#allocation3 + $0x40] sm:$0x1] %vm317, %v307
        %vm319 = vcmask 253952
        %320 = vst.msk [vmem:[#allocation3 + $0x48] sm:$0x1] %vm319, %v307
        %s321 = sadd.s32 %s282, 2
        %s322 = smul.u32 %s321, 24
        %s323 = scalar_lea.vmem [#allocation2], %s322
        %v324 = vld [vmem:[%s323] sm:$0xff]
        %v325 = vld [vmem:[%s323 + $0x8] sm:$0xff]
        %v326 = vld [vmem:[%s323 + $0x10] sm:$0x1]
        %330 = vrot.lane.b32.xlu0 %v324, 32
        %v331 = vpop.permute.xlu0 %330
        %332 = vrot.lane.b32.xlu0 %v325, 32
        %v333 = vpop.permute.xlu0 %332
        %334 = vrot.lane.b32.xlu0 %v326, 32
        %v335 = vpop.permute.xlu0 %334
        %vm339 = vcmask 916736
        %340 = vst.msk [vmem:[#allocation3 + $0x8] sm:$0xff] %vm339, %v331
        %341 = vst.msk [vmem:[#allocation3 + $0x28] sm:$0xff] %vm339, %v333
        %vm342 = vcmask 909568
        %343 = vst.msk [vmem:[#allocation3 + $0x48] sm:$0x1] %vm342, %v335
        %s344 = sadd.s32 %s282, 3
        %s345 = smul.u32 %s344, 24
        %s346 = scalar_lea.vmem [#allocation2], %s345
        %v347 = vld [vmem:[%s346] sm:$0xff]
        %v348 = vld [vmem:[%s346 + $0x8] sm:$0xff]
        %v349 = vld [vmem:[%s346 + $0x10] sm:$0x1]
        %353 = vrot.lane.b32.xlu0 %v347, 112
        %v354 = vpop.permute.xlu0 %353
        %355 = vrot.lane.b32.xlu0 %v348, 112
        %v356 = vpop.permute.xlu0 %355
        %357 = vrot.lane.b32.xlu0 %v349, 112
        %v358 = vpop.permute.xlu0 %357
        %vm362 = vcmask 1048448
        %363 = vst.msk [vmem:[#allocation3 + $0x8] sm:$0xff] %vm362, %v354
        %vm364 = vcmask 523264
        %365 = vst.msk [vmem:[#allocation3 + $0x10] sm:$0xff] %vm364, %v354
        %366 = vst.msk [vmem:[#allocation3 + $0x28] sm:$0xff] %vm362, %v356
        %367 = vst.msk [vmem:[#allocation3 + $0x30] sm:$0xff] %vm364, %v356
        %vm368 = vcmask 1041280
        %369 = vst.msk [vmem:[#allocation3 + $0x48] sm:$0x1] %vm368, %v358
        %vm370 = vcmask 516096
        %371 = vst.msk [vmem:[#allocation3 + $0x50] sm:$0x1] %vm370, %v358
        %s372 = sadd.s32 %s282, 4
        %s373 = smul.u32 %s372, 24
        %s374 = scalar_lea.vmem [#allocation2], %s373
        %v375 = vld [vmem:[%s374] sm:$0xff]
        %v376 = vld [vmem:[%s374 + $0x8] sm:$0xff]
        %v377 = vld [vmem:[%s374 + $0x10] sm:$0x1]
        %381 = vrot.lane.b32.xlu0 %v375, 64
        %v382 = vpop.permute.xlu0 %381
        %383 = vrot.lane.b32.xlu0 %v376, 64
        %v384 = vpop.permute.xlu0 %383
        %385 = vrot.lane.b32.xlu0 %v377, 64
        %v386 = vpop.permute.xlu0 %385
        %vm390 = vcmask 1048064
        %391 = vst.msk [vmem:[#allocation3 + $0x10] sm:$0xff] %vm390, %v382
        %vm392 = vcmask 130048
        %393 = vst.msk [vmem:[#allocation3 + $0x18] sm:$0xff] %vm392, %v382
        %394 = vst.msk [vmem:[#allocation3 + $0x30] sm:$0xff] %vm390, %v384
        %395 = vst.msk [vmem:[#allocation3 + $0x38] sm:$0xff] %vm392, %v384
        %vm396 = vcmask 1040896
        %397 = vst.msk [vmem:[#allocation3 + $0x50] sm:$0x1] %vm396, %v386
        %vm398 = vcmask 122880
        %399 = vst.msk [vmem:[#allocation3 + $0x58] sm:$0x1] %vm398, %v386
        %v400 = vld [vmem:[%s284] sm:$0xff]
        %v401 = vld [vmem:[%s284 + $0x8] sm:$0xff]
        %v402 = vld [vmem:[%s284 + $0x10] sm:$0x1]
        %406 = vrot.lane.b32.xlu0 %v400, 112
        %v407 = vpop.permute.xlu0 %406
        %408 = vrot.lane.b32.xlu0 %v401, 112
        %v409 = vpop.permute.xlu0 %408
        %410 = vrot.lane.b32.xlu0 %v402, 112
        %v411 = vpop.permute.xlu0 %410
        %s415 = scalar_lea.vmem [#allocation3], 96
        %416 = vst.msk [vmem:[%s415] sm:$0xff] %vm288, %v407
        %417 = vst.msk [vmem:[%s415 + $0x20] sm:$0xff] %vm288, %v409
        %418 = vst.msk [vmem:[%s415 + $0x40] sm:$0x1] %vm291, %v411
        %v419 = vld [vmem:[%s295] sm:$0xff]
        %v420 = vld [vmem:[%s295 + $0x8] sm:$0xff]
        %v421 = vld [vmem:[%s295 + $0x10] sm:$0x1]
        %425 = vrot.lane.b32.xlu0 %v419, 64
        %v426 = vpop.permute.xlu0 %425
        %427 = vrot.lane.b32.xlu0 %v420, 64
        %v428 = vpop.permute.xlu0 %427
        %429 = vrot.lane.b32.xlu0 %v421, 64
        %v430 = vpop.permute.xlu0 %429
        %434 = vst.msk [vmem:[%s415] sm:$0xff] %vm311, %v426
        %435 = vst.msk [vmem:[%s415 + $0x8] sm:$0xff] %vm313, %v426
        %436 = vst.msk [vmem:[%s415 + $0x20] sm:$0xff] %vm311, %v428
        %437 = vst.msk [vmem:[%s415 + $0x28] sm:$0xff] %vm313, %v428
        %438 = vst.msk [vmem:[%s415 + $0x40] sm:$0x1] %vm317, %v430
        %439 = vst.msk [vmem:[%s415 + $0x48] sm:$0x1] %vm319, %v430
        %v440 = vld [vmem:[%s323] sm:$0xff]
        %v441 = vld [vmem:[%s323 + $0x8] sm:$0xff]
        %v442 = vld [vmem:[%s323 + $0x10] sm:$0x1]
        %446 = vrot.lane.b32.xlu0 %v440, 16
        %v447 = vpop.permute.xlu0 %446
        %448 = vrot.lane.b32.xlu0 %v441, 16
        %v449 = vpop.permute.xlu0 %448
        %450 = vrot.lane.b32.xlu0 %v442, 16
        %v451 = vpop.permute.xlu0 %450
        %455 = vst.msk [vmem:[%s415 + $0x8] sm:$0xff] %vm339, %v447
        %456 = vst.msk [vmem:[%s415 + $0x28] sm:$0xff] %vm339, %v449
        %457 = vst.msk [vmem:[%s415 + $0x48] sm:$0x1] %vm342, %v451
        %v458 = vld [vmem:[%s346] sm:$0xff]
        %v459 = vld [vmem:[%s346 + $0x8] sm:$0xff]
        %v460 = vld [vmem:[%s346 + $0x10] sm:$0x1]
        %464 = vrot.lane.b32.xlu0 %v458, 96
        %v465 = vpop.permute.xlu0 %464
        %466 = vrot.lane.b32.xlu0 %v459, 96
        %v467 = vpop.permute.xlu0 %466
        %468 = vrot.lane.b32.xlu0 %v460, 96
        %v469 = vpop.permute.xlu0 %468
        %473 = vst.msk [vmem:[%s415 + $0x8] sm:$0xff] %vm362, %v465
        %474 = vst.msk [vmem:[%s415 + $0x10] sm:$0xff] %vm364, %v465
        %475 = vst.msk [vmem:[%s415 + $0x28] sm:$0xff] %vm362, %v467
        %476 = vst.msk [vmem:[%s415 + $0x30] sm:$0xff] %vm364, %v467
        %477 = vst.msk [vmem:[%s415 + $0x48] sm:$0x1] %vm368, %v469
        %478 = vst.msk [vmem:[%s415 + $0x50] sm:$0x1] %vm370, %v469
        %v479 = vld [vmem:[%s374] sm:$0xff]
        %v480 = vld [vmem:[%s374 + $0x8] sm:$0xff]
        %v481 = vld [vmem:[%s374 + $0x10] sm:$0x1]
        %485 = vrot.lane.b32.xlu0 %v479, 48
        %v486 = vpop.permute.xlu0 %485
        %487 = vrot.lane.b32.xlu0 %v480, 48
        %v488 = vpop.permute.xlu0 %487
        %489 = vrot.lane.b32.xlu0 %v481, 48
        %v490 = vpop.permute.xlu0 %489
        %494 = vst.msk [vmem:[%s415 + $0x10] sm:$0xff] %vm390, %v486
        %495 = vst.msk [vmem:[%s415 + $0x18] sm:$0xff] %vm392, %v486
        %496 = vst.msk [vmem:[%s415 + $0x30] sm:$0xff] %vm390, %v488
        %497 = vst.msk [vmem:[%s415 + $0x38] sm:$0xff] %vm392, %v488
        %498 = vst.msk [vmem:[%s415 + $0x50] sm:$0x1] %vm396, %v490
        %499 = vst.msk [vmem:[%s415 + $0x58] sm:$0x1] %vm398, %v490
        %v500 = vld [vmem:[%s295] sm:$0xff]
        %v501 = vld [vmem:[%s295 + $0x8] sm:$0xff]
        %v502 = vld [vmem:[%s295 + $0x10] sm:$0x1]
        %s503 = scalar_lea.vmem [#allocation3], 192
        %504 = vst.msk [vmem:[%s503] sm:$0xff] %vm288, %v500
        %505 = vst.msk [vmem:[%s503 + $0x20] sm:$0xff] %vm288, %v501
        %506 = vst.msk [vmem:[%s503 + $0x40] sm:$0x1] %vm291, %v502
        %v507 = vld [vmem:[%s323] sm:$0xff]
        %v508 = vld [vmem:[%s323 + $0x8] sm:$0xff]
        %v509 = vld [vmem:[%s323 + $0x10] sm:$0x1]
        %513 = vrot.lane.b32.xlu0 %v507, 80
        %v514 = vpop.permute.xlu0 %513
        %515 = vrot.lane.b32.xlu0 %v508, 80
        %v516 = vpop.permute.xlu0 %515
        %517 = vrot.lane.b32.xlu0 %v509, 80
        %v518 = vpop.permute.xlu0 %517
        %522 = vst.msk [vmem:[%s503] sm:$0xff] %vm311, %v514
        %523 = vst.msk [vmem:[%s503 + $0x8] sm:$0xff] %vm313, %v514
        %524 = vst.msk [vmem:[%s503 + $0x20] sm:$0xff] %vm311, %v516
        %525 = vst.msk [vmem:[%s503 + $0x28] sm:$0xff] %vm313, %v516
        %526 = vst.msk [vmem:[%s503 + $0x40] sm:$0x1] %vm317, %v518
        %527 = vst.msk [vmem:[%s503 + $0x48] sm:$0x1] %vm319, %v518
        %v528 = vld [vmem:[%s346] sm:$0xff]
        %v529 = vld [vmem:[%s346 + $0x8] sm:$0xff]
        %v530 = vld [vmem:[%s346 + $0x10] sm:$0x1]
        %534 = vrot.lane.b32.xlu0 %v528, 32
        %v535 = vpop.permute.xlu0 %534
        %536 = vrot.lane.b32.xlu0 %v529, 32
        %v537 = vpop.permute.xlu0 %536
        %538 = vrot.lane.b32.xlu0 %v530, 32
        %v539 = vpop.permute.xlu0 %538
        %543 = vst.msk [vmem:[%s503 + $0x8] sm:$0xff] %vm339, %v535
        %544 = vst.msk [vmem:[%s503 + $0x28] sm:$0xff] %vm339, %v537
        %545 = vst.msk [vmem:[%s503 + $0x48] sm:$0x1] %vm342, %v539
        %v546 = vld [vmem:[%s374] sm:$0xff]
        %v547 = vld [vmem:[%s374 + $0x8] sm:$0xff]
        %v548 = vld [vmem:[%s374 + $0x10] sm:$0x1]
        %552 = vrot.lane.b32.xlu0 %v546, 112
        %v553 = vpop.permute.xlu0 %552
        %554 = vrot.lane.b32.xlu0 %v547, 112
        %v555 = vpop.permute.xlu0 %554
        %556 = vrot.lane.b32.xlu0 %v548, 112
        %v557 = vpop.permute.xlu0 %556
        %561 = vst.msk [vmem:[%s503 + $0x8] sm:$0xff] %vm362, %v553
        %562 = vst.msk [vmem:[%s503 + $0x10] sm:$0xff] %vm364, %v553
        %563 = vst.msk [vmem:[%s503 + $0x28] sm:$0xff] %vm362, %v555
        %564 = vst.msk [vmem:[%s503 + $0x30] sm:$0xff] %vm364, %v555
        %565 = vst.msk [vmem:[%s503 + $0x48] sm:$0x1] %vm368, %v557
        %566 = vst.msk [vmem:[%s503 + $0x50] sm:$0x1] %vm370, %v557
        %s567 = sadd.s32 %s282, 5
        %s568 = smul.u32 %s567, 24
        %s569 = scalar_lea.vmem [#allocation2], %s568
        %v570 = vld [vmem:[%s569] sm:$0xff]
        %v571 = vld [vmem:[%s569 + $0x8] sm:$0xff]
        %v572 = vld [vmem:[%s569 + $0x10] sm:$0x1]
        %576 = vrot.lane.b32.xlu0 %v570, 64
        %v577 = vpop.permute.xlu0 %576
        %578 = vrot.lane.b32.xlu0 %v571, 64
        %v579 = vpop.permute.xlu0 %578
        %580 = vrot.lane.b32.xlu0 %v572, 64
        %v581 = vpop.permute.xlu0 %580
        %585 = vst.msk [vmem:[%s503 + $0x10] sm:$0xff] %vm390, %v577
        %586 = vst.msk [vmem:[%s503 + $0x18] sm:$0xff] %vm392, %v577
        %587 = vst.msk [vmem:[%s503 + $0x30] sm:$0xff] %vm390, %v579
        %588 = vst.msk [vmem:[%s503 + $0x38] sm:$0xff] %vm392, %v579
        %589 = vst.msk [vmem:[%s503 + $0x50] sm:$0x1] %vm396, %v581
        %590 = vst.msk [vmem:[%s503 + $0x58] sm:$0x1] %vm398, %v581
        %v591 = vld [vmem:[%s295] sm:$0xff]
        %v592 = vld [vmem:[%s295 + $0x8] sm:$0xff]
        %v593 = vld [vmem:[%s295 + $0x10] sm:$0x1]
        %597 = vrot.lane.b32.xlu0 %v591, 112
        %v598 = vpop.permute.xlu0 %597
        %599 = vrot.lane.b32.xlu0 %v592, 112
        %v600 = vpop.permute.xlu0 %599
        %601 = vrot.lane.b32.xlu0 %v593, 112
        %v602 = vpop.permute.xlu0 %601
        %s606 = scalar_lea.vmem [#allocation3], 288
        %607 = vst.msk [vmem:[%s606] sm:$0xff] %vm288, %v598
        %608 = vst.msk [vmem:[%s606 + $0x20] sm:$0xff] %vm288, %v600
        %609 = vst.msk [vmem:[%s606 + $0x40] sm:$0x1] %vm291, %v602
        %v610 = vld [vmem:[%s323] sm:$0xff]
        %v611 = vld [vmem:[%s323 + $0x8] sm:$0xff]
        %v612 = vld [vmem:[%s323 + $0x10] sm:$0x1]
        %616 = vrot.lane.b32.xlu0 %v610, 64
        %v617 = vpop.permute.xlu0 %616
        %618 = vrot.lane.b32.xlu0 %v611, 64
        %v619 = vpop.permute.xlu0 %618
        %620 = vrot.lane.b32.xlu0 %v612, 64
        %v621 = vpop.permute.xlu0 %620
        %625 = vst.msk [vmem:[%s606] sm:$0xff] %vm311, %v617
        %626 = vst.msk [vmem:[%s606 + $0x8] sm:$0xff] %vm313, %v617
        %627 = vst.msk [vmem:[%s606 + $0x20] sm:$0xff] %vm311, %v619
        %628 = vst.msk [vmem:[%s606 + $0x28] sm:$0xff] %vm313, %v619
        %629 = vst.msk [vmem:[%s606 + $0x40] sm:$0x1] %vm317, %v621
        %630 = vst.msk [vmem:[%s606 + $0x48] sm:$0x1] %vm319, %v621
        %v631 = vld [vmem:[%s346] sm:$0xff]
        %v632 = vld [vmem:[%s346 + $0x8] sm:$0xff]
        %v633 = vld [vmem:[%s346 + $0x10] sm:$0x1]
        %637 = vrot.lane.b32.xlu0 %v631, 16
        %v638 = vpop.permute.xlu0 %637
        %639 = vrot.lane.b32.xlu0 %v632, 16
        %v640 = vpop.permute.xlu0 %639
        %641 = vrot.lane.b32.xlu0 %v633, 16
        %v642 = vpop.permute.xlu0 %641
        %646 = vst.msk [vmem:[%s606 + $0x8] sm:$0xff] %vm339, %v638
        %647 = vst.msk [vmem:[%s606 + $0x28] sm:$0xff] %vm339, %v640
        %648 = vst.msk [vmem:[%s606 + $0x48] sm:$0x1] %vm342, %v642
        %v649 = vld [vmem:[%s374] sm:$0xff]
        %v650 = vld [vmem:[%s374 + $0x8] sm:$0xff]
        %v651 = vld [vmem:[%s374 + $0x10] sm:$0x1]
        %655 = vrot.lane.b32.xlu0 %v649, 96
        %v656 = vpop.permute.xlu0 %655
        %657 = vrot.lane.b32.xlu0 %v650, 96
        %v658 = vpop.permute.xlu0 %657
        %659 = vrot.lane.b32.xlu0 %v651, 96
        %v660 = vpop.permute.xlu0 %659
        %664 = vst.msk [vmem:[%s606 + $0x8] sm:$0xff] %vm362, %v656
        %665 = vst.msk [vmem:[%s606 + $0x10] sm:$0xff] %vm364, %v656
        %666 = vst.msk [vmem:[%s606 + $0x28] sm:$0xff] %vm362, %v658
        %667 = vst.msk [vmem:[%s606 + $0x30] sm:$0xff] %vm364, %v658
        %668 = vst.msk [vmem:[%s606 + $0x48] sm:$0x1] %vm368, %v660
        %669 = vst.msk [vmem:[%s606 + $0x50] sm:$0x1] %vm370, %v660
        %v670 = vld [vmem:[%s569] sm:$0xff]
        %v671 = vld [vmem:[%s569 + $0x8] sm:$0xff]
        %v672 = vld [vmem:[%s569 + $0x10] sm:$0x1]
        %676 = vrot.lane.b32.xlu0 %v670, 48
        %v677 = vpop.permute.xlu0 %676
        %678 = vrot.lane.b32.xlu0 %v671, 48
        %v679 = vpop.permute.xlu0 %678
        %680 = vrot.lane.b32.xlu0 %v672, 48
        %v681 = vpop.permute.xlu0 %680
        %685 = vst.msk [vmem:[%s606 + $0x10] sm:$0xff] %vm390, %v677
        %686 = vst.msk [vmem:[%s606 + $0x18] sm:$0xff] %vm392, %v677
        %687 = vst.msk [vmem:[%s606 + $0x30] sm:$0xff] %vm390, %v679
        %688 = vst.msk [vmem:[%s606 + $0x38] sm:$0xff] %vm392, %v679
        %689 = vst.msk [vmem:[%s606 + $0x50] sm:$0x1] %vm396, %v681
        %690 = vst.msk [vmem:[%s606 + $0x58] sm:$0x1] %vm398, %v681
        %v691 = vld [vmem:[#allocation3] sm:$0xff]
        %v692 = vld [vmem:[#allocation3 + $0x8] sm:$0xff]
        %v693 = vld [vmem:[#allocation3 + $0x10] sm:$0xff]
        %v694 = vld [vmem:[#allocation3 + $0x18] sm:$0xff]
        %v695 = vld [vmem:[#allocation3 + $0x20] sm:$0xff]
        %v696 = vld [vmem:[#allocation3 + $0x28] sm:$0xff]
        %v697 = vld [vmem:[#allocation3 + $0x30] sm:$0xff]
        %v698 = vld [vmem:[#allocation3 + $0x38] sm:$0xff]
        %v699 = vld [vmem:[#allocation3 + $0x40] sm:$0x1]
        %v700 = vld [vmem:[#allocation3 + $0x48] sm:$0x1]
        %v701 = vld [vmem:[#allocation3 + $0x50] sm:$0x1]
        %v702 = vld [vmem:[#allocation3 + $0x58] sm:$0x1]
        %v703 = vld [vmem:[%s1] sm:$0xff]
        %v704 = vld [vmem:[%s1 + $0x8] sm:$0xff]
        %v705 = vld [vmem:[%s1 + $0x10] sm:$0xff]
        %v706 = vld [vmem:[%s1 + $0x18] sm:$0xff]
        %v707 = vld [vmem:[%s1 + $0x20] sm:$0xff]
        %v708 = vld [vmem:[%s1 + $0x28] sm:$0xff]
        %v709 = vld [vmem:[%s1 + $0x30] sm:$0xff]
        %v710 = vld [vmem:[%s1 + $0x38] sm:$0xff]
        %v711 = vld [vmem:[%s1 + $0x40] sm:$0xff]
        %v712 = vld [vmem:[%s1 + $0x48] sm:$0xff]
        %v713 = vld [vmem:[%s1 + $0x50] sm:$0xff]
        %v714 = vld [vmem:[%s1 + $0x58] sm:$0xff]
        %v715 = vld [vmem:[%s1 + $0x60] sm:$0xff]
        %v716 = vld [vmem:[%s1 + $0x68] sm:$0xff]
        %v717 = vld [vmem:[%s1 + $0x70] sm:$0xff]
        %v718 = vld [vmem:[%s1 + $0x78] sm:$0xff]
        %v719 = vld [vmem:[%s1 + $0x80] sm:$0xff]
        %v720 = vld [vmem:[%s1 + $0x88] sm:$0xff]
        %v721 = vld [vmem:[%s1 + $0x90] sm:$0xff]
        %v722 = vld [vmem:[%s1 + $0x98] sm:$0xff]
        %v723 = vld [vmem:[%s1 + $0xa0] sm:$0xff]
        %v724 = vld [vmem:[%s1 + $0xa8] sm:$0xff]
        %v725 = vld [vmem:[%s1 + $0xb0] sm:$0xff]
        %v726 = vld [vmem:[%s1 + $0xb8] sm:$0xff]
        %v727 = vld [vmem:[%s1 + $0xc0] sm:$0xff]
        %v728 = vld [vmem:[%s1 + $0xc8] sm:$0xff]
        %v729 = vld [vmem:[%s1 + $0xd0] sm:$0xff]
        %v730 = vld [vmem:[%s1 + $0xd8] sm:$0xff]
        %v731 = vld [vmem:[%s1 + $0xe0] sm:$0xff]
        %v732 = vld [vmem:[%s1 + $0xe8] sm:$0xff]
        %v733 = vld [vmem:[%s1 + $0xf0] sm:$0xff]
        %v734 = vld [vmem:[%s1 + $0xf8] sm:$0xff]
        %v735 = vld [vmem:[%s1 + $0x100] sm:$0xff]
        %v736 = vld [vmem:[%s1 + $0x108] sm:$0xff]
        %v737 = vld [vmem:[%s1 + $0x110] sm:$0xff]
        %v738 = vld [vmem:[%s1 + $0x118] sm:$0xff]
        %v739 = vld [vmem:[%s1 + $0x120] sm:$0xff]
        %v740 = vld [vmem:[%s1 + $0x128] sm:$0xff]
        %v741 = vld [vmem:[%s1 + $0x130] sm:$0xff]
        %v742 = vld [vmem:[%s1 + $0x138] sm:$0xff]
        %v743 = vld [vmem:[%s1 + $0x140] sm:$0xff]
        %v744 = vld [vmem:[%s1 + $0x148] sm:$0xff]
        %v745 = vld [vmem:[%s1 + $0x150] sm:$0xff]
        %v746 = vld [vmem:[%s1 + $0x158] sm:$0xff]
        %v747 = vld [vmem:[%s1 + $0x160] sm:$0xff]
        %v748 = vld [vmem:[%s1 + $0x168] sm:$0xff]
        %v749 = vld [vmem:[%s1 + $0x170] sm:$0xff]
        %v750 = vld [vmem:[%s1 + $0x178] sm:$0xff]
        %v751 = vld [vmem:[%s1 + $0x180] sm:$0xff]
        %v752 = vld [vmem:[%s1 + $0x188] sm:$0xff]
        %v754 = vsel %vm392, %v694, 0
        %v757 = vsel %vm392, %v698, 0
        %v760 = vsel %vm392, %v702, 0
        %762 = vmatpush.msra.mxu0 %v718
        %763 = vmatpush.msra.mxu0 %v717
        %764 = vmatpush.msra.mxu0 %v716
        %765 = vmatpush.msra.mxu0 %v715
        %766 = vmatpush.msra.mxu0 %v714
        %767 = vmatpush.msra.mxu0 %v713
        %768 = vmatpush.msra.mxu0 %v712
        %769 = vmatpush.msra.mxu0 %v711
        %770 = vmatpush.msra.mxu0 %v710
        %771 = vmatpush.msra.mxu0 %v709
        %772 = vmatpush.msra.mxu0 %v708
        %773 = vmatpush.msra.mxu0 %v707
        %774 = vmatpush.msra.mxu0 %v706
        %775 = vmatpush.msra.mxu0 %v705
        %776 = vmatpush.msra.mxu0 %v704
        %777 = vmatpush.msra.mxu0 %v703
        %778 = vmatmul.f32.gmra.mxu0 %v691
        %v779 = vpop.f32.mrf.mxu0
        %v780 = vadd.f32 0.0, %v779
        %781 = vmatmul.f32.gmra.mxu0 %v695
        %v782 = vpop.f32.mrf.mxu0
        %v783 = vadd.f32 0.0, %v782
        %784 = vmatmul.f32.gmra.mxu0 %v699
        %v785 = vpop.f32.mrf.mxu0
        %v786 = vadd.f32 0.0, %v785
        %787 = vdwg.mxu0
        %788 = vmatpush.msra.mxu0 %v734
        %789 = vmatpush.msra.mxu0 %v733
        %790 = vmatpush.msra.mxu0 %v732
        %791 = vmatpush.msra.mxu0 %v731
        %792 = vmatpush.msra.mxu0 %v730
        %793 = vmatpush.msra.mxu0 %v729
        %794 = vmatpush.msra.mxu0 %v728
        %795 = vmatpush.msra.mxu0 %v727
        %796 = vmatpush.msra.mxu0 %v726
        %797 = vmatpush.msra.mxu0 %v725
        %798 = vmatpush.msra.mxu0 %v724
        %799 = vmatpush.msra.mxu0 %v723
        %800 = vmatpush.msra.mxu0 %v722
        %801 = vmatpush.msra.mxu0 %v721
        %802 = vmatpush.msra.mxu0 %v720
        %803 = vmatpush.msra.mxu0 %v719
        %804 = vmatmul.f32.gmra.mxu0 %v692
        %v805 = vpop.f32.mrf.mxu0
        %v806 = vadd.f32 %v780, %v805
        %807 = vmatmul.f32.gmra.mxu0 %v696
        %v808 = vpop.f32.mrf.mxu0
        %v809 = vadd.f32 %v783, %v808
        %810 = vmatmul.f32.gmra.mxu0 %v700
        %v811 = vpop.f32.mrf.mxu0
        %v812 = vadd.f32 %v786, %v811
        %813 = vdwg.mxu0
        %814 = vmatpush.msra.mxu0 %v750
        %815 = vmatpush.msra.mxu0 %v749
        %816 = vmatpush.msra.mxu0 %v748
        %817 = vmatpush.msra.mxu0 %v747
        %818 = vmatpush.msra.mxu0 %v746
        %819 = vmatpush.msra.mxu0 %v745
        %820 = vmatpush.msra.mxu0 %v744
        %821 = vmatpush.msra.mxu0 %v743
        %822 = vmatpush.msra.mxu0 %v742
        %823 = vmatpush.msra.mxu0 %v741
        %824 = vmatpush.msra.mxu0 %v740
        %825 = vmatpush.msra.mxu0 %v739
        %826 = vmatpush.msra.mxu0 %v738
        %827 = vmatpush.msra.mxu0 %v737
        %828 = vmatpush.msra.mxu0 %v736
        %829 = vmatpush.msra.mxu0 %v735
        %830 = vmatmul.f32.gmra.mxu0 %v693
        %v831 = vpop.f32.mrf.mxu0
        %v832 = vadd.f32 %v806, %v831
        %833 = vmatmul.f32.gmra.mxu0 %v697
        %v834 = vpop.f32.mrf.mxu0
        %v835 = vadd.f32 %v809, %v834
        %836 = vmatmul.f32.gmra.mxu0 %v701
        %v837 = vpop.f32.mrf.mxu0
        %v838 = vadd.f32 %v812, %v837
        %839 = vdwg.mxu0
        %840 = vmatpush.msra.mxu0 0.0
        %841 = vmatpush.msra.mxu0 0.0
        %842 = vmatpush.msra.mxu0 0.0
        %843 = vmatpush.msra.mxu0 0.0
        %844 = vmatpush.msra.mxu0 0.0
        %845 = vmatpush.msra.mxu0 0.0
        %846 = vmatpush.msra.mxu0 0.0
        %847 = vmatpush.msra.mxu0 0.0
        %848 = vmatpush.msra.mxu0 0.0
        %849 = vmatpush.msra.mxu0 0.0
        %850 = vmatpush.msra.mxu0 0.0
        %851 = vmatpush.msra.mxu0 0.0
        %852 = vmatpush.msra.mxu0 0.0
        %853 = vmatpush.msra.mxu0 0.0
        %854 = vmatpush.msra.mxu0 %v752
        %855 = vmatpush.msra.mxu0 %v751
        %856 = vmatmul.f32.gmra.mxu0 %v754
        %v857 = vpop.f32.mrf.mxu0
        %v858 = vadd.f32 %v832, %v857
        %859 = vmatmul.f32.gmra.mxu0 %v757
        %v860 = vpop.f32.mrf.mxu0
        %v861 = vadd.f32 %v835, %v860
        %862 = vmatmul.f32.gmra.mxu0 %v760
        %v863 = vpop.f32.mrf.mxu0
        %v864 = vadd.f32 %v838, %v863
        %865 = vdwg.mxu0
        %v866 = vld [vmem:[%s415] sm:$0xff]
        %v867 = vld [vmem:[%s415 + $0x8] sm:$0xff]
        %v868 = vld [vmem:[%s415 + $0x10] sm:$0xff]
        %v869 = vld [vmem:[%s415 + $0x18] sm:$0xff]
        %v870 = vld [vmem:[%s415 + $0x20] sm:$0xff]
        %v871 = vld [vmem:[%s415 + $0x28] sm:$0xff]
        %v872 = vld [vmem:[%s415 + $0x30] sm:$0xff]
        %v873 = vld [vmem:[%s415 + $0x38] sm:$0xff]
        %v874 = vld [vmem:[%s415 + $0x40] sm:$0x1]
        %v875 = vld [vmem:[%s415 + $0x48] sm:$0x1]
        %v876 = vld [vmem:[%s415 + $0x50] sm:$0x1]
        %v877 = vld [vmem:[%s415 + $0x58] sm:$0x1]
        %v879 = vsel %vm392, %v869, 0
        %v882 = vsel %vm392, %v873, 0
        %v885 = vsel %vm392, %v877, 0
        %887 = vmatpush.msra.mxu0 %v718
        %888 = vmatpush.msra.mxu0 %v717
        %889 = vmatpush.msra.mxu0 %v716
        %890 = vmatpush.msra.mxu0 %v715
        %891 = vmatpush.msra.mxu0 %v714
        %892 = vmatpush.msra.mxu0 %v713
        %893 = vmatpush.msra.mxu0 %v712
        %894 = vmatpush.msra.mxu0 %v711
        %895 = vmatpush.msra.mxu0 %v710
        %896 = vmatpush.msra.mxu0 %v709
        %897 = vmatpush.msra.mxu0 %v708
        %898 = vmatpush.msra.mxu0 %v707
        %899 = vmatpush.msra.mxu0 %v706
        %900 = vmatpush.msra.mxu0 %v705
        %901 = vmatpush.msra.mxu0 %v704
        %902 = vmatpush.msra.mxu0 %v703
        %903 = vmatmul.f32.gmra.mxu0 %v866
        %v904 = vpop.f32.mrf.mxu0
        %v905 = vadd.f32 0.0, %v904
        %906 = vmatmul.f32.gmra.mxu0 %v870
        %v907 = vpop.f32.mrf.mxu0
        %v908 = vadd.f32 0.0, %v907
        %909 = vmatmul.f32.gmra.mxu0 %v874
        %v910 = vpop.f32.mrf.mxu0
        %v911 = vadd.f32 0.0, %v910
        %912 = vdwg.mxu0
        %913 = vmatpush.msra.mxu0 %v734
        %914 = vmatpush.msra.mxu0 %v733
        %915 = vmatpush.msra.mxu0 %v732
        %916 = vmatpush.msra.mxu0 %v731
        %917 = vmatpush.msra.mxu0 %v730
        %918 = vmatpush.msra.mxu0 %v729
        %919 = vmatpush.msra.mxu0 %v728
        %920 = vmatpush.msra.mxu0 %v727
        %921 = vmatpush.msra.mxu0 %v726
        %922 = vmatpush.msra.mxu0 %v725
        %923 = vmatpush.msra.mxu0 %v724
        %924 = vmatpush.msra.mxu0 %v723
        %925 = vmatpush.msra.mxu0 %v722
        %926 = vmatpush.msra.mxu0 %v721
        %927 = vmatpush.msra.mxu0 %v720
        %928 = vmatpush.msra.mxu0 %v719
        %929 = vmatmul.f32.gmra.mxu0 %v867
        %v930 = vpop.f32.mrf.mxu0
        %v931 = vadd.f32 %v905, %v930
        %932 = vmatmul.f32.gmra.mxu0 %v871
        %v933 = vpop.f32.mrf.mxu0
        %v934 = vadd.f32 %v908, %v933
        %935 = vmatmul.f32.gmra.mxu0 %v875
        %v936 = vpop.f32.mrf.mxu0
        %v937 = vadd.f32 %v911, %v936
        %938 = vdwg.mxu0
        %939 = vmatpush.msra.mxu0 %v750
        %940 = vmatpush.msra.mxu0 %v749
        %941 = vmatpush.msra.mxu0 %v748
        %942 = vmatpush.msra.mxu0 %v747
        %943 = vmatpush.msra.mxu0 %v746
        %944 = vmatpush.msra.mxu0 %v745
        %945 = vmatpush.msra.mxu0 %v744
        %946 = vmatpush.msra.mxu0 %v743
        %947 = vmatpush.msra.mxu0 %v742
        %948 = vmatpush.msra.mxu0 %v741
        %949 = vmatpush.msra.mxu0 %v740
        %950 = vmatpush.msra.mxu0 %v739
        %951 = vmatpush.msra.mxu0 %v738
        %952 = vmatpush.msra.mxu0 %v737
        %953 = vmatpush.msra.mxu0 %v736
        %954 = vmatpush.msra.mxu0 %v735
        %955 = vmatmul.f32.gmra.mxu0 %v868
        %v956 = vpop.f32.mrf.mxu0
        %v957 = vadd.f32 %v931, %v956
        %958 = vmatmul.f32.gmra.mxu0 %v872
        %v959 = vpop.f32.mrf.mxu0
        %v960 = vadd.f32 %v934, %v959
        %961 = vmatmul.f32.gmra.mxu0 %v876
        %v962 = vpop.f32.mrf.mxu0
        %v963 = vadd.f32 %v937, %v962
        %964 = vdwg.mxu0
        %965 = vmatpush.msra.mxu0 0.0
        %966 = vmatpush.msra.mxu0 0.0
        %967 = vmatpush.msra.mxu0 0.0
        %968 = vmatpush.msra.mxu0 0.0
        %969 = vmatpush.msra.mxu0 0.0
        %970 = vmatpush.msra.mxu0 0.0
        %971 = vmatpush.msra.mxu0 0.0
        %972 = vmatpush.msra.mxu0 0.0
        %973 = vmatpush.msra.mxu0 0.0
        %974 = vmatpush.msra.mxu0 0.0
        %975 = vmatpush.msra.mxu0 0.0
        %976 = vmatpush.msra.mxu0 0.0
        %977 = vmatpush.msra.mxu0 0.0
        %978 = vmatpush.msra.mxu0 0.0
        %979 = vmatpush.msra.mxu0 %v752
        %980 = vmatpush.msra.mxu0 %v751
        %981 = vmatmul.f32.gmra.mxu0 %v879
        %v982 = vpop.f32.mrf.mxu0
        %v983 = vadd.f32 %v957, %v982
        %984 = vmatmul.f32.gmra.mxu0 %v882
        %v985 = vpop.f32.mrf.mxu0
        %v986 = vadd.f32 %v960, %v985
        %987 = vmatmul.f32.gmra.mxu0 %v885
        %v988 = vpop.f32.mrf.mxu0
        %v989 = vadd.f32 %v963, %v988
        %990 = vdwg.mxu0
        %v991 = vmax.f32 %v858, %v983
        %v992 = vmax.f32 %v861, %v986
        %v993 = vmax.f32 %v864, %v989
        %v994 = vld [vmem:[%s503] sm:$0xff]
        %v995 = vld [vmem:[%s503 + $0x8] sm:$0xff]
        %v996 = vld [vmem:[%s503 + $0x10] sm:$0xff]
        %v997 = vld [vmem:[%s503 + $0x18] sm:$0xff]
        %v998 = vld [vmem:[%s503 + $0x20] sm:$0xff]
        %v999 = vld [vmem:[%s503 + $0x28] sm:$0xff]
        %v1000 = vld [vmem:[%s503 + $0x30] sm:$0xff]
        %v1001 = vld [vmem:[%s503 + $0x38] sm:$0xff]
        %v1002 = vld [vmem:[%s503 + $0x40] sm:$0x1]
        %v1003 = vld [vmem:[%s503 + $0x48] sm:$0x1]
        %v1004 = vld [vmem:[%s503 + $0x50] sm:$0x1]
        %v1005 = vld [vmem:[%s503 + $0x58] sm:$0x1]
        %v1007 = vsel %vm392, %v997, 0
        %v1010 = vsel %vm392, %v1001, 0
        %v1013 = vsel %vm392, %v1005, 0
        %1015 = vmatpush.msra.mxu0 %v718
        %1016 = vmatpush.msra.mxu0 %v717
        %1017 = vmatpush.msra.mxu0 %v716
        %1018 = vmatpush.msra.mxu0 %v715
        %1019 = vmatpush.msra.mxu0 %v714
        %1020 = vmatpush.msra.mxu0 %v713
        %1021 = vmatpush.msra.mxu0 %v712
        %1022 = vmatpush.msra.mxu0 %v711
        %1023 = vmatpush.msra.mxu0 %v710
        %1024 = vmatpush.msra.mxu0 %v709
        %1025 = vmatpush.msra.mxu0 %v708
        %1026 = vmatpush.msra.mxu0 %v707
        %1027 = vmatpush.msra.mxu0 %v706
        %1028 = vmatpush.msra.mxu0 %v705
        %1029 = vmatpush.msra.mxu0 %v704
        %1030 = vmatpush.msra.mxu0 %v703
        %1031 = vmatmul.f32.gmra.mxu0 %v994
        %v1032 = vpop.f32.mrf.mxu0
        %v1033 = vadd.f32 0.0, %v1032
        %1034 = vmatmul.f32.gmra.mxu0 %v998
        %v1035 = vpop.f32.mrf.mxu0
        %v1036 = vadd.f32 0.0, %v1035
        %1037 = vmatmul.f32.gmra.mxu0 %v1002
        %v1038 = vpop.f32.mrf.mxu0
        %v1039 = vadd.f32 0.0, %v1038
        %1040 = vdwg.mxu0
        %1041 = vmatpush.msra.mxu0 %v734
        %1042 = vmatpush.msra.mxu0 %v733
        %1043 = vmatpush.msra.mxu0 %v732
        %1044 = vmatpush.msra.mxu0 %v731
        %1045 = vmatpush.msra.mxu0 %v730
        %1046 = vmatpush.msra.mxu0 %v729
        %1047 = vmatpush.msra.mxu0 %v728
        %1048 = vmatpush.msra.mxu0 %v727
        %1049 = vmatpush.msra.mxu0 %v726
        %1050 = vmatpush.msra.mxu0 %v725
        %1051 = vmatpush.msra.mxu0 %v724
        %1052 = vmatpush.msra.mxu0 %v723
        %1053 = vmatpush.msra.mxu0 %v722
        %1054 = vmatpush.msra.mxu0 %v721
        %1055 = vmatpush.msra.mxu0 %v720
        %1056 = vmatpush.msra.mxu0 %v719
        %1057 = vmatmul.f32.gmra.mxu0 %v995
        %v1058 = vpop.f32.mrf.mxu0
        %v1059 = vadd.f32 %v1033, %v1058
        %1060 = vmatmul.f32.gmra.mxu0 %v999
        %v1061 = vpop.f32.mrf.mxu0
        %v1062 = vadd.f32 %v1036, %v1061
        %1063 = vmatmul.f32.gmra.mxu0 %v1003
        %v1064 = vpop.f32.mrf.mxu0
        %v1065 = vadd.f32 %v1039, %v1064
        %1066 = vdwg.mxu0
        %1067 = vmatpush.msra.mxu0 %v750
        %1068 = vmatpush.msra.mxu0 %v749
        %1069 = vmatpush.msra.mxu0 %v748
        %1070 = vmatpush.msra.mxu0 %v747
        %1071 = vmatpush.msra.mxu0 %v746
        %1072 = vmatpush.msra.mxu0 %v745
        %1073 = vmatpush.msra.mxu0 %v744
        %1074 = vmatpush.msra.mxu0 %v743
        %1075 = vmatpush.msra.mxu0 %v742
        %1076 = vmatpush.msra.mxu0 %v741
        %1077 = vmatpush.msra.mxu0 %v740
        %1078 = vmatpush.msra.mxu0 %v739
        %1079 = vmatpush.msra.mxu0 %v738
        %1080 = vmatpush.msra.mxu0 %v737
        %1081 = vmatpush.msra.mxu0 %v736
        %1082 = vmatpush.msra.mxu0 %v735
        %1083 = vmatmul.f32.gmra.mxu0 %v996
        %v1084 = vpop.f32.mrf.mxu0
        %v1085 = vadd.f32 %v1059, %v1084
        %1086 = vmatmul.f32.gmra.mxu0 %v1000
        %v1087 = vpop.f32.mrf.mxu0
        %v1088 = vadd.f32 %v1062, %v1087
        %1089 = vmatmul.f32.gmra.mxu0 %v1004
        %v1090 = vpop.f32.mrf.mxu0
        %v1091 = vadd.f32 %v1065, %v1090
        %1092 = vdwg.mxu0
        %1093 = vmatpush.msra.mxu0 0.0
        %1094 = vmatpush.msra.mxu0 0.0
        %1095 = vmatpush.msra.mxu0 0.0
        %1096 = vmatpush.msra.mxu0 0.0
        %1097 = vmatpush.msra.mxu0 0.0
        %1098 = vmatpush.msra.mxu0 0.0
        %1099 = vmatpush.msra.mxu0 0.0
        %1100 = vmatpush.msra.mxu0 0.0
        %1101 = vmatpush.msra.mxu0 0.0
        %1102 = vmatpush.msra.mxu0 0.0
        %1103 = vmatpush.msra.mxu0 0.0
        %1104 = vmatpush.msra.mxu0 0.0
        %1105 = vmatpush.msra.mxu0 0.0
        %1106 = vmatpush.msra.mxu0 0.0
        %1107 = vmatpush.msra.mxu0 %v752
        %1108 = vmatpush.msra.mxu0 %v751
        %1109 = vmatmul.f32.gmra.mxu0 %v1007
        %v1110 = vpop.f32.mrf.mxu0
        %v1111 = vadd.f32 %v1085, %v1110
        %1112 = vmatmul.f32.gmra.mxu0 %v1010
        %v1113 = vpop.f32.mrf.mxu0
        %v1114 = vadd.f32 %v1088, %v1113
        %1115 = vmatmul.f32.gmra.mxu0 %v1013
        %v1116 = vpop.f32.mrf.mxu0
        %v1117 = vadd.f32 %v1091, %v1116
        %1118 = vdwg.mxu0
        %v1119 = vmax.f32 %v991, %v1111
        %v1120 = vmax.f32 %v992, %v1114
        %v1121 = vmax.f32 %v993, %v1117
        %v1122 = vld [vmem:[%s606] sm:$0xff]
        %v1123 = vld [vmem:[%s606 + $0x8] sm:$0xff]
        %v1124 = vld [vmem:[%s606 + $0x10] sm:$0xff]
        %v1125 = vld [vmem:[%s606 + $0x18] sm:$0xff]
        %v1126 = vld [vmem:[%s606 + $0x20] sm:$0xff]
        %v1127 = vld [vmem:[%s606 + $0x28] sm:$0xff]
        %v1128 = vld [vmem:[%s606 + $0x30] sm:$0xff]
        %v1129 = vld [vmem:[%s606 + $0x38] sm:$0xff]
        %v1130 = vld [vmem:[%s606 + $0x40] sm:$0x1]
        %v1131 = vld [vmem:[%s606 + $0x48] sm:$0x1]
        %v1132 = vld [vmem:[%s606 + $0x50] sm:$0x1]
        %v1133 = vld [vmem:[%s606 + $0x58] sm:$0x1]
        %v1135 = vsel %vm392, %v1125, 0
        %v1138 = vsel %vm392, %v1129, 0
        %v1141 = vsel %vm392, %v1133, 0
        %1143 = vmatpush.msra.mxu0 %v718
        %1144 = vmatpush.msra.mxu0 %v717
        %1145 = vmatpush.msra.mxu0 %v716
        %1146 = vmatpush.msra.mxu0 %v715
        %1147 = vmatpush.msra.mxu0 %v714
        %1148 = vmatpush.msra.mxu0 %v713
        %1149 = vmatpush.msra.mxu0 %v712
        %1150 = vmatpush.msra.mxu0 %v711
        %1151 = vmatpush.msra.mxu0 %v710
        %1152 = vmatpush.msra.mxu0 %v709
        %1153 = vmatpush.msra.mxu0 %v708
        %1154 = vmatpush.msra.mxu0 %v707
        %1155 = vmatpush.msra.mxu0 %v706
        %1156 = vmatpush.msra.mxu0 %v705
        %1157 = vmatpush.msra.mxu0 %v704
        %1158 = vmatpush.msra.mxu0 %v703
        %1159 = vmatmul.f32.gmra.mxu0 %v1122
        %v1160 = vpop.f32.mrf.mxu0
        %v1161 = vadd.f32 0.0, %v1160
        %1162 = vmatmul.f32.gmra.mxu0 %v1126
        %v1163 = vpop.f32.mrf.mxu0
        %v1164 = vadd.f32 0.0, %v1163
        %1165 = vmatmul.f32.gmra.mxu0 %v1130
        %v1166 = vpop.f32.mrf.mxu0
        %v1167 = vadd.f32 0.0, %v1166
        %1168 = vdwg.mxu0
        %1169 = vmatpush.msra.mxu0 %v734
        %1170 = vmatpush.msra.mxu0 %v733
        %1171 = vmatpush.msra.mxu0 %v732
        %1172 = vmatpush.msra.mxu0 %v731
        %1173 = vmatpush.msra.mxu0 %v730
        %1174 = vmatpush.msra.mxu0 %v729
        %1175 = vmatpush.msra.mxu0 %v728
        %1176 = vmatpush.msra.mxu0 %v727
        %1177 = vmatpush.msra.mxu0 %v726
        %1178 = vmatpush.msra.mxu0 %v725
        %1179 = vmatpush.msra.mxu0 %v724
        %1180 = vmatpush.msra.mxu0 %v723
        %1181 = vmatpush.msra.mxu0 %v722
        %1182 = vmatpush.msra.mxu0 %v721
        %1183 = vmatpush.msra.mxu0 %v720
        %1184 = vmatpush.msra.mxu0 %v719
        %1185 = vmatmul.f32.gmra.mxu0 %v1123
        %v1186 = vpop.f32.mrf.mxu0
        %v1187 = vadd.f32 %v1161, %v1186
        %1188 = vmatmul.f32.gmra.mxu0 %v1127
        %v1189 = vpop.f32.mrf.mxu0
        %v1190 = vadd.f32 %v1164, %v1189
        %1191 = vmatmul.f32.gmra.mxu0 %v1131
        %v1192 = vpop.f32.mrf.mxu0
        %v1193 = vadd.f32 %v1167, %v1192
        %1194 = vdwg.mxu0
        %1195 = vmatpush.msra.mxu0 %v750
        %1196 = vmatpush.msra.mxu0 %v749
        %1197 = vmatpush.msra.mxu0 %v748
        %1198 = vmatpush.msra.mxu0 %v747
        %1199 = vmatpush.msra.mxu0 %v746
        %1200 = vmatpush.msra.mxu0 %v745
        %1201 = vmatpush.msra.mxu0 %v744
        %1202 = vmatpush.msra.mxu0 %v743
        %1203 = vmatpush.msra.mxu0 %v742
        %1204 = vmatpush.msra.mxu0 %v741
        %1205 = vmatpush.msra.mxu0 %v740
        %1206 = vmatpush.msra.mxu0 %v739
        %1207 = vmatpush.msra.mxu0 %v738
        %1208 = vmatpush.msra.mxu0 %v737
        %1209 = vmatpush.msra.mxu0 %v736
        %1210 = vmatpush.msra.mxu0 %v735
        %1211 = vmatmul.f32.gmra.mxu0 %v1124
        %v1212 = vpop.f32.mrf.mxu0
        %v1213 = vadd.f32 %v1187, %v1212
        %1214 = vmatmul.f32.gmra.mxu0 %v1128
        %v1215 = vpop.f32.mrf.mxu0
        %v1216 = vadd.f32 %v1190, %v1215
        %1217 = vmatmul.f32.gmra.mxu0 %v1132
        %v1218 = vpop.f32.mrf.mxu0
        %v1219 = vadd.f32 %v1193, %v1218
        %1220 = vdwg.mxu0
        %1221 = vmatpush.msra.mxu0 0.0
        %1222 = vmatpush.msra.mxu0 0.0
        %1223 = vmatpush.msra.mxu0 0.0
        %1224 = vmatpush.msra.mxu0 0.0
        %1225 = vmatpush.msra.mxu0 0.0
        %1226 = vmatpush.msra.mxu0 0.0
        %1227 = vmatpush.msra.mxu0 0.0
        %1228 = vmatpush.msra.mxu0 0.0
        %1229 = vmatpush.msra.mxu0 0.0
        %1230 = vmatpush.msra.mxu0 0.0
        %1231 = vmatpush.msra.mxu0 0.0
        %1232 = vmatpush.msra.mxu0 0.0
        %1233 = vmatpush.msra.mxu0 0.0
        %1234 = vmatpush.msra.mxu0 0.0
        %1235 = vmatpush.msra.mxu0 %v752
        %1236 = vmatpush.msra.mxu0 %v751
        %1237 = vmatmul.f32.gmra.mxu0 %v1135
        %v1238 = vpop.f32.mrf.mxu0
        %v1239 = vadd.f32 %v1213, %v1238
        %1240 = vmatmul.f32.gmra.mxu0 %v1138
        %v1241 = vpop.f32.mrf.mxu0
        %v1242 = vadd.f32 %v1216, %v1241
        %1243 = vmatmul.f32.gmra.mxu0 %v1141
        %v1244 = vpop.f32.mrf.mxu0
        %v1245 = vadd.f32 %v1219, %v1244
        %1246 = vdwg.mxu0
        %v1247 = vmax.f32 %v1119, %v1239
        %v1248 = vmax.f32 %v1120, %v1242
        %v1249 = vmax.f32 %v1121, %v1245
        %v1250 = vld [vmem:[%s2] sm:$0x1]
        %v1252 = vperm.slane %v1250, 0
        %v1254 = vadd.f32 %v1247, %v1252
        %v1255 = vadd.f32 %v1248, %v1252
        %v1256 = vadd.f32 %v1249, %v1252
        %v1257 = vmax.f32 %v1254, 0.0
        %v1258 = vmax.f32 %v1255, 0.0
        %v1259 = vmax.f32 %v1256, 0.0
        %s1260 = smul.u32 %s277, 24
        %s1261 = scalar_lea.vmem %s170, %s1260
        %1262 = vst.msk [vmem:[%s1261] sm:$0xff] %vm313, %v1257
        %1263 = vst.msk [vmem:[%s1261 + $0x8] sm:$0xff] %vm313, %v1258
        %1264 = vst.msk [vmem:[%s1261 + $0x10] sm:$0x1] %vm319, %v1259
      $region44: #{net_forward.4} parent=31 // loop_footer
        %s281 = sadd.s32 1, %s277
      $region45: #{net_forward.4} parent=31 // loop_footer_branch
        %276 = sbr.rel target = $region41
      $region46: #{net_forward.4} parent=31 // loop_exit
        _
      %p1265 = scmp.lt.s32.totalorder %s14, 1
      %s1266 = scalar_select %p1265, %s14, 1
      %s1267 = smul.addr %s1266, 51
      %s1268 = smul.addr %s1267, 8
      %s1269 = scalar_lea.vmem %s3, %s1268
      // Predicated region
      $region47: #{net_forward.4} parent=31 // pred_check
        %p1270 = pneg %p100
      $region48: #{net_forward.4} parent=31 // pred_check_branch
        %1272 = sbr.rel (%p1270) target = $region50
      $region49: #{net_forward.4} parent=31 // pred_region
        _
      $region50: #{net_forward.4} parent=31 // pred_fallthru
        _
    $region32: #{net_forward.4} parent=5 // pred_fallthru
      _
    %p1273 = scmp.le.s32.totalorder 2, %s9
    // Predicated region
    $region51: #{net_forward.4} parent=5 // pred_check
      %p1274 = pneg %p1273
    $region52: #{net_forward.4} parent=5 // pred_check_branch
      %1276 = sbr.rel (%p1274) target = $region54
    $region53: #{net_forward.4} parent=5 // pred_region
      %s1277 = ssub.s32 %s9, 2
      // Predicated region
      $region55: #{net_forward.4} parent=53 // pred_check
        %p1278 = pneg %p106
      $region56: #{net_forward.4} parent=53 // pred_check_branch
        %1280 = sbr.rel (%p1278) target = $region58
      $region57: #{net_forward.4} parent=53 // pred_region
        %p1281 = scmp.lt.s32.totalorder %s15, 1
        %s1282 = scalar_select %p1281, %s15, 1
        %s1283 = smul.addr %s1282, 51
        %s1284 = smul.addr %s1283, 8
        %s1285 = scalar_lea.vmem %s3, %s1284
      $region58: #{net_forward.4} parent=53 // pred_fallthru
        _
    $region54: #{net_forward.4} parent=5 // pred_fallthru
      _
  $region6: #{net_forward.4} parent=0 // loop_footer
    %s13 = sadd.s32 1, %s9
  $region7: #{net_forward.4} parent=0 // loop_footer_branch
    %8 = sbr.rel target = $region3
  $region8: #{net_forward.4} parent=0 // loop_exit
    _

// kernel: net_forward.5
$region0: #{net_forward.5}
  #allocation0 [shape = 'u32[]', space=smem, size = 0x4, offset = 0x4, fixed_abs, tag = 'smem constant byte address 0x4 - core index']
  #allocation1 [shape = 'u32[72,128]{1,0:T(1,128)}', space=vmem, size = 0x9000, scoped, tag = 'internal scratch']
  %s0 = inlined_call_operand.vmem [shape: f32[2,9248], index: 0, kind: input, shape index: {}]
  %s1 = inlined_call_operand.vmem [shape: f32[9248,64], index: 1, kind: input, shape index: {}]
  %s2 = inlined_call_operand.vmem [shape: f32[1,64], index: 2, kind: input, shape index: {}]
  %s3 = inlined_call_operand.vmem [shape: f32[64,16], index: 3, kind: input, shape index: {}]
  %s4 = inlined_call_operand.vmem [shape: f32[1,16], index: 4, kind: input, shape index: {}]
  %s5 = inlined_call_operand.vmem [shape: f32[16,2], index: 5, kind: input, shape index: {}]
  %s6 = inlined_call_operand.vmem [shape: f32[1,2], index: 6, kind: input, shape index: {}]
  %s7 = inlined_call_operand.hbm [shape: f32[2,2], index: 7, kind: output, shape index: {}]
  %s8 = sld [smem:[#allocation0]]
  $region38: #{net_forward.5} parent=0
    _
  %s10 = ssub.s32 1, %s8
  %s11 = scalar_select 0, %s10, %s8
  $region1: #{net_forward.5} parent=0
    #allocation2 [shape = 'u8[1024]{0}', space=vmem, size = 0x400, scoped, tag = 'output window, operand 0, single buffered']
    #allocation3 [shape = 's32[1]{0}', space=sflag, size = 0x4, scoped, tag = 'scoped memory for net_forward.5']
    %12 = vsyncpa [#allocation3], 0
    // Predicated region
    $region2: #{net_forward.5} parent=1 // pred_check
      _
    $region3: #{net_forward.5} parent=1 // pred_check_branch
      %14 = sbr.rel (0) target = $region5
    $region4: #{net_forward.5} parent=1 // pred_region
      _
    $region5: #{net_forward.5} parent=1 // pred_fallthru
      _
    // Predicated region
    $region6: #{net_forward.5} parent=1 // pred_check
      _
    $region7: #{net_forward.5} parent=1 // pred_check_branch
      %16 = sbr.rel (0) target = $region9
    $region8: #{net_forward.5} parent=1 // pred_region
      _
    $region9: #{net_forward.5} parent=1 // pred_fallthru
      _
    // Predicated region
    $region10: #{net_forward.5} parent=1 // pred_check
      _
    $region11: #{net_forward.5} parent=1 // pred_check_branch
      %18 = sbr.rel (0) target = $region13
    $region12: #{net_forward.5} parent=1 // pred_region
      _
    $region13: #{net_forward.5} parent=1 // pred_fallthru
      _
    // Predicated region
    $region14: #{net_forward.5} parent=1 // pred_check
      _
    $region15: #{net_forward.5} parent=1 // pred_check_branch
      %20 = sbr.rel (0) target = $region17
    $region16: #{net_forward.5} parent=1 // pred_region
      _
    $region17: #{net_forward.5} parent=1 // pred_fallthru
      _
    // Predicated region
    $region18: #{net_forward.5} parent=1 // pred_check
      _
    $region19: #{net_forward.5} parent=1 // pred_check_branch
      %22 = sbr.rel (0) target = $region21
    $region20: #{net_forward.5} parent=1 // pred_region
      _
    $region21: #{net_forward.5} parent=1 // pred_fallthru
      _
    // Predicated region
    $region22: #{net_forward.5} parent=1 // pred_check
      _
    $region23: #{net_forward.5} parent=1 // pred_check_branch
      %24 = sbr.rel (0) target = $region25
    $region24: #{net_forward.5} parent=1 // pred_region
      _
    $region25: #{net_forward.5} parent=1 // pred_fallthru
      _
    // Predicated region
    $region26: #{net_forward.5} parent=1 // pred_check
      _
    $region27: #{net_forward.5} parent=1 // pred_check_branch
      %26 = sbr.rel (0) target = $region29
    $region28: #{net_forward.5} parent=1 // pred_region
      _
    $region29: #{net_forward.5} parent=1 // pred_fallthru
      _
    %v27 = vld [vmem:[%s0] sm:$0xff]
    %v28 = vld [vmem:[%s0 + $0x8] sm:$0xff]
    %v29 = vld [vmem:[%s0 + $0x10] sm:$0xff]
    %v30 = vld [vmem:[%s0 + $0x18] sm:$0xff]
    %v31 = vld [vmem:[%s0 + $0x20] sm:$0xff]
    %v32 = vld [vmem:[%s0 + $0x28] sm:$0xff]
    %v33 = vld [vmem:[%s0 + $0x30] sm:$0xff]
    %v34 = vld [vmem:[%s0 + $0x38] sm:$0xff]
    %v35 = vld [vmem:[%s0 + $0x40] sm:$0xff]
    %v36 = vld [vmem:[%s0 + $0x48] sm:$0xff]
    %v37 = vld [vmem:[%s0 + $0x50] sm:$0xff]
    %v38 = vld [vmem:[%s0 + $0x58] sm:$0xff]
    %v39 = vld [vmem:[%s0 + $0x60] sm:$0xff]
    %v40 = vld [vmem:[%s0 + $0x68] sm:$0xff]
    %v41 = vld [vmem:[%s0 + $0x70] sm:$0xff]
    %v42 = vld [vmem:[%s0 + $0x78] sm:$0xff]
    %v43 = vld [vmem:[%s0 + $0x80] sm:$0xff]
    %v44 = vld [vmem:[%s0 + $0x88] sm:$0xff]
    %v45 = vld [vmem:[%s0 + $0x90] sm:$0x3]
    %v46 = vld [vmem:[%s1] sm:$0xff]
    %v47 = vld [vmem:[%s1 + $0x8] sm:$0xff]
    %v48 = vld [vmem:[%s1 + $0x10] sm:$0xff]
    %v49 = vld [vmem:[%s1 + $0x18] sm:$0xff]
    %v50 = vld [vmem:[%s1 + $0x20] sm:$0xff]
    %v51 = vld [vmem:[%s1 + $0x28] sm:$0xff]
    %v52 = vld [vmem:[%s1 + $0x30] sm:$0xff]
    %v53 = vld [vmem:[%s1 + $0x38] sm:$0xff]
    %v54 = vld [vmem:[%s1 + $0x40] sm:$0xff]
    %v55 = vld [vmem:[%s1 + $0x48] sm:$0xff]
    %v56 = vld [vmem:[%s1 + $0x50] sm:$0xff]
    %v57 = vld [vmem:[%s1 + $0x58] sm:$0xff]
    %v58 = vld [vmem:[%s1 + $0x60] sm:$0xff]
    %v59 = vld [vmem:[%s1 + $0x68] sm:$0xff]
    %v60 = vld [vmem:[%s1 + $0x70] sm:$0xff]
    %v61 = vld [vmem:[%s1 + $0x78] sm:$0xff]
    %v62 = vld [vmem:[%s1 + $0x80] sm:$0xff]
    %v63 = vld [vmem:[%s1 + $0x88] sm:$0xff]
    %v64 = vld [vmem:[%s1 + $0x90] sm:$0xff]
    %v65 = vld [vmem:[%s1 + $0x98] sm:$0xff]
    %v66 = vld [vmem:[%s1 + $0xa0] sm:$0xff]
    %v67 = vld [vmem:[%s1 + $0xa8] sm:$0xff]
    %v68 = vld [vmem:[%s1 + $0xb0] sm:$0xff]
    %v69 = vld [vmem:[%s1 + $0xb8] sm:$0xff]
    %v70 = vld [vmem:[%s1 + $0xc0] sm:$0xff]
    %v71 = vld [vmem:[%s1 + $0xc8] sm:$0xff]
    %v72 = vld [vmem:[%s1 + $0xd0] sm:$0xff]
    %v73 = vld [vmem:[%s1 + $0xd8] sm:$0xff]
    %v74 = vld [vmem:[%s1 + $0xe0] sm:$0xff]
    %v75 = vld [vmem:[%s1 + $0xe8] sm:$0xff]
    %v76 = vld [vmem:[%s1 + $0xf0] sm:$0xff]
    %v77 = vld [vmem:[%s1 + $0xf8] sm:$0xff]
    %v78 = vld [vmem:[%s1 + $0x100] sm:$0xff]
    %v79 = vld [vmem:[%s1 + $0x108] sm:$0xff]
    %v80 = vld [vmem:[%s1 + $0x110] sm:$0xff]
    %v81 = vld [vmem:[%s1 + $0x118] sm:$0xff]
    %v82 = vld [vmem:[%s1 + $0x120] sm:$0xff]
    %v83 = vld [vmem:[%s1 + $0x128] sm:$0xff]
    %v84 = vld [vmem:[%s1 + $0x130] sm:$0xff]
    %v85 = vld [vmem:[%s1 + $0x138] sm:$0xff]
    %v86 = vld [vmem:[%s1 + $0x140] sm:$0xff]
    %v87 = vld [vmem:[%s1 + $0x148] sm:$0xff]
    %v88 = vld [vmem:[%s1 + $0x150] sm:$0xff]
    %v89 = vld [vmem:[%s1 + $0x158] sm:$0xff]
    %v90 = vld [vmem:[%s1 + $0x160] sm:$0xff]
    %v91 = vld [vmem:[%s1 + $0x168] sm:$0xff]
    %v92 = vld [vmem:[%s1 + $0x170] sm:$0xff]
    %v93 = vld [vmem:[%s1 + $0x178] sm:$0xff]
    %v94 = vld [vmem:[%s1 + $0x180] sm:$0xff]
    %v95 = vld [vmem:[%s1 + $0x188] sm:$0xff]
    %v96 = vld [vmem:[%s1 + $0x190] sm:$0xff]
    %v97 = vld [vmem:[%s1 + $0x198] sm:$0xff]
    %v98 = vld [vmem:[%s1 + $0x1a0] sm:$0xff]
    %v99 = vld [vmem:[%s1 + $0x1a8] sm:$0xff]
    %v100 = vld [vmem:[%s1 + $0x1b0] sm:$0xff]
    %v101 = vld [vmem:[%s1 + $0x1b8] sm:$0xff]
    %v102 = vld [vmem:[%s1 + $0x1c0] sm:$0xff]
    %v103 = vld [vmem:[%s1 + $0x1c8] sm:$0xff]
    %v104 = vld [vmem:[%s1 + $0x1d0] sm:$0xff]
    %v105 = vld [vmem:[%s1 + $0x1d8] sm:$0xff]
    %v106 = vld [vmem:[%s1 + $0x1e0] sm:$0xff]
    %v107 = vld [vmem:[%s1 + $0x1e8] sm:$0xff]
    %v108 = vld [vmem:[%s1 + $0x1f0] sm:$0xff]
    %v109 = vld [vmem:[%s1 + $0x1f8] sm:$0xff]
    %v110 = vld [vmem:[%s1 + $0x200] sm:$0xff]
    %v111 = vld [vmem:[%s1 + $0x208] sm:$0xff]
    %v112 = vld [vmem:[%s1 + $0x210] sm:$0xff]
    %v113 = vld [vmem:[%s1 + $0x218] sm:$0xff]
    %v114 = vld [vmem:[%s1 + $0x220] sm:$0xff]
    %v115 = vld [vmem:[%s1 + $0x228] sm:$0xff]
    %v116 = vld [vmem:[%s1 + $0x230] sm:$0xff]
    %v117 = vld [vmem:[%s1 + $0x238] sm:$0xff]
    %v118 = vld [vmem:[%s1 + $0x240] sm:$0xff]
    %v119 = vld [vmem:[%s1 + $0x248] sm:$0xff]
    %v120 = vld [vmem:[%s1 + $0x250] sm:$0xff]
    %v121 = vld [vmem:[%s1 + $0x258] sm:$0xff]
    %v122 = vld [vmem:[%s1 + $0x260] sm:$0xff]
    %v123 = vld [vmem:[%s1 + $0x268] sm:$0xff]
    %v124 = vld [vmem:[%s1 + $0x270] sm:$0xff]
    %v125 = vld [vmem:[%s1 + $0x278] sm:$0xff]
    %v126 = vld [vmem:[%s1 + $0x280] sm:$0xff]
    %v127 = vld [vmem:[%s1 + $0x288] sm:$0xff]
    %v128 = vld [vmem:[%s1 + $0x290] sm:$0xff]
    %v129 = vld [vmem:[%s1 + $0x298] sm:$0xff]
    %v130 = vld [vmem:[%s1 + $0x2a0] sm:$0xff]
    %v131 = vld [vmem:[%s1 + $0x2a8] sm:$0xff]
    %v132 = vld [vmem:[%s1 + $0x2b0] sm:$0xff]
    %v133 = vld [vmem:[%s1 + $0x2b8] sm:$0xff]
    %v134 = vld [vmem:[%s1 + $0x2c0] sm:$0xff]
    %v135 = vld [vmem:[%s1 + $0x2c8] sm:$0xff]
    %v136 = vld [vmem:[%s1 + $0x2d0] sm:$0xff]
    %v137 = vld [vmem:[%s1 + $0x2d8] sm:$0xff]
    %v138 = vld [vmem:[%s1 + $0x2e0] sm:$0xff]
    %v139 = vld [vmem:[%s1 + $0x2e8] sm:$0xff]
    %v140 = vld [vmem:[%s1 + $0x2f0] sm:$0xff]
    %v141 = vld [vmem:[%s1 + $0x2f8] sm:$0xff]
    %v142 = vld [vmem:[%s1 + $0x300] sm:$0xff]
    %v143 = vld [vmem:[%s1 + $0x308] sm:$0xff]
    %v144 = vld [vmem:[%s1 + $0x310] sm:$0xff]
    %v145 = vld [vmem:[%s1 + $0x318] sm:$0xff]
    %v146 = vld [vmem:[%s1 + $0x320] sm:$0xff]
    %v147 = vld [vmem:[%s1 + $0x328] sm:$0xff]
    %v148 = vld [vmem:[%s1 + $0x330] sm:$0xff]
    %v149 = vld [vmem:[%s1 + $0x338] sm:$0xff]
    %v150 = vld [vmem:[%s1 + $0x340] sm:$0xff]
    %v151 = vld [vmem:[%s1 + $0x348] sm:$0xff]
    %v152 = vld [vmem:[%s1 + $0x350] sm:$0xff]
    %v153 = vld [vmem:[%s1 + $0x358] sm:$0xff]
    %v154 = vld [vmem:[%s1 + $0x360] sm:$0xff]
    %v155 = vld [vmem:[%s1 + $0x368] sm:$0xff]
    %v156 = vld [vmem:[%s1 + $0x370] sm:$0xff]
    %v157 = vld [vmem:[%s1 + $0x378] sm:$0xff]
    %v158 = vld [vmem:[%s1 + $0x380] sm:$0xff]
    %v159 = vld [vmem:[%s1 + $0x388] sm:$0xff]
    %v160 = vld [vmem:[%s1 + $0x390] sm:$0xff]
    %v161 = vld [vmem:[%s1 + $0x398] sm:$0xff]
    %v162 = vld [vmem:[%s1 + $0x3a0] sm:$0xff]
    %v163 = vld [vmem:[%s1 + $0x3a8] sm:$0xff]
    %v164 = vld [vmem:[%s1 + $0x3b0] sm:$0xff]
    %v165 = vld [vmem:[%s1 + $0x3b8] sm:$0xff]
    %v166 = vld [vmem:[%s1 + $0x3c0] sm:$0xff]
    %v167 = vld [vmem:[%s1 + $0x3c8] sm:$0xff]
    %v168 = vld [vmem:[%s1 + $0x3d0] sm:$0xff]
    %v169 = vld [vmem:[%s1 + $0x3d8] sm:$0xff]
    %v170 = vld [vmem:[%s1 + $0x3e0] sm:$0xff]
    %v171 = vld [vmem:[%s1 + $0x3e8] sm:$0xff]
    %v172 = vld [vmem:[%s1 + $0x3f0] sm:$0xff]
    %v173 = vld [vmem:[%s1 + $0x3f8] sm:$0xff]
    %v174 = vld [vmem:[%s1 + $0x400] sm:$0xff]
    %v175 = vld [vmem:[%s1 + $0x408] sm:$0xff]
    %v176 = vld [vmem:[%s1 + $0x410] sm:$0xff]
    %v177 = vld [vmem:[%s1 + $0x418] sm:$0xff]
    %v178 = vld [vmem:[%s1 + $0x420] sm:$0xff]
    %v179 = vld [vmem:[%s1 + $0x428] sm:$0xff]
    %v180 = vld [vmem:[%s1 + $0x430] sm:$0xff]
    %v181 = vld [vmem:[%s1 + $0x438] sm:$0xff]
    %v182 = vld [vmem:[%s1 + $0x440] sm:$0xff]
    %v183 = vld [vmem:[%s1 + $0x448] sm:$0xff]
    %v184 = vld [vmem:[%s1 + $0x450] sm:$0xff]
    %v185 = vld [vmem:[%s1 + $0x458] sm:$0xff]
    %v186 = vld [vmem:[%s1 + $0x460] sm:$0xff]
    %v187 = vld [vmem:[%s1 + $0x468] sm:$0xff]
    %v188 = vld [vmem:[%s1 + $0x470] sm:$0xff]
    %v189 = vld [vmem:[%s1 + $0x478] sm:$0xff]
    %v190 = vld [vmem:[%s1 + $0x480] sm:$0xff]
    %v191 = vld [vmem:[%s1 + $0x488] sm:$0xff]
    %v192 = vld [vmem:[%s1 + $0x490] sm:$0xff]
    %v193 = vld [vmem:[%s1 + $0x498] sm:$0xff]
    %v194 = vld [vmem:[%s1 + $0x4a0] sm:$0xff]
    %v195 = vld [vmem:[%s1 + $0x4a8] sm:$0xff]
    %v196 = vld [vmem:[%s1 + $0x4b0] sm:$0xff]
    %v197 = vld [vmem:[%s1 + $0x4b8] sm:$0xff]
    %v198 = vld [vmem:[%s1 + $0x4c0] sm:$0xff]
    %v199 = vld [vmem:[%s1 + $0x4c8] sm:$0xff]
    %v200 = vld [vmem:[%s1 + $0x4d0] sm:$0xff]
    %v201 = vld [vmem:[%s1 + $0x4d8] sm:$0xff]
    %v202 = vld [vmem:[%s1 + $0x4e0] sm:$0xff]
    %v203 = vld [vmem:[%s1 + $0x4e8] sm:$0xff]
    %v204 = vld [vmem:[%s1 + $0x4f0] sm:$0xff]
    %v205 = vld [vmem:[%s1 + $0x4f8] sm:$0xff]
    %v206 = vld [vmem:[%s1 + $0x500] sm:$0xff]
    %v207 = vld [vmem:[%s1 + $0x508] sm:$0xff]
    %v208 = vld [vmem:[%s1 + $0x510] sm:$0xff]
    %v209 = vld [vmem:[%s1 + $0x518] sm:$0xff]
    %v210 = vld [vmem:[%s1 + $0x520] sm:$0xff]
    %v211 = vld [vmem:[%s1 + $0x528] sm:$0xff]
    %v212 = vld [vmem:[%s1 + $0x530] sm:$0xff]
    %v213 = vld [vmem:[%s1 + $0x538] sm:$0xff]
    %v214 = vld [vmem:[%s1 + $0x540] sm:$0xff]
    %v215 = vld [vmem:[%s1 + $0x548] sm:$0xff]
    %v216 = vld [vmem:[%s1 + $0x550] sm:$0xff]
    %v217 = vld [vmem:[%s1 + $0x558] sm:$0xff]
    %v218 = vld [vmem:[%s1 + $0x560] sm:$0xff]
    %v219 = vld [vmem:[%s1 + $0x568] sm:$0xff]
    %v220 = vld [vmem:[%s1 + $0x570] sm:$0xff]
    %v221 = vld [vmem:[%s1 + $0x578] sm:$0xff]
    %v222 = vld [vmem:[%s1 + $0x580] sm:$0xff]
    %v223 = vld [vmem:[%s1 + $0x588] sm:$0xff]
    %v224 = vld [vmem:[%s1 + $0x590] sm:$0xff]
    %v225 = vld [vmem:[%s1 + $0x598] sm:$0xff]
    %v226 = vld [vmem:[%s1 + $0x5a0] sm:$0xff]
    %v227 = vld [vmem:[%s1 + $0x5a8] sm:$0xff]
    %v228 = vld [vmem:[%s1 + $0x5b0] sm:$0xff]
    %v229 = vld [vmem:[%s1 + $0x5b8] sm:$0xff]
    %v230 = vld [vmem:[%s1 + $0x5c0] sm:$0xff]
    %v231 = vld [vmem:[%s1 + $0x5c8] sm:$0xff]
    %v232 = vld [vmem:[%s1 + $0x5d0] sm:$0xff]
    %v233 = vld [vmem:[%s1 + $0x5d8] sm:$0xff]
    %v234 = vld [vmem:[%s1 + $0x5e0] sm:$0xff]
    %v235 = vld [vmem:[%s1 + $0x5e8] sm:$0xff]
    %v236 = vld [vmem:[%s1 + $0x5f0] sm:$0xff]
    %v237 = vld [vmem:[%s1 + $0x5f8] sm:$0xff]
    %v238 = vld [vmem:[%s1 + $0x600] sm:$0xff]
    %v239 = vld [vmem:[%s1 + $0x608] sm:$0xff]
    %v240 = vld [vmem:[%s1 + $0x610] sm:$0xff]
    %v241 = vld [vmem:[%s1 + $0x618] sm:$0xff]
    %v242 = vld [vmem:[%s1 + $0x620] sm:$0xff]
    %v243 = vld [vmem:[%s1 + $0x628] sm:$0xff]
    %v244 = vld [vmem:[%s1 + $0x630] sm:$0xff]
    %v245 = vld [vmem:[%s1 + $0x638] sm:$0xff]
    %v246 = vld [vmem:[%s1 + $0x640] sm:$0xff]
    %v247 = vld [vmem:[%s1 + $0x648] sm:$0xff]
    %v248 = vld [vmem:[%s1 + $0x650] sm:$0xff]
    %v249 = vld [vmem:[%s1 + $0x658] sm:$0xff]
    %v250 = vld [vmem:[%s1 + $0x660] sm:$0xff]
    %v251 = vld [vmem:[%s1 + $0x668] sm:$0xff]
    %v252 = vld [vmem:[%s1 + $0x670] sm:$0xff]
    %v253 = vld [vmem:[%s1 + $0x678] sm:$0xff]
    %v254 = vld [vmem:[%s1 + $0x680] sm:$0xff]
    %v255 = vld [vmem:[%s1 + $0x688] sm:$0xff]
    %v256 = vld [vmem:[%s1 + $0x690] sm:$0xff]
    %v257 = vld [vmem:[%s1 + $0x698] sm:$0xff]
    %v258 = vld [vmem:[%s1 + $0x6a0] sm:$0xff]
    %v259 = vld [vmem:[%s1 + $0x6a8] sm:$0xff]
    %v260 = vld [vmem:[%s1 + $0x6b0] sm:$0xff]
    %v261 = vld [vmem:[%s1 + $0x6b8] sm:$0xff]
    %v262 = vld [vmem:[%s1 + $0x6c0] sm:$0xff]
    %v263 = vld [vmem:[%s1 + $0x6c8] sm:$0xff]
    %v264 = vld [vmem:[%s1 + $0x6d0] sm:$0xff]
    %v265 = vld [vmem:[%s1 + $0x6d8] sm:$0xff]
    %v266 = vld [vmem:[%s1 + $0x6e0] sm:$0xff]
    %v267 = vld [vmem:[%s1 + $0x6e8] sm:$0xff]
    %v268 = vld [vmem:[%s1 + $0x6f0] sm:$0xff]
    %v269 = vld [vmem:[%s1 + $0x6f8] sm:$0xff]
    %v270 = vld [vmem:[%s1 + $0x700] sm:$0xff]
    %v271 = vld [vmem:[%s1 + $0x708] sm:$0xff]
    %v272 = vld [vmem:[%s1 + $0x710] sm:$0xff]
    %v273 = vld [vmem:[%s1 + $0x718] sm:$0xff]
    %v274 = vld [vmem:[%s1 + $0x720] sm:$0xff]
    %v275 = vld [vmem:[%s1 + $0x728] sm:$0xff]
    %v276 = vld [vmem:[%s1 + $0x730] sm:$0xff]
    %v277 = vld [vmem:[%s1 + $0x738] sm:$0xff]
    %v278 = vld [vmem:[%s1 + $0x740] sm:$0xff]
    %v279 = vld [vmem:[%s1 + $0x748] sm:$0xff]
    %v280 = vld [vmem:[%s1 + $0x750] sm:$0xff]
    %v281 = vld [vmem:[%s1 + $0x758] sm:$0xff]
    %v282 = vld [vmem:[%s1 + $0x760] sm:$0xff]
    %v283 = vld [vmem:[%s1 + $0x768] sm:$0xff]
    %v284 = vld [vmem:[%s1 + $0x770] sm:$0xff]
    %v285 = vld [vmem:[%s1 + $0x778] sm:$0xff]
    %v286 = vld [vmem:[%s1 + $0x780] sm:$0xff]
    %v287 = vld [vmem:[%s1 + $0x788] sm:$0xff]
    %v288 = vld [vmem:[%s1 + $0x790] sm:$0xff]
    %v289 = vld [vmem:[%s1 + $0x798] sm:$0xff]
    %v290 = vld [vmem:[%s1 + $0x7a0] sm:$0xff]
    %v291 = vld [vmem:[%s1 + $0x7a8] sm:$0xff]
    %v292 = vld [vmem:[%s1 + $0x7b0] sm:$0xff]
    %v293 = vld [vmem:[%s1 + $0x7b8] sm:$0xff]
    %v294 = vld [vmem:[%s1 + $0x7c0] sm:$0xff]
    %v295 = vld [vmem:[%s1 + $0x7c8] sm:$0xff]
    %v296 = vld [vmem:[%s1 + $0x7d0] sm:$0xff]
    %v297 = vld [vmem:[%s1 + $0x7d8] sm:$0xff]
    %v298 = vld [vmem:[%s1 + $0x7e0] sm:$0xff]
    %v299 = vld [vmem:[%s1 + $0x7e8] sm:$0xff]
    %v300 = vld [vmem:[%s1 + $0x7f0] sm:$0xff]
    %v301 = vld [vmem:[%s1 + $0x7f8] sm:$0xff]
    %v302 = vld [vmem:[%s1 + $0x800] sm:$0xff]
    %v303 = vld [vmem:[%s1 + $0x808] sm:$0xff]
    %v304 = vld [vmem:[%s1 + $0x810] sm:$0xff]
    %v305 = vld [vmem:[%s1 + $0x818] sm:$0xff]
    %v306 = vld [vmem:[%s1 + $0x820] sm:$0xff]
    %v307 = vld [vmem:[%s1 + $0x828] sm:$0xff]
    %v308 = vld [vmem:[%s1 + $0x830] sm:$0xff]
    %v309 = vld [vmem:[%s1 + $0x838] sm:$0xff]
    %v310 = vld [vmem:[%s1 + $0x840] sm:$0xff]
    %v311 = vld [vmem:[%s1 + $0x848] sm:$0xff]
    %v312 = vld [vmem:[%s1 + $0x850] sm:$0xff]
    %v313 = vld [vmem:[%s1 + $0x858] sm:$0xff]
    %v314 = vld [vmem:[%s1 + $0x860] sm:$0xff]
    %v315 = vld [vmem:[%s1 + $0x868] sm:$0xff]
    %v316 = vld [vmem:[%s1 + $0x870] sm:$0xff]
    %v317 = vld [vmem:[%s1 + $0x878] sm:$0xff]
    %v318 = vld [vmem:[%s1 + $0x880] sm:$0xff]
    %v319 = vld [vmem:[%s1 + $0x888] sm:$0xff]
    %v320 = vld [vmem:[%s1 + $0x890] sm:$0xff]
    %v321 = vld [vmem:[%s1 + $0x898] sm:$0xff]
    %v322 = vld [vmem:[%s1 + $0x8a0] sm:$0xff]
    %v323 = vld [vmem:[%s1 + $0x8a8] sm:$0xff]
    %v324 = vld [vmem:[%s1 + $0x8b0] sm:$0xff]
    %v325 = vld [vmem:[%s1 + $0x8b8] sm:$0xff]
    %v326 = vld [vmem:[%s1 + $0x8c0] sm:$0xff]
    %v327 = vld [vmem:[%s1 + $0x8c8] sm:$0xff]
    %v328 = vld [vmem:[%s1 + $0x8d0] sm:$0xff]
    %v329 = vld [vmem:[%s1 + $0x8d8] sm:$0xff]
    %v330 = vld [vmem:[%s1 + $0x8e0] sm:$0xff]
    %v331 = vld [vmem:[%s1 + $0x8e8] sm:$0xff]
    %v332 = vld [vmem:[%s1 + $0x8f0] sm:$0xff]
    %v333 = vld [vmem:[%s1 + $0x8f8] sm:$0xff]
    %v334 = vld [vmem:[%s1 + $0x900] sm:$0xff]
    %v335 = vld [vmem:[%s1 + $0x908] sm:$0xff]
    %v336 = vld [vmem:[%s1 + $0x910] sm:$0xff]
    %v337 = vld [vmem:[%s1 + $0x918] sm:$0xff]
    %v338 = vld [vmem:[%s1 + $0x920] sm:$0xff]
    %v339 = vld [vmem:[%s1 + $0x928] sm:$0xff]
    %v340 = vld [vmem:[%s1 + $0x930] sm:$0xff]
    %v341 = vld [vmem:[%s1 + $0x938] sm:$0xff]
    %v342 = vld [vmem:[%s1 + $0x940] sm:$0xff]
    %v343 = vld [vmem:[%s1 + $0x948] sm:$0xff]
    %v344 = vld [vmem:[%s1 + $0x950] sm:$0xff]
    %v345 = vld [vmem:[%s1 + $0x958] sm:$0xff]
    %v346 = vld [vmem:[%s1 + $0x960] sm:$0xff]
    %v347 = vld [vmem:[%s1 + $0x968] sm:$0xff]
    %v348 = vld [vmem:[%s1 + $0x970] sm:$0xff]
    %v349 = vld [vmem:[%s1 + $0x978] sm:$0xff]
    %v350 = vld [vmem:[%s1 + $0x980] sm:$0xff]
    %v351 = vld [vmem:[%s1 + $0x988] sm:$0xff]
    %v352 = vld [vmem:[%s1 + $0x990] sm:$0xff]
    %v353 = vld [vmem:[%s1 + $0x998] sm:$0xff]
    %v354 = vld [vmem:[%s1 + $0x9a0] sm:$0xff]
    %v355 = vld [vmem:[%s1 + $0x9a8] sm:$0xff]
    %v356 = vld [vmem:[%s1 + $0x9b0] sm:$0xff]
    %v357 = vld [vmem:[%s1 + $0x9b8] sm:$0xff]
    %v358 = vld [vmem:[%s1 + $0x9c0] sm:$0xff]
    %v359 = vld [vmem:[%s1 + $0x9c8] sm:$0xff]
    %v360 = vld [vmem:[%s1 + $0x9d0] sm:$0xff]
    %v361 = vld [vmem:[%s1 + $0x9d8] sm:$0xff]
    %v362 = vld [vmem:[%s1 + $0x9e0] sm:$0xff]
    %v363 = vld [vmem:[%s1 + $0x9e8] sm:$0xff]
    %v364 = vld [vmem:[%s1 + $0x9f0] sm:$0xff]
    %v365 = vld [vmem:[%s1 + $0x9f8] sm:$0xff]
    %v366 = vld [vmem:[%s1 + $0xa00] sm:$0xff]
    %v367 = vld [vmem:[%s1 + $0xa08] sm:$0xff]
    %v368 = vld [vmem:[%s1 + $0xa10] sm:$0xff]
    %v369 = vld [vmem:[%s1 + $0xa18] sm:$0xff]
    %v370 = vld [vmem:[%s1 + $0xa20] sm:$0xff]
    %v371 = vld [vmem:[%s1 + $0xa28] sm:$0xff]
    %v372 = vld [vmem:[%s1 + $0xa30] sm:$0xff]
    %v373 = vld [vmem:[%s1 + $0xa38] sm:$0xff]
    %v374 = vld [vmem:[%s1 + $0xa40] sm:$0xff]
    %v375 = vld [vmem:[%s1 + $0xa48] sm:$0xff]
    %v376 = vld [vmem:[%s1 + $0xa50] sm:$0xff]
    %v377 = vld [vmem:[%s1 + $0xa58] sm:$0xff]
    %v378 = vld [vmem:[%s1 + $0xa60] sm:$0xff]
    %v379 = vld [vmem:[%s1 + $0xa68] sm:$0xff]
    %v380 = vld [vmem:[%s1 + $0xa70] sm:$0xff]
    %v381 = vld [vmem:[%s1 + $0xa78] sm:$0xff]
    %v382 = vld [vmem:[%s1 + $0xa80] sm:$0xff]
    %v383 = vld [vmem:[%s1 + $0xa88] sm:$0xff]
    %v384 = vld [vmem:[%s1 + $0xa90] sm:$0xff]
    %v385 = vld [vmem:[%s1 + $0xa98] sm:$0xff]
    %v386 = vld [vmem:[%s1 + $0xaa0] sm:$0xff]
    %v387 = vld [vmem:[%s1 + $0xaa8] sm:$0xff]
    %v388 = vld [vmem:[%s1 + $0xab0] sm:$0xff]
    %v389 = vld [vmem:[%s1 + $0xab8] sm:$0xff]
    %v390 = vld [vmem:[%s1 + $0xac0] sm:$0xff]
    %v391 = vld [vmem:[%s1 + $0xac8] sm:$0xff]
    %v392 = vld [vmem:[%s1 + $0xad0] sm:$0xff]
    %v393 = vld [vmem:[%s1 + $0xad8] sm:$0xff]
    %v394 = vld [vmem:[%s1 + $0xae0] sm:$0xff]
    %v395 = vld [vmem:[%s1 + $0xae8] sm:$0xff]
    %v396 = vld [vmem:[%s1 + $0xaf0] sm:$0xff]
    %v397 = vld [vmem:[%s1 + $0xaf8] sm:$0xff]
    %v398 = vld [vmem:[%s1 + $0xb00] sm:$0xff]
    %v399 = vld [vmem:[%s1 + $0xb08] sm:$0xff]
    %v400 = vld [vmem:[%s1 + $0xb10] sm:$0xff]
    %v401 = vld [vmem:[%s1 + $0xb18] sm:$0xff]
    %v402 = vld [vmem:[%s1 + $0xb20] sm:$0xff]
    %v403 = vld [vmem:[%s1 + $0xb28] sm:$0xff]
    %v404 = vld [vmem:[%s1 + $0xb30] sm:$0xff]
    %v405 = vld [vmem:[%s1 + $0xb38] sm:$0xff]
    %v406 = vld [vmem:[%s1 + $0xb40] sm:$0xff]
    %v407 = vld [vmem:[%s1 + $0xb48] sm:$0xff]
    %v408 = vld [vmem:[%s1 + $0xb50] sm:$0xff]
    %v409 = vld [vmem:[%s1 + $0xb58] sm:$0xff]
    %v410 = vld [vmem:[%s1 + $0xb60] sm:$0xff]
    %v411 = vld [vmem:[%s1 + $0xb68] sm:$0xff]
    %v412 = vld [vmem:[%s1 + $0xb70] sm:$0xff]
    %v413 = vld [vmem:[%s1 + $0xb78] sm:$0xff]
    %v414 = vld [vmem:[%s1 + $0xb80] sm:$0xff]
    %v415 = vld [vmem:[%s1 + $0xb88] sm:$0xff]
    %v416 = vld [vmem:[%s1 + $0xb90] sm:$0xff]
    %v417 = vld [vmem:[%s1 + $0xb98] sm:$0xff]
    %v418 = vld [vmem:[%s1 + $0xba0] sm:$0xff]
    %v419 = vld [vmem:[%s1 + $0xba8] sm:$0xff]
    %v420 = vld [vmem:[%s1 + $0xbb0] sm:$0xff]
    %v421 = vld [vmem:[%s1 + $0xbb8] sm:$0xff]
    %v422 = vld [vmem:[%s1 + $0xbc0] sm:$0xff]
    %v423 = vld [vmem:[%s1 + $0xbc8] sm:$0xff]
    %v424 = vld [vmem:[%s1 + $0xbd0] sm:$0xff]
    %v425 = vld [vmem:[%s1 + $0xbd8] sm:$0xff]
    %v426 = vld [vmem:[%s1 + $0xbe0] sm:$0xff]
    %v427 = vld [vmem:[%s1 + $0xbe8] sm:$0xff]
    %v428 = vld [vmem:[%s1 + $0xbf0] sm:$0xff]
    %v429 = vld [vmem:[%s1 + $0xbf8] sm:$0xff]
    %v430 = vld [vmem:[%s1 + $0xc00] sm:$0xff]
    %v431 = vld [vmem:[%s1 + $0xc08] sm:$0xff]
    %v432 = vld [vmem:[%s1 + $0xc10] sm:$0xff]
    %v433 = vld [vmem:[%s1 + $0xc18] sm:$0xff]
    %v434 = vld [vmem:[%s1 + $0xc20] sm:$0xff]
    %v435 = vld [vmem:[%s1 + $0xc28] sm:$0xff]
    %v436 = vld [vmem:[%s1 + $0xc30] sm:$0xff]
    %v437 = vld [vmem:[%s1 + $0xc38] sm:$0xff]
    %v438 = vld [vmem:[%s1 + $0xc40] sm:$0xff]
    %v439 = vld [vmem:[%s1 + $0xc48] sm:$0xff]
    %v440 = vld [vmem:[%s1 + $0xc50] sm:$0xff]
    %v441 = vld [vmem:[%s1 + $0xc58] sm:$0xff]
    %v442 = vld [vmem:[%s1 + $0xc60] sm:$0xff]
    %v443 = vld [vmem:[%s1 + $0xc68] sm:$0xff]
    %v444 = vld [vmem:[%s1 + $0xc70] sm:$0xff]
    %v445 = vld [vmem:[%s1 + $0xc78] sm:$0xff]
    %v446 = vld [vmem:[%s1 + $0xc80] sm:$0xff]
    %v447 = vld [vmem:[%s1 + $0xc88] sm:$0xff]
    %v448 = vld [vmem:[%s1 + $0xc90] sm:$0xff]
    %v449 = vld [vmem:[%s1 + $0xc98] sm:$0xff]
    %v450 = vld [vmem:[%s1 + $0xca0] sm:$0xff]
    %v451 = vld [vmem:[%s1 + $0xca8] sm:$0xff]
    %v452 = vld [vmem:[%s1 + $0xcb0] sm:$0xff]
    %v453 = vld [vmem:[%s1 + $0xcb8] sm:$0xff]
    %v454 = vld [vmem:[%s1 + $0xcc0] sm:$0xff]
    %v455 = vld [vmem:[%s1 + $0xcc8] sm:$0xff]
    %v456 = vld [vmem:[%s1 + $0xcd0] sm:$0xff]
    %v457 = vld [vmem:[%s1 + $0xcd8] sm:$0xff]
    %v458 = vld [vmem:[%s1 + $0xce0] sm:$0xff]
    %v459 = vld [vmem:[%s1 + $0xce8] sm:$0xff]
    %v460 = vld [vmem:[%s1 + $0xcf0] sm:$0xff]
    %v461 = vld [vmem:[%s1 + $0xcf8] sm:$0xff]
    %v462 = vld [vmem:[%s1 + $0xd00] sm:$0xff]
    %v463 = vld [vmem:[%s1 + $0xd08] sm:$0xff]
    %v464 = vld [vmem:[%s1 + $0xd10] sm:$0xff]
    %v465 = vld [vmem:[%s1 + $0xd18] sm:$0xff]
    %v466 = vld [vmem:[%s1 + $0xd20] sm:$0xff]
    %v467 = vld [vmem:[%s1 + $0xd28] sm:$0xff]
    %v468 = vld [vmem:[%s1 + $0xd30] sm:$0xff]
    %v469 = vld [vmem:[%s1 + $0xd38] sm:$0xff]
    %v470 = vld [vmem:[%s1 + $0xd40] sm:$0xff]
    %v471 = vld [vmem:[%s1 + $0xd48] sm:$0xff]
    %v472 = vld [vmem:[%s1 + $0xd50] sm:$0xff]
    %v473 = vld [vmem:[%s1 + $0xd58] sm:$0xff]
    %v474 = vld [vmem:[%s1 + $0xd60] sm:$0xff]
    %v475 = vld [vmem:[%s1 + $0xd68] sm:$0xff]
    %v476 = vld [vmem:[%s1 + $0xd70] sm:$0xff]
    %v477 = vld [vmem:[%s1 + $0xd78] sm:$0xff]
    %v478 = vld [vmem:[%s1 + $0xd80] sm:$0xff]
    %v479 = vld [vmem:[%s1 + $0xd88] sm:$0xff]
    %v480 = vld [vmem:[%s1 + $0xd90] sm:$0xff]
    %v481 = vld [vmem:[%s1 + $0xd98] sm:$0xff]
    %v482 = vld [vmem:[%s1 + $0xda0] sm:$0xff]
    %v483 = vld [vmem:[%s1 + $0xda8] sm:$0xff]
    %v484 = vld [vmem:[%s1 + $0xdb0] sm:$0xff]
    %v485 = vld [vmem:[%s1 + $0xdb8] sm:$0xff]
    %v486 = vld [vmem:[%s1 + $0xdc0] sm:$0xff]
    %v487 = vld [vmem:[%s1 + $0xdc8] sm:$0xff]
    %v488 = vld [vmem:[%s1 + $0xdd0] sm:$0xff]
    %v489 = vld [vmem:[%s1 + $0xdd8] sm:$0xff]
    %v490 = vld [vmem:[%s1 + $0xde0] sm:$0xff]
    %v491 = vld [vmem:[%s1 + $0xde8] sm:$0xff]
    %v492 = vld [vmem:[%s1 + $0xdf0] sm:$0xff]
    %v493 = vld [vmem:[%s1 + $0xdf8] sm:$0xff]
    %v494 = vld [vmem:[%s1 + $0xe00] sm:$0xff]
    %v495 = vld [vmem:[%s1 + $0xe08] sm:$0xff]
    %v496 = vld [vmem:[%s1 + $0xe10] sm:$0xff]
    %v497 = vld [vmem:[%s1 + $0xe18] sm:$0xff]
    %v498 = vld [vmem:[%s1 + $0xe20] sm:$0xff]
    %v499 = vld [vmem:[%s1 + $0xe28] sm:$0xff]
    %v500 = vld [vmem:[%s1 + $0xe30] sm:$0xff]
    %v501 = vld [vmem:[%s1 + $0xe38] sm:$0xff]
    %v502 = vld [vmem:[%s1 + $0xe40] sm:$0xff]
    %v503 = vld [vmem:[%s1 + $0xe48] sm:$0xff]
    %v504 = vld [vmem:[%s1 + $0xe50] sm:$0xff]
    %v505 = vld [vmem:[%s1 + $0xe58] sm:$0xff]
    %v506 = vld [vmem:[%s1 + $0xe60] sm:$0xff]
    %v507 = vld [vmem:[%s1 + $0xe68] sm:$0xff]
    %v508 = vld [vmem:[%s1 + $0xe70] sm:$0xff]
    %v509 = vld [vmem:[%s1 + $0xe78] sm:$0xff]
    %v510 = vld [vmem:[%s1 + $0xe80] sm:$0xff]
    %v511 = vld [vmem:[%s1 + $0xe88] sm:$0xff]
    %v512 = vld [vmem:[%s1 + $0xe90] sm:$0xff]
    %v513 = vld [vmem:[%s1 + $0xe98] sm:$0xff]
    %v514 = vld [vmem:[%s1 + $0xea0] sm:$0xff]
    %v515 = vld [vmem:[%s1 + $0xea8] sm:$0xff]
    %v516 = vld [vmem:[%s1 + $0xeb0] sm:$0xff]
    %v517 = vld [vmem:[%s1 + $0xeb8] sm:$0xff]
    %v518 = vld [vmem:[%s1 + $0xec0] sm:$0xff]
    %v519 = vld [vmem:[%s1 + $0xec8] sm:$0xff]
    %v520 = vld [vmem:[%s1 + $0xed0] sm:$0xff]
    %v521 = vld [vmem:[%s1 + $0xed8] sm:$0xff]
    %v522 = vld [vmem:[%s1 + $0xee0] sm:$0xff]
    %v523 = vld [vmem:[%s1 + $0xee8] sm:$0xff]
    %v524 = vld [vmem:[%s1 + $0xef0] sm:$0xff]
    %v525 = vld [vmem:[%s1 + $0xef8] sm:$0xff]
    %v526 = vld [vmem:[%s1 + $0xf00] sm:$0xff]
    %v527 = vld [vmem:[%s1 + $0xf08] sm:$0xff]
    %v528 = vld [vmem:[%s1 + $0xf10] sm:$0xff]
    %v529 = vld [vmem:[%s1 + $0xf18] sm:$0xff]
    %v530 = vld [vmem:[%s1 + $0xf20] sm:$0xff]
    %v531 = vld [vmem:[%s1 + $0xf28] sm:$0xff]
    %v532 = vld [vmem:[%s1 + $0xf30] sm:$0xff]
    %v533 = vld [vmem:[%s1 + $0xf38] sm:$0xff]
    %v534 = vld [vmem:[%s1 + $0xf40] sm:$0xff]
    %v535 = vld [vmem:[%s1 + $0xf48] sm:$0xff]
    %v536 = vld [vmem:[%s1 + $0xf50] sm:$0xff]
    %v537 = vld [vmem:[%s1 + $0xf58] sm:$0xff]
    %v538 = vld [vmem:[%s1 + $0xf60] sm:$0xff]
    %v539 = vld [vmem:[%s1 + $0xf68] sm:$0xff]
    %v540 = vld [vmem:[%s1 + $0xf70] sm:$0xff]
    %v541 = vld [vmem:[%s1 + $0xf78] sm:$0xff]
    %v542 = vld [vmem:[%s1 + $0xf80] sm:$0xff]
    %v543 = vld [vmem:[%s1 + $0xf88] sm:$0xff]
    %v544 = vld [vmem:[%s1 + $0xf90] sm:$0xff]
    %v545 = vld [vmem:[%s1 + $0xf98] sm:$0xff]
    %v546 = vld [vmem:[%s1 + $0xfa0] sm:$0xff]
    %v547 = vld [vmem:[%s1 + $0xfa8] sm:$0xff]
    %v548 = vld [vmem:[%s1 + $0xfb0] sm:$0xff]
    %v549 = vld [vmem:[%s1 + $0xfb8] sm:$0xff]
    %v550 = vld [vmem:[%s1 + $0xfc0] sm:$0xff]
    %v551 = vld [vmem:[%s1 + $0xfc8] sm:$0xff]
    %v552 = vld [vmem:[%s1 + $0xfd0] sm:$0xff]
    %v553 = vld [vmem:[%s1 + $0xfd8] sm:$0xff]
    %v554 = vld [vmem:[%s1 + $0xfe0] sm:$0xff]
    %v555 = vld [vmem:[%s1 + $0xfe8] sm:$0xff]
    %v556 = vld [vmem:[%s1 + $0xff0] sm:$0xff]
    %v557 = vld [vmem:[%s1 + $0xff8] sm:$0xff]
    %v558 = vld [vmem:[%s1 + $0x1000] sm:$0xff]
    %v559 = vld [vmem:[%s1 + $0x1008] sm:$0xff]
    %v560 = vld [vmem:[%s1 + $0x1010] sm:$0xff]
    %v561 = vld [vmem:[%s1 + $0x1018] sm:$0xff]
    %v562 = vld [vmem:[%s1 + $0x1020] sm:$0xff]
    %v563 = vld [vmem:[%s1 + $0x1028] sm:$0xff]
    %v564 = vld [vmem:[%s1 + $0x1030] sm:$0xff]
    %v565 = vld [vmem:[%s1 + $0x1038] sm:$0xff]
    %v566 = vld [vmem:[%s1 + $0x1040] sm:$0xff]
    %v567 = vld [vmem:[%s1 + $0x1048] sm:$0xff]
    %v568 = vld [vmem:[%s1 + $0x1050] sm:$0xff]
    %v569 = vld [vmem:[%s1 + $0x1058] sm:$0xff]
    %v570 = vld [vmem:[%s1 + $0x1060] sm:$0xff]
    %v571 = vld [vmem:[%s1 + $0x1068] sm:$0xff]
    %v572 = vld [vmem:[%s1 + $0x1070] sm:$0xff]
    %v573 = vld [vmem:[%s1 + $0x1078] sm:$0xff]
    %v574 = vld [vmem:[%s1 + $0x1080] sm:$0xff]
    %v575 = vld [vmem:[%s1 + $0x1088] sm:$0xff]
    %v576 = vld [vmem:[%s1 + $0x1090] sm:$0xff]
    %v577 = vld [vmem:[%s1 + $0x1098] sm:$0xff]
    %v578 = vld [vmem:[%s1 + $0x10a0] sm:$0xff]
    %v579 = vld [vmem:[%s1 + $0x10a8] sm:$0xff]
    %v580 = vld [vmem:[%s1 + $0x10b0] sm:$0xff]
    %v581 = vld [vmem:[%s1 + $0x10b8] sm:$0xff]
    %v582 = vld [vmem:[%s1 + $0x10c0] sm:$0xff]
    %v583 = vld [vmem:[%s1 + $0x10c8] sm:$0xff]
    %v584 = vld [vmem:[%s1 + $0x10d0] sm:$0xff]
    %v585 = vld [vmem:[%s1 + $0x10d8] sm:$0xff]
    %v586 = vld [vmem:[%s1 + $0x10e0] sm:$0xff]
    %v587 = vld [vmem:[%s1 + $0x10e8] sm:$0xff]
    %v588 = vld [vmem:[%s1 + $0x10f0] sm:$0xff]
    %v589 = vld [vmem:[%s1 + $0x10f8] sm:$0xff]
    %v590 = vld [vmem:[%s1 + $0x1100] sm:$0xff]
    %v591 = vld [vmem:[%s1 + $0x1108] sm:$0xff]
    %v592 = vld [vmem:[%s1 + $0x1110] sm:$0xff]
    %v593 = vld [vmem:[%s1 + $0x1118] sm:$0xff]
    %v594 = vld [vmem:[%s1 + $0x1120] sm:$0xff]
    %v595 = vld [vmem:[%s1 + $0x1128] sm:$0xff]
    %v596 = vld [vmem:[%s1 + $0x1130] sm:$0xff]
    %v597 = vld [vmem:[%s1 + $0x1138] sm:$0xff]
    %v598 = vld [vmem:[%s1 + $0x1140] sm:$0xff]
    %v599 = vld [vmem:[%s1 + $0x1148] sm:$0xff]
    %v600 = vld [vmem:[%s1 + $0x1150] sm:$0xff]
    %v601 = vld [vmem:[%s1 + $0x1158] sm:$0xff]
    %v602 = vld [vmem:[%s1 + $0x1160] sm:$0xff]
    %v603 = vld [vmem:[%s1 + $0x1168] sm:$0xff]
    %v604 = vld [vmem:[%s1 + $0x1170] sm:$0xff]
    %v605 = vld [vmem:[%s1 + $0x1178] sm:$0xff]
    %v606 = vld [vmem:[%s1 + $0x1180] sm:$0xff]
    %v607 = vld [vmem:[%s1 + $0x1188] sm:$0xff]
    %v608 = vld [vmem:[%s1 + $0x1190] sm:$0xff]
    %v609 = vld [vmem:[%s1 + $0x1198] sm:$0xff]
    %v610 = vld [vmem:[%s1 + $0x11a0] sm:$0xff]
    %v611 = vld [vmem:[%s1 + $0x11a8] sm:$0xff]
    %v612 = vld [vmem:[%s1 + $0x11b0] sm:$0xff]
    %v613 = vld [vmem:[%s1 + $0x11b8] sm:$0xff]
    %v614 = vld [vmem:[%s1 + $0x11c0] sm:$0xff]
    %v615 = vld [vmem:[%s1 + $0x11c8] sm:$0xff]
    %v616 = vld [vmem:[%s1 + $0x11d0] sm:$0xff]
    %v617 = vld [vmem:[%s1 + $0x11d8] sm:$0xff]
    %v618 = vld [vmem:[%s1 + $0x11e0] sm:$0xff]
    %v619 = vld [vmem:[%s1 + $0x11e8] sm:$0xff]
    %v620 = vld [vmem:[%s1 + $0x11f0] sm:$0xff]
    %v621 = vld [vmem:[%s1 + $0x11f8] sm:$0xff]
    %v622 = vld [vmem:[%s1 + $0x1200] sm:$0xff]
    %v623 = vld [vmem:[%s1 + $0x1208] sm:$0xff]
    %v624 = vld [vmem:[%s1 + $0x1210] sm:$0xff]
    %v625 = vld [vmem:[%s1 + $0x1218] sm:$0xff]
    %v626 = vld [vmem:[%s1 + $0x1220] sm:$0xff]
    %v627 = vld [vmem:[%s1 + $0x1228] sm:$0xff]
    %v628 = vld [vmem:[%s1 + $0x1230] sm:$0xff]
    %v629 = vld [vmem:[%s1 + $0x1238] sm:$0xff]
    %v630 = vld [vmem:[%s1 + $0x1240] sm:$0xff]
    %v631 = vld [vmem:[%s1 + $0x1248] sm:$0xff]
    %v632 = vld [vmem:[%s1 + $0x1250] sm:$0xff]
    %v633 = vld [vmem:[%s1 + $0x1258] sm:$0xff]
    %v634 = vld [vmem:[%s1 + $0x1260] sm:$0xff]
    %v635 = vld [vmem:[%s1 + $0x1268] sm:$0xff]
    %v636 = vld [vmem:[%s1 + $0x1270] sm:$0xff]
    %v637 = vld [vmem:[%s1 + $0x1278] sm:$0xff]
    %v638 = vld [vmem:[%s1 + $0x1280] sm:$0xff]
    %v639 = vld [vmem:[%s1 + $0x1288] sm:$0xff]
    %v640 = vld [vmem:[%s1 + $0x1290] sm:$0xff]
    %v641 = vld [vmem:[%s1 + $0x1298] sm:$0xff]
    %v642 = vld [vmem:[%s1 + $0x12a0] sm:$0xff]
    %v643 = vld [vmem:[%s1 + $0x12a8] sm:$0xff]
    %v644 = vld [vmem:[%s1 + $0x12b0] sm:$0xff]
    %v645 = vld [vmem:[%s1 + $0x12b8] sm:$0xff]
    %v646 = vld [vmem:[%s1 + $0x12c0] sm:$0xff]
    %v647 = vld [vmem:[%s1 + $0x12c8] sm:$0xff]
    %v648 = vld [vmem:[%s1 + $0x12d0] sm:$0xff]
    %v649 = vld [vmem:[%s1 + $0x12d8] sm:$0xff]
    %v650 = vld [vmem:[%s1 + $0x12e0] sm:$0xff]
    %v651 = vld [vmem:[%s1 + $0x12e8] sm:$0xff]
    %v652 = vld [vmem:[%s1 + $0x12f0] sm:$0xff]
    %v653 = vld [vmem:[%s1 + $0x12f8] sm:$0xff]
    %v654 = vld [vmem:[%s1 + $0x1300] sm:$0xff]
    %v655 = vld [vmem:[%s1 + $0x1308] sm:$0xff]
    %v656 = vld [vmem:[%s1 + $0x1310] sm:$0xff]
    %v657 = vld [vmem:[%s1 + $0x1318] sm:$0xff]
    %v658 = vld [vmem:[%s1 + $0x1320] sm:$0xff]
    %v659 = vld [vmem:[%s1 + $0x1328] sm:$0xff]
    %v660 = vld [vmem:[%s1 + $0x1330] sm:$0xff]
    %v661 = vld [vmem:[%s1 + $0x1338] sm:$0xff]
    %v662 = vld [vmem:[%s1 + $0x1340] sm:$0xff]
    %v663 = vld [vmem:[%s1 + $0x1348] sm:$0xff]
    %v664 = vld [vmem:[%s1 + $0x1350] sm:$0xff]
    %v665 = vld [vmem:[%s1 + $0x1358] sm:$0xff]
    %v666 = vld [vmem:[%s1 + $0x1360] sm:$0xff]
    %v667 = vld [vmem:[%s1 + $0x1368] sm:$0xff]
    %v668 = vld [vmem:[%s1 + $0x1370] sm:$0xff]
    %v669 = vld [vmem:[%s1 + $0x1378] sm:$0xff]
    %v670 = vld [vmem:[%s1 + $0x1380] sm:$0xff]
    %v671 = vld [vmem:[%s1 + $0x1388] sm:$0xff]
    %v672 = vld [vmem:[%s1 + $0x1390] sm:$0xff]
    %v673 = vld [vmem:[%s1 + $0x1398] sm:$0xff]
    %v674 = vld [vmem:[%s1 + $0x13a0] sm:$0xff]
    %v675 = vld [vmem:[%s1 + $0x13a8] sm:$0xff]
    %v676 = vld [vmem:[%s1 + $0x13b0] sm:$0xff]
    %v677 = vld [vmem:[%s1 + $0x13b8] sm:$0xff]
    %v678 = vld [vmem:[%s1 + $0x13c0] sm:$0xff]
    %v679 = vld [vmem:[%s1 + $0x13c8] sm:$0xff]
    %v680 = vld [vmem:[%s1 + $0x13d0] sm:$0xff]
    %v681 = vld [vmem:[%s1 + $0x13d8] sm:$0xff]
    %v682 = vld [vmem:[%s1 + $0x13e0] sm:$0xff]
    %v683 = vld [vmem:[%s1 + $0x13e8] sm:$0xff]
    %v684 = vld [vmem:[%s1 + $0x13f0] sm:$0xff]
    %v685 = vld [vmem:[%s1 + $0x13f8] sm:$0xff]
    %v686 = vld [vmem:[%s1 + $0x1400] sm:$0xff]
    %v687 = vld [vmem:[%s1 + $0x1408] sm:$0xff]
    %v688 = vld [vmem:[%s1 + $0x1410] sm:$0xff]
    %v689 = vld [vmem:[%s1 + $0x1418] sm:$0xff]
    %v690 = vld [vmem:[%s1 + $0x1420] sm:$0xff]
    %v691 = vld [vmem:[%s1 + $0x1428] sm:$0xff]
    %v692 = vld [vmem:[%s1 + $0x1430] sm:$0xff]
    %v693 = vld [vmem:[%s1 + $0x1438] sm:$0xff]
    %v694 = vld [vmem:[%s1 + $0x1440] sm:$0xff]
    %v695 = vld [vmem:[%s1 + $0x1448] sm:$0xff]
    %v696 = vld [vmem:[%s1 + $0x1450] sm:$0xff]
    %v697 = vld [vmem:[%s1 + $0x1458] sm:$0xff]
    %v698 = vld [vmem:[%s1 + $0x1460] sm:$0xff]
    %v699 = vld [vmem:[%s1 + $0x1468] sm:$0xff]
    %v700 = vld [vmem:[%s1 + $0x1470] sm:$0xff]
    %v701 = vld [vmem:[%s1 + $0x1478] sm:$0xff]
    %v702 = vld [vmem:[%s1 + $0x1480] sm:$0xff]
    %v703 = vld [vmem:[%s1 + $0x1488] sm:$0xff]
    %v704 = vld [vmem:[%s1 + $0x1490] sm:$0xff]
    %v705 = vld [vmem:[%s1 + $0x1498] sm:$0xff]
    %v706 = vld [vmem:[%s1 + $0x14a0] sm:$0xff]
    %v707 = vld [vmem:[%s1 + $0x14a8] sm:$0xff]
    %v708 = vld [vmem:[%s1 + $0x14b0] sm:$0xff]
    %v709 = vld [vmem:[%s1 + $0x14b8] sm:$0xff]
    %v710 = vld [vmem:[%s1 + $0x14c0] sm:$0xff]
    %v711 = vld [vmem:[%s1 + $0x14c8] sm:$0xff]
    %v712 = vld [vmem:[%s1 + $0x14d0] sm:$0xff]
    %v713 = vld [vmem:[%s1 + $0x14d8] sm:$0xff]
    %v714 = vld [vmem:[%s1 + $0x14e0] sm:$0xff]
    %v715 = vld [vmem:[%s1 + $0x14e8] sm:$0xff]
    %v716 = vld [vmem:[%s1 + $0x14f0] sm:$0xff]
    %v717 = vld [vmem:[%s1 + $0x14f8] sm:$0xff]
    %v718 = vld [vmem:[%s1 + $0x1500] sm:$0xff]
    %v719 = vld [vmem:[%s1 + $0x1508] sm:$0xff]
    %v720 = vld [vmem:[%s1 + $0x1510] sm:$0xff]
    %v721 = vld [vmem:[%s1 + $0x1518] sm:$0xff]
    %v722 = vld [vmem:[%s1 + $0x1520] sm:$0xff]
    %v723 = vld [vmem:[%s1 + $0x1528] sm:$0xff]
    %v724 = vld [vmem:[%s1 + $0x1530] sm:$0xff]
    %v725 = vld [vmem:[%s1 + $0x1538] sm:$0xff]
    %v726 = vld [vmem:[%s1 + $0x1540] sm:$0xff]
    %v727 = vld [vmem:[%s1 + $0x1548] sm:$0xff]
    %v728 = vld [vmem:[%s1 + $0x1550] sm:$0xff]
    %v729 = vld [vmem:[%s1 + $0x1558] sm:$0xff]
    %v730 = vld [vmem:[%s1 + $0x1560] sm:$0xff]
    %v731 = vld [vmem:[%s1 + $0x1568] sm:$0xff]
    %v732 = vld [vmem:[%s1 + $0x1570] sm:$0xff]
    %v733 = vld [vmem:[%s1 + $0x1578] sm:$0xff]
    %v734 = vld [vmem:[%s1 + $0x1580] sm:$0xff]
    %v735 = vld [vmem:[%s1 + $0x1588] sm:$0xff]
    %v736 = vld [vmem:[%s1 + $0x1590] sm:$0xff]
    %v737 = vld [vmem:[%s1 + $0x1598] sm:$0xff]
    %v738 = vld [vmem:[%s1 + $0x15a0] sm:$0xff]
    %v739 = vld [vmem:[%s1 + $0x15a8] sm:$0xff]
    %v740 = vld [vmem:[%s1 + $0x15b0] sm:$0xff]
    %v741 = vld [vmem:[%s1 + $0x15b8] sm:$0xff]
    %v742 = vld [vmem:[%s1 + $0x15c0] sm:$0xff]
    %v743 = vld [vmem:[%s1 + $0x15c8] sm:$0xff]
    %v744 = vld [vmem:[%s1 + $0x15d0] sm:$0xff]
    %v745 = vld [vmem:[%s1 + $0x15d8] sm:$0xff]
    %v746 = vld [vmem:[%s1 + $0x15e0] sm:$0xff]
    %v747 = vld [vmem:[%s1 + $0x15e8] sm:$0xff]
    %v748 = vld [vmem:[%s1 + $0x15f0] sm:$0xff]
    %v749 = vld [vmem:[%s1 + $0x15f8] sm:$0xff]
    %v750 = vld [vmem:[%s1 + $0x1600] sm:$0xff]
    %v751 = vld [vmem:[%s1 + $0x1608] sm:$0xff]
    %v752 = vld [vmem:[%s1 + $0x1610] sm:$0xff]
    %v753 = vld [vmem:[%s1 + $0x1618] sm:$0xff]
    %v754 = vld [vmem:[%s1 + $0x1620] sm:$0xff]
    %v755 = vld [vmem:[%s1 + $0x1628] sm:$0xff]
    %v756 = vld [vmem:[%s1 + $0x1630] sm:$0xff]
    %v757 = vld [vmem:[%s1 + $0x1638] sm:$0xff]
    %v758 = vld [vmem:[%s1 + $0x1640] sm:$0xff]
    %v759 = vld [vmem:[%s1 + $0x1648] sm:$0xff]
    %v760 = vld [vmem:[%s1 + $0x1650] sm:$0xff]
    %v761 = vld [vmem:[%s1 + $0x1658] sm:$0xff]
    %v762 = vld [vmem:[%s1 + $0x1660] sm:$0xff]
    %v763 = vld [vmem:[%s1 + $0x1668] sm:$0xff]
    %v764 = vld [vmem:[%s1 + $0x1670] sm:$0xff]
    %v765 = vld [vmem:[%s1 + $0x1678] sm:$0xff]
    %v766 = vld [vmem:[%s1 + $0x1680] sm:$0xff]
    %v767 = vld [vmem:[%s1 + $0x1688] sm:$0xff]
    %v768 = vld [vmem:[%s1 + $0x1690] sm:$0xff]
    %v769 = vld [vmem:[%s1 + $0x1698] sm:$0xff]
    %v770 = vld [vmem:[%s1 + $0x16a0] sm:$0xff]
    %v771 = vld [vmem:[%s1 + $0x16a8] sm:$0xff]
    %v772 = vld [vmem:[%s1 + $0x16b0] sm:$0xff]
    %v773 = vld [vmem:[%s1 + $0x16b8] sm:$0xff]
    %v774 = vld [vmem:[%s1 + $0x16c0] sm:$0xff]
    %v775 = vld [vmem:[%s1 + $0x16c8] sm:$0xff]
    %v776 = vld [vmem:[%s1 + $0x16d0] sm:$0xff]
    %v777 = vld [vmem:[%s1 + $0x16d8] sm:$0xff]
    %v778 = vld [vmem:[%s1 + $0x16e0] sm:$0xff]
    %v779 = vld [vmem:[%s1 + $0x16e8] sm:$0xff]
    %v780 = vld [vmem:[%s1 + $0x16f0] sm:$0xff]
    %v781 = vld [vmem:[%s1 + $0x16f8] sm:$0xff]
    %v782 = vld [vmem:[%s1 + $0x1700] sm:$0xff]
    %v783 = vld [vmem:[%s1 + $0x1708] sm:$0xff]
    %v784 = vld [vmem:[%s1 + $0x1710] sm:$0xff]
    %v785 = vld [vmem:[%s1 + $0x1718] sm:$0xff]
    %v786 = vld [vmem:[%s1 + $0x1720] sm:$0xff]
    %v787 = vld [vmem:[%s1 + $0x1728] sm:$0xff]
    %v788 = vld [vmem:[%s1 + $0x1730] sm:$0xff]
    %v789 = vld [vmem:[%s1 + $0x1738] sm:$0xff]
    %v790 = vld [vmem:[%s1 + $0x1740] sm:$0xff]
    %v791 = vld [vmem:[%s1 + $0x1748] sm:$0xff]
    %v792 = vld [vmem:[%s1 + $0x1750] sm:$0xff]
    %v793 = vld [vmem:[%s1 + $0x1758] sm:$0xff]
    %v794 = vld [vmem:[%s1 + $0x1760] sm:$0xff]
    %v795 = vld [vmem:[%s1 + $0x1768] sm:$0xff]
    %v796 = vld [vmem:[%s1 + $0x1770] sm:$0xff]
    %v797 = vld [vmem:[%s1 + $0x1778] sm:$0xff]
    %v798 = vld [vmem:[%s1 + $0x1780] sm:$0xff]
    %v799 = vld [vmem:[%s1 + $0x1788] sm:$0xff]
    %v800 = vld [vmem:[%s1 + $0x1790] sm:$0xff]
    %v801 = vld [vmem:[%s1 + $0x1798] sm:$0xff]
    %v802 = vld [vmem:[%s1 + $0x17a0] sm:$0xff]
    %v803 = vld [vmem:[%s1 + $0x17a8] sm:$0xff]
    %v804 = vld [vmem:[%s1 + $0x17b0] sm:$0xff]
    %v805 = vld [vmem:[%s1 + $0x17b8] sm:$0xff]
    %v806 = vld [vmem:[%s1 + $0x17c0] sm:$0xff]
    %v807 = vld [vmem:[%s1 + $0x17c8] sm:$0xff]
    %v808 = vld [vmem:[%s1 + $0x17d0] sm:$0xff]
    %v809 = vld [vmem:[%s1 + $0x17d8] sm:$0xff]
    %v810 = vld [vmem:[%s1 + $0x17e0] sm:$0xff]
    %v811 = vld [vmem:[%s1 + $0x17e8] sm:$0xff]
    %v812 = vld [vmem:[%s1 + $0x17f0] sm:$0xff]
    %v813 = vld [vmem:[%s1 + $0x17f8] sm:$0xff]
    %v814 = vld [vmem:[%s1 + $0x1800] sm:$0xff]
    %v815 = vld [vmem:[%s1 + $0x1808] sm:$0xff]
    %v816 = vld [vmem:[%s1 + $0x1810] sm:$0xff]
    %v817 = vld [vmem:[%s1 + $0x1818] sm:$0xff]
    %v818 = vld [vmem:[%s1 + $0x1820] sm:$0xff]
    %v819 = vld [vmem:[%s1 + $0x1828] sm:$0xff]
    %v820 = vld [vmem:[%s1 + $0x1830] sm:$0xff]
    %v821 = vld [vmem:[%s1 + $0x1838] sm:$0xff]
    %v822 = vld [vmem:[%s1 + $0x1840] sm:$0xff]
    %v823 = vld [vmem:[%s1 + $0x1848] sm:$0xff]
    %v824 = vld [vmem:[%s1 + $0x1850] sm:$0xff]
    %v825 = vld [vmem:[%s1 + $0x1858] sm:$0xff]
    %v826 = vld [vmem:[%s1 + $0x1860] sm:$0xff]
    %v827 = vld [vmem:[%s1 + $0x1868] sm:$0xff]
    %v828 = vld [vmem:[%s1 + $0x1870] sm:$0xff]
    %v829 = vld [vmem:[%s1 + $0x1878] sm:$0xff]
    %v830 = vld [vmem:[%s1 + $0x1880] sm:$0xff]
    %v831 = vld [vmem:[%s1 + $0x1888] sm:$0xff]
    %v832 = vld [vmem:[%s1 + $0x1890] sm:$0xff]
    %v833 = vld [vmem:[%s1 + $0x1898] sm:$0xff]
    %v834 = vld [vmem:[%s1 + $0x18a0] sm:$0xff]
    %v835 = vld [vmem:[%s1 + $0x18a8] sm:$0xff]
    %v836 = vld [vmem:[%s1 + $0x18b0] sm:$0xff]
    %v837 = vld [vmem:[%s1 + $0x18b8] sm:$0xff]
    %v838 = vld [vmem:[%s1 + $0x18c0] sm:$0xff]
    %v839 = vld [vmem:[%s1 + $0x18c8] sm:$0xff]
    %v840 = vld [vmem:[%s1 + $0x18d0] sm:$0xff]
    %v841 = vld [vmem:[%s1 + $0x18d8] sm:$0xff]
    %v842 = vld [vmem:[%s1 + $0x18e0] sm:$0xff]
    %v843 = vld [vmem:[%s1 + $0x18e8] sm:$0xff]
    %v844 = vld [vmem:[%s1 + $0x18f0] sm:$0xff]
    %v845 = vld [vmem:[%s1 + $0x18f8] sm:$0xff]
    %v846 = vld [vmem:[%s1 + $0x1900] sm:$0xff]
    %v847 = vld [vmem:[%s1 + $0x1908] sm:$0xff]
    %v848 = vld [vmem:[%s1 + $0x1910] sm:$0xff]
    %v849 = vld [vmem:[%s1 + $0x1918] sm:$0xff]
    %v850 = vld [vmem:[%s1 + $0x1920] sm:$0xff]
    %v851 = vld [vmem:[%s1 + $0x1928] sm:$0xff]
    %v852 = vld [vmem:[%s1 + $0x1930] sm:$0xff]
    %v853 = vld [vmem:[%s1 + $0x1938] sm:$0xff]
    %v854 = vld [vmem:[%s1 + $0x1940] sm:$0xff]
    %v855 = vld [vmem:[%s1 + $0x1948] sm:$0xff]
    %v856 = vld [vmem:[%s1 + $0x1950] sm:$0xff]
    %v857 = vld [vmem:[%s1 + $0x1958] sm:$0xff]
    %v858 = vld [vmem:[%s1 + $0x1960] sm:$0xff]
    %v859 = vld [vmem:[%s1 + $0x1968] sm:$0xff]
    %v860 = vld [vmem:[%s1 + $0x1970] sm:$0xff]
    %v861 = vld [vmem:[%s1 + $0x1978] sm:$0xff]
    %v862 = vld [vmem:[%s1 + $0x1980] sm:$0xff]
    %v863 = vld [vmem:[%s1 + $0x1988] sm:$0xff]
    %v864 = vld [vmem:[%s1 + $0x1990] sm:$0xff]
    %v865 = vld [vmem:[%s1 + $0x1998] sm:$0xff]
    %v866 = vld [vmem:[%s1 + $0x19a0] sm:$0xff]
    %v867 = vld [vmem:[%s1 + $0x19a8] sm:$0xff]
    %v868 = vld [vmem:[%s1 + $0x19b0] sm:$0xff]
    %v869 = vld [vmem:[%s1 + $0x19b8] sm:$0xff]
    %v870 = vld [vmem:[%s1 + $0x19c0] sm:$0xff]
    %v871 = vld [vmem:[%s1 + $0x19c8] sm:$0xff]
    %v872 = vld [vmem:[%s1 + $0x19d0] sm:$0xff]
    %v873 = vld [vmem:[%s1 + $0x19d8] sm:$0xff]
    %v874 = vld [vmem:[%s1 + $0x19e0] sm:$0xff]
    %v875 = vld [vmem:[%s1 + $0x19e8] sm:$0xff]
    %v876 = vld [vmem:[%s1 + $0x19f0] sm:$0xff]
    %v877 = vld [vmem:[%s1 + $0x19f8] sm:$0xff]
    %v878 = vld [vmem:[%s1 + $0x1a00] sm:$0xff]
    %v879 = vld [vmem:[%s1 + $0x1a08] sm:$0xff]
    %v880 = vld [vmem:[%s1 + $0x1a10] sm:$0xff]
    %v881 = vld [vmem:[%s1 + $0x1a18] sm:$0xff]
    %v882 = vld [vmem:[%s1 + $0x1a20] sm:$0xff]
    %v883 = vld [vmem:[%s1 + $0x1a28] sm:$0xff]
    %v884 = vld [vmem:[%s1 + $0x1a30] sm:$0xff]
    %v885 = vld [vmem:[%s1 + $0x1a38] sm:$0xff]
    %v886 = vld [vmem:[%s1 + $0x1a40] sm:$0xff]
    %v887 = vld [vmem:[%s1 + $0x1a48] sm:$0xff]
    %v888 = vld [vmem:[%s1 + $0x1a50] sm:$0xff]
    %v889 = vld [vmem:[%s1 + $0x1a58] sm:$0xff]
    %v890 = vld [vmem:[%s1 + $0x1a60] sm:$0xff]
    %v891 = vld [vmem:[%s1 + $0x1a68] sm:$0xff]
    %v892 = vld [vmem:[%s1 + $0x1a70] sm:$0xff]
    %v893 = vld [vmem:[%s1 + $0x1a78] sm:$0xff]
    %v894 = vld [vmem:[%s1 + $0x1a80] sm:$0xff]
    %v895 = vld [vmem:[%s1 + $0x1a88] sm:$0xff]
    %v896 = vld [vmem:[%s1 + $0x1a90] sm:$0xff]
    %v897 = vld [vmem:[%s1 + $0x1a98] sm:$0xff]
    %v898 = vld [vmem:[%s1 + $0x1aa0] sm:$0xff]
    %v899 = vld [vmem:[%s1 + $0x1aa8] sm:$0xff]
    %v900 = vld [vmem:[%s1 + $0x1ab0] sm:$0xff]
    %v901 = vld [vmem:[%s1 + $0x1ab8] sm:$0xff]
    %v902 = vld [vmem:[%s1 + $0x1ac0] sm:$0xff]
    %v903 = vld [vmem:[%s1 + $0x1ac8] sm:$0xff]
    %v904 = vld [vmem:[%s1 + $0x1ad0] sm:$0xff]
    %v905 = vld [vmem:[%s1 + $0x1ad8] sm:$0xff]
    %v906 = vld [vmem:[%s1 + $0x1ae0] sm:$0xff]
    %v907 = vld [vmem:[%s1 + $0x1ae8] sm:$0xff]
    %v908 = vld [vmem:[%s1 + $0x1af0] sm:$0xff]
    %v909 = vld [vmem:[%s1 + $0x1af8] sm:$0xff]
    %v910 = vld [vmem:[%s1 + $0x1b00] sm:$0xff]
    %v911 = vld [vmem:[%s1 + $0x1b08] sm:$0xff]
    %v912 = vld [vmem:[%s1 + $0x1b10] sm:$0xff]
    %v913 = vld [vmem:[%s1 + $0x1b18] sm:$0xff]
    %v914 = vld [vmem:[%s1 + $0x1b20] sm:$0xff]
    %v915 = vld [vmem:[%s1 + $0x1b28] sm:$0xff]
    %v916 = vld [vmem:[%s1 + $0x1b30] sm:$0xff]
    %v917 = vld [vmem:[%s1 + $0x1b38] sm:$0xff]
    %v918 = vld [vmem:[%s1 + $0x1b40] sm:$0xff]
    %v919 = vld [vmem:[%s1 + $0x1b48] sm:$0xff]
    %v920 = vld [vmem:[%s1 + $0x1b50] sm:$0xff]
    %v921 = vld [vmem:[%s1 + $0x1b58] sm:$0xff]
    %v922 = vld [vmem:[%s1 + $0x1b60] sm:$0xff]
    %v923 = vld [vmem:[%s1 + $0x1b68] sm:$0xff]
    %v924 = vld [vmem:[%s1 + $0x1b70] sm:$0xff]
    %v925 = vld [vmem:[%s1 + $0x1b78] sm:$0xff]
    %v926 = vld [vmem:[%s1 + $0x1b80] sm:$0xff]
    %v927 = vld [vmem:[%s1 + $0x1b88] sm:$0xff]
    %v928 = vld [vmem:[%s1 + $0x1b90] sm:$0xff]
    %v929 = vld [vmem:[%s1 + $0x1b98] sm:$0xff]
    %v930 = vld [vmem:[%s1 + $0x1ba0] sm:$0xff]
    %v931 = vld [vmem:[%s1 + $0x1ba8] sm:$0xff]
    %v932 = vld [vmem:[%s1 + $0x1bb0] sm:$0xff]
    %v933 = vld [vmem:[%s1 + $0x1bb8] sm:$0xff]
    %v934 = vld [vmem:[%s1 + $0x1bc0] sm:$0xff]
    %v935 = vld [vmem:[%s1 + $0x1bc8] sm:$0xff]
    %v936 = vld [vmem:[%s1 + $0x1bd0] sm:$0xff]
    %v937 = vld [vmem:[%s1 + $0x1bd8] sm:$0xff]
    %v938 = vld [vmem:[%s1 + $0x1be0] sm:$0xff]
    %v939 = vld [vmem:[%s1 + $0x1be8] sm:$0xff]
    %v940 = vld [vmem:[%s1 + $0x1bf0] sm:$0xff]
    %v941 = vld [vmem:[%s1 + $0x1bf8] sm:$0xff]
    %v942 = vld [vmem:[%s1 + $0x1c00] sm:$0xff]
    %v943 = vld [vmem:[%s1 + $0x1c08] sm:$0xff]
    %v944 = vld [vmem:[%s1 + $0x1c10] sm:$0xff]
    %v945 = vld [vmem:[%s1 + $0x1c18] sm:$0xff]
    %v946 = vld [vmem:[%s1 + $0x1c20] sm:$0xff]
    %v947 = vld [vmem:[%s1 + $0x1c28] sm:$0xff]
    %v948 = vld [vmem:[%s1 + $0x1c30] sm:$0xff]
    %v949 = vld [vmem:[%s1 + $0x1c38] sm:$0xff]
    %v950 = vld [vmem:[%s1 + $0x1c40] sm:$0xff]
    %v951 = vld [vmem:[%s1 + $0x1c48] sm:$0xff]
    %v952 = vld [vmem:[%s1 + $0x1c50] sm:$0xff]
    %v953 = vld [vmem:[%s1 + $0x1c58] sm:$0xff]
    %v954 = vld [vmem:[%s1 + $0x1c60] sm:$0xff]
    %v955 = vld [vmem:[%s1 + $0x1c68] sm:$0xff]
    %v956 = vld [vmem:[%s1 + $0x1c70] sm:$0xff]
    %v957 = vld [vmem:[%s1 + $0x1c78] sm:$0xff]
    %v958 = vld [vmem:[%s1 + $0x1c80] sm:$0xff]
    %v959 = vld [vmem:[%s1 + $0x1c88] sm:$0xff]
    %v960 = vld [vmem:[%s1 + $0x1c90] sm:$0xff]
    %v961 = vld [vmem:[%s1 + $0x1c98] sm:$0xff]
    %v962 = vld [vmem:[%s1 + $0x1ca0] sm:$0xff]
    %v963 = vld [vmem:[%s1 + $0x1ca8] sm:$0xff]
    %v964 = vld [vmem:[%s1 + $0x1cb0] sm:$0xff]
    %v965 = vld [vmem:[%s1 + $0x1cb8] sm:$0xff]
    %v966 = vld [vmem:[%s1 + $0x1cc0] sm:$0xff]
    %v967 = vld [vmem:[%s1 + $0x1cc8] sm:$0xff]
    %v968 = vld [vmem:[%s1 + $0x1cd0] sm:$0xff]
    %v969 = vld [vmem:[%s1 + $0x1cd8] sm:$0xff]
    %v970 = vld [vmem:[%s1 + $0x1ce0] sm:$0xff]
    %v971 = vld [vmem:[%s1 + $0x1ce8] sm:$0xff]
    %v972 = vld [vmem:[%s1 + $0x1cf0] sm:$0xff]
    %v973 = vld [vmem:[%s1 + $0x1cf8] sm:$0xff]
    %v974 = vld [vmem:[%s1 + $0x1d00] sm:$0xff]
    %v975 = vld [vmem:[%s1 + $0x1d08] sm:$0xff]
    %v976 = vld [vmem:[%s1 + $0x1d10] sm:$0xff]
    %v977 = vld [vmem:[%s1 + $0x1d18] sm:$0xff]
    %v978 = vld [vmem:[%s1 + $0x1d20] sm:$0xff]
    %v979 = vld [vmem:[%s1 + $0x1d28] sm:$0xff]
    %v980 = vld [vmem:[%s1 + $0x1d30] sm:$0xff]
    %v981 = vld [vmem:[%s1 + $0x1d38] sm:$0xff]
    %v982 = vld [vmem:[%s1 + $0x1d40] sm:$0xff]
    %v983 = vld [vmem:[%s1 + $0x1d48] sm:$0xff]
    %v984 = vld [vmem:[%s1 + $0x1d50] sm:$0xff]
    %v985 = vld [vmem:[%s1 + $0x1d58] sm:$0xff]
    %v986 = vld [vmem:[%s1 + $0x1d60] sm:$0xff]
    %v987 = vld [vmem:[%s1 + $0x1d68] sm:$0xff]
    %v988 = vld [vmem:[%s1 + $0x1d70] sm:$0xff]
    %v989 = vld [vmem:[%s1 + $0x1d78] sm:$0xff]
    %v990 = vld [vmem:[%s1 + $0x1d80] sm:$0xff]
    %v991 = vld [vmem:[%s1 + $0x1d88] sm:$0xff]
    %v992 = vld [vmem:[%s1 + $0x1d90] sm:$0xff]
    %v993 = vld [vmem:[%s1 + $0x1d98] sm:$0xff]
    %v994 = vld [vmem:[%s1 + $0x1da0] sm:$0xff]
    %v995 = vld [vmem:[%s1 + $0x1da8] sm:$0xff]
    %v996 = vld [vmem:[%s1 + $0x1db0] sm:$0xff]
    %v997 = vld [vmem:[%s1 + $0x1db8] sm:$0xff]
    %v998 = vld [vmem:[%s1 + $0x1dc0] sm:$0xff]
    %v999 = vld [vmem:[%s1 + $0x1dc8] sm:$0xff]
    %v1000 = vld [vmem:[%s1 + $0x1dd0] sm:$0xff]
    %v1001 = vld [vmem:[%s1 + $0x1dd8] sm:$0xff]
    %v1002 = vld [vmem:[%s1 + $0x1de0] sm:$0xff]
    %v1003 = vld [vmem:[%s1 + $0x1de8] sm:$0xff]
    %v1004 = vld [vmem:[%s1 + $0x1df0] sm:$0xff]
    %v1005 = vld [vmem:[%s1 + $0x1df8] sm:$0xff]
    %v1006 = vld [vmem:[%s1 + $0x1e00] sm:$0xff]
    %v1007 = vld [vmem:[%s1 + $0x1e08] sm:$0xff]
    %v1008 = vld [vmem:[%s1 + $0x1e10] sm:$0xff]
    %v1009 = vld [vmem:[%s1 + $0x1e18] sm:$0xff]
    %v1010 = vld [vmem:[%s1 + $0x1e20] sm:$0xff]
    %v1011 = vld [vmem:[%s1 + $0x1e28] sm:$0xff]
    %v1012 = vld [vmem:[%s1 + $0x1e30] sm:$0xff]
    %v1013 = vld [vmem:[%s1 + $0x1e38] sm:$0xff]
    %v1014 = vld [vmem:[%s1 + $0x1e40] sm:$0xff]
    %v1015 = vld [vmem:[%s1 + $0x1e48] sm:$0xff]
    %v1016 = vld [vmem:[%s1 + $0x1e50] sm:$0xff]
    %v1017 = vld [vmem:[%s1 + $0x1e58] sm:$0xff]
    %v1018 = vld [vmem:[%s1 + $0x1e60] sm:$0xff]
    %v1019 = vld [vmem:[%s1 + $0x1e68] sm:$0xff]
    %v1020 = vld [vmem:[%s1 + $0x1e70] sm:$0xff]
    %v1021 = vld [vmem:[%s1 + $0x1e78] sm:$0xff]
    %v1022 = vld [vmem:[%s1 + $0x1e80] sm:$0xff]
    %v1023 = vld [vmem:[%s1 + $0x1e88] sm:$0xff]
    %v1024 = vld [vmem:[%s1 + $0x1e90] sm:$0xff]
    %v1025 = vld [vmem:[%s1 + $0x1e98] sm:$0xff]
    %v1026 = vld [vmem:[%s1 + $0x1ea0] sm:$0xff]
    %v1027 = vld [vmem:[%s1 + $0x1ea8] sm:$0xff]
    %v1028 = vld [vmem:[%s1 + $0x1eb0] sm:$0xff]
    %v1029 = vld [vmem:[%s1 + $0x1eb8] sm:$0xff]
    %v1030 = vld [vmem:[%s1 + $0x1ec0] sm:$0xff]
    %v1031 = vld [vmem:[%s1 + $0x1ec8] sm:$0xff]
    %v1032 = vld [vmem:[%s1 + $0x1ed0] sm:$0xff]
    %v1033 = vld [vmem:[%s1 + $0x1ed8] sm:$0xff]
    %v1034 = vld [vmem:[%s1 + $0x1ee0] sm:$0xff]
    %v1035 = vld [vmem:[%s1 + $0x1ee8] sm:$0xff]
    %v1036 = vld [vmem:[%s1 + $0x1ef0] sm:$0xff]
    %v1037 = vld [vmem:[%s1 + $0x1ef8] sm:$0xff]
    %v1038 = vld [vmem:[%s1 + $0x1f00] sm:$0xff]
    %v1039 = vld [vmem:[%s1 + $0x1f08] sm:$0xff]
    %v1040 = vld [vmem:[%s1 + $0x1f10] sm:$0xff]
    %v1041 = vld [vmem:[%s1 + $0x1f18] sm:$0xff]
    %v1042 = vld [vmem:[%s1 + $0x1f20] sm:$0xff]
    %v1043 = vld [vmem:[%s1 + $0x1f28] sm:$0xff]
    %v1044 = vld [vmem:[%s1 + $0x1f30] sm:$0xff]
    %v1045 = vld [vmem:[%s1 + $0x1f38] sm:$0xff]
    %v1046 = vld [vmem:[%s1 + $0x1f40] sm:$0xff]
    %v1047 = vld [vmem:[%s1 + $0x1f48] sm:$0xff]
    %v1048 = vld [vmem:[%s1 + $0x1f50] sm:$0xff]
    %v1049 = vld [vmem:[%s1 + $0x1f58] sm:$0xff]
    %v1050 = vld [vmem:[%s1 + $0x1f60] sm:$0xff]
    %v1051 = vld [vmem:[%s1 + $0x1f68] sm:$0xff]
    %v1052 = vld [vmem:[%s1 + $0x1f70] sm:$0xff]
    %v1053 = vld [vmem:[%s1 + $0x1f78] sm:$0xff]
    %v1054 = vld [vmem:[%s1 + $0x1f80] sm:$0xff]
    %v1055 = vld [vmem:[%s1 + $0x1f88] sm:$0xff]
    %v1056 = vld [vmem:[%s1 + $0x1f90] sm:$0xff]
    %v1057 = vld [vmem:[%s1 + $0x1f98] sm:$0xff]
    %v1058 = vld [vmem:[%s1 + $0x1fa0] sm:$0xff]
    %v1059 = vld [vmem:[%s1 + $0x1fa8] sm:$0xff]
    %v1060 = vld [vmem:[%s1 + $0x1fb0] sm:$0xff]
    %v1061 = vld [vmem:[%s1 + $0x1fb8] sm:$0xff]
    %v1062 = vld [vmem:[%s1 + $0x1fc0] sm:$0xff]
    %v1063 = vld [vmem:[%s1 + $0x1fc8] sm:$0xff]
    %v1064 = vld [vmem:[%s1 + $0x1fd0] sm:$0xff]
    %v1065 = vld [vmem:[%s1 + $0x1fd8] sm:$0xff]
    %v1066 = vld [vmem:[%s1 + $0x1fe0] sm:$0xff]
    %v1067 = vld [vmem:[%s1 + $0x1fe8] sm:$0xff]
    %v1068 = vld [vmem:[%s1 + $0x1ff0] sm:$0xff]
    %v1069 = vld [vmem:[%s1 + $0x1ff8] sm:$0xff]
    %v1070 = vld [vmem:[%s1 + $0x2000] sm:$0xff]
    %v1071 = vld [vmem:[%s1 + $0x2008] sm:$0xff]
    %v1072 = vld [vmem:[%s1 + $0x2010] sm:$0xff]
    %v1073 = vld [vmem:[%s1 + $0x2018] sm:$0xff]
    %v1074 = vld [vmem:[%s1 + $0x2020] sm:$0xff]
    %v1075 = vld [vmem:[%s1 + $0x2028] sm:$0xff]
    %v1076 = vld [vmem:[%s1 + $0x2030] sm:$0xff]
    %v1077 = vld [vmem:[%s1 + $0x2038] sm:$0xff]
    %v1078 = vld [vmem:[%s1 + $0x2040] sm:$0xff]
    %v1079 = vld [vmem:[%s1 + $0x2048] sm:$0xff]
    %v1080 = vld [vmem:[%s1 + $0x2050] sm:$0xff]
    %v1081 = vld [vmem:[%s1 + $0x2058] sm:$0xff]
    %v1082 = vld [vmem:[%s1 + $0x2060] sm:$0xff]
    %v1083 = vld [vmem:[%s1 + $0x2068] sm:$0xff]
    %v1084 = vld [vmem:[%s1 + $0x2070] sm:$0xff]
    %v1085 = vld [vmem:[%s1 + $0x2078] sm:$0xff]
    %v1086 = vld [vmem:[%s1 + $0x2080] sm:$0xff]
    %v1087 = vld [vmem:[%s1 + $0x2088] sm:$0xff]
    %v1088 = vld [vmem:[%s1 + $0x2090] sm:$0xff]
    %v1089 = vld [vmem:[%s1 + $0x2098] sm:$0xff]
    %v1090 = vld [vmem:[%s1 + $0x20a0] sm:$0xff]
    %v1091 = vld [vmem:[%s1 + $0x20a8] sm:$0xff]
    %v1092 = vld [vmem:[%s1 + $0x20b0] sm:$0xff]
    %v1093 = vld [vmem:[%s1 + $0x20b8] sm:$0xff]
    %v1094 = vld [vmem:[%s1 + $0x20c0] sm:$0xff]
    %v1095 = vld [vmem:[%s1 + $0x20c8] sm:$0xff]
    %v1096 = vld [vmem:[%s1 + $0x20d0] sm:$0xff]
    %v1097 = vld [vmem:[%s1 + $0x20d8] sm:$0xff]
    %v1098 = vld [vmem:[%s1 + $0x20e0] sm:$0xff]
    %v1099 = vld [vmem:[%s1 + $0x20e8] sm:$0xff]
    %v1100 = vld [vmem:[%s1 + $0x20f0] sm:$0xff]
    %v1101 = vld [vmem:[%s1 + $0x20f8] sm:$0xff]
    %v1102 = vld [vmem:[%s1 + $0x2100] sm:$0xff]
    %v1103 = vld [vmem:[%s1 + $0x2108] sm:$0xff]
    %v1104 = vld [vmem:[%s1 + $0x2110] sm:$0xff]
    %v1105 = vld [vmem:[%s1 + $0x2118] sm:$0xff]
    %v1106 = vld [vmem:[%s1 + $0x2120] sm:$0xff]
    %v1107 = vld [vmem:[%s1 + $0x2128] sm:$0xff]
    %v1108 = vld [vmem:[%s1 + $0x2130] sm:$0xff]
    %v1109 = vld [vmem:[%s1 + $0x2138] sm:$0xff]
    %v1110 = vld [vmem:[%s1 + $0x2140] sm:$0xff]
    %v1111 = vld [vmem:[%s1 + $0x2148] sm:$0xff]
    %v1112 = vld [vmem:[%s1 + $0x2150] sm:$0xff]
    %v1113 = vld [vmem:[%s1 + $0x2158] sm:$0xff]
    %v1114 = vld [vmem:[%s1 + $0x2160] sm:$0xff]
    %v1115 = vld [vmem:[%s1 + $0x2168] sm:$0xff]
    %v1116 = vld [vmem:[%s1 + $0x2170] sm:$0xff]
    %v1117 = vld [vmem:[%s1 + $0x2178] sm:$0xff]
    %v1118 = vld [vmem:[%s1 + $0x2180] sm:$0xff]
    %v1119 = vld [vmem:[%s1 + $0x2188] sm:$0xff]
    %v1120 = vld [vmem:[%s1 + $0x2190] sm:$0xff]
    %v1121 = vld [vmem:[%s1 + $0x2198] sm:$0xff]
    %v1122 = vld [vmem:[%s1 + $0x21a0] sm:$0xff]
    %v1123 = vld [vmem:[%s1 + $0x21a8] sm:$0xff]
    %v1124 = vld [vmem:[%s1 + $0x21b0] sm:$0xff]
    %v1125 = vld [vmem:[%s1 + $0x21b8] sm:$0xff]
    %v1126 = vld [vmem:[%s1 + $0x21c0] sm:$0xff]
    %v1127 = vld [vmem:[%s1 + $0x21c8] sm:$0xff]
    %v1128 = vld [vmem:[%s1 + $0x21d0] sm:$0xff]
    %v1129 = vld [vmem:[%s1 + $0x21d8] sm:$0xff]
    %v1130 = vld [vmem:[%s1 + $0x21e0] sm:$0xff]
    %v1131 = vld [vmem:[%s1 + $0x21e8] sm:$0xff]
    %v1132 = vld [vmem:[%s1 + $0x21f0] sm:$0xff]
    %v1133 = vld [vmem:[%s1 + $0x21f8] sm:$0xff]
    %v1134 = vld [vmem:[%s1 + $0x2200] sm:$0xff]
    %v1135 = vld [vmem:[%s1 + $0x2208] sm:$0xff]
    %v1136 = vld [vmem:[%s1 + $0x2210] sm:$0xff]
    %v1137 = vld [vmem:[%s1 + $0x2218] sm:$0xff]
    %v1138 = vld [vmem:[%s1 + $0x2220] sm:$0xff]
    %v1139 = vld [vmem:[%s1 + $0x2228] sm:$0xff]
    %v1140 = vld [vmem:[%s1 + $0x2230] sm:$0xff]
    %v1141 = vld [vmem:[%s1 + $0x2238] sm:$0xff]
    %v1142 = vld [vmem:[%s1 + $0x2240] sm:$0xff]
    %v1143 = vld [vmem:[%s1 + $0x2248] sm:$0xff]
    %v1144 = vld [vmem:[%s1 + $0x2250] sm:$0xff]
    %v1145 = vld [vmem:[%s1 + $0x2258] sm:$0xff]
    %v1146 = vld [vmem:[%s1 + $0x2260] sm:$0xff]
    %v1147 = vld [vmem:[%s1 + $0x2268] sm:$0xff]
    %v1148 = vld [vmem:[%s1 + $0x2270] sm:$0xff]
    %v1149 = vld [vmem:[%s1 + $0x2278] sm:$0xff]
    %v1150 = vld [vmem:[%s1 + $0x2280] sm:$0xff]
    %v1151 = vld [vmem:[%s1 + $0x2288] sm:$0xff]
    %v1152 = vld [vmem:[%s1 + $0x2290] sm:$0xff]
    %v1153 = vld [vmem:[%s1 + $0x2298] sm:$0xff]
    %v1154 = vld [vmem:[%s1 + $0x22a0] sm:$0xff]
    %v1155 = vld [vmem:[%s1 + $0x22a8] sm:$0xff]
    %v1156 = vld [vmem:[%s1 + $0x22b0] sm:$0xff]
    %v1157 = vld [vmem:[%s1 + $0x22b8] sm:$0xff]
    %v1158 = vld [vmem:[%s1 + $0x22c0] sm:$0xff]
    %v1159 = vld [vmem:[%s1 + $0x22c8] sm:$0xff]
    %v1160 = vld [vmem:[%s1 + $0x22d0] sm:$0xff]
    %v1161 = vld [vmem:[%s1 + $0x22d8] sm:$0xff]
    %v1162 = vld [vmem:[%s1 + $0x22e0] sm:$0xff]
    %v1163 = vld [vmem:[%s1 + $0x22e8] sm:$0xff]
    %v1164 = vld [vmem:[%s1 + $0x22f0] sm:$0xff]
    %v1165 = vld [vmem:[%s1 + $0x22f8] sm:$0xff]
    %v1166 = vld [vmem:[%s1 + $0x2300] sm:$0xff]
    %v1167 = vld [vmem:[%s1 + $0x2308] sm:$0xff]
    %v1168 = vld [vmem:[%s1 + $0x2310] sm:$0xff]
    %v1169 = vld [vmem:[%s1 + $0x2318] sm:$0xff]
    %v1170 = vld [vmem:[%s1 + $0x2320] sm:$0xff]
    %v1171 = vld [vmem:[%s1 + $0x2328] sm:$0xff]
    %v1172 = vld [vmem:[%s1 + $0x2330] sm:$0xff]
    %v1173 = vld [vmem:[%s1 + $0x2338] sm:$0xff]
    %v1174 = vld [vmem:[%s1 + $0x2340] sm:$0xff]
    %v1175 = vld [vmem:[%s1 + $0x2348] sm:$0xff]
    %v1176 = vld [vmem:[%s1 + $0x2350] sm:$0xff]
    %v1177 = vld [vmem:[%s1 + $0x2358] sm:$0xff]
    %v1178 = vld [vmem:[%s1 + $0x2360] sm:$0xff]
    %v1179 = vld [vmem:[%s1 + $0x2368] sm:$0xff]
    %v1180 = vld [vmem:[%s1 + $0x2370] sm:$0xff]
    %v1181 = vld [vmem:[%s1 + $0x2378] sm:$0xff]
    %v1182 = vld [vmem:[%s1 + $0x2380] sm:$0xff]
    %v1183 = vld [vmem:[%s1 + $0x2388] sm:$0xff]
    %v1184 = vld [vmem:[%s1 + $0x2390] sm:$0xff]
    %v1185 = vld [vmem:[%s1 + $0x2398] sm:$0xff]
    %v1186 = vld [vmem:[%s1 + $0x23a0] sm:$0xff]
    %v1187 = vld [vmem:[%s1 + $0x23a8] sm:$0xff]
    %v1188 = vld [vmem:[%s1 + $0x23b0] sm:$0xff]
    %v1189 = vld [vmem:[%s1 + $0x23b8] sm:$0xff]
    %v1190 = vld [vmem:[%s1 + $0x23c0] sm:$0xff]
    %v1191 = vld [vmem:[%s1 + $0x23c8] sm:$0xff]
    %v1192 = vld [vmem:[%s1 + $0x23d0] sm:$0xff]
    %v1193 = vld [vmem:[%s1 + $0x23d8] sm:$0xff]
    %v1194 = vld [vmem:[%s1 + $0x23e0] sm:$0xff]
    %v1195 = vld [vmem:[%s1 + $0x23e8] sm:$0xff]
    %v1196 = vld [vmem:[%s1 + $0x23f0] sm:$0xff]
    %v1197 = vld [vmem:[%s1 + $0x23f8] sm:$0xff]
    %v1198 = vld [vmem:[%s1 + $0x2400] sm:$0xff]
    %v1199 = vld [vmem:[%s1 + $0x2408] sm:$0xff]
    %v1200 = vld [vmem:[%s1 + $0x2410] sm:$0xff]
    %v1201 = vld [vmem:[%s1 + $0x2418] sm:$0xff]
    %v1202 = vld [vmem:[%s2] sm:$0x1]
    %v1204 = vperm.slane %v1202, 0
    %1225 = vst [vmem:[#allocation1] ss:$4 sm:$0xff] %v27
    %s1226 = scalar_lea.vmem [#allocation1], 32
    %1227 = vst [vmem:[%s1226] ss:$4 sm:$0xff] %v28
    %v1228 = vld.sshfl [vmem:[#allocation1] sm:$0xff pattern:$0x73625140]
    %v1229 = vld.sshfl [vmem:[#allocation1 + $0x8] sm:$0xff pattern:$0x73625140]
    %v1230 = vld.sshfl [vmem:[#allocation1 + $0x10] sm:$0xff pattern:$0x73625140]
    %v1231 = vld.sshfl [vmem:[#allocation1 + $0x18] sm:$0xff pattern:$0x73625140]
    %v1232 = vld.sshfl [vmem:[#allocation1 + $0x20] sm:$0xff pattern:$0x73625140]
    %v1233 = vld.sshfl [vmem:[#allocation1 + $0x28] sm:$0xff pattern:$0x73625140]
    %v1234 = vld.sshfl [vmem:[#allocation1 + $0x30] sm:$0xff pattern:$0x73625140]
    %v1235 = vld.sshfl [vmem:[#allocation1 + $0x38] sm:$0xff pattern:$0x73625140]
    %1236 = vst [vmem:[#allocation1] ss:$4 sm:$0xff] %v29
    %1237 = vst [vmem:[%s1226] ss:$4 sm:$0xff] %v30
    %v1238 = vld.sshfl [vmem:[#allocation1] sm:$0xff pattern:$0x73625140]
    %v1239 = vld.sshfl [vmem:[#allocation1 + $0x8] sm:$0xff pattern:$0x73625140]
    %v1240 = vld.sshfl [vmem:[#allocation1 + $0x10] sm:$0xff pattern:$0x73625140]
    %v1241 = vld.sshfl [vmem:[#allocation1 + $0x18] sm:$0xff pattern:$0x73625140]
    %v1242 = vld.sshfl [vmem:[#allocation1 + $0x20] sm:$0xff pattern:$0x73625140]
    %v1243 = vld.sshfl [vmem:[#allocation1 + $0x28] sm:$0xff pattern:$0x73625140]
    %v1244 = vld.sshfl [vmem:[#allocation1 + $0x30] sm:$0xff pattern:$0x73625140]
    %v1245 = vld.sshfl [vmem:[#allocation1 + $0x38] sm:$0xff pattern:$0x73625140]
    %1246 = vst [vmem:[#allocation1] ss:$4 sm:$0xff] %v31
    %1247 = vst [vmem:[%s1226] ss:$4 sm:$0xff] %v32
    %v1248 = vld.sshfl [vmem:[#allocation1] sm:$0xff pattern:$0x73625140]
    %v1249 = vld.sshfl [vmem:[#allocation1 + $0x8] sm:$0xff pattern:$0x73625140]
    %v1250 = vld.sshfl [vmem:[#allocation1 + $0x10] sm:$0xff pattern:$0x73625140]
    %v1251 = vld.sshfl [vmem:[#allocation1 + $0x18] sm:$0xff pattern:$0x73625140]
    %v1252 = vld.sshfl [vmem:[#allocation1 + $0x20] sm:$0xff pattern:$0x73625140]
    %v1253 = vld.sshfl [vmem:[#allocation1 + $0x28] sm:$0xff pattern:$0x73625140]
    %v1254 = vld.sshfl [vmem:[#allocation1 + $0x30] sm:$0xff pattern:$0x73625140]
    %v1255 = vld.sshfl [vmem:[#allocation1 + $0x38] sm:$0xff pattern:$0x73625140]
    %1256 = vst [vmem:[#allocation1] ss:$4 sm:$0xff] %v33
    %1257 = vst [vmem:[%s1226] ss:$4 sm:$0xff] %v34
    %v1258 = vld.sshfl [vmem:[#allocation1] sm:$0xff pattern:$0x73625140]
    %v1259 = vld.sshfl [vmem:[#allocation1 + $0x8] sm:$0xff pattern:$0x73625140]
    %v1260 = vld.sshfl [vmem:[#allocation1 + $0x10] sm:$0xff pattern:$0x73625140]
    %v1261 = vld.sshfl [vmem:[#allocation1 + $0x18] sm:$0xff pattern:$0x73625140]
    %v1262 = vld.sshfl [vmem:[#allocation1 + $0x20] sm:$0xff pattern:$0x73625140]
    %v1263 = vld.sshfl [vmem:[#allocation1 + $0x28] sm:$0xff pattern:$0x73625140]
    %v1264 = vld.sshfl [vmem:[#allocation1 + $0x30] sm:$0xff pattern:$0x73625140]
    %v1265 = vld.sshfl [vmem:[#allocation1 + $0x38] sm:$0xff pattern:$0x73625140]
    %1266 = vst [vmem:[#allocation1] ss:$4 sm:$0xff] %v35
    %1267 = vst [vmem:[%s1226] ss:$4 sm:$0xff] %v36
    %v1268 = vld.sshfl [vmem:[#allocation1] sm:$0xff pattern:$0x73625140]
    %v1269 = vld.sshfl [vmem:[#allocation1 + $0x8] sm:$0xff pattern:$0x73625140]
    %v1270 = vld.sshfl [vmem:[#allocation1 + $0x10] sm:$0xff pattern:$0x73625140]
    %v1271 = vld.sshfl [vmem:[#allocation1 + $0x18] sm:$0xff pattern:$0x73625140]
    %v1272 = vld.sshfl [vmem:[#allocation1 + $0x20] sm:$0xff pattern:$0x73625140]
    %v1273 = vld.sshfl [vmem:[#allocation1 + $0x28] sm:$0xff pattern:$0x73625140]
    %v1274 = vld.sshfl [vmem:[#allocation1 + $0x30] sm:$0xff pattern:$0x73625140]
    %v1275 = vld.sshfl [vmem:[#allocation1 + $0x38] sm:$0xff pattern:$0x73625140]
    %1276 = vst [vmem:[#allocation1] ss:$4 sm:$0xff] %v37
    %1277 = vst [vmem:[%s1226] ss:$4 sm:$0xff] %v38
    %v1278 = vld.sshfl [vmem:[#allocation1] sm:$0xff pattern:$0x73625140]
    %v1279 = vld.sshfl [vmem:[#allocation1 + $0x8] sm:$0xff pattern:$0x73625140]
    %v1280 = vld.sshfl [vmem:[#allocation1 + $0x10] sm:$0xff pattern:$0x73625140]
    %v1281 = vld.sshfl [vmem:[#allocation1 + $0x18] sm:$0xff pattern:$0x73625140]
    %v1282 = vld.sshfl [vmem:[#allocation1 + $0x20] sm:$0xff pattern:$0x73625140]
    %v1283 = vld.sshfl [vmem:[#allocation1 + $0x28] sm:$0xff pattern:$0x73625140]
    %v1284 = vld.sshfl [vmem:[#allocation1 + $0x30] sm:$0xff pattern:$0x73625140]
    %v1285 = vld.sshfl [vmem:[#allocation1 + $0x38] sm:$0xff pattern:$0x73625140]
    %1286 = vst [vmem:[#allocation1] ss:$4 sm:$0xff] %v39
    %1287 = vst [vmem:[%s1226] ss:$4 sm:$0xff] %v40
    %v1288 = vld.sshfl [vmem:[#allocation1] sm:$0xff pattern:$0x73625140]
    %v1289 = vld.sshfl [vmem:[#allocation1 + $0x8] sm:$0xff pattern:$0x73625140]
    %v1290 = vld.sshfl [vmem:[#allocation1 + $0x10] sm:$0xff pattern:$0x73625140]
    %v1291 = vld.sshfl [vmem:[#allocation1 + $0x18] sm:$0xff pattern:$0x73625140]
    %v1292 = vld.sshfl [vmem:[#allocation1 + $0x20] sm:$0xff pattern:$0x73625140]
    %v1293 = vld.sshfl [vmem:[#allocation1 + $0x28] sm:$0xff pattern:$0x73625140]
    %v1294 = vld.sshfl [vmem:[#allocation1 + $0x30] sm:$0xff pattern:$0x73625140]
    %v1295 = vld.sshfl [vmem:[#allocation1 + $0x38] sm:$0xff pattern:$0x73625140]
    %1296 = vst [vmem:[#allocation1] ss:$4 sm:$0xff] %v41
    %1297 = vst [vmem:[%s1226] ss:$4 sm:$0xff] %v42
    %v1298 = vld.sshfl [vmem:[#allocation1] sm:$0xff pattern:$0x73625140]
    %v1299 = vld.sshfl [vmem:[#allocation1 + $0x8] sm:$0xff pattern:$0x73625140]
    %v1300 = vld.sshfl [vmem:[#allocation1 + $0x10] sm:$0xff pattern:$0x73625140]
    %v1301 = vld.sshfl [vmem:[#allocation1 + $0x18] sm:$0xff pattern:$0x73625140]
    %v1302 = vld.sshfl [vmem:[#allocation1 + $0x20] sm:$0xff pattern:$0x73625140]
    %v1303 = vld.sshfl [vmem:[#allocation1 + $0x28] sm:$0xff pattern:$0x73625140]
    %v1304 = vld.sshfl [vmem:[#allocation1 + $0x30] sm:$0xff pattern:$0x73625140]
    %v1305 = vld.sshfl [vmem:[#allocation1 + $0x38] sm:$0xff pattern:$0x73625140]
    %1306 = vst [vmem:[#allocation1] ss:$4 sm:$0xff] %v43
    %1307 = vst [vmem:[%s1226] ss:$4 sm:$0xff] %v44
    %v1308 = vld.sshfl [vmem:[#allocation1] sm:$0xff pattern:$0x73625140]
    %v1309 = vld.sshfl [vmem:[#allocation1 + $0x8] sm:$0xff pattern:$0x73625140]
    %v1310 = vld.sshfl [vmem:[#allocation1 + $0x10] sm:$0xff pattern:$0x73625140]
    %v1311 = vld.sshfl [vmem:[#allocation1 + $0x18] sm:$0xff pattern:$0x73625140]
    %v1312 = vld.sshfl [vmem:[#allocation1 + $0x20] sm:$0xff pattern:$0x73625140]
    %v1313 = vld.sshfl [vmem:[#allocation1 + $0x28] sm:$0xff pattern:$0x73625140]
    %v1314 = vld.sshfl [vmem:[#allocation1 + $0x30] sm:$0xff pattern:$0x73625140]
    %v1315 = vld.sshfl [vmem:[#allocation1 + $0x38] sm:$0xff pattern:$0x73625140]
    %1316 = vst [vmem:[#allocation1] ss:$4 sm:$0xff] %v45
    %v1317 = vld.sshfl [vmem:[#allocation1] sm:$0xff pattern:$0x73625140]
    %vm1390 = vcmask 261120
    %v1391 = vsel %vm1390, %v1317, 0
    %1393 = vmatpush.msra.mxu0 %v61
    %1394 = vmatpush.msra.mxu0 %v60
    %1395 = vmatpush.msra.mxu0 %v59
    %1396 = vmatpush.msra.mxu0 %v58
    %1397 = vmatpush.msra.mxu0 %v57
    %1398 = vmatpush.msra.mxu0 %v56
    %1399 = vmatpush.msra.mxu0 %v55
    %1400 = vmatpush.msra.mxu0 %v54
    %1401 = vmatpush.msra.mxu0 %v53
    %1402 = vmatpush.msra.mxu0 %v52
    %1403 = vmatpush.msra.mxu0 %v51
    %1404 = vmatpush.msra.mxu0 %v50
    %1405 = vmatpush.msra.mxu0 %v49
    %1406 = vmatpush.msra.mxu0 %v48
    %1407 = vmatpush.msra.mxu0 %v47
    %1408 = vmatpush.msra.mxu0 %v46
    %1409 = vmatmul.f32.gmra.mxu0 %v1228
    %v1410 = vpop.f32.mrf.mxu0
    %v1411 = vadd.f32 %v1204, %v1410
    %1412 = vdwg.mxu0
    %1413 = vmatpush.msra.mxu0 %v77
    %1414 = vmatpush.msra.mxu0 %v76
    %1415 = vmatpush.msra.mxu0 %v75
    %1416 = vmatpush.msra.mxu0 %v74
    %1417 = vmatpush.msra.mxu0 %v73
    %1418 = vmatpush.msra.mxu0 %v72
    %1419 = vmatpush.msra.mxu0 %v71
    %1420 = vmatpush.msra.mxu0 %v70
    %1421 = vmatpush.msra.mxu0 %v69
    %1422 = vmatpush.msra.mxu0 %v68
    %1423 = vmatpush.msra.mxu0 %v67
    %1424 = vmatpush.msra.mxu0 %v66
    %1425 = vmatpush.msra.mxu0 %v65
    %1426 = vmatpush.msra.mxu0 %v64
    %1427 = vmatpush.msra.mxu0 %v63
    %1428 = vmatpush.msra.mxu0 %v62
    %1429 = vmatmul.f32.gmra.mxu0 %v1229
    %v1430 = vpop.f32.mrf.mxu0
    %v1431 = vadd.f32 %v1411, %v1430
    %1432 = vdwg.mxu0
    %1433 = vmatpush.msra.mxu0 %v93
    %1434 = vmatpush.msra.mxu0 %v92
    %1435 = vmatpush.msra.mxu0 %v91
    %1436 = vmatpush.msra.mxu0 %v90
    %1437 = vmatpush.msra.mxu0 %v89
    %1438 = vmatpush.msra.mxu0 %v88
    %1439 = vmatpush.msra.mxu0 %v87
    %1440 = vmatpush.msra.mxu0 %v86
    %1441 = vmatpush.msra.mxu0 %v85
    %1442 = vmatpush.msra.mxu0 %v84
    %1443 = vmatpush.msra.mxu0 %v83
    %1444 = vmatpush.msra.mxu0 %v82
    %1445 = vmatpush.msra.mxu0 %v81
    %1446 = vmatpush.msra.mxu0 %v80
    %1447 = vmatpush.msra.mxu0 %v79
    %1448 = vmatpush.msra.mxu0 %v78
    %1449 = vmatmul.f32.gmra.mxu0 %v1230
    %v1450 = vpop.f32.mrf.mxu0
    %v1451 = vadd.f32 %v1431, %v1450
    %1452 = vdwg.mxu0
    %1453 = vmatpush.msra.mxu0 %v109
    %1454 = vmatpush.msra.mxu0 %v108
    %1455 = vmatpush.msra.mxu0 %v107
    %1456 = vmatpush.msra.mxu0 %v106
    %1457 = vmatpush.msra.mxu0 %v105
    %1458 = vmatpush.msra.mxu0 %v104
    %1459 = vmatpush.msra.mxu0 %v103
    %1460 = vmatpush.msra.mxu0 %v102
    %1461 = vmatpush.msra.mxu0 %v101
    %1462 = vmatpush.msra.mxu0 %v100
    %1463 = vmatpush.msra.mxu0 %v99
    %1464 = vmatpush.msra.mxu0 %v98
    %1465 = vmatpush.msra.mxu0 %v97
    %1466 = vmatpush.msra.mxu0 %v96
    %1467 = vmatpush.msra.mxu0 %v95
    %1468 = vmatpush.msra.mxu0 %v94
    %1469 = vmatmul.f32.gmra.mxu0 %v1231
    %v1470 = vpop.f32.mrf.mxu0
    %v1471 = vadd.f32 %v1451, %v1470
    %1472 = vdwg.mxu0
    %1473 = vmatpush.msra.mxu0 %v125
    %1474 = vmatpush.msra.mxu0 %v124
    %1475 = vmatpush.msra.mxu0 %v123
    %1476 = vmatpush.msra.mxu0 %v122
    %1477 = vmatpush.msra.mxu0 %v121
    %1478 = vmatpush.msra.mxu0 %v120
    %1479 = vmatpush.msra.mxu0 %v119
    %1480 = vmatpush.msra.mxu0 %v118
    %1481 = vmatpush.msra.mxu0 %v117
    %1482 = vmatpush.msra.mxu0 %v116
    %1483 = vmatpush.msra.mxu0 %v115
    %1484 = vmatpush.msra.mxu0 %v114
    %1485 = vmatpush.msra.mxu0 %v113
    %1486 = vmatpush.msra.mxu0 %v112
    %1487 = vmatpush.msra.mxu0 %v111
    %1488 = vmatpush.msra.mxu0 %v110
    %1489 = vmatmul.f32.gmra.mxu0 %v1232
    %v1490 = vpop.f32.mrf.mxu0
    %v1491 = vadd.f32 %v1471, %v1490
    %1492 = vdwg.mxu0
    %1493 = vmatpush.msra.mxu0 %v141
    %1494 = vmatpush.msra.mxu0 %v140
    %1495 = vmatpush.msra.mxu0 %v139
    %1496 = vmatpush.msra.mxu0 %v138
    %1497 = vmatpush.msra.mxu0 %v137
    %1498 = vmatpush.msra.mxu0 %v136
    %1499 = vmatpush.msra.mxu0 %v135
    %1500 = vmatpush.msra.mxu0 %v134
    %1501 = vmatpush.msra.mxu0 %v133
    %1502 = vmatpush.msra.mxu0 %v132
    %1503 = vmatpush.msra.mxu0 %v131
    %1504 = vmatpush.msra.mxu0 %v130
    %1505 = vmatpush.msra.mxu0 %v129
    %1506 = vmatpush.msra.mxu0 %v128
    %1507 = vmatpush.msra.mxu0 %v127
    %1508 = vmatpush.msra.mxu0 %v126
    %1509 = vmatmul.f32.gmra.mxu0 %v1233
    %v1510 = vpop.f32.mrf.mxu0
    %v1511 = vadd.f32 %v1491, %v1510
    %1512 = vdwg.mxu0
    %1513 = vmatpush.msra.mxu0 %v157
    %1514 = vmatpush.msra.mxu0 %v156
    %1515 = vmatpush.msra.mxu0 %v155
    %1516 = vmatpush.msra.mxu0 %v154
    %1517 = vmatpush.msra.mxu0 %v153
    %1518 = vmatpush.msra.mxu0 %v152
    %1519 = vmatpush.msra.mxu0 %v151
    %1520 = vmatpush.msra.mxu0 %v150
    %1521 = vmatpush.msra.mxu0 %v149
    %1522 = vmatpush.msra.mxu0 %v148
    %1523 = vmatpush.msra.mxu0 %v147
    %1524 = vmatpush.msra.mxu0 %v146
    %1525 = vmatpush.msra.mxu0 %v145
    %1526 = vmatpush.msra.mxu0 %v144
    %1527 = vmatpush.msra.mxu0 %v143
    %1528 = vmatpush.msra.mxu0 %v142
    %1529 = vmatmul.f32.gmra.mxu0 %v1234
    %v1530 = vpop.f32.mrf.mxu0
    %v1531 = vadd.f32 %v1511, %v1530
    %1532 = vdwg.mxu0
    %1533 = vmatpush.msra.mxu0 %v173
    %1534 = vmatpush.msra.mxu0 %v172
    %1535 = vmatpush.msra.mxu0 %v171
    %1536 = vmatpush.msra.mxu0 %v170
    %1537 = vmatpush.msra.mxu0 %v169
    %1538 = vmatpush.msra.mxu0 %v168
    %1539 = vmatpush.msra.mxu0 %v167
    %1540 = vmatpush.msra.mxu0 %v166
    %1541 = vmatpush.msra.mxu0 %v165
    %1542 = vmatpush.msra.mxu0 %v164
    %1543 = vmatpush.msra.mxu0 %v163
    %1544 = vmatpush.msra.mxu0 %v162
    %1545 = vmatpush.msra.mxu0 %v161
    %1546 = vmatpush.msra.mxu0 %v160
    %1547 = vmatpush.msra.mxu0 %v159
    %1548 = vmatpush.msra.mxu0 %v158
    %1549 = vmatmul.f32.gmra.mxu0 %v1235
    %v1550 = vpop.f32.mrf.mxu0
    %v1551 = vadd.f32 %v1531, %v1550
    %1552 = vdwg.mxu0
    %1553 = vmatpush.msra.mxu0 %v189
    %1554 = vmatpush.msra.mxu0 %v188
    %1555 = vmatpush.msra.mxu0 %v187
    %1556 = vmatpush.msra.mxu0 %v186
    %1557 = vmatpush.msra.mxu0 %v185
    %1558 = vmatpush.msra.mxu0 %v184
    %1559 = vmatpush.msra.mxu0 %v183
    %1560 = vmatpush.msra.mxu0 %v182
    %1561 = vmatpush.msra.mxu0 %v181
    %1562 = vmatpush.msra.mxu0 %v180
    %1563 = vmatpush.msra.mxu0 %v179
    %1564 = vmatpush.msra.mxu0 %v178
    %1565 = vmatpush.msra.mxu0 %v177
    %1566 = vmatpush.msra.mxu0 %v176
    %1567 = vmatpush.msra.mxu0 %v175
    %1568 = vmatpush.msra.mxu0 %v174
    %1569 = vmatmul.f32.gmra.mxu0 %v1238
    %v1570 = vpop.f32.mrf.mxu0
    %v1571 = vadd.f32 %v1551, %v1570
    %1572 = vdwg.mxu0
    %1573 = vmatpush.msra.mxu0 %v205
    %1574 = vmatpush.msra.mxu0 %v204
    %1575 = vmatpush.msra.mxu0 %v203
    %1576 = vmatpush.msra.mxu0 %v202
    %1577 = vmatpush.msra.mxu0 %v201
    %1578 = vmatpush.msra.mxu0 %v200
    %1579 = vmatpush.msra.mxu0 %v199
    %1580 = vmatpush.msra.mxu0 %v198
    %1581 = vmatpush.msra.mxu0 %v197
    %1582 = vmatpush.msra.mxu0 %v196
    %1583 = vmatpush.msra.mxu0 %v195
    %1584 = vmatpush.msra.mxu0 %v194
    %1585 = vmatpush.msra.mxu0 %v193
    %1586 = vmatpush.msra.mxu0 %v192
    %1587 = vmatpush.msra.mxu0 %v191
    %1588 = vmatpush.msra.mxu0 %v190
    %1589 = vmatmul.f32.gmra.mxu0 %v1239
    %v1590 = vpop.f32.mrf.mxu0
    %v1591 = vadd.f32 %v1571, %v1590
    %1592 = vdwg.mxu0
    %1593 = vmatpush.msra.mxu0 %v221
    %1594 = vmatpush.msra.mxu0 %v220
    %1595 = vmatpush.msra.mxu0 %v219
    %1596 = vmatpush.msra.mxu0 %v218
    %1597 = vmatpush.msra.mxu0 %v217
    %1598 = vmatpush.msra.mxu0 %v216
    %1599 = vmatpush.msra.mxu0 %v215
    %1600 = vmatpush.msra.mxu0 %v214
    %1601 = vmatpush.msra.mxu0 %v213
    %1602 = vmatpush.msra.mxu0 %v212
    %1603 = vmatpush.msra.mxu0 %v211
    %1604 = vmatpush.msra.mxu0 %v210
    %1605 = vmatpush.msra.mxu0 %v209
    %1606 = vmatpush.msra.mxu0 %v208
    %1607 = vmatpush.msra.mxu0 %v207
    %1608 = vmatpush.msra.mxu0 %v206
    %1609 = vmatmul.f32.gmra.mxu0 %v1240
    %v1610 = vpop.f32.mrf.mxu0
    %v1611 = vadd.f32 %v1591, %v1610
    %1612 = vdwg.mxu0
    %1613 = vmatpush.msra.mxu0 %v237
    %1614 = vmatpush.msra.mxu0 %v236
    %1615 = vmatpush.msra.mxu0 %v235
    %1616 = vmatpush.msra.mxu0 %v234
    %1617 = vmatpush.msra.mxu0 %v233
    %1618 = vmatpush.msra.mxu0 %v232
    %1619 = vmatpush.msra.mxu0 %v231
    %1620 = vmatpush.msra.mxu0 %v230
    %1621 = vmatpush.msra.mxu0 %v229
    %1622 = vmatpush.msra.mxu0 %v228
    %1623 = vmatpush.msra.mxu0 %v227
    %1624 = vmatpush.msra.mxu0 %v226
    %1625 = vmatpush.msra.mxu0 %v225
    %1626 = vmatpush.msra.mxu0 %v224
    %1627 = vmatpush.msra.mxu0 %v223
    %1628 = vmatpush.msra.mxu0 %v222
    %1629 = vmatmul.f32.gmra.mxu0 %v1241
    %v1630 = vpop.f32.mrf.mxu0
    %v1631 = vadd.f32 %v1611, %v1630
    %1632 = vdwg.mxu0
    %1633 = vmatpush.msra.mxu0 %v253
    %1634 = vmatpush.msra.mxu0 %v252
    %1635 = vmatpush.msra.mxu0 %v251
    %1636 = vmatpush.msra.mxu0 %v250
    %1637 = vmatpush.msra.mxu0 %v249
    %1638 = vmatpush.msra.mxu0 %v248
    %1639 = vmatpush.msra.mxu0 %v247
    %1640 = vmatpush.msra.mxu0 %v246
    %1641 = vmatpush.msra.mxu0 %v245
    %1642 = vmatpush.msra.mxu0 %v244
    %1643 = vmatpush.msra.mxu0 %v243
    %1644 = vmatpush.msra.mxu0 %v242
    %1645 = vmatpush.msra.mxu0 %v241
    %1646 = vmatpush.msra.mxu0 %v240
    %1647 = vmatpush.msra.mxu0 %v239
    %1648 = vmatpush.msra.mxu0 %v238
    %1649 = vmatmul.f32.gmra.mxu0 %v1242
    %v1650 = vpop.f32.mrf.mxu0
    %v1651 = vadd.f32 %v1631, %v1650
    %1652 = vdwg.mxu0
    %1653 = vmatpush.msra.mxu0 %v269
    %1654 = vmatpush.msra.mxu0 %v268
    %1655 = vmatpush.msra.mxu0 %v267
    %1656 = vmatpush.msra.mxu0 %v266
    %1657 = vmatpush.msra.mxu0 %v265
    %1658 = vmatpush.msra.mxu0 %v264
    %1659 = vmatpush.msra.mxu0 %v263
    %1660 = vmatpush.msra.mxu0 %v262
    %1661 = vmatpush.msra.mxu0 %v261
    %1662 = vmatpush.msra.mxu0 %v260
    %1663 = vmatpush.msra.mxu0 %v259
    %1664 = vmatpush.msra.mxu0 %v258
    %1665 = vmatpush.msra.mxu0 %v257
    %1666 = vmatpush.msra.mxu0 %v256
    %1667 = vmatpush.msra.mxu0 %v255
    %1668 = vmatpush.msra.mxu0 %v254
    %1669 = vmatmul.f32.gmra.mxu0 %v1243
    %v1670 = vpop.f32.mrf.mxu0
    %v1671 = vadd.f32 %v1651, %v1670
    %1672 = vdwg.mxu0
    %1673 = vmatpush.msra.mxu0 %v285
    %1674 = vmatpush.msra.mxu0 %v284
    %1675 = vmatpush.msra.mxu0 %v283
    %1676 = vmatpush.msra.mxu0 %v282
    %1677 = vmatpush.msra.mxu0 %v281
    %1678 = vmatpush.msra.mxu0 %v280
    %1679 = vmatpush.msra.mxu0 %v279
    %1680 = vmatpush.msra.mxu0 %v278
    %1681 = vmatpush.msra.mxu0 %v277
    %1682 = vmatpush.msra.mxu0 %v276
    %1683 = vmatpush.msra.mxu0 %v275
    %1684 = vmatpush.msra.mxu0 %v274
    %1685 = vmatpush.msra.mxu0 %v273
    %1686 = vmatpush.msra.mxu0 %v272
    %1687 = vmatpush.msra.mxu0 %v271
    %1688 = vmatpush.msra.mxu0 %v270
    %1689 = vmatmul.f32.gmra.mxu0 %v1244
    %v1690 = vpop.f32.mrf.mxu0
    %v1691 = vadd.f32 %v1671, %v1690
    %1692 = vdwg.mxu0
    %1693 = vmatpush.msra.mxu0 %v301
    %1694 = vmatpush.msra.mxu0 %v300
    %1695 = vmatpush.msra.mxu0 %v299
    %1696 = vmatpush.msra.mxu0 %v298
    %1697 = vmatpush.msra.mxu0 %v297
    %1698 = vmatpush.msra.mxu0 %v296
    %1699 = vmatpush.msra.mxu0 %v295
    %1700 = vmatpush.msra.mxu0 %v294
    %1701 = vmatpush.msra.mxu0 %v293
    %1702 = vmatpush.msra.mxu0 %v292
    %1703 = vmatpush.msra.mxu0 %v291
    %1704 = vmatpush.msra.mxu0 %v290
    %1705 = vmatpush.msra.mxu0 %v289
    %1706 = vmatpush.msra.mxu0 %v288
    %1707 = vmatpush.msra.mxu0 %v287
    %1708 = vmatpush.msra.mxu0 %v286
    %1709 = vmatmul.f32.gmra.mxu0 %v1245
    %v1710 = vpop.f32.mrf.mxu0
    %v1711 = vadd.f32 %v1691, %v1710
    %1712 = vdwg.mxu0
    %1713 = vmatpush.msra.mxu0 %v317
    %1714 = vmatpush.msra.mxu0 %v316
    %1715 = vmatpush.msra.mxu0 %v315
    %1716 = vmatpush.msra.mxu0 %v314
    %1717 = vmatpush.msra.mxu0 %v313
    %1718 = vmatpush.msra.mxu0 %v312
    %1719 = vmatpush.msra.mxu0 %v311
    %1720 = vmatpush.msra.mxu0 %v310
    %1721 = vmatpush.msra.mxu0 %v309
    %1722 = vmatpush.msra.mxu0 %v308
    %1723 = vmatpush.msra.mxu0 %v307
    %1724 = vmatpush.msra.mxu0 %v306
    %1725 = vmatpush.msra.mxu0 %v305
    %1726 = vmatpush.msra.mxu0 %v304
    %1727 = vmatpush.msra.mxu0 %v303
    %1728 = vmatpush.msra.mxu0 %v302
    %1729 = vmatmul.f32.gmra.mxu0 %v1248
    %v1730 = vpop.f32.mrf.mxu0
    %v1731 = vadd.f32 %v1711, %v1730
    %1732 = vdwg.mxu0
    %1733 = vmatpush.msra.mxu0 %v333
    %1734 = vmatpush.msra.mxu0 %v332
    %1735 = vmatpush.msra.mxu0 %v331
    %1736 = vmatpush.msra.mxu0 %v330
    %1737 = vmatpush.msra.mxu0 %v329
    %1738 = vmatpush.msra.mxu0 %v328
    %1739 = vmatpush.msra.mxu0 %v327
    %1740 = vmatpush.msra.mxu0 %v326
    %1741 = vmatpush.msra.mxu0 %v325
    %1742 = vmatpush.msra.mxu0 %v324
    %1743 = vmatpush.msra.mxu0 %v323
    %1744 = vmatpush.msra.mxu0 %v322
    %1745 = vmatpush.msra.mxu0 %v321
    %1746 = vmatpush.msra.mxu0 %v320
    %1747 = vmatpush.msra.mxu0 %v319
    %1748 = vmatpush.msra.mxu0 %v318
    %1749 = vmatmul.f32.gmra.mxu0 %v1249
    %v1750 = vpop.f32.mrf.mxu0
    %v1751 = vadd.f32 %v1731, %v1750
    %1752 = vdwg.mxu0
    %1753 = vmatpush.msra.mxu0 %v349
    %1754 = vmatpush.msra.mxu0 %v348
    %1755 = vmatpush.msra.mxu0 %v347
    %1756 = vmatpush.msra.mxu0 %v346
    %1757 = vmatpush.msra.mxu0 %v345
    %1758 = vmatpush.msra.mxu0 %v344
    %1759 = vmatpush.msra.mxu0 %v343
    %1760 = vmatpush.msra.mxu0 %v342
    %1761 = vmatpush.msra.mxu0 %v341
    %1762 = vmatpush.msra.mxu0 %v340
    %1763 = vmatpush.msra.mxu0 %v339
    %1764 = vmatpush.msra.mxu0 %v338
    %1765 = vmatpush.msra.mxu0 %v337
    %1766 = vmatpush.msra.mxu0 %v336
    %1767 = vmatpush.msra.mxu0 %v335
    %1768 = vmatpush.msra.mxu0 %v334
    %1769 = vmatmul.f32.gmra.mxu0 %v1250
    %v1770 = vpop.f32.mrf.mxu0
    %v1771 = vadd.f32 %v1751, %v1770
    %1772 = vdwg.mxu0
    %1773 = vmatpush.msra.mxu0 %v365
    %1774 = vmatpush.msra.mxu0 %v364
    %1775 = vmatpush.msra.mxu0 %v363
    %1776 = vmatpush.msra.mxu0 %v362
    %1777 = vmatpush.msra.mxu0 %v361
    %1778 = vmatpush.msra.mxu0 %v360
    %1779 = vmatpush.msra.mxu0 %v359
    %1780 = vmatpush.msra.mxu0 %v358
    %1781 = vmatpush.msra.mxu0 %v357
    %1782 = vmatpush.msra.mxu0 %v356
    %1783 = vmatpush.msra.mxu0 %v355
    %1784 = vmatpush.msra.mxu0 %v354
    %1785 = vmatpush.msra.mxu0 %v353
    %1786 = vmatpush.msra.mxu0 %v352
    %1787 = vmatpush.msra.mxu0 %v351
    %1788 = vmatpush.msra.mxu0 %v350
    %1789 = vmatmul.f32.gmra.mxu0 %v1251
    %v1790 = vpop.f32.mrf.mxu0
    %v1791 = vadd.f32 %v1771, %v1790
    %1792 = vdwg.mxu0
    %1793 = vmatpush.msra.mxu0 %v381
    %1794 = vmatpush.msra.mxu0 %v380
    %1795 = vmatpush.msra.mxu0 %v379
    %1796 = vmatpush.msra.mxu0 %v378
    %1797 = vmatpush.msra.mxu0 %v377
    %1798 = vmatpush.msra.mxu0 %v376
    %1799 = vmatpush.msra.mxu0 %v375
    %1800 = vmatpush.msra.mxu0 %v374
    %1801 = vmatpush.msra.mxu0 %v373
    %1802 = vmatpush.msra.mxu0 %v372
    %1803 = vmatpush.msra.mxu0 %v371
    %1804 = vmatpush.msra.mxu0 %v370
    %1805 = vmatpush.msra.mxu0 %v369
    %1806 = vmatpush.msra.mxu0 %v368
    %1807 = vmatpush.msra.mxu0 %v367
    %1808 = vmatpush.msra.mxu0 %v366
    %1809 = vmatmul.f32.gmra.mxu0 %v1252
    %v1810 = vpop.f32.mrf.mxu0
    %v1811 = vadd.f32 %v1791, %v1810
    %1812 = vdwg.mxu0
    %1813 = vmatpush.msra.mxu0 %v397
    %1814 = vmatpush.msra.mxu0 %v396
    %1815 = vmatpush.msra.mxu0 %v395
    %1816 = vmatpush.msra.mxu0 %v394
    %1817 = vmatpush.msra.mxu0 %v393
    %1818 = vmatpush.msra.mxu0 %v392
    %1819 = vmatpush.msra.mxu0 %v391
    %1820 = vmatpush.msra.mxu0 %v390
    %1821 = vmatpush.msra.mxu0 %v389
    %1822 = vmatpush.msra.mxu0 %v388
    %1823 = vmatpush.msra.mxu0 %v387
    %1824 = vmatpush.msra.mxu0 %v386
    %1825 = vmatpush.msra.mxu0 %v385
    %1826 = vmatpush.msra.mxu0 %v384
    %1827 = vmatpush.msra.mxu0 %v383
    %1828 = vmatpush.msra.mxu0 %v382
    %1829 = vmatmul.f32.gmra.mxu0 %v1253
    %v1830 = vpop.f32.mrf.mxu0
    %v1831 = vadd.f32 %v1811, %v1830
    %1832 = vdwg.mxu0
    %1833 = vmatpush.msra.mxu0 %v413
    %1834 = vmatpush.msra.mxu0 %v412
    %1835 = vmatpush.msra.mxu0 %v411
    %1836 = vmatpush.msra.mxu0 %v410
    %1837 = vmatpush.msra.mxu0 %v409
    %1838 = vmatpush.msra.mxu0 %v408
    %1839 = vmatpush.msra.mxu0 %v407
    %1840 = vmatpush.msra.mxu0 %v406
    %1841 = vmatpush.msra.mxu0 %v405
    %1842 = vmatpush.msra.mxu0 %v404
    %1843 = vmatpush.msra.mxu0 %v403
    %1844 = vmatpush.msra.mxu0 %v402
    %1845 = vmatpush.msra.mxu0 %v401
    %1846 = vmatpush.msra.mxu0 %v400
    %1847 = vmatpush.msra.mxu0 %v399
    %1848 = vmatpush.msra.mxu0 %v398
    %1849 = vmatmul.f32.gmra.mxu0 %v1254
    %v1850 = vpop.f32.mrf.mxu0
    %v1851 = vadd.f32 %v1831, %v1850
    %1852 = vdwg.mxu0
    %1853 = vmatpush.msra.mxu0 %v429
    %1854 = vmatpush.msra.mxu0 %v428
    %1855 = vmatpush.msra.mxu0 %v427
    %1856 = vmatpush.msra.mxu0 %v426
    %1857 = vmatpush.msra.mxu0 %v425
    %1858 = vmatpush.msra.mxu0 %v424
    %1859 = vmatpush.msra.mxu0 %v423
    %1860 = vmatpush.msra.mxu0 %v422
    %1861 = vmatpush.msra.mxu0 %v421
    %1862 = vmatpush.msra.mxu0 %v420
    %1863 = vmatpush.msra.mxu0 %v419
    %1864 = vmatpush.msra.mxu0 %v418
    %1865 = vmatpush.msra.mxu0 %v417
    %1866 = vmatpush.msra.mxu0 %v416
    %1867 = vmatpush.msra.mxu0 %v415
    %1868 = vmatpush.msra.mxu0 %v414
    %1869 = vmatmul.f32.gmra.mxu0 %v1255
    %v1870 = vpop.f32.mrf.mxu0
    %v1871 = vadd.f32 %v1851, %v1870
    %1872 = vdwg.mxu0
    %1873 = vmatpush.msra.mxu0 %v445
    %1874 = vmatpush.msra.mxu0 %v444
    %1875 = vmatpush.msra.mxu0 %v443
    %1876 = vmatpush.msra.mxu0 %v442
    %1877 = vmatpush.msra.mxu0 %v441
    %1878 = vmatpush.msra.mxu0 %v440
    %1879 = vmatpush.msra.mxu0 %v439
    %1880 = vmatpush.msra.mxu0 %v438
    %1881 = vmatpush.msra.mxu0 %v437
    %1882 = vmatpush.msra.mxu0 %v436
    %1883 = vmatpush.msra.mxu0 %v435
    %1884 = vmatpush.msra.mxu0 %v434
    %1885 = vmatpush.msra.mxu0 %v433
    %1886 = vmatpush.msra.mxu0 %v432
    %1887 = vmatpush.msra.mxu0 %v431
    %1888 = vmatpush.msra.mxu0 %v430
    %1889 = vmatmul.f32.gmra.mxu0 %v1258
    %v1890 = vpop.f32.mrf.mxu0
    %v1891 = vadd.f32 %v1871, %v1890
    %1892 = vdwg.mxu0
    %1893 = vmatpush.msra.mxu0 %v461
    %1894 = vmatpush.msra.mxu0 %v460
    %1895 = vmatpush.msra.mxu0 %v459
    %1896 = vmatpush.msra.mxu0 %v458
    %1897 = vmatpush.msra.mxu0 %v457
    %1898 = vmatpush.msra.mxu0 %v456
    %1899 = vmatpush.msra.mxu0 %v455
    %1900 = vmatpush.msra.mxu0 %v454
    %1901 = vmatpush.msra.mxu0 %v453
    %1902 = vmatpush.msra.mxu0 %v452
    %1903 = vmatpush.msra.mxu0 %v451
    %1904 = vmatpush.msra.mxu0 %v450
    %1905 = vmatpush.msra.mxu0 %v449
    %1906 = vmatpush.msra.mxu0 %v448
    %1907 = vmatpush.msra.mxu0 %v447
    %1908 = vmatpush.msra.mxu0 %v446
    %1909 = vmatmul.f32.gmra.mxu0 %v1259
    %v1910 = vpop.f32.mrf.mxu0
    %v1911 = vadd.f32 %v1891, %v1910
    %1912 = vdwg.mxu0
    %1913 = vmatpush.msra.mxu0 %v477
    %1914 = vmatpush.msra.mxu0 %v476
    %1915 = vmatpush.msra.mxu0 %v475
    %1916 = vmatpush.msra.mxu0 %v474
    %1917 = vmatpush.msra.mxu0 %v473
    %1918 = vmatpush.msra.mxu0 %v472
    %1919 = vmatpush.msra.mxu0 %v471
    %1920 = vmatpush.msra.mxu0 %v470
    %1921 = vmatpush.msra.mxu0 %v469
    %1922 = vmatpush.msra.mxu0 %v468
    %1923 = vmatpush.msra.mxu0 %v467
    %1924 = vmatpush.msra.mxu0 %v466
    %1925 = vmatpush.msra.mxu0 %v465
    %1926 = vmatpush.msra.mxu0 %v464
    %1927 = vmatpush.msra.mxu0 %v463
    %1928 = vmatpush.msra.mxu0 %v462
    %1929 = vmatmul.f32.gmra.mxu0 %v1260
    %v1930 = vpop.f32.mrf.mxu0
    %v1931 = vadd.f32 %v1911, %v1930
    %1932 = vdwg.mxu0
    %1933 = vmatpush.msra.mxu0 %v493
    %1934 = vmatpush.msra.mxu0 %v492
    %1935 = vmatpush.msra.mxu0 %v491
    %1936 = vmatpush.msra.mxu0 %v490
    %1937 = vmatpush.msra.mxu0 %v489
    %1938 = vmatpush.msra.mxu0 %v488
    %1939 = vmatpush.msra.mxu0 %v487
    %1940 = vmatpush.msra.mxu0 %v486
    %1941 = vmatpush.msra.mxu0 %v485
    %1942 = vmatpush.msra.mxu0 %v484
    %1943 = vmatpush.msra.mxu0 %v483
    %1944 = vmatpush.msra.mxu0 %v482
    %1945 = vmatpush.msra.mxu0 %v481
    %1946 = vmatpush.msra.mxu0 %v480
    %1947 = vmatpush.msra.mxu0 %v479
    %1948 = vmatpush.msra.mxu0 %v478
    %1949 = vmatmul.f32.gmra.mxu0 %v1261
    %v1950 = vpop.f32.mrf.mxu0
    %v1951 = vadd.f32 %v1931, %v1950
    %1952 = vdwg.mxu0
    %1953 = vmatpush.msra.mxu0 %v509
    %1954 = vmatpush.msra.mxu0 %v508
    %1955 = vmatpush.msra.mxu0 %v507
    %1956 = vmatpush.msra.mxu0 %v506
    %1957 = vmatpush.msra.mxu0 %v505
    %1958 = vmatpush.msra.mxu0 %v504
    %1959 = vmatpush.msra.mxu0 %v503
    %1960 = vmatpush.msra.mxu0 %v502
    %1961 = vmatpush.msra.mxu0 %v501
    %1962 = vmatpush.msra.mxu0 %v500
    %1963 = vmatpush.msra.mxu0 %v499
    %1964 = vmatpush.msra.mxu0 %v498
    %1965 = vmatpush.msra.mxu0 %v497
    %1966 = vmatpush.msra.mxu0 %v496
    %1967 = vmatpush.msra.mxu0 %v495
    %1968 = vmatpush.msra.mxu0 %v494
    %1969 = vmatmul.f32.gmra.mxu0 %v1262
    %v1970 = vpop.f32.mrf.mxu0
    %v1971 = vadd.f32 %v1951, %v1970
    %1972 = vdwg.mxu0
    %1973 = vmatpush.msra.mxu0 %v525
    %1974 = vmatpush.msra.mxu0 %v524
    %1975 = vmatpush.msra.mxu0 %v523
    %1976 = vmatpush.msra.mxu0 %v522
    %1977 = vmatpush.msra.mxu0 %v521
    %1978 = vmatpush.msra.mxu0 %v520
    %1979 = vmatpush.msra.mxu0 %v519
    %1980 = vmatpush.msra.mxu0 %v518
    %1981 = vmatpush.msra.mxu0 %v517
    %1982 = vmatpush.msra.mxu0 %v516
    %1983 = vmatpush.msra.mxu0 %v515
    %1984 = vmatpush.msra.mxu0 %v514
    %1985 = vmatpush.msra.mxu0 %v513
    %1986 = vmatpush.msra.mxu0 %v512
    %1987 = vmatpush.msra.mxu0 %v511
    %1988 = vmatpush.msra.mxu0 %v510
    %1989 = vmatmul.f32.gmra.mxu0 %v1263
    %v1990 = vpop.f32.mrf.mxu0
    %v1991 = vadd.f32 %v1971, %v1990
    %1992 = vdwg.mxu0
    %1993 = vmatpush.msra.mxu0 %v541
    %1994 = vmatpush.msra.mxu0 %v540
    %1995 = vmatpush.msra.mxu0 %v539
    %1996 = vmatpush.msra.mxu0 %v538
    %1997 = vmatpush.msra.mxu0 %v537
    %1998 = vmatpush.msra.mxu0 %v536
    %1999 = vmatpush.msra.mxu0 %v535
    %2000 = vmatpush.msra.mxu0 %v534
    %2001 = vmatpush.msra.mxu0 %v533
    %2002 = vmatpush.msra.mxu0 %v532
    %2003 = vmatpush.msra.mxu0 %v531
    %2004 = vmatpush.msra.mxu0 %v530
    %2005 = vmatpush.msra.mxu0 %v529
    %2006 = vmatpush.msra.mxu0 %v528
    %2007 = vmatpush.msra.mxu0 %v527
    %2008 = vmatpush.msra.mxu0 %v526
    %2009 = vmatmul.f32.gmra.mxu0 %v1264
    %v2010 = vpop.f32.mrf.mxu0
    %v2011 = vadd.f32 %v1991, %v2010
    %2012 = vdwg.mxu0
    %2013 = vmatpush.msra.mxu0 %v557
    %2014 = vmatpush.msra.mxu0 %v556
    %2015 = vmatpush.msra.mxu0 %v555
    %2016 = vmatpush.msra.mxu0 %v554
    %2017 = vmatpush.msra.mxu0 %v553
    %2018 = vmatpush.msra.mxu0 %v552
    %2019 = vmatpush.msra.mxu0 %v551
    %2020 = vmatpush.msra.mxu0 %v550
    %2021 = vmatpush.msra.mxu0 %v549
    %2022 = vmatpush.msra.mxu0 %v548
    %2023 = vmatpush.msra.mxu0 %v547
    %2024 = vmatpush.msra.mxu0 %v546
    %2025 = vmatpush.msra.mxu0 %v545
    %2026 = vmatpush.msra.mxu0 %v544
    %2027 = vmatpush.msra.mxu0 %v543
    %2028 = vmatpush.msra.mxu0 %v542
    %2029 = vmatmul.f32.gmra.mxu0 %v1265
    %v2030 = vpop.f32.mrf.mxu0
    %v2031 = vadd.f32 %v2011, %v2030
    %2032 = vdwg.mxu0
    %2033 = vmatpush.msra.mxu0 %v573
    %2034 = vmatpush.msra.mxu0 %v572
    %2035 = vmatpush.msra.mxu0 %v571
    %2036 = vmatpush.msra.mxu0 %v570
    %2037 = vmatpush.msra.mxu0 %v569
    %2038 = vmatpush.msra.mxu0 %v568
    %2039 = vmatpush.msra.mxu0 %v567
    %2040 = vmatpush.msra.mxu0 %v566
    %2041 = vmatpush.msra.mxu0 %v565
    %2042 = vmatpush.msra.mxu0 %v564
    %2043 = vmatpush.msra.mxu0 %v563
    %2044 = vmatpush.msra.mxu0 %v562
    %2045 = vmatpush.msra.mxu0 %v561
    %2046 = vmatpush.msra.mxu0 %v560
    %2047 = vmatpush.msra.mxu0 %v559
    %2048 = vmatpush.msra.mxu0 %v558
    %2049 = vmatmul.f32.gmra.mxu0 %v1268
    %v2050 = vpop.f32.mrf.mxu0
    %v2051 = vadd.f32 %v2031, %v2050
    %2052 = vdwg.mxu0
    %2053 = vmatpush.msra.mxu0 %v589
    %2054 = vmatpush.msra.mxu0 %v588
    %2055 = vmatpush.msra.mxu0 %v587
    %2056 = vmatpush.msra.mxu0 %v586
    %2057 = vmatpush.msra.mxu0 %v585
    %2058 = vmatpush.msra.mxu0 %v584
    %2059 = vmatpush.msra.mxu0 %v583
    %2060 = vmatpush.msra.mxu0 %v582
    %2061 = vmatpush.msra.mxu0 %v581
    %2062 = vmatpush.msra.mxu0 %v580
    %2063 = vmatpush.msra.mxu0 %v579
    %2064 = vmatpush.msra.mxu0 %v578
    %2065 = vmatpush.msra.mxu0 %v577
    %2066 = vmatpush.msra.mxu0 %v576
    %2067 = vmatpush.msra.mxu0 %v575
    %2068 = vmatpush.msra.mxu0 %v574
    %2069 = vmatmul.f32.gmra.mxu0 %v1269
    %v2070 = vpop.f32.mrf.mxu0
    %v2071 = vadd.f32 %v2051, %v2070
    %2072 = vdwg.mxu0
    %2073 = vmatpush.msra.mxu0 %v605
    %2074 = vmatpush.msra.mxu0 %v604
    %2075 = vmatpush.msra.mxu0 %v603
    %2076 = vmatpush.msra.mxu0 %v602
    %2077 = vmatpush.msra.mxu0 %v601
    %2078 = vmatpush.msra.mxu0 %v600
    %2079 = vmatpush.msra.mxu0 %v599
    %2080 = vmatpush.msra.mxu0 %v598
    %2081 = vmatpush.msra.mxu0 %v597
    %2082 = vmatpush.msra.mxu0 %v596
    %2083 = vmatpush.msra.mxu0 %v595
    %2084 = vmatpush.msra.mxu0 %v594
    %2085 = vmatpush.msra.mxu0 %v593
    %2086 = vmatpush.msra.mxu0 %v592
    %2087 = vmatpush.msra.mxu0 %v591
    %2088 = vmatpush.msra.mxu0 %v590
    %2089 = vmatmul.f32.gmra.mxu0 %v1270
    %v2090 = vpop.f32.mrf.mxu0
    %v2091 = vadd.f32 %v2071, %v2090
    %2092 = vdwg.mxu0
    %2093 = vmatpush.msra.mxu0 %v621
    %2094 = vmatpush.msra.mxu0 %v620
    %2095 = vmatpush.msra.mxu0 %v619
    %2096 = vmatpush.msra.mxu0 %v618
    %2097 = vmatpush.msra.mxu0 %v617
    %2098 = vmatpush.msra.mxu0 %v616
    %2099 = vmatpush.msra.mxu0 %v615
    %2100 = vmatpush.msra.mxu0 %v614
    %2101 = vmatpush.msra.mxu0 %v613
    %2102 = vmatpush.msra.mxu0 %v612
    %2103 = vmatpush.msra.mxu0 %v611
    %2104 = vmatpush.msra.mxu0 %v610
    %2105 = vmatpush.msra.mxu0 %v609
    %2106 = vmatpush.msra.mxu0 %v608
    %2107 = vmatpush.msra.mxu0 %v607
    %2108 = vmatpush.msra.mxu0 %v606
    %2109 = vmatmul.f32.gmra.mxu0 %v1271
    %v2110 = vpop.f32.mrf.mxu0
    %v2111 = vadd.f32 %v2091, %v2110
    %2112 = vdwg.mxu0
    %2113 = vmatpush.msra.mxu0 %v637
    %2114 = vmatpush.msra.mxu0 %v636
    %2115 = vmatpush.msra.mxu0 %v635
    %2116 = vmatpush.msra.mxu0 %v634
    %2117 = vmatpush.msra.mxu0 %v633
    %2118 = vmatpush.msra.mxu0 %v632
    %2119 = vmatpush.msra.mxu0 %v631
    %2120 = vmatpush.msra.mxu0 %v630
    %2121 = vmatpush.msra.mxu0 %v629
    %2122 = vmatpush.msra.mxu0 %v628
    %2123 = vmatpush.msra.mxu0 %v627
    %2124 = vmatpush.msra.mxu0 %v626
    %2125 = vmatpush.msra.mxu0 %v625
    %2126 = vmatpush.msra.mxu0 %v624
    %2127 = vmatpush.msra.mxu0 %v623
    %2128 = vmatpush.msra.mxu0 %v622
    %2129 = vmatmul.f32.gmra.mxu0 %v1272
    %v2130 = vpop.f32.mrf.mxu0
    %v2131 = vadd.f32 %v2111, %v2130
    %2132 = vdwg.mxu0
    %2133 = vmatpush.msra.mxu0 %v653
    %2134 = vmatpush.msra.mxu0 %v652
    %2135 = vmatpush.msra.mxu0 %v651
    %2136 = vmatpush.msra.mxu0 %v650
    %2137 = vmatpush.msra.mxu0 %v649
    %2138 = vmatpush.msra.mxu0 %v648
    %2139 = vmatpush.msra.mxu0 %v647
    %2140 = vmatpush.msra.mxu0 %v646
    %2141 = vmatpush.msra.mxu0 %v645
    %2142 = vmatpush.msra.mxu0 %v644
    %2143 = vmatpush.msra.mxu0 %v643
    %2144 = vmatpush.msra.mxu0 %v642
    %2145 = vmatpush.msra.mxu0 %v641
    %2146 = vmatpush.msra.mxu0 %v640
    %2147 = vmatpush.msra.mxu0 %v639
    %2148 = vmatpush.msra.mxu0 %v638
    %2149 = vmatmul.f32.gmra.mxu0 %v1273
    %v2150 = vpop.f32.mrf.mxu0
    %v2151 = vadd.f32 %v2131, %v2150
    %2152 = vdwg.mxu0
    %2153 = vmatpush.msra.mxu0 %v669
    %2154 = vmatpush.msra.mxu0 %v668
    %2155 = vmatpush.msra.mxu0 %v667
    %2156 = vmatpush.msra.mxu0 %v666
    %2157 = vmatpush.msra.mxu0 %v665
    %2158 = vmatpush.msra.mxu0 %v664
    %2159 = vmatpush.msra.mxu0 %v663
    %2160 = vmatpush.msra.mxu0 %v662
    %2161 = vmatpush.msra.mxu0 %v661
    %2162 = vmatpush.msra.mxu0 %v660
    %2163 = vmatpush.msra.mxu0 %v659
    %2164 = vmatpush.msra.mxu0 %v658
    %2165 = vmatpush.msra.mxu0 %v657
    %2166 = vmatpush.msra.mxu0 %v656
    %2167 = vmatpush.msra.mxu0 %v655
    %2168 = vmatpush.msra.mxu0 %v654
    %2169 = vmatmul.f32.gmra.mxu0 %v1274
    %v2170 = vpop.f32.mrf.mxu0
    %v2171 = vadd.f32 %v2151, %v2170
    %2172 = vdwg.mxu0
    %2173 = vmatpush.msra.mxu0 %v685
    %2174 = vmatpush.msra.mxu0 %v684
    %2175 = vmatpush.msra.mxu0 %v683
    %2176 = vmatpush.msra.mxu0 %v682
    %2177 = vmatpush.msra.mxu0 %v681
    %2178 = vmatpush.msra.mxu0 %v680
    %2179 = vmatpush.msra.mxu0 %v679
    %2180 = vmatpush.msra.mxu0 %v678
    %2181 = vmatpush.msra.mxu0 %v677
    %2182 = vmatpush.msra.mxu0 %v676
    %2183 = vmatpush.msra.mxu0 %v675
    %2184 = vmatpush.msra.mxu0 %v674
    %2185 = vmatpush.msra.mxu0 %v673
    %2186 = vmatpush.msra.mxu0 %v672
    %2187 = vmatpush.msra.mxu0 %v671
    %2188 = vmatpush.msra.mxu0 %v670
    %2189 = vmatmul.f32.gmra.mxu0 %v1275
    %v2190 = vpop.f32.mrf.mxu0
    %v2191 = vadd.f32 %v2171, %v2190
    %2192 = vdwg.mxu0
    %2193 = vmatpush.msra.mxu0 %v701
    %2194 = vmatpush.msra.mxu0 %v700
    %2195 = vmatpush.msra.mxu0 %v699
    %2196 = vmatpush.msra.mxu0 %v698
    %2197 = vmatpush.msra.mxu0 %v697
    %2198 = vmatpush.msra.mxu0 %v696
    %2199 = vmatpush.msra.mxu0 %v695
    %2200 = vmatpush.msra.mxu0 %v694
    %2201 = vmatpush.msra.mxu0 %v693
    %2202 = vmatpush.msra.mxu0 %v692
    %2203 = vmatpush.msra.mxu0 %v691
    %2204 = vmatpush.msra.mxu0 %v690
    %2205 = vmatpush.msra.mxu0 %v689
    %2206 = vmatpush.msra.mxu0 %v688
    %2207 = vmatpush.msra.mxu0 %v687
    %2208 = vmatpush.msra.mxu0 %v686
    %2209 = vmatmul.f32.gmra.mxu0 %v1278
    %v2210 = vpop.f32.mrf.mxu0
    %v2211 = vadd.f32 %v2191, %v2210
    %2212 = vdwg.mxu0
    %2213 = vmatpush.msra.mxu0 %v717
    %2214 = vmatpush.msra.mxu0 %v716
    %2215 = vmatpush.msra.mxu0 %v715
    %2216 = vmatpush.msra.mxu0 %v714
    %2217 = vmatpush.msra.mxu0 %v713
    %2218 = vmatpush.msra.mxu0 %v712
    %2219 = vmatpush.msra.mxu0 %v711
    %2220 = vmatpush.msra.mxu0 %v710
    %2221 = vmatpush.msra.mxu0 %v709
    %2222 = vmatpush.msra.mxu0 %v708
    %2223 = vmatpush.msra.mxu0 %v707
    %2224 = vmatpush.msra.mxu0 %v706
    %2225 = vmatpush.msra.mxu0 %v705
    %2226 = vmatpush.msra.mxu0 %v704
    %2227 = vmatpush.msra.mxu0 %v703
    %2228 = vmatpush.msra.mxu0 %v702
    %2229 = vmatmul.f32.gmra.mxu0 %v1279
    %v2230 = vpop.f32.mrf.mxu0
    %v2231 = vadd.f32 %v2211, %v2230
    %2232 = vdwg.mxu0
    %2233 = vmatpush.msra.mxu0 %v733
    %2234 = vmatpush.msra.mxu0 %v732
    %2235 = vmatpush.msra.mxu0 %v731
    %2236 = vmatpush.msra.mxu0 %v730
    %2237 = vmatpush.msra.mxu0 %v729
    %2238 = vmatpush.msra.mxu0 %v728
    %2239 = vmatpush.msra.mxu0 %v727
    %2240 = vmatpush.msra.mxu0 %v726
    %2241 = vmatpush.msra.mxu0 %v725
    %2242 = vmatpush.msra.mxu0 %v724
    %2243 = vmatpush.msra.mxu0 %v723
    %2244 = vmatpush.msra.mxu0 %v722
    %2245 = vmatpush.msra.mxu0 %v721
    %2246 = vmatpush.msra.mxu0 %v720
    %2247 = vmatpush.msra.mxu0 %v719
    %2248 = vmatpush.msra.mxu0 %v718
    %2249 = vmatmul.f32.gmra.mxu0 %v1280
    %v2250 = vpop.f32.mrf.mxu0
    %v2251 = vadd.f32 %v2231, %v2250
    %2252 = vdwg.mxu0
    %2253 = vmatpush.msra.mxu0 %v749
    %2254 = vmatpush.msra.mxu0 %v748
    %2255 = vmatpush.msra.mxu0 %v747
    %2256 = vmatpush.msra.mxu0 %v746
    %2257 = vmatpush.msra.mxu0 %v745
    %2258 = vmatpush.msra.mxu0 %v744
    %2259 = vmatpush.msra.mxu0 %v743
    %2260 = vmatpush.msra.mxu0 %v742
    %2261 = vmatpush.msra.mxu0 %v741
    %2262 = vmatpush.msra.mxu0 %v740
    %2263 = vmatpush.msra.mxu0 %v739
    %2264 = vmatpush.msra.mxu0 %v738
    %2265 = vmatpush.msra.mxu0 %v737
    %2266 = vmatpush.msra.mxu0 %v736
    %2267 = vmatpush.msra.mxu0 %v735
    %2268 = vmatpush.msra.mxu0 %v734
    %2269 = vmatmul.f32.gmra.mxu0 %v1281
    %v2270 = vpop.f32.mrf.mxu0
    %v2271 = vadd.f32 %v2251, %v2270
    %2272 = vdwg.mxu0
    %2273 = vmatpush.msra.mxu0 %v765
    %2274 = vmatpush.msra.mxu0 %v764
    %2275 = vmatpush.msra.mxu0 %v763
    %2276 = vmatpush.msra.mxu0 %v762
    %2277 = vmatpush.msra.mxu0 %v761
    %2278 = vmatpush.msra.mxu0 %v760
    %2279 = vmatpush.msra.mxu0 %v759
    %2280 = vmatpush.msra.mxu0 %v758
    %2281 = vmatpush.msra.mxu0 %v757
    %2282 = vmatpush.msra.mxu0 %v756
    %2283 = vmatpush.msra.mxu0 %v755
    %2284 = vmatpush.msra.mxu0 %v754
    %2285 = vmatpush.msra.mxu0 %v753
    %2286 = vmatpush.msra.mxu0 %v752
    %2287 = vmatpush.msra.mxu0 %v751
    %2288 = vmatpush.msra.mxu0 %v750
    %2289 = vmatmul.f32.gmra.mxu0 %v1282
    %v2290 = vpop.f32.mrf.mxu0
    %v2291 = vadd.f32 %v2271, %v2290
    %2292 = vdwg.mxu0
    %2293 = vmatpush.msra.mxu0 %v781
    %2294 = vmatpush.msra.mxu0 %v780
    %2295 = vmatpush.msra.mxu0 %v779
    %2296 = vmatpush.msra.mxu0 %v778
    %2297 = vmatpush.msra.mxu0 %v777
    %2298 = vmatpush.msra.mxu0 %v776
    %2299 = vmatpush.msra.mxu0 %v775
    %2300 = vmatpush.msra.mxu0 %v774
    %2301 = vmatpush.msra.mxu0 %v773
    %2302 = vmatpush.msra.mxu0 %v772
    %2303 = vmatpush.msra.mxu0 %v771
    %2304 = vmatpush.msra.mxu0 %v770
    %2305 = vmatpush.msra.mxu0 %v769
    %2306 = vmatpush.msra.mxu0 %v768
    %2307 = vmatpush.msra.mxu0 %v767
    %2308 = vmatpush.msra.mxu0 %v766
    %2309 = vmatmul.f32.gmra.mxu0 %v1283
    %v2310 = vpop.f32.mrf.mxu0
    %v2311 = vadd.f32 %v2291, %v2310
    %2312 = vdwg.mxu0
    %2313 = vmatpush.msra.mxu0 %v797
    %2314 = vmatpush.msra.mxu0 %v796
    %2315 = vmatpush.msra.mxu0 %v795
    %2316 = vmatpush.msra.mxu0 %v794
    %2317 = vmatpush.msra.mxu0 %v793
    %2318 = vmatpush.msra.mxu0 %v792
    %2319 = vmatpush.msra.mxu0 %v791
    %2320 = vmatpush.msra.mxu0 %v790
    %2321 = vmatpush.msra.mxu0 %v789
    %2322 = vmatpush.msra.mxu0 %v788
    %2323 = vmatpush.msra.mxu0 %v787
    %2324 = vmatpush.msra.mxu0 %v786
    %2325 = vmatpush.msra.mxu0 %v785
    %2326 = vmatpush.msra.mxu0 %v784
    %2327 = vmatpush.msra.mxu0 %v783
    %2328 = vmatpush.msra.mxu0 %v782
    %2329 = vmatmul.f32.gmra.mxu0 %v1284
    %v2330 = vpop.f32.mrf.mxu0
    %v2331 = vadd.f32 %v2311, %v2330
    %2332 = vdwg.mxu0
    %2333 = vmatpush.msra.mxu0 %v813
    %2334 = vmatpush.msra.mxu0 %v812
    %2335 = vmatpush.msra.mxu0 %v811
    %2336 = vmatpush.msra.mxu0 %v810
    %2337 = vmatpush.msra.mxu0 %v809
    %2338 = vmatpush.msra.mxu0 %v808
    %2339 = vmatpush.msra.mxu0 %v807
    %2340 = vmatpush.msra.mxu0 %v806
    %2341 = vmatpush.msra.mxu0 %v805
    %2342 = vmatpush.msra.mxu0 %v804
    %2343 = vmatpush.msra.mxu0 %v803
    %2344 = vmatpush.msra.mxu0 %v802
    %2345 = vmatpush.msra.mxu0 %v801
    %2346 = vmatpush.msra.mxu0 %v800
    %2347 = vmatpush.msra.mxu0 %v799
    %2348 = vmatpush.msra.mxu0 %v798
    %2349 = vmatmul.f32.gmra.mxu0 %v1285
    %v2350 = vpop.f32.mrf.mxu0
    %v2351 = vadd.f32 %v2331, %v2350
    %2352 = vdwg.mxu0
    %2353 = vmatpush.msra.mxu0 %v829
    %2354 = vmatpush.msra.mxu0 %v828
    %2355 = vmatpush.msra.mxu0 %v827
    %2356 = vmatpush.msra.mxu0 %v826
    %2357 = vmatpush.msra.mxu0 %v825
    %2358 = vmatpush.msra.mxu0 %v824
    %2359 = vmatpush.msra.mxu0 %v823
    %2360 = vmatpush.msra.mxu0 %v822
    %2361 = vmatpush.msra.mxu0 %v821
    %2362 = vmatpush.msra.mxu0 %v820
    %2363 = vmatpush.msra.mxu0 %v819
    %2364 = vmatpush.msra.mxu0 %v818
    %2365 = vmatpush.msra.mxu0 %v817
    %2366 = vmatpush.msra.mxu0 %v816
    %2367 = vmatpush.msra.mxu0 %v815
    %2368 = vmatpush.msra.mxu0 %v814
    %2369 = vmatmul.f32.gmra.mxu0 %v1288
    %v2370 = vpop.f32.mrf.mxu0
    %v2371 = vadd.f32 %v2351, %v2370
    %2372 = vdwg.mxu0
    %2373 = vmatpush.msra.mxu0 %v845
    %2374 = vmatpush.msra.mxu0 %v844
    %2375 = vmatpush.msra.mxu0 %v843
    %2376 = vmatpush.msra.mxu0 %v842
    %2377 = vmatpush.msra.mxu0 %v841
    %2378 = vmatpush.msra.mxu0 %v840
    %2379 = vmatpush.msra.mxu0 %v839
    %2380 = vmatpush.msra.mxu0 %v838
    %2381 = vmatpush.msra.mxu0 %v837
    %2382 = vmatpush.msra.mxu0 %v836
    %2383 = vmatpush.msra.mxu0 %v835
    %2384 = vmatpush.msra.mxu0 %v834
    %2385 = vmatpush.msra.mxu0 %v833
    %2386 = vmatpush.msra.mxu0 %v832
    %2387 = vmatpush.msra.mxu0 %v831
    %2388 = vmatpush.msra.mxu0 %v830
    %2389 = vmatmul.f32.gmra.mxu0 %v1289
    %v2390 = vpop.f32.mrf.mxu0
    %v2391 = vadd.f32 %v2371, %v2390
    %2392 = vdwg.mxu0
    %2393 = vmatpush.msra.mxu0 %v861
    %2394 = vmatpush.msra.mxu0 %v860
    %2395 = vmatpush.msra.mxu0 %v859
    %2396 = vmatpush.msra.mxu0 %v858
    %2397 = vmatpush.msra.mxu0 %v857
    %2398 = vmatpush.msra.mxu0 %v856
    %2399 = vmatpush.msra.mxu0 %v855
    %2400 = vmatpush.msra.mxu0 %v854
    %2401 = vmatpush.msra.mxu0 %v853
    %2402 = vmatpush.msra.mxu0 %v852
    %2403 = vmatpush.msra.mxu0 %v851
    %2404 = vmatpush.msra.mxu0 %v850
    %2405 = vmatpush.msra.mxu0 %v849
    %2406 = vmatpush.msra.mxu0 %v848
    %2407 = vmatpush.msra.mxu0 %v847
    %2408 = vmatpush.msra.mxu0 %v846
    %2409 = vmatmul.f32.gmra.mxu0 %v1290
    %v2410 = vpop.f32.mrf.mxu0
    %v2411 = vadd.f32 %v2391, %v2410
    %2412 = vdwg.mxu0
    %2413 = vmatpush.msra.mxu0 %v877
    %2414 = vmatpush.msra.mxu0 %v876
    %2415 = vmatpush.msra.mxu0 %v875
    %2416 = vmatpush.msra.mxu0 %v874
    %2417 = vmatpush.msra.mxu0 %v873
    %2418 = vmatpush.msra.mxu0 %v872
    %2419 = vmatpush.msra.mxu0 %v871
    %2420 = vmatpush.msra.mxu0 %v870
    %2421 = vmatpush.msra.mxu0 %v869
    %2422 = vmatpush.msra.mxu0 %v868
    %2423 = vmatpush.msra.mxu0 %v867
    %2424 = vmatpush.msra.mxu0 %v866
    %2425 = vmatpush.msra.mxu0 %v865
    %2426 = vmatpush.msra.mxu0 %v864
    %2427 = vmatpush.msra.mxu0 %v863
    %2428 = vmatpush.msra.mxu0 %v862
    %2429 = vmatmul.f32.gmra.mxu0 %v1291
    %v2430 = vpop.f32.mrf.mxu0
    %v2431 = vadd.f32 %v2411, %v2430
    %2432 = vdwg.mxu0
    %2433 = vmatpush.msra.mxu0 %v893
    %2434 = vmatpush.msra.mxu0 %v892
    %2435 = vmatpush.msra.mxu0 %v891
    %2436 = vmatpush.msra.mxu0 %v890
    %2437 = vmatpush.msra.mxu0 %v889
    %2438 = vmatpush.msra.mxu0 %v888
    %2439 = vmatpush.msra.mxu0 %v887
    %2440 = vmatpush.msra.mxu0 %v886
    %2441 = vmatpush.msra.mxu0 %v885
    %2442 = vmatpush.msra.mxu0 %v884
    %2443 = vmatpush.msra.mxu0 %v883
    %2444 = vmatpush.msra.mxu0 %v882
    %2445 = vmatpush.msra.mxu0 %v881
    %2446 = vmatpush.msra.mxu0 %v880
    %2447 = vmatpush.msra.mxu0 %v879
    %2448 = vmatpush.msra.mxu0 %v878
    %2449 = vmatmul.f32.gmra.mxu0 %v1292
    %v2450 = vpop.f32.mrf.mxu0
    %v2451 = vadd.f32 %v2431, %v2450
    %2452 = vdwg.mxu0
    %2453 = vmatpush.msra.mxu0 %v909
    %2454 = vmatpush.msra.mxu0 %v908
    %2455 = vmatpush.msra.mxu0 %v907
    %2456 = vmatpush.msra.mxu0 %v906
    %2457 = vmatpush.msra.mxu0 %v905
    %2458 = vmatpush.msra.mxu0 %v904
    %2459 = vmatpush.msra.mxu0 %v903
    %2460 = vmatpush.msra.mxu0 %v902
    %2461 = vmatpush.msra.mxu0 %v901
    %2462 = vmatpush.msra.mxu0 %v900
    %2463 = vmatpush.msra.mxu0 %v899
    %2464 = vmatpush.msra.mxu0 %v898
    %2465 = vmatpush.msra.mxu0 %v897
    %2466 = vmatpush.msra.mxu0 %v896
    %2467 = vmatpush.msra.mxu0 %v895
    %2468 = vmatpush.msra.mxu0 %v894
    %2469 = vmatmul.f32.gmra.mxu0 %v1293
    %v2470 = vpop.f32.mrf.mxu0
    %v2471 = vadd.f32 %v2451, %v2470
    %2472 = vdwg.mxu0
    %2473 = vmatpush.msra.mxu0 %v925
    %2474 = vmatpush.msra.mxu0 %v924
    %2475 = vmatpush.msra.mxu0 %v923
    %2476 = vmatpush.msra.mxu0 %v922
    %2477 = vmatpush.msra.mxu0 %v921
    %2478 = vmatpush.msra.mxu0 %v920
    %2479 = vmatpush.msra.mxu0 %v919
    %2480 = vmatpush.msra.mxu0 %v918
    %2481 = vmatpush.msra.mxu0 %v917
    %2482 = vmatpush.msra.mxu0 %v916
    %2483 = vmatpush.msra.mxu0 %v915
    %2484 = vmatpush.msra.mxu0 %v914
    %2485 = vmatpush.msra.mxu0 %v913
    %2486 = vmatpush.msra.mxu0 %v912
    %2487 = vmatpush.msra.mxu0 %v911
    %2488 = vmatpush.msra.mxu0 %v910
    %2489 = vmatmul.f32.gmra.mxu0 %v1294
    %v2490 = vpop.f32.mrf.mxu0
    %v2491 = vadd.f32 %v2471, %v2490
    %2492 = vdwg.mxu0
    %2493 = vmatpush.msra.mxu0 %v941
    %2494 = vmatpush.msra.mxu0 %v940
    %2495 = vmatpush.msra.mxu0 %v939
    %2496 = vmatpush.msra.mxu0 %v938
    %2497 = vmatpush.msra.mxu0 %v937
    %2498 = vmatpush.msra.mxu0 %v936
    %2499 = vmatpush.msra.mxu0 %v935
    %2500 = vmatpush.msra.mxu0 %v934
    %2501 = vmatpush.msra.mxu0 %v933
    %2502 = vmatpush.msra.mxu0 %v932
    %2503 = vmatpush.msra.mxu0 %v931
    %2504 = vmatpush.msra.mxu0 %v930
    %2505 = vmatpush.msra.mxu0 %v929
    %2506 = vmatpush.msra.mxu0 %v928
    %2507 = vmatpush.msra.mxu0 %v927
    %2508 = vmatpush.msra.mxu0 %v926
    %2509 = vmatmul.f32.gmra.mxu0 %v1295
    %v2510 = vpop.f32.mrf.mxu0
    %v2511 = vadd.f32 %v2491, %v2510
    %2512 = vdwg.mxu0
    %2513 = vmatpush.msra.mxu0 %v957
    %2514 = vmatpush.msra.mxu0 %v956
    %2515 = vmatpush.msra.mxu0 %v955
    %2516 = vmatpush.msra.mxu0 %v954
    %2517 = vmatpush.msra.mxu0 %v953
    %2518 = vmatpush.msra.mxu0 %v952
    %2519 = vmatpush.msra.mxu0 %v951
    %2520 = vmatpush.msra.mxu0 %v950
    %2521 = vmatpush.msra.mxu0 %v949
    %2522 = vmatpush.msra.mxu0 %v948
    %2523 = vmatpush.msra.mxu0 %v947
    %2524 = vmatpush.msra.mxu0 %v946
    %2525 = vmatpush.msra.mxu0 %v945
    %2526 = vmatpush.msra.mxu0 %v944
    %2527 = vmatpush.msra.mxu0 %v943
    %2528 = vmatpush.msra.mxu0 %v942
    %2529 = vmatmul.f32.gmra.mxu0 %v1298
    %v2530 = vpop.f32.mrf.mxu0
    %v2531 = vadd.f32 %v2511, %v2530
    %2532 = vdwg.mxu0
    %2533 = vmatpush.msra.mxu0 %v973
    %2534 = vmatpush.msra.mxu0 %v972
    %2535 = vmatpush.msra.mxu0 %v971
    %2536 = vmatpush.msra.mxu0 %v970
    %2537 = vmatpush.msra.mxu0 %v969
    %2538 = vmatpush.msra.mxu0 %v968
    %2539 = vmatpush.msra.mxu0 %v967
    %2540 = vmatpush.msra.mxu0 %v966
    %2541 = vmatpush.msra.mxu0 %v965
    %2542 = vmatpush.msra.mxu0 %v964
    %2543 = vmatpush.msra.mxu0 %v963
    %2544 = vmatpush.msra.mxu0 %v962
    %2545 = vmatpush.msra.mxu0 %v961
    %2546 = vmatpush.msra.mxu0 %v960
    %2547 = vmatpush.msra.mxu0 %v959
    %2548 = vmatpush.msra.mxu0 %v958
    %2549 = vmatmul.f32.gmra.mxu0 %v1299
    %v2550 = vpop.f32.mrf.mxu0
    %v2551 = vadd.f32 %v2531, %v2550
    %2552 = vdwg.mxu0
    %2553 = vmatpush.msra.mxu0 %v989
    %2554 = vmatpush.msra.mxu0 %v988
    %2555 = vmatpush.msra.mxu0 %v987
    %2556 = vmatpush.msra.mxu0 %v986
    %2557 = vmatpush.msra.mxu0 %v985
    %2558 = vmatpush.msra.mxu0 %v984
    %2559 = vmatpush.msra.mxu0 %v983
    %2560 = vmatpush.msra.mxu0 %v982
    %2561 = vmatpush.msra.mxu0 %v981
    %2562 = vmatpush.msra.mxu0 %v980
    %2563 = vmatpush.msra.mxu0 %v979
    %2564 = vmatpush.msra.mxu0 %v978
    %2565 = vmatpush.msra.mxu0 %v977
    %2566 = vmatpush.msra.mxu0 %v976
    %2567 = vmatpush.msra.mxu0 %v975
    %2568 = vmatpush.msra.mxu0 %v974
    %2569 = vmatmul.f32.gmra.mxu0 %v1300
    %v2570 = vpop.f32.mrf.mxu0
    %v2571 = vadd.f32 %v2551, %v2570
    %2572 = vdwg.mxu0
    %2573 = vmatpush.msra.mxu0 %v1005
    %2574 = vmatpush.msra.mxu0 %v1004
    %2575 = vmatpush.msra.mxu0 %v1003
    %2576 = vmatpush.msra.mxu0 %v1002
    %2577 = vmatpush.msra.mxu0 %v1001
    %2578 = vmatpush.msra.mxu0 %v1000
    %2579 = vmatpush.msra.mxu0 %v999
    %2580 = vmatpush.msra.mxu0 %v998
    %2581 = vmatpush.msra.mxu0 %v997
    %2582 = vmatpush.msra.mxu0 %v996
    %2583 = vmatpush.msra.mxu0 %v995
    %2584 = vmatpush.msra.mxu0 %v994
    %2585 = vmatpush.msra.mxu0 %v993
    %2586 = vmatpush.msra.mxu0 %v992
    %2587 = vmatpush.msra.mxu0 %v991
    %2588 = vmatpush.msra.mxu0 %v990
    %2589 = vmatmul.f32.gmra.mxu0 %v1301
    %v2590 = vpop.f32.mrf.mxu0
    %v2591 = vadd.f32 %v2571, %v2590
    %2592 = vdwg.mxu0
    %2593 = vmatpush.msra.mxu0 %v1021
    %2594 = vmatpush.msra.mxu0 %v1020
    %2595 = vmatpush.msra.mxu0 %v1019
    %2596 = vmatpush.msra.mxu0 %v1018
    %2597 = vmatpush.msra.mxu0 %v1017
    %2598 = vmatpush.msra.mxu0 %v1016
    %2599 = vmatpush.msra.mxu0 %v1015
    %2600 = vmatpush.msra.mxu0 %v1014
    %2601 = vmatpush.msra.mxu0 %v1013
    %2602 = vmatpush.msra.mxu0 %v1012
    %2603 = vmatpush.msra.mxu0 %v1011
    %2604 = vmatpush.msra.mxu0 %v1010
    %2605 = vmatpush.msra.mxu0 %v1009
    %2606 = vmatpush.msra.mxu0 %v1008
    %2607 = vmatpush.msra.mxu0 %v1007
    %2608 = vmatpush.msra.mxu0 %v1006
    %2609 = vmatmul.f32.gmra.mxu0 %v1302
    %v2610 = vpop.f32.mrf.mxu0
    %v2611 = vadd.f32 %v2591, %v2610
    %2612 = vdwg.mxu0
    %2613 = vmatpush.msra.mxu0 %v1037
    %2614 = vmatpush.msra.mxu0 %v1036
    %2615 = vmatpush.msra.mxu0 %v1035
    %2616 = vmatpush.msra.mxu0 %v1034
    %2617 = vmatpush.msra.mxu0 %v1033
    %2618 = vmatpush.msra.mxu0 %v1032
    %2619 = vmatpush.msra.mxu0 %v1031
    %2620 = vmatpush.msra.mxu0 %v1030
    %2621 = vmatpush.msra.mxu0 %v1029
    %2622 = vmatpush.msra.mxu0 %v1028
    %2623 = vmatpush.msra.mxu0 %v1027
    %2624 = vmatpush.msra.mxu0 %v1026
    %2625 = vmatpush.msra.mxu0 %v1025
    %2626 = vmatpush.msra.mxu0 %v1024
    %2627 = vmatpush.msra.mxu0 %v1023
    %2628 = vmatpush.msra.mxu0 %v1022
    %2629 = vmatmul.f32.gmra.mxu0 %v1303
    %v2630 = vpop.f32.mrf.mxu0
    %v2631 = vadd.f32 %v2611, %v2630
    %2632 = vdwg.mxu0
    %2633 = vmatpush.msra.mxu0 %v1053
    %2634 = vmatpush.msra.mxu0 %v1052
    %2635 = vmatpush.msra.mxu0 %v1051
    %2636 = vmatpush.msra.mxu0 %v1050
    %2637 = vmatpush.msra.mxu0 %v1049
    %2638 = vmatpush.msra.mxu0 %v1048
    %2639 = vmatpush.msra.mxu0 %v1047
    %2640 = vmatpush.msra.mxu0 %v1046
    %2641 = vmatpush.msra.mxu0 %v1045
    %2642 = vmatpush.msra.mxu0 %v1044
    %2643 = vmatpush.msra.mxu0 %v1043
    %2644 = vmatpush.msra.mxu0 %v1042
    %2645 = vmatpush.msra.mxu0 %v1041
    %2646 = vmatpush.msra.mxu0 %v1040
    %2647 = vmatpush.msra.mxu0 %v1039
    %2648 = vmatpush.msra.mxu0 %v1038
    %2649 = vmatmul.f32.gmra.mxu0 %v1304
    %v2650 = vpop.f32.mrf.mxu0
    %v2651 = vadd.f32 %v2631, %v2650
    %2652 = vdwg.mxu0
    %2653 = vmatpush.msra.mxu0 %v1069
    %2654 = vmatpush.msra.mxu0 %v1068
    %2655 = vmatpush.msra.mxu0 %v1067
    %2656 = vmatpush.msra.mxu0 %v1066
    %2657 = vmatpush.msra.mxu0 %v1065
    %2658 = vmatpush.msra.mxu0 %v1064
    %2659 = vmatpush.msra.mxu0 %v1063
    %2660 = vmatpush.msra.mxu0 %v1062
    %2661 = vmatpush.msra.mxu0 %v1061
    %2662 = vmatpush.msra.mxu0 %v1060
    %2663 = vmatpush.msra.mxu0 %v1059
    %2664 = vmatpush.msra.mxu0 %v1058
    %2665 = vmatpush.msra.mxu0 %v1057
    %2666 = vmatpush.msra.mxu0 %v1056
    %2667 = vmatpush.msra.mxu0 %v1055
    %2668 = vmatpush.msra.mxu0 %v1054
    %2669 = vmatmul.f32.gmra.mxu0 %v1305
    %v2670 = vpop.f32.mrf.mxu0
    %v2671 = vadd.f32 %v2651, %v2670
    %2672 = vdwg.mxu0
    %2673 = vmatpush.msra.mxu0 %v1085
    %2674 = vmatpush.msra.mxu0 %v1084
    %2675 = vmatpush.msra.mxu0 %v1083
    %2676 = vmatpush.msra.mxu0 %v1082
    %2677 = vmatpush.msra.mxu0 %v1081
    %2678 = vmatpush.msra.mxu0 %v1080
    %2679 = vmatpush.msra.mxu0 %v1079
    %2680 = vmatpush.msra.mxu0 %v1078
    %2681 = vmatpush.msra.mxu0 %v1077
    %2682 = vmatpush.msra.mxu0 %v1076
    %2683 = vmatpush.msra.mxu0 %v1075
    %2684 = vmatpush.msra.mxu0 %v1074
    %2685 = vmatpush.msra.mxu0 %v1073
    %2686 = vmatpush.msra.mxu0 %v1072
    %2687 = vmatpush.msra.mxu0 %v1071
    %2688 = vmatpush.msra.mxu0 %v1070
    %2689 = vmatmul.f32.gmra.mxu0 %v1308
    %v2690 = vpop.f32.mrf.mxu0
    %v2691 = vadd.f32 %v2671, %v2690
    %2692 = vdwg.mxu0
    %2693 = vmatpush.msra.mxu0 %v1101
    %2694 = vmatpush.msra.mxu0 %v1100
    %2695 = vmatpush.msra.mxu0 %v1099
    %2696 = vmatpush.msra.mxu0 %v1098
    %2697 = vmatpush.msra.mxu0 %v1097
    %2698 = vmatpush.msra.mxu0 %v1096
    %2699 = vmatpush.msra.mxu0 %v1095
    %2700 = vmatpush.msra.mxu0 %v1094
    %2701 = vmatpush.msra.mxu0 %v1093
    %2702 = vmatpush.msra.mxu0 %v1092
    %2703 = vmatpush.msra.mxu0 %v1091
    %2704 = vmatpush.msra.mxu0 %v1090
    %2705 = vmatpush.msra.mxu0 %v1089
    %2706 = vmatpush.msra.mxu0 %v1088
    %2707 = vmatpush.msra.mxu0 %v1087
    %2708 = vmatpush.msra.mxu0 %v1086
    %2709 = vmatmul.f32.gmra.mxu0 %v1309
    %v2710 = vpop.f32.mrf.mxu0
    %v2711 = vadd.f32 %v2691, %v2710
    %2712 = vdwg.mxu0
    %2713 = vmatpush.msra.mxu0 %v1117
    %2714 = vmatpush.msra.mxu0 %v1116
    %2715 = vmatpush.msra.mxu0 %v1115
    %2716 = vmatpush.msra.mxu0 %v1114
    %2717 = vmatpush.msra.mxu0 %v1113
    %2718 = vmatpush.msra.mxu0 %v1112
    %2719 = vmatpush.msra.mxu0 %v1111
    %2720 = vmatpush.msra.mxu0 %v1110
    %2721 = vmatpush.msra.mxu0 %v1109
    %2722 = vmatpush.msra.mxu0 %v1108
    %2723 = vmatpush.msra.mxu0 %v1107
    %2724 = vmatpush.msra.mxu0 %v1106
    %2725 = vmatpush.msra.mxu0 %v1105
    %2726 = vmatpush.msra.mxu0 %v1104
    %2727 = vmatpush.msra.mxu0 %v1103
    %2728 = vmatpush.msra.mxu0 %v1102
    %2729 = vmatmul.f32.gmra.mxu0 %v1310
    %v2730 = vpop.f32.mrf.mxu0
    %v2731 = vadd.f32 %v2711, %v2730
    %2732 = vdwg.mxu0
    %2733 = vmatpush.msra.mxu0 %v1133
    %2734 = vmatpush.msra.mxu0 %v1132
    %2735 = vmatpush.msra.mxu0 %v1131
    %2736 = vmatpush.msra.mxu0 %v1130
    %2737 = vmatpush.msra.mxu0 %v1129
    %2738 = vmatpush.msra.mxu0 %v1128
    %2739 = vmatpush.msra.mxu0 %v1127
    %2740 = vmatpush.msra.mxu0 %v1126
    %2741 = vmatpush.msra.mxu0 %v1125
    %2742 = vmatpush.msra.mxu0 %v1124
    %2743 = vmatpush.msra.mxu0 %v1123
    %2744 = vmatpush.msra.mxu0 %v1122
    %2745 = vmatpush.msra.mxu0 %v1121
    %2746 = vmatpush.msra.mxu0 %v1120
    %2747 = vmatpush.msra.mxu0 %v1119
    %2748 = vmatpush.msra.mxu0 %v1118
    %2749 = vmatmul.f32.gmra.mxu0 %v1311
    %v2750 = vpop.f32.mrf.mxu0
    %v2751 = vadd.f32 %v2731, %v2750
    %2752 = vdwg.mxu0
    %2753 = vmatpush.msra.mxu0 %v1149
    %2754 = vmatpush.msra.mxu0 %v1148
    %2755 = vmatpush.msra.mxu0 %v1147
    %2756 = vmatpush.msra.mxu0 %v1146
    %2757 = vmatpush.msra.mxu0 %v1145
    %2758 = vmatpush.msra.mxu0 %v1144
    %2759 = vmatpush.msra.mxu0 %v1143
    %2760 = vmatpush.msra.mxu0 %v1142
    %2761 = vmatpush.msra.mxu0 %v1141
    %2762 = vmatpush.msra.mxu0 %v1140
    %2763 = vmatpush.msra.mxu0 %v1139
    %2764 = vmatpush.msra.mxu0 %v1138
    %2765 = vmatpush.msra.mxu0 %v1137
    %2766 = vmatpush.msra.mxu0 %v1136
    %2767 = vmatpush.msra.mxu0 %v1135
    %2768 = vmatpush.msra.mxu0 %v1134
    %2769 = vmatmul.f32.gmra.mxu0 %v1312
    %v2770 = vpop.f32.mrf.mxu0
    %v2771 = vadd.f32 %v2751, %v2770
    %2772 = vdwg.mxu0
    %2773 = vmatpush.msra.mxu0 %v1165
    %2774 = vmatpush.msra.mxu0 %v1164
    %2775 = vmatpush.msra.mxu0 %v1163
    %2776 = vmatpush.msra.mxu0 %v1162
    %2777 = vmatpush.msra.mxu0 %v1161
    %2778 = vmatpush.msra.mxu0 %v1160
    %2779 = vmatpush.msra.mxu0 %v1159
    %2780 = vmatpush.msra.mxu0 %v1158
    %2781 = vmatpush.msra.mxu0 %v1157
    %2782 = vmatpush.msra.mxu0 %v1156
    %2783 = vmatpush.msra.mxu0 %v1155
    %2784 = vmatpush.msra.mxu0 %v1154
    %2785 = vmatpush.msra.mxu0 %v1153
    %2786 = vmatpush.msra.mxu0 %v1152
    %2787 = vmatpush.msra.mxu0 %v1151
    %2788 = vmatpush.msra.mxu0 %v1150
    %2789 = vmatmul.f32.gmra.mxu0 %v1313
    %v2790 = vpop.f32.mrf.mxu0
    %v2791 = vadd.f32 %v2771, %v2790
    %2792 = vdwg.mxu0
    %2793 = vmatpush.msra.mxu0 %v1181
    %2794 = vmatpush.msra.mxu0 %v1180
    %2795 = vmatpush.msra.mxu0 %v1179
    %2796 = vmatpush.msra.mxu0 %v1178
    %2797 = vmatpush.msra.mxu0 %v1177
    %2798 = vmatpush.msra.mxu0 %v1176
    %2799 = vmatpush.msra.mxu0 %v1175
    %2800 = vmatpush.msra.mxu0 %v1174
    %2801 = vmatpush.msra.mxu0 %v1173
    %2802 = vmatpush.msra.mxu0 %v1172
    %2803 = vmatpush.msra.mxu0 %v1171
    %2804 = vmatpush.msra.mxu0 %v1170
    %2805 = vmatpush.msra.mxu0 %v1169
    %2806 = vmatpush.msra.mxu0 %v1168
    %2807 = vmatpush.msra.mxu0 %v1167
    %2808 = vmatpush.msra.mxu0 %v1166
    %2809 = vmatmul.f32.gmra.mxu0 %v1314
    %v2810 = vpop.f32.mrf.mxu0
    %v2811 = vadd.f32 %v2791, %v2810
    %2812 = vdwg.mxu0
    %2813 = vmatpush.msra.mxu0 %v1197
    %2814 = vmatpush.msra.mxu0 %v1196
    %2815 = vmatpush.msra.mxu0 %v1195
    %2816 = vmatpush.msra.mxu0 %v1194
    %2817 = vmatpush.msra.mxu0 %v1193
    %2818 = vmatpush.msra.mxu0 %v1192
    %2819 = vmatpush.msra.mxu0 %v1191
    %2820 = vmatpush.msra.mxu0 %v1190
    %2821 = vmatpush.msra.mxu0 %v1189
    %2822 = vmatpush.msra.mxu0 %v1188
    %2823 = vmatpush.msra.mxu0 %v1187
    %2824 = vmatpush.msra.mxu0 %v1186
    %2825 = vmatpush.msra.mxu0 %v1185
    %2826 = vmatpush.msra.mxu0 %v1184
    %2827 = vmatpush.msra.mxu0 %v1183
    %2828 = vmatpush.msra.mxu0 %v1182
    %2829 = vmatmul.f32.gmra.mxu0 %v1315
    %v2830 = vpop.f32.mrf.mxu0
    %v2831 = vadd.f32 %v2811, %v2830
    %2832 = vdwg.mxu0
    %2833 = vmatpush.msra.mxu0 0.0
    %2834 = vmatpush.msra.mxu0 0.0
    %2835 = vmatpush.msra.mxu0 0.0
    %2836 = vmatpush.msra.mxu0 0.0
    %2837 = vmatpush.msra.mxu0 0.0
    %2838 = vmatpush.msra.mxu0 0.0
    %2839 = vmatpush.msra.mxu0 0.0
    %2840 = vmatpush.msra.mxu0 0.0
    %2841 = vmatpush.msra.mxu0 0.0
    %2842 = vmatpush.msra.mxu0 0.0
    %2843 = vmatpush.msra.mxu0 0.0
    %2844 = vmatpush.msra.mxu0 0.0
    %2845 = vmatpush.msra.mxu0 %v1201
    %2846 = vmatpush.msra.mxu0 %v1200
    %2847 = vmatpush.msra.mxu0 %v1199
    %2848 = vmatpush.msra.mxu0 %v1198
    %2849 = vmatmul.f32.gmra.mxu0 %v1391
    %v2850 = vpop.f32.mrf.mxu0
    %v2851 = vadd.f32 %v2831, %v2850
    %2852 = vdwg.mxu0
    %v2853 = vmax.f32 %v2851, 0.0
    %v2854 = vld [vmem:[%s3] sm:$0xff]
    %v2855 = vld [vmem:[%s3 + $0x8] sm:$0xff]
    %v2856 = vld [vmem:[%s3 + $0x10] sm:$0xff]
    %v2857 = vld [vmem:[%s3 + $0x18] sm:$0xff]
    %v2858 = vld [vmem:[%s3 + $0x20] sm:$0xff]
    %v2859 = vld [vmem:[%s3 + $0x28] sm:$0xff]
    %v2860 = vld [vmem:[%s3 + $0x30] sm:$0xff]
    %v2861 = vld [vmem:[%s3 + $0x38] sm:$0xff]
    %v2862 = vld [vmem:[%s4] sm:$0x1]
    %v2864 = vperm.slane %v2862, 0
    %vm2866 = vcmask 523264
    %v2868 = vsel %vm2866, %v2853, 0
    %2870 = vmatpush.msra.mxu0 0.0
    %2871 = vmatpush.msra.mxu0 0.0
    %2872 = vmatpush.msra.mxu0 0.0
    %2873 = vmatpush.msra.mxu0 0.0
    %2874 = vmatpush.msra.mxu0 0.0
    %2875 = vmatpush.msra.mxu0 0.0
    %2876 = vmatpush.msra.mxu0 0.0
    %2877 = vmatpush.msra.mxu0 0.0
    %2878 = vmatpush.msra.mxu0 %v2861
    %2879 = vmatpush.msra.mxu0 %v2860
    %2880 = vmatpush.msra.mxu0 %v2859
    %2881 = vmatpush.msra.mxu0 %v2858
    %2882 = vmatpush.msra.mxu0 %v2857
    %2883 = vmatpush.msra.mxu0 %v2856
    %2884 = vmatpush.msra.mxu0 %v2855
    %2885 = vmatpush.msra.mxu0 %v2854
    %2886 = vmatmul.f32.gmra.mxu0 %v2868
    %v2887 = vpop.f32.mrf.mxu0
    %v2888 = vadd.f32 %v2864, %v2887
    %2889 = vdwg.mxu0
    %v2890 = vmax.f32 %v2888, 0.0
    %v2891 = vld [vmem:[%s5] sm:$0xff]
    %v2892 = vld [vmem:[%s5 + $0x8] sm:$0xff]
    %v2893 = vld [vmem:[%s6] sm:$0x1]
    %v2895 = vperm.slane %v2893, 0
    %vm2897 = vcmask 130048
    %v2899 = vsel %vm2897, %v2890, 0
    %2901 = vmatpush.msra.mxu0 0.0
    %2902 = vmatpush.msra.mxu0 0.0
    %2903 = vmatpush.msra.mxu0 0.0
    %2904 = vmatpush.msra.mxu0 0.0
    %2905 = vmatpush.msra.mxu0 0.0
    %2906 = vmatpush.msra.mxu0 0.0
    %2907 = vmatpush.msra.mxu0 0.0
    %2908 = vmatpush.msra.mxu0 0.0
    %2909 = vmatpush.msra.mxu0 0.0
    %2910 = vmatpush.msra.mxu0 0.0
    %2911 = vmatpush.msra.mxu0 0.0
    %2912 = vmatpush.msra.mxu0 0.0
    %2913 = vmatpush.msra.mxu0 0.0
    %2914 = vmatpush.msra.mxu0 0.0
    %2915 = vmatpush.msra.mxu0 %v2892
    %2916 = vmatpush.msra.mxu0 %v2891
    %2917 = vmatmul.f32.gmra.mxu0 %v2899
    %v2918 = vpop.f32.mrf.mxu0
    %v2919 = vadd.f32 %v2895, %v2918
    %2920 = vdwg.mxu0
    %vm2921 = vcmask 9216
    %2922 = vst.msk [vmem:[#allocation2] sm:$0x3] %vm2921, %v2919
    // Predicated region
    $region30: #{net_forward.5} parent=1 // pred_check
      _
    $region31: #{net_forward.5} parent=1 // pred_check_branch
      %2924 = sbr.rel (0) target = $region33
    $region32: #{net_forward.5} parent=1 // pred_region
      %2926 = vsyncadd [#allocation3], 0
      %s2928 = sshll.u32 [#allocation2], 4
      %s2929 = int_to_ptr.vmem [resolvable:$true] %s2928
      %s2930 = sshll.u32 %s7, 4
      %s2931 = int_to_ptr.hbm [resolvable:$true] %s2930
      %2933 = dma.vmem_to_hbm [thread:$0]  %s2929, 32, %s2931, [#allocation3]
    $region33: #{net_forward.5} parent=1 // pred_fallthru
      _
    // Predicated region
    $region34: #{net_forward.5} parent=1 // pred_check
      _
    $region35: #{net_forward.5} parent=1 // pred_check_branch
      %2935 = sbr.rel (0) target = $region37
    $region36: #{net_forward.5} parent=1 // pred_region
      %2937 = dma.done [#allocation3], 32
    $region37: #{net_forward.5} parent=1 // pred_fallthru
      _
    %2938 = vsyncpa [#allocation3], 1

</llo_original>
